<compile_context>
chip_gen: v7x
topology: tpu7x:2x2x1
jax: 0.10.0
libtpu: 0.0.40
codegen_flags: <defaults>
</compile_context>

<pallas_src>
import functools
import numpy as np

import jax
import jax.numpy as jnp
from jax.experimental import pallas as pl
from jax.experimental.pallas import tpu as pltpu

TASKS = ('seg', 'depth')
NUM_OUT = {'seg': 17, 'depth': 1}
C_STEM = 16    # stem channels   (scaled stand-in for resnet18's 64)
C_FEAT = 32    # backbone output (scaled stand-in for resnet18's 512)
C_ASPP = 16    # ASPP inner width (scaled stand-in for 256)
TM = 128       # matmul M tile


# ----------------------------------------------------------------------------
# Pallas kernels
# ----------------------------------------------------------------------------
def _mm_bias_act_kernel(a_ref, w_ref, b_ref, o_ref, *, relu):
    # (tm, K) bf16 @ (K, N) bf16 -> f32, + bias, optional ReLU, fused epilogue.
    y = jnp.dot(a_ref[0], w_ref[0], preferred_element_type=jnp.float32) + b_ref[0]
    if relu:
        y = jnp.maximum(y, 0.0)
    o_ref[0] = y


def _mm_bias_res_act_kernel(a_ref, w_ref, b_ref, r_ref, o_ref, *, relu):
    # Same as above with a fused residual add (BasicBlock skip connection).
    y = (jnp.dot(a_ref[0], w_ref[0], preferred_element_type=jnp.float32)
         + b_ref[0] + r_ref[0])
    if relu:
        y = jnp.maximum(y, 0.0)
    o_ref[0] = y


def matmul_bias_act(a, w, b, *, residual=None, relu=True):
    """Grouped (G,M,K)@(G,K,N) + bias [+ residual] [+ ReLU] in one pallas_call."""
    G, M, K = a.shape
    N = w.shape[-1]
    if M >= TM:
        tm = TM
        Mp = pl.cdiv(M, TM) * TM
        if Mp != M:
            a = jnp.pad(a, ((0, 0), (0, Mp - M), (0, 0)))
            if residual is not None:
                residual = jnp.pad(residual, ((0, 0), (0, Mp - M), (0, 0)))
    else:
        tm, Mp = M, M      # small M: single full-extent block, no padding

    in_specs = [pl.BlockSpec((1, tm, K), lambda g, m: (g, m, 0)),
                pl.BlockSpec((1, K, N), lambda g, m: (g, 0, 0)),
                pl.BlockSpec((1, 1, N), lambda g, m: (g, 0, 0))]
    operands = [a, w, b]
    if residual is None:
        kernel = functools.partial(_mm_bias_act_kernel, relu=relu)
    else:
        kernel = functools.partial(_mm_bias_res_act_kernel, relu=relu)
        in_specs.append(pl.BlockSpec((1, tm, N), lambda g, m: (g, m, 0)))
        operands.append(residual)

    out = pl.pallas_call(
        kernel,
        out_shape=jax.ShapeDtypeStruct((G, Mp, N), jnp.float32),
        grid=(G, Mp // tm),
        in_specs=in_specs,
        out_specs=pl.BlockSpec((1, tm, N), lambda g, m: (g, m, 0)),
        compiler_params=pltpu.CompilerParams(
            dimension_semantics=("parallel", "parallel")),
    )(*operands)
    return out[:, :M]


def _pool_conv_kernel(x_ref, w_ref, b_ref, o_ref):
    # Fused AdaptiveAvgPool2d(1) + 1x1 conv + folded-BN bias + ReLU.
    m = jnp.mean(x_ref[0], axis=1)                               # (N, Cin) f32
    y = jnp.dot(m.astype(jnp.bfloat16), w_ref[0],
                preferred_element_type=jnp.float32) + b_ref[0]
    o_ref[0] = jnp.maximum(y, 0.0)


def pool_branch(x, w, b):
    """ASPP pooling branch: GAP -> 1x1 conv -> BN -> ReLU, one kernel, grouped."""
    G, N, H, W, C = x.shape
    Ca = w.shape[-1]
    x3 = x.reshape(G, N, H * W, C)
    w2 = w.reshape(G, C, Ca)
    out = pl.pallas_call(
        _pool_conv_kernel,
        out_shape=jax.ShapeDtypeStruct((G, N, Ca), jnp.float32),
        grid=(G,),
        in_specs=[pl.BlockSpec((1, N, H * W, C), lambda g: (g, 0, 0, 0)),
                  pl.BlockSpec((1, C, Ca), lambda g: (g, 0, 0)),
                  pl.BlockSpec((1, 1, Ca), lambda g: (g, 0, 0))],
        out_specs=pl.BlockSpec((1, N, Ca), lambda g: (g, 0, 0)),
        compiler_params=pltpu.CompilerParams(dimension_semantics=("parallel",)),
    )(x3, w2, b)
    return out.reshape(G, N, 1, 1, Ca)


def _blend_resize_kernel(a_ref, m_ref, ys_ref, yt_ref, o_ref):
    # out = InterpMatrix @ (alpha0*y_s + alpha1*y_t), channels stay lane-resident.
    blended = a_ref[0] * ys_ref[...] + a_ref[1] * yt_ref[...]
    o_ref[...] = jnp.dot(m_ref[...], blended, preferred_element_type=jnp.float32)


def blend_resize(ys, yt, alpha, m_full, out_h, out_w):
    """Fused softmax(alpha) blend + bilinear(align_corners=True) upsample."""
    N, h, w, C = ys.shape
    P = N * out_h * out_w
    Q = N * h * w
    ys2 = ys.reshape(Q, C)
    yt2 = yt.reshape(Q, C)
    out = pl.pallas_call(
        _blend_resize_kernel,
        out_shape=jax.ShapeDtypeStruct((P, C), jnp.float32),
        grid=(1,),
        in_specs=[pl.BlockSpec(memory_space=pltpu.MemorySpace.SMEM),
                  pl.BlockSpec((P, Q), lambda i: (0, 0)),
                  pl.BlockSpec((Q, C), lambda i: (0, 0)),
                  pl.BlockSpec((Q, C), lambda i: (0, 0))],
        out_specs=pl.BlockSpec((P, C), lambda i: (0, 0)),
    )(alpha, m_full, ys2, yt2)
    return out.reshape(N, out_h, out_w, C)


# ----------------------------------------------------------------------------
# Conv built on the grouped fused matmul kernel (im2col is glue)
# ----------------------------------------------------------------------------
def im2col(x, kh, kw, *, stride=1, dilation=1, padding=0):
    """(G, N, H, W, C) -> (G, N*Ho*Wo, kh*kw*C) bf16 patch matrix."""
    G, N, H, W, C = x.shape
    if kh == 1 and kw == 1 and stride == 1 and padding == 0:
        return x.reshape(G, N * H * W, C).astype(jnp.bfloat16), H, W
    xp = jnp.pad(x, ((0, 0), (0, 0), (padding, padding), (padding, padding), (0, 0)))
    Hp, Wp = H + 2 * padding, W + 2 * padding
    Ho = (Hp - dilation * (kh - 1) - 1) // stride + 1
    Wo = (Wp - dilation * (kw - 1) - 1) // stride + 1
    cols = []
    for i in range(kh):
        for j in range(kw):
            cols.append(
                xp[:, :, i * dilation: i * dilation + stride * (Ho - 1) + 1: stride,
                      j * dilation: j * dilation + stride * (Wo - 1) + 1: stride, :])
    a = jnp.concatenate(cols, axis=-1).reshape(G, N * Ho * Wo, kh * kw * C)
    # TODO(synk): im2col could be moved inside the kernel (grid axis over taps +
    # VMEM accumulator) to avoid the kh*kw activation copy at real resolutions.
    return a.astype(jnp.bfloat16), Ho, Wo


def conv_bn_act(x, w, b, *, stride=1, dilation=1, padding=0, relu=True, residual=None):
    """Grouped NHWC conv, BN pre-folded into w, bias/residual/ReLU fused in kernel."""
    G, N, H, W, Cin = x.shape
    kh, kw, Cout = w.shape[1], w.shape[2], w.shape[-1]
    a, Ho, Wo = im2col(x, kh, kw, stride=stride, dilation=dilation, padding=padding)
    w2 = w.reshape(G, kh * kw * Cin, Cout)
    r2 = None if residual is None else residual.reshape(G, N * Ho * Wo, Cout)
    y = matmul_bias_act(a, w2, b, residual=r2, relu=relu)
    return y.reshape(G, N, Ho, Wo, Cout)


def _interp_matrix(out_size, in_size):
    A = np.zeros((out_size, in_size), np.float32)
    if in_size == 1:
        A[:, 0] = 1.0
        return A
    for o in range(out_size):
        src = (o * (in_size - 1) / (out_size - 1)) if out_size > 1 else 0.0
        lo = min(int(np.floor(src)), in_size - 2)
        frac = src - lo
        A[o, lo] += 1.0 - frac
        A[o, lo + 1] += frac
    return A


def _interp_kron(out_h, out_w, in_h, in_w, n_batch):
    """Block-diagonal combined interp matrix for align_corners=True bilinear."""
    m = np.kron(_interp_matrix(out_h, in_h), _interp_matrix(out_w, in_w))
    return jnp.asarray(np.kron(np.eye(n_batch, dtype=np.float32), m))


# ----------------------------------------------------------------------------
# Parameters (deterministic synthetic init; BN scale folded offline, bf16 weights)
# ----------------------------------------------------------------------------
def _conv_bn_init(key, kh, kw, cin, cout):
    k1, k2, k3 = jax.random.split(key, 3)
    w = jax.random.normal(k1, (kh, kw, cin, cout), jnp.float32) / np.sqrt(kh * kw * cin)
    scale = 1.0 + 0.1 * jax.random.normal(k2, (cout,), jnp.float32)
    shift = 0.1 * jax.random.normal(k3, (cout,), jnp.float32)
    # eval-mode BatchNorm folded: scale -> weights (offline), shift stays as bias.
    return (w * scale).astype(jnp.bfloat16), shift.reshape(1, cout)


def init_backbone(key):
    ks = jax.random.split(key, 6)
    return {
        'conv1': _conv_bn_init(ks[0], 3, 3, 3, C_STEM),
        'b1_dw': _conv_bn_init(ks[1], 1, 1, C_STEM, C_FEAT),
        'b1_c1': _conv_bn_init(ks[2], 3, 3, C_STEM, C_FEAT),
        'b1_c2': _conv_bn_init(ks[3], 3, 3, C_FEAT, C_FEAT),
        'b2_c1': _conv_bn_init(ks[4], 3, 3, C_FEAT, C_FEAT),
        'b2_c2': _conv_bn_init(ks[5], 3, 3, C_FEAT, C_FEAT),
    }


def init_decoder_trunk(key):
    ks = jax.random.split(key, 7)
    return {
        'aspp0': _conv_bn_init(ks[0], 1, 1, C_FEAT, C_ASPP),
        'aspp1': _conv_bn_init(ks[1], 3, 3, C_FEAT, C_ASPP),
        'aspp2': _conv_bn_init(ks[2], 3, 3, C_FEAT, C_ASPP),
        'aspp3': _conv_bn_init(ks[3], 3, 3, C_FEAT, C_ASPP),
        'pool':  _conv_bn_init(ks[4], 1, 1, C_FEAT, C_ASPP),
        'proj':  _conv_bn_init(ks[5], 1, 1, 5 * C_ASPP, C_ASPP),
        'head':  _conv_bn_init(ks[6], 3, 3, C_ASPP, C_ASPP),
    }


def init_classifier(key, out_ch):
    k1, k2 = jax.random.split(key)
    w = (jax.random.normal(k1, (1, 1, C_ASPP, out_ch), jnp.float32)
         / np.sqrt(C_ASPP)).astype(jnp.bfloat16)
    b = 0.1 * jax.random.normal(k2, (1, out_ch), jnp.float32)
    return w, b


def init_params(key):
    ks = jax.random.split(key, 11)
    # Backbones grouped along a leading G=3 axis: [shared, task0, task1].
    backbones = jax.tree_util.tree_map(
        lambda *xs: jnp.stack(xs, 0), *[init_backbone(ks[i]) for i in range(3)])
    # Decoder trunks grouped along G=4: [s_seg, s_depth, t_seg, t_depth].
    decoders = jax.tree_util.tree_map(
        lambda *xs: jnp.stack(xs, 0), *[init_decoder_trunk(ks[3 + i]) for i in range(4)])
    # Classifiers grouped per task as [s-branch, t-branch] (out channels differ per task).
    cls = [init_classifier(ks[7 + i], oc)
           for i, oc in enumerate([NUM_OUT['seg'], NUM_OUT['depth'],
                                   NUM_OUT['seg'], NUM_OUT['depth']])]
    cls_w = [jnp.stack([cls[i][0], cls[2 + i][0]], 0) for i in range(len(TASKS))]
    cls_b = [jnp.stack([cls[i][1], cls[2 + i][1]], 0) for i in range(len(TASKS))]
    alpha = jnp.full((len(TASKS), 2), 0.5, jnp.float32)   # v1: Parameter(T,2).fill_(0.5)
    return {'backbones': backbones, 'decoders': decoders,
            'cls_w': cls_w, 'cls_b': cls_b, 'alpha': alpha}


# ----------------------------------------------------------------------------
# Model forward (mirrors SMTLmodel_new.forward, version='v1')
# ----------------------------------------------------------------------------
def backbones_forward(x, P):
    """All 3 dilated-resnet backbones (shared + 2 per-task) in grouped kernels."""
    G = P['conv1'][0].shape[0]
    xg = jnp.broadcast_to(x[None], (G,) + x.shape)
    # stem: 3x3 stride-2 conv + BN + ReLU
    y = conv_bn_act(xg, *P['conv1'], stride=2, padding=1)
    # BasicBlock (channel change, 1x1 downsample on the skip)
    idn = conv_bn_act(y, *P['b1_dw'], relu=False)
    z = conv_bn_act(y, *P['b1_c1'], padding=1)
    y = conv_bn_act(z, *P['b1_c2'], padding=1, residual=idn)       # add + ReLU fused
    # dilated BasicBlock (ResnetDilated: stride removed, dilation=2)
    z = conv_bn_act(y, *P['b2_c1'], dilation=2, padding=2)
    y = conv_bn_act(z, *P['b2_c2'], dilation=2, padding=2, residual=y)
    return y                                                        # (3, N, H/2, W/2, C_FEAT)


def decoders_forward(x, D):
    """All 4 DeepLabHead trunks (decoders_s + decoders_t) in grouped kernels."""
    G, N, H, W, _ = x.shape
    b0 = conv_bn_act(x, *D['aspp0'])
    b1 = conv_bn_act(x, *D['aspp1'], dilation=2, padding=2)
    b2 = conv_bn_act(x, *D['aspp2'], dilation=4, padding=4)
    b3 = conv_bn_act(x, *D['aspp3'], dilation=6, padding=6)
    bp = pool_branch(x, *D['pool'])                    # GAP + 1x1 conv + BN + ReLU fused
    bp = jnp.broadcast_to(bp, (G, N, H, W, bp.shape[-1]))   # upsample of 1x1 == broadcast
    cat = jnp.concatenate([b0, b1, b2, b3, bp], axis=-1)
    y = conv_bn_act(cat, *D['proj'])
    # TODO(synk): torchvision ASPP Dropout(0.5) omitted (deterministic eval-mode inference).
    y = conv_bn_act(y, *D['head'], padding=1)
    return y                                            # (4, N, H, W, C_ASPP)


def smtl_forward(x, params):
    N, H, W, _ = x.shape
    feats = backbones_forward(x, params['backbones'])             # (3, N, h, w, C_FEAT)
    x_s, x_t0, x_t1 = feats[0], feats[1], feats[2]
    # decoder group order: [s_seg, s_depth, t_seg, t_depth]
    dec_in = jnp.stack([x_s, x_s, x_t0, x_t1], axis=0)
    feat = decoders_forward(dec_in, params['decoders'])           # (4, N, h, w, C_ASPP)
    h, w = feat.shape[2], feat.shape[3]
    m_full = _interp_kron(H, W, h, w, N)                          # constant interp matrix

    out = {}
    for i, t in enumerate(TASKS):
        pair = jnp.stack([feat[i], feat[2 + i]], axis=0)          # (2, N, h, w, C_ASPP)
        # classifier 1x1 convs for the s- and t-branch of this task, bias fused
        logits = conv_bn_act(pair, params['cls_w'][i], params['cls_b'][i], relu=False)
        # v1: temp_alpha = softmax(alpha[i]); blend commutes with the (linear)
        # bilinear interpolation, so blend + upsample run as one fused kernel.
        alpha = jax.nn.softmax(params['alpha'][i])
        out[t] = blend_resize(logits[0], logits[1], alpha, m_full, H, W)
    return out


# ----------------------------------------------------------------------------
if __name__ == "__main__":
    key = jax.random.PRNGKey(0)
    k_x, k_p = jax.random.split(key)

    # PyTorch-convention input (NCHW): batch=2, 3 channels, 16x16.
    x_nchw = jax.random.normal(k_x, (2, 3, 16, 16), jnp.float32)
    x = jnp.transpose(x_nchw, (0, 2, 3, 1))        # -> NHWC for the kernels

    params = init_params(k_p)
    fwd = jax.jit(smtl_forward)
    out = jax.block_until_ready(fwd(x, params))

    assert out['seg'].shape == (2, 16, 16, 17)     # NHWC (== NCHW (2,17,16,16) transposed)
    assert out['depth'].shape == (2, 16, 16, 1)
    assert all(bool(jnp.all(jnp.isfinite(v))) for v in out.values())
    print("KERNEL_OK")
</pallas_src>

<mosaic_0001>
module attributes {stable_mosaic.version = 11 : i64} {
  func.func @_mm_bias_act_kernel(%arg0: i32, %arg1: i32, %arg2: memref<1x128x27xbf16, #tpu.memory_space<vmem>>, %arg3: memref<1x27x16xbf16, #tpu.memory_space<vmem>>, %arg4: memref<1x1x16xf32, #tpu.memory_space<vmem>>, %arg5: memref<1x128x16xf32, #tpu.memory_space<vmem>>) attributes {dimension_semantics = [#tpu.dimension_semantics<parallel>, #tpu.dimension_semantics<parallel>], iteration_bounds = array<i64: 3, 1>, scalar_prefetch = 0 : i64, scratch_operands = 0 : i64, tpu.core_type = #tpu.core_type<tc>, window_params = [{transform_indices = @transform_0, window_bounds = array<i64: 1, 128, 27>}, {transform_indices = @transform_1, window_bounds = array<i64: 1, 27, 16>}, {transform_indices = @transform_2, window_bounds = array<i64: 1, 1, 16>}, {transform_indices = @transform_3, window_bounds = array<i64: 1, 128, 16>}]} {
    %c0 = arith.constant 0 : index
    %c0_0 = arith.constant 0 : index
    %c0_1 = arith.constant 0 : index
    %0 = vector.load %arg2[%c0, %c0_0, %c0_1] : memref<1x128x27xbf16, #tpu.memory_space<vmem>>, vector<1x128x27xbf16>
    %1 = vector.shape_cast %0 : vector<1x128x27xbf16> to vector<128x27xbf16>
    %c0_2 = arith.constant 0 : index
    %c0_3 = arith.constant 0 : index
    %c0_4 = arith.constant 0 : index
    %2 = vector.load %arg3[%c0_2, %c0_3, %c0_4] : memref<1x27x16xbf16, #tpu.memory_space<vmem>>, vector<1x27x16xbf16>
    %3 = vector.shape_cast %2 : vector<1x27x16xbf16> to vector<27x16xbf16>
    %cst = arith.constant dense<0.000000e+00> : vector<128x16xf32>
    %4 = tpu.matmul %1, %3, %cst {dimension_numbers = #tpu.dot_dimension_numbers<[1], [0], [0], [1], [0, 0, 1, 1], [], []>} : vector<128x27xbf16>, vector<27x16xbf16>, vector<128x16xf32> -> vector<128x16xf32>
    %c0_5 = arith.constant 0 : index
    %c0_6 = arith.constant 0 : index
    %c0_7 = arith.constant 0 : index
    %5 = vector.load %arg4[%c0_5, %c0_6, %c0_7] : memref<1x1x16xf32, #tpu.memory_space<vmem>>, vector<1x1x16xf32>
    %6 = vector.shape_cast %5 : vector<1x1x16xf32> to vector<1x16xf32>
    %7 = vector.broadcast %6 : vector<1x16xf32> to vector<128x16xf32>
    %8 = arith.addf %4, %7 : vector<128x16xf32>
    %cst_8 = arith.constant 0.000000e+00 : f32
    %9 = vector.broadcast %cst_8 : f32 to vector<128x16xf32>
    %10 = arith.maximumf %8, %9 : vector<128x16xf32>
    %c0_9 = arith.constant 0 : index
    %c0_10 = arith.constant 0 : index
    %c0_11 = arith.constant 0 : index
    %11 = vector.load %arg5[%c0_9, %c0_10, %c0_11] : memref<1x128x16xf32, #tpu.memory_space<vmem>>, vector<1x128x16xf32>
    %12 = vector.shape_cast %11 : vector<1x128x16xf32> to vector<128x16xf32>
    %13 = vector.shape_cast %10 : vector<128x16xf32> to vector<1x128x16xf32>
    tpu.vector_store %arg5[%c0_9, %c0_10, %c0_11], %13 {strides = array<i32>} : memref<1x128x16xf32, #tpu.memory_space<vmem>>, vector<1x128x16xf32>,
    return
  }
  func.func @transform_0(%arg0: i32, %arg1: i32) -> (i32, i32, i32) {
    %c0_i32 = arith.constant 0 : i32
    %c0_i32_0 = arith.constant 0 : i32
    return %arg0, %arg1, %c0_i32 : i32, i32, i32
  }
  func.func @transform_1(%arg0: i32, %arg1: i32) -> (i32, i32, i32) {
    %c0_i32 = arith.constant 0 : i32
    %c0_i32_0 = arith.constant 0 : i32
    %c0_i32_1 = arith.constant 0 : i32
    return %arg0, %c0_i32, %c0_i32_0 : i32, i32, i32
  }
  func.func @transform_2(%arg0: i32, %arg1: i32) -> (i32, i32, i32) {
    %c0_i32 = arith.constant 0 : i32
    %c0_i32_0 = arith.constant 0 : i32
    %c0_i32_1 = arith.constant 0 : i32
    return %arg0, %c0_i32, %c0_i32_0 : i32, i32, i32
  }
  func.func @transform_3(%arg0: i32, %arg1: i32) -> (i32, i32, i32) {
    %c0_i32 = arith.constant 0 : i32
    %c0_i32_0 = arith.constant 0 : i32
    return %arg0, %arg1, %c0_i32 : i32, i32, i32
  }
}

module attributes {stable_mosaic.version = 11 : i64} {
  func.func @_mm_bias_act_kernel(%arg0: i32, %arg1: i32, %arg2: memref<1x128x144xbf16, #tpu.memory_space<vmem>>, %arg3: memref<1x144x32xbf16, #tpu.memory_space<vmem>>, %arg4: memref<1x1x32xf32, #tpu.memory_space<vmem>>, %arg5: memref<1x128x32xf32, #tpu.memory_space<vmem>>) attributes {dimension_semantics = [#tpu.dimension_semantics<parallel>, #tpu.dimension_semantics<parallel>], iteration_bounds = array<i64: 3, 1>, scalar_prefetch = 0 : i64, scratch_operands = 0 : i64, tpu.core_type = #tpu.core_type<tc>, window_params = [{transform_indices = @transform_0, window_bounds = array<i64: 1, 128, 144>}, {transform_indices = @transform_1, window_bounds = array<i64: 1, 144, 32>}, {transform_indices = @transform_2, window_bounds = array<i64: 1, 1, 32>}, {transform_indices = @transform_3, window_bounds = array<i64: 1, 128, 32>}]} {
    %c0 = arith.constant 0 : index
    %c0_0 = arith.constant 0 : index
    %c0_1 = arith.constant 0 : index
    %0 = vector.load %arg2[%c0, %c0_0, %c0_1] : memref<1x128x144xbf16, #tpu.memory_space<vmem>>, vector<1x128x144xbf16>
    %1 = vector.shape_cast %0 : vector<1x128x144xbf16> to vector<128x144xbf16>
    %c0_2 = arith.constant 0 : index
    %c0_3 = arith.constant 0 : index
    %c0_4 = arith.constant 0 : index
    %2 = vector.load %arg3[%c0_2, %c0_3, %c0_4] : memref<1x144x32xbf16, #tpu.memory_space<vmem>>, vector<1x144x32xbf16>
    %3 = vector.shape_cast %2 : vector<1x144x32xbf16> to vector<144x32xbf16>
    %cst = arith.constant dense<0.000000e+00> : vector<128x32xf32>
    %4 = tpu.matmul %1, %3, %cst {dimension_numbers = #tpu.dot_dimension_numbers<[1], [0], [0], [1], [0, 0, 1, 1], [], []>} : vector<128x144xbf16>, vector<144x32xbf16>, vector<128x32xf32> -> vector<128x32xf32>
    %c0_5 = arith.constant 0 : index
    %c0_6 = arith.constant 0 : index
    %c0_7 = arith.constant 0 : index
    %5 = vector.load %arg4[%c0_5, %c0_6, %c0_7] : memref<1x1x32xf32, #tpu.memory_space<vmem>>, vector<1x1x32xf32>
    %6 = vector.shape_cast %5 : vector<1x1x32xf32> to vector<1x32xf32>
    %7 = vector.broadcast %6 : vector<1x32xf32> to vector<128x32xf32>
    %8 = arith.addf %4, %7 : vector<128x32xf32>
    %cst_8 = arith.constant 0.000000e+00 : f32
    %9 = vector.broadcast %cst_8 : f32 to vector<128x32xf32>
    %10 = arith.maximumf %8, %9 : vector<128x32xf32>
    %c0_9 = arith.constant 0 : index
    %c0_10 = arith.constant 0 : index
    %c0_11 = arith.constant 0 : index
    %11 = vector.load %arg5[%c0_9, %c0_10, %c0_11] : memref<1x128x32xf32, #tpu.memory_space<vmem>>, vector<1x128x32xf32>
    %12 = vector.shape_cast %11 : vector<1x128x32xf32> to vector<128x32xf32>
    %13 = vector.shape_cast %10 : vector<128x32xf32> to vector<1x128x32xf32>
    tpu.vector_store %arg5[%c0_9, %c0_10, %c0_11], %13 {strides = array<i32>} : memref<1x128x32xf32, #tpu.memory_space<vmem>>, vector<1x128x32xf32>,
    return
  }
  func.func @transform_0(%arg0: i32, %arg1: i32) -> (i32, i32, i32) {
    %c0_i32 = arith.constant 0 : i32
    %c0_i32_0 = arith.constant 0 : i32
    return %arg0, %arg1, %c0_i32 : i32, i32, i32
  }
  func.func @transform_1(%arg0: i32, %arg1: i32) -> (i32, i32, i32) {
    %c0_i32 = arith.constant 0 : i32
    %c0_i32_0 = arith.constant 0 : i32
    %c0_i32_1 = arith.constant 0 : i32
    return %arg0, %c0_i32, %c0_i32_0 : i32, i32, i32
  }
  func.func @transform_2(%arg0: i32, %arg1: i32) -> (i32, i32, i32) {
    %c0_i32 = arith.constant 0 : i32
    %c0_i32_0 = arith.constant 0 : i32
    %c0_i32_1 = arith.constant 0 : i32
    return %arg0, %c0_i32, %c0_i32_0 : i32, i32, i32
  }
  func.func @transform_3(%arg0: i32, %arg1: i32) -> (i32, i32, i32) {
    %c0_i32 = arith.constant 0 : i32
    %c0_i32_0 = arith.constant 0 : i32
    return %arg0, %arg1, %c0_i32 : i32, i32, i32
  }
}

module attributes {stable_mosaic.version = 11 : i64} {
  func.func @_mm_bias_act_kernel(%arg0: i32, %arg1: i32, %arg2: memref<1x128x16xbf16, #tpu.memory_space<vmem>>, %arg3: memref<1x16x32xbf16, #tpu.memory_space<vmem>>, %arg4: memref<1x1x32xf32, #tpu.memory_space<vmem>>, %arg5: memref<1x128x32xf32, #tpu.memory_space<vmem>>) attributes {dimension_semantics = [#tpu.dimension_semantics<parallel>, #tpu.dimension_semantics<parallel>], iteration_bounds = array<i64: 3, 1>, scalar_prefetch = 0 : i64, scratch_operands = 0 : i64, tpu.core_type = #tpu.core_type<tc>, window_params = [{transform_indices = @transform_0, window_bounds = array<i64: 1, 128, 16>}, {transform_indices = @transform_1, window_bounds = array<i64: 1, 16, 32>}, {transform_indices = @transform_2, window_bounds = array<i64: 1, 1, 32>}, {transform_indices = @transform_3, window_bounds = array<i64: 1, 128, 32>}]} {
    %c0 = arith.constant 0 : index
    %c0_0 = arith.constant 0 : index
    %c0_1 = arith.constant 0 : index
    %0 = vector.load %arg2[%c0, %c0_0, %c0_1] : memref<1x128x16xbf16, #tpu.memory_space<vmem>>, vector<1x128x16xbf16>
    %1 = vector.shape_cast %0 : vector<1x128x16xbf16> to vector<128x16xbf16>
    %c0_2 = arith.constant 0 : index
    %c0_3 = arith.constant 0 : index
    %c0_4 = arith.constant 0 : index
    %2 = vector.load %arg3[%c0_2, %c0_3, %c0_4] : memref<1x16x32xbf16, #tpu.memory_space<vmem>>, vector<1x16x32xbf16>
    %3 = vector.shape_cast %2 : vector<1x16x32xbf16> to vector<16x32xbf16>
    %cst = arith.constant dense<0.000000e+00> : vector<128x32xf32>
    %4 = tpu.matmul %1, %3, %cst {dimension_numbers = #tpu.dot_dimension_numbers<[1], [0], [0], [1], [0, 0, 1, 1], [], []>} : vector<128x16xbf16>, vector<16x32xbf16>, vector<128x32xf32> -> vector<128x32xf32>
    %c0_5 = arith.constant 0 : index
    %c0_6 = arith.constant 0 : index
    %c0_7 = arith.constant 0 : index
    %5 = vector.load %arg4[%c0_5, %c0_6, %c0_7] : memref<1x1x32xf32, #tpu.memory_space<vmem>>, vector<1x1x32xf32>
    %6 = vector.shape_cast %5 : vector<1x1x32xf32> to vector<1x32xf32>
    %7 = vector.broadcast %6 : vector<1x32xf32> to vector<128x32xf32>
    %8 = arith.addf %4, %7 : vector<128x32xf32>
    %c0_8 = arith.constant 0 : index
    %c0_9 = arith.constant 0 : index
    %c0_10 = arith.constant 0 : index
    %9 = vector.load %arg5[%c0_8, %c0_9, %c0_10] : memref<1x128x32xf32, #tpu.memory_space<vmem>>, vector<1x128x32xf32>
    %10 = vector.shape_cast %9 : vector<1x128x32xf32> to vector<128x32xf32>
    %11 = vector.shape_cast %8 : vector<128x32xf32> to vector<1x128x32xf32>
    tpu.vector_store %arg5[%c0_8, %c0_9, %c0_10], %11 {strides = array<i32>} : memref<1x128x32xf32, #tpu.memory_space<vmem>>, vector<1x128x32xf32>,
    return
  }
  func.func @transform_0(%arg0: i32, %arg1: i32) -> (i32, i32, i32) {
    %c0_i32 = arith.constant 0 : i32
    %c0_i32_0 = arith.constant 0 : i32
    return %arg0, %arg1, %c0_i32 : i32, i32, i32
  }
  func.func @transform_1(%arg0: i32, %arg1: i32) -> (i32, i32, i32) {
    %c0_i32 = arith.constant 0 : i32
    %c0_i32_0 = arith.constant 0 : i32
    %c0_i32_1 = arith.constant 0 : i32
    return %arg0, %c0_i32, %c0_i32_0 : i32, i32, i32
  }
  func.func @transform_2(%arg0: i32, %arg1: i32) -> (i32, i32, i32) {
    %c0_i32 = arith.constant 0 : i32
    %c0_i32_0 = arith.constant 0 : i32
    %c0_i32_1 = arith.constant 0 : i32
    return %arg0, %c0_i32, %c0_i32_0 : i32, i32, i32
  }
  func.func @transform_3(%arg0: i32, %arg1: i32) -> (i32, i32, i32) {
    %c0_i32 = arith.constant 0 : i32
    %c0_i32_0 = arith.constant 0 : i32
    return %arg0, %arg1, %c0_i32 : i32, i32, i32
  }
}

module attributes {stable_mosaic.version = 11 : i64} {
  func.func @_mm_bias_res_act_kernel(%arg0: i32, %arg1: i32, %arg2: memref<1x128x288xbf16, #tpu.memory_space<vmem>>, %arg3: memref<1x288x32xbf16, #tpu.memory_space<vmem>>, %arg4: memref<1x1x32xf32, #tpu.memory_space<vmem>>, %arg5: memref<1x128x32xf32, #tpu.memory_space<vmem>>, %arg6: memref<1x128x32xf32, #tpu.memory_space<vmem>>) attributes {dimension_semantics = [#tpu.dimension_semantics<parallel>, #tpu.dimension_semantics<parallel>], iteration_bounds = array<i64: 3, 1>, scalar_prefetch = 0 : i64, scratch_operands = 0 : i64, tpu.core_type = #tpu.core_type<tc>, window_params = [{transform_indices = @transform_0, window_bounds = array<i64: 1, 128, 288>}, {transform_indices = @transform_1, window_bounds = array<i64: 1, 288, 32>}, {transform_indices = @transform_2, window_bounds = array<i64: 1, 1, 32>}, {transform_indices = @transform_3, window_bounds = array<i64: 1, 128, 32>}, {transform_indices = @transform_4, window_bounds = array<i64: 1, 128, 32>}]} {
    %c0 = arith.constant 0 : index
    %c0_0 = arith.constant 0 : index
    %c0_1 = arith.constant 0 : index
    %0 = vector.load %arg2[%c0, %c0_0, %c0_1] : memref<1x128x288xbf16, #tpu.memory_space<vmem>>, vector<1x128x288xbf16>
    %1 = vector.shape_cast %0 : vector<1x128x288xbf16> to vector<128x288xbf16>
    %c0_2 = arith.constant 0 : index
    %c0_3 = arith.constant 0 : index
    %c0_4 = arith.constant 0 : index
    %2 = vector.load %arg3[%c0_2, %c0_3, %c0_4] : memref<1x288x32xbf16, #tpu.memory_space<vmem>>, vector<1x288x32xbf16>
    %3 = vector.shape_cast %2 : vector<1x288x32xbf16> to vector<288x32xbf16>
    %cst = arith.constant dense<0.000000e+00> : vector<128x32xf32>
    %4 = tpu.matmul %1, %3, %cst {dimension_numbers = #tpu.dot_dimension_numbers<[1], [0], [0], [1], [0, 0, 1, 1], [], []>} : vector<128x288xbf16>, vector<288x32xbf16>, vector<128x32xf32> -> vector<128x32xf32>
    %c0_5 = arith.constant 0 : index
    %c0_6 = arith.constant 0 : index
    %c0_7 = arith.constant 0 : index
    %5 = vector.load %arg4[%c0_5, %c0_6, %c0_7] : memref<1x1x32xf32, #tpu.memory_space<vmem>>, vector<1x1x32xf32>
    %6 = vector.shape_cast %5 : vector<1x1x32xf32> to vector<1x32xf32>
    %7 = vector.broadcast %6 : vector<1x32xf32> to vector<128x32xf32>
    %8 = arith.addf %4, %7 : vector<128x32xf32>
    %c0_8 = arith.constant 0 : index
    %c0_9 = arith.constant 0 : index
    %c0_10 = arith.constant 0 : index
    %9 = vector.load %arg5[%c0_8, %c0_9, %c0_10] : memref<1x128x32xf32, #tpu.memory_space<vmem>>, vector<1x128x32xf32>
    %10 = vector.shape_cast %9 : vector<1x128x32xf32> to vector<128x32xf32>
    %11 = arith.addf %8, %10 : vector<128x32xf32>
    %cst_11 = arith.constant 0.000000e+00 : f32
    %12 = vector.broadcast %cst_11 : f32 to vector<128x32xf32>
    %13 = arith.maximumf %11, %12 : vector<128x32xf32>
    %c0_12 = arith.constant 0 : index
    %c0_13 = arith.constant 0 : index
    %c0_14 = arith.constant 0 : index
    %14 = vector.load %arg6[%c0_12, %c0_13, %c0_14] : memref<1x128x32xf32, #tpu.memory_space<vmem>>, vector<1x128x32xf32>
    %15 = vector.shape_cast %14 : vector<1x128x32xf32> to vector<128x32xf32>
    %16 = vector.shape_cast %13 : vector<128x32xf32> to vector<1x128x32xf32>
    tpu.vector_store %arg6[%c0_12, %c0_13, %c0_14], %16 {strides = array<i32>} : memref<1x128x32xf32, #tpu.memory_space<vmem>>, vector<1x128x32xf32>,
    return
  }
  func.func @transform_0(%arg0: i32, %arg1: i32) -> (i32, i32, i32) {
    %c0_i32 = arith.constant 0 : i32
    %c0_i32_0 = arith.constant 0 : i32
    return %arg0, %arg1, %c0_i32 : i32, i32, i32
  }
  func.func @transform_1(%arg0: i32, %arg1: i32) -> (i32, i32, i32) {
    %c0_i32 = arith.constant 0 : i32
    %c0_i32_0 = arith.constant 0 : i32
    %c0_i32_1 = arith.constant 0 : i32
    return %arg0, %c0_i32, %c0_i32_0 : i32, i32, i32
  }
  func.func @transform_2(%arg0: i32, %arg1: i32) -> (i32, i32, i32) {
    %c0_i32 = arith.constant 0 : i32
    %c0_i32_0 = arith.constant 0 : i32
    %c0_i32_1 = arith.constant 0 : i32
    return %arg0, %c0_i32, %c0_i32_0 : i32, i32, i32
  }
  func.func @transform_3(%arg0: i32, %arg1: i32) -> (i32, i32, i32) {
    %c0_i32 = arith.constant 0 : i32
    %c0_i32_0 = arith.constant 0 : i32
    return %arg0, %arg1, %c0_i32 : i32, i32, i32
  }
  func.func @transform_4(%arg0: i32, %arg1: i32) -> (i32, i32, i32) {
    %c0_i32 = arith.constant 0 : i32
    %c0_i32_0 = arith.constant 0 : i32
    return %arg0, %arg1, %c0_i32 : i32, i32, i32
  }
}

module attributes {stable_mosaic.version = 11 : i64} {
  func.func @_mm_bias_act_kernel(%arg0: i32, %arg1: i32, %arg2: memref<1x128x288xbf16, #tpu.memory_space<vmem>>, %arg3: memref<1x288x32xbf16, #tpu.memory_space<vmem>>, %arg4: memref<1x1x32xf32, #tpu.memory_space<vmem>>, %arg5: memref<1x128x32xf32, #tpu.memory_space<vmem>>) attributes {dimension_semantics = [#tpu.dimension_semantics<parallel>, #tpu.dimension_semantics<parallel>], iteration_bounds = array<i64: 3, 1>, scalar_prefetch = 0 : i64, scratch_operands = 0 : i64, tpu.core_type = #tpu.core_type<tc>, window_params = [{transform_indices = @transform_0, window_bounds = array<i64: 1, 128, 288>}, {transform_indices = @transform_1, window_bounds = array<i64: 1, 288, 32>}, {transform_indices = @transform_2, window_bounds = array<i64: 1, 1, 32>}, {transform_indices = @transform_3, window_bounds = array<i64: 1, 128, 32>}]} {
    %c0 = arith.constant 0 : index
    %c0_0 = arith.constant 0 : index
    %c0_1 = arith.constant 0 : index
    %0 = vector.load %arg2[%c0, %c0_0, %c0_1] : memref<1x128x288xbf16, #tpu.memory_space<vmem>>, vector<1x128x288xbf16>
    %1 = vector.shape_cast %0 : vector<1x128x288xbf16> to vector<128x288xbf16>
    %c0_2 = arith.constant 0 : index
    %c0_3 = arith.constant 0 : index
    %c0_4 = arith.constant 0 : index
    %2 = vector.load %arg3[%c0_2, %c0_3, %c0_4] : memref<1x288x32xbf16, #tpu.memory_space<vmem>>, vector<1x288x32xbf16>
    %3 = vector.shape_cast %2 : vector<1x288x32xbf16> to vector<288x32xbf16>
    %cst = arith.constant dense<0.000000e+00> : vector<128x32xf32>
    %4 = tpu.matmul %1, %3, %cst {dimension_numbers = #tpu.dot_dimension_numbers<[1], [0], [0], [1], [0, 0, 1, 1], [], []>} : vector<128x288xbf16>, vector<288x32xbf16>, vector<128x32xf32> -> vector<128x32xf32>
    %c0_5 = arith.constant 0 : index
    %c0_6 = arith.constant 0 : index
    %c0_7 = arith.constant 0 : index
    %5 = vector.load %arg4[%c0_5, %c0_6, %c0_7] : memref<1x1x32xf32, #tpu.memory_space<vmem>>, vector<1x1x32xf32>
    %6 = vector.shape_cast %5 : vector<1x1x32xf32> to vector<1x32xf32>
    %7 = vector.broadcast %6 : vector<1x32xf32> to vector<128x32xf32>
    %8 = arith.addf %4, %7 : vector<128x32xf32>
    %cst_8 = arith.constant 0.000000e+00 : f32
    %9 = vector.broadcast %cst_8 : f32 to vector<128x32xf32>
    %10 = arith.maximumf %8, %9 : vector<128x32xf32>
    %c0_9 = arith.constant 0 : index
    %c0_10 = arith.constant 0 : index
    %c0_11 = arith.constant 0 : index
    %11 = vector.load %arg5[%c0_9, %c0_10, %c0_11] : memref<1x128x32xf32, #tpu.memory_space<vmem>>, vector<1x128x32xf32>
    %12 = vector.shape_cast %11 : vector<1x128x32xf32> to vector<128x32xf32>
    %13 = vector.shape_cast %10 : vector<128x32xf32> to vector<1x128x32xf32>
    tpu.vector_store %arg5[%c0_9, %c0_10, %c0_11], %13 {strides = array<i32>} : memref<1x128x32xf32, #tpu.memory_space<vmem>>, vector<1x128x32xf32>,
    return
  }
  func.func @transform_0(%arg0: i32, %arg1: i32) -> (i32, i32, i32) {
    %c0_i32 = arith.constant 0 : i32
    %c0_i32_0 = arith.constant 0 : i32
    return %arg0, %arg1, %c0_i32 : i32, i32, i32
  }
  func.func @transform_1(%arg0: i32, %arg1: i32) -> (i32, i32, i32) {
    %c0_i32 = arith.constant 0 : i32
    %c0_i32_0 = arith.constant 0 : i32
    %c0_i32_1 = arith.constant 0 : i32
    return %arg0, %c0_i32, %c0_i32_0 : i32, i32, i32
  }
  func.func @transform_2(%arg0: i32, %arg1: i32) -> (i32, i32, i32) {
    %c0_i32 = arith.constant 0 : i32
    %c0_i32_0 = arith.constant 0 : i32
    %c0_i32_1 = arith.constant 0 : i32
    return %arg0, %c0_i32, %c0_i32_0 : i32, i32, i32
  }
  func.func @transform_3(%arg0: i32, %arg1: i32) -> (i32, i32, i32) {
    %c0_i32 = arith.constant 0 : i32
    %c0_i32_0 = arith.constant 0 : i32
    return %arg0, %arg1, %c0_i32 : i32, i32, i32
  }
}

module attributes {stable_mosaic.version = 11 : i64} {
  func.func @_pool_conv_kernel(%arg0: i32, %arg1: memref<1x2x64x32xf32, #tpu.memory_space<vmem>>, %arg2: memref<1x32x16xbf16, #tpu.memory_space<vmem>>, %arg3: memref<1x1x16xf32, #tpu.memory_space<vmem>>, %arg4: memref<1x2x16xf32, #tpu.memory_space<vmem>>) attributes {dimension_semantics = [#tpu.dimension_semantics<parallel>], iteration_bounds = array<i64: 4>, scalar_prefetch = 0 : i64, scratch_operands = 0 : i64, tpu.core_type = #tpu.core_type<tc>, window_params = [{transform_indices = @transform_0, window_bounds = array<i64: 1, 2, 64, 32>}, {transform_indices = @transform_1, window_bounds = array<i64: 1, 32, 16>}, {transform_indices = @transform_2, window_bounds = array<i64: 1, 1, 16>}, {transform_indices = @transform_3, window_bounds = array<i64: 1, 2, 16>}]} {
    %c0 = arith.constant 0 : index
    %c0_0 = arith.constant 0 : index
    %c0_1 = arith.constant 0 : index
    %c0_2 = arith.constant 0 : index
    %0 = vector.load %arg1[%c0, %c0_0, %c0_1, %c0_2] : memref<1x2x64x32xf32, #tpu.memory_space<vmem>>, vector<1x2x64x32xf32>
    %1 = vector.shape_cast %0 : vector<1x2x64x32xf32> to vector<2x64x32xf32>
    %cst = arith.constant dense<0.000000e+00> : vector<2x32xf32>
    %2 = vector.multi_reduction <add>, %1, %cst [1] : vector<2x64x32xf32> to vector<2x32xf32>
    %cst_3 = arith.constant 6.400000e+01 : f32
    %3 = vector.broadcast %cst_3 : f32 to vector<2x32xf32>
    %4 = arith.divf %2, %3 : vector<2x32xf32>
    %5 = arith.truncf %4 : vector<2x32xf32> to vector<2x32xbf16>
    %c0_4 = arith.constant 0 : index
    %c0_5 = arith.constant 0 : index
    %c0_6 = arith.constant 0 : index
    %6 = vector.load %arg2[%c0_4, %c0_5, %c0_6] : memref<1x32x16xbf16, #tpu.memory_space<vmem>>, vector<1x32x16xbf16>
    %7 = vector.shape_cast %6 : vector<1x32x16xbf16> to vector<32x16xbf16>
    %cst_7 = arith.constant dense<0.000000e+00> : vector<2x16xf32>
    %8 = tpu.matmul %5, %7, %cst_7 {dimension_numbers = #tpu.dot_dimension_numbers<[1], [0], [0], [1], [0, 0, 1, 1], [], []>} : vector<2x32xbf16>, vector<32x16xbf16>, vector<2x16xf32> -> vector<2x16xf32>
    %c0_8 = arith.constant 0 : index
    %c0_9 = arith.constant 0 : index
    %c0_10 = arith.constant 0 : index
    %9 = vector.load %arg3[%c0_8, %c0_9, %c0_10] : memref<1x1x16xf32, #tpu.memory_space<vmem>>, vector<1x1x16xf32>
    %10 = vector.shape_cast %9 : vector<1x1x16xf32> to vector<1x16xf32>
    %11 = vector.broadcast %10 : vector<1x16xf32> to vector<2x16xf32>
    %12 = arith.addf %8, %11 : vector<2x16xf32>
    %cst_11 = arith.constant 0.000000e+00 : f32
    %13 = vector.broadcast %cst_11 : f32 to vector<2x16xf32>
    %14 = arith.maximumf %12, %13 : vector<2x16xf32>
    %c0_12 = arith.constant 0 : index
    %c0_13 = arith.constant 0 : index
    %c0_14 = arith.constant 0 : index
    %15 = vector.load %arg4[%c0_12, %c0_13, %c0_14] : memref<1x2x16xf32, #tpu.memory_space<vmem>>, vector<1x2x16xf32>
    %16 = vector.shape_cast %15 : vector<1x2x16xf32> to vector<2x16xf32>
    %17 = vector.shape_cast %14 : vector<2x16xf32> to vector<1x2x16xf32>
    tpu.vector_store %arg4[%c0_12, %c0_13, %c0_14], %17 {strides = array<i32>} : memref<1x2x16xf32, #tpu.memory_space<vmem>>, vector<1x2x16xf32>,
    return
  }
  func.func @transform_0(%arg0: i32) -> (i32, i32, i32, i32) {
    %c0_i32 = arith.constant 0 : i32
    %c0_i32_0 = arith.constant 0 : i32
    %c0_i32_1 = arith.constant 0 : i32
    %c0_i32_2 = arith.constant 0 : i32
    return %arg0, %c0_i32, %c0_i32_0, %c0_i32_1 : i32, i32, i32, i32
  }
  func.func @transform_1(%arg0: i32) -> (i32, i32, i32) {
    %c0_i32 = arith.constant 0 : i32
    %c0_i32_0 = arith.constant 0 : i32
    %c0_i32_1 = arith.constant 0 : i32
    return %arg0, %c0_i32, %c0_i32_0 : i32, i32, i32
  }
  func.func @transform_2(%arg0: i32) -> (i32, i32, i32) {
    %c0_i32 = arith.constant 0 : i32
    %c0_i32_0 = arith.constant 0 : i32
    %c0_i32_1 = arith.constant 0 : i32
    return %arg0, %c0_i32, %c0_i32_0 : i32, i32, i32
  }
  func.func @transform_3(%arg0: i32) -> (i32, i32, i32) {
    %c0_i32 = arith.constant 0 : i32
    %c0_i32_0 = arith.constant 0 : i32
    %c0_i32_1 = arith.constant 0 : i32
    return %arg0, %c0_i32, %c0_i32_0 : i32, i32, i32
  }
}

module attributes {stable_mosaic.version = 11 : i64} {
  func.func @_mm_bias_act_kernel(%arg0: i32, %arg1: i32, %arg2: memref<1x128x288xbf16, #tpu.memory_space<vmem>>, %arg3: memref<1x288x16xbf16, #tpu.memory_space<vmem>>, %arg4: memref<1x1x16xf32, #tpu.memory_space<vmem>>, %arg5: memref<1x128x16xf32, #tpu.memory_space<vmem>>) attributes {dimension_semantics = [#tpu.dimension_semantics<parallel>, #tpu.dimension_semantics<parallel>], iteration_bounds = array<i64: 4, 1>, scalar_prefetch = 0 : i64, scratch_operands = 0 : i64, tpu.core_type = #tpu.core_type<tc>, window_params = [{transform_indices = @transform_0, window_bounds = array<i64: 1, 128, 288>}, {transform_indices = @transform_1, window_bounds = array<i64: 1, 288, 16>}, {transform_indices = @transform_2, window_bounds = array<i64: 1, 1, 16>}, {transform_indices = @transform_3, window_bounds = array<i64: 1, 128, 16>}]} {
    %c0 = arith.constant 0 : index
    %c0_0 = arith.constant 0 : index
    %c0_1 = arith.constant 0 : index
    %0 = vector.load %arg2[%c0, %c0_0, %c0_1] : memref<1x128x288xbf16, #tpu.memory_space<vmem>>, vector<1x128x288xbf16>
    %1 = vector.shape_cast %0 : vector<1x128x288xbf16> to vector<128x288xbf16>
    %c0_2 = arith.constant 0 : index
    %c0_3 = arith.constant 0 : index
    %c0_4 = arith.constant 0 : index
    %2 = vector.load %arg3[%c0_2, %c0_3, %c0_4] : memref<1x288x16xbf16, #tpu.memory_space<vmem>>, vector<1x288x16xbf16>
    %3 = vector.shape_cast %2 : vector<1x288x16xbf16> to vector<288x16xbf16>
    %cst = arith.constant dense<0.000000e+00> : vector<128x16xf32>
    %4 = tpu.matmul %1, %3, %cst {dimension_numbers = #tpu.dot_dimension_numbers<[1], [0], [0], [1], [0, 0, 1, 1], [], []>} : vector<128x288xbf16>, vector<288x16xbf16>, vector<128x16xf32> -> vector<128x16xf32>
    %c0_5 = arith.constant 0 : index
    %c0_6 = arith.constant 0 : index
    %c0_7 = arith.constant 0 : index
    %5 = vector.load %arg4[%c0_5, %c0_6, %c0_7] : memref<1x1x16xf32, #tpu.memory_space<vmem>>, vector<1x1x16xf32>
    %6 = vector.shape_cast %5 : vector<1x1x16xf32> to vector<1x16xf32>
    %7 = vector.broadcast %6 : vector<1x16xf32> to vector<128x16xf32>
    %8 = arith.addf %4, %7 : vector<128x16xf32>
    %cst_8 = arith.constant 0.000000e+00 : f32
    %9 = vector.broadcast %cst_8 : f32 to vector<128x16xf32>
    %10 = arith.maximumf %8, %9 : vector<128x16xf32>
    %c0_9 = arith.constant 0 : index
    %c0_10 = arith.constant 0 : index
    %c0_11 = arith.constant 0 : index
    %11 = vector.load %arg5[%c0_9, %c0_10, %c0_11] : memref<1x128x16xf32, #tpu.memory_space<vmem>>, vector<1x128x16xf32>
    %12 = vector.shape_cast %11 : vector<1x128x16xf32> to vector<128x16xf32>
    %13 = vector.shape_cast %10 : vector<128x16xf32> to vector<1x128x16xf32>
    tpu.vector_store %arg5[%c0_9, %c0_10, %c0_11], %13 {strides = array<i32>} : memref<1x128x16xf32, #tpu.memory_space<vmem>>, vector<1x128x16xf32>,
    return
  }
  func.func @transform_0(%arg0: i32, %arg1: i32) -> (i32, i32, i32) {
    %c0_i32 = arith.constant 0 : i32
    %c0_i32_0 = arith.constant 0 : i32
    return %arg0, %arg1, %c0_i32 : i32, i32, i32
  }
  func.func @transform_1(%arg0: i32, %arg1: i32) -> (i32, i32, i32) {
    %c0_i32 = arith.constant 0 : i32
    %c0_i32_0 = arith.constant 0 : i32
    %c0_i32_1 = arith.constant 0 : i32
    return %arg0, %c0_i32, %c0_i32_0 : i32, i32, i32
  }
  func.func @transform_2(%arg0: i32, %arg1: i32) -> (i32, i32, i32) {
    %c0_i32 = arith.constant 0 : i32
    %c0_i32_0 = arith.constant 0 : i32
    %c0_i32_1 = arith.constant 0 : i32
    return %arg0, %c0_i32, %c0_i32_0 : i32, i32, i32
  }
  func.func @transform_3(%arg0: i32, %arg1: i32) -> (i32, i32, i32) {
    %c0_i32 = arith.constant 0 : i32
    %c0_i32_0 = arith.constant 0 : i32
    return %arg0, %arg1, %c0_i32 : i32, i32, i32
  }
}

module attributes {stable_mosaic.version = 11 : i64} {
  func.func @_mm_bias_act_kernel(%arg0: i32, %arg1: i32, %arg2: memref<1x128x32xbf16, #tpu.memory_space<vmem>>, %arg3: memref<1x32x16xbf16, #tpu.memory_space<vmem>>, %arg4: memref<1x1x16xf32, #tpu.memory_space<vmem>>, %arg5: memref<1x128x16xf32, #tpu.memory_space<vmem>>) attributes {dimension_semantics = [#tpu.dimension_semantics<parallel>, #tpu.dimension_semantics<parallel>], iteration_bounds = array<i64: 4, 1>, scalar_prefetch = 0 : i64, scratch_operands = 0 : i64, tpu.core_type = #tpu.core_type<tc>, window_params = [{transform_indices = @transform_0, window_bounds = array<i64: 1, 128, 32>}, {transform_indices = @transform_1, window_bounds = array<i64: 1, 32, 16>}, {transform_indices = @transform_2, window_bounds = array<i64: 1, 1, 16>}, {transform_indices = @transform_3, window_bounds = array<i64: 1, 128, 16>}]} {
    %c0 = arith.constant 0 : index
    %c0_0 = arith.constant 0 : index
    %c0_1 = arith.constant 0 : index
    %0 = vector.load %arg2[%c0, %c0_0, %c0_1] : memref<1x128x32xbf16, #tpu.memory_space<vmem>>, vector<1x128x32xbf16>
    %1 = vector.shape_cast %0 : vector<1x128x32xbf16> to vector<128x32xbf16>
    %c0_2 = arith.constant 0 : index
    %c0_3 = arith.constant 0 : index
    %c0_4 = arith.constant 0 : index
    %2 = vector.load %arg3[%c0_2, %c0_3, %c0_4] : memref<1x32x16xbf16, #tpu.memory_space<vmem>>, vector<1x32x16xbf16>
    %3 = vector.shape_cast %2 : vector<1x32x16xbf16> to vector<32x16xbf16>
    %cst = arith.constant dense<0.000000e+00> : vector<128x16xf32>
    %4 = tpu.matmul %1, %3, %cst {dimension_numbers = #tpu.dot_dimension_numbers<[1], [0], [0], [1], [0, 0, 1, 1], [], []>} : vector<128x32xbf16>, vector<32x16xbf16>, vector<128x16xf32> -> vector<128x16xf32>
    %c0_5 = arith.constant 0 : index
    %c0_6 = arith.constant 0 : index
    %c0_7 = arith.constant 0 : index
    %5 = vector.load %arg4[%c0_5, %c0_6, %c0_7] : memref<1x1x16xf32, #tpu.memory_space<vmem>>, vector<1x1x16xf32>
    %6 = vector.shape_cast %5 : vector<1x1x16xf32> to vector<1x16xf32>
    %7 = vector.broadcast %6 : vector<1x16xf32> to vector<128x16xf32>
    %8 = arith.addf %4, %7 : vector<128x16xf32>
    %cst_8 = arith.constant 0.000000e+00 : f32
    %9 = vector.broadcast %cst_8 : f32 to vector<128x16xf32>
    %10 = arith.maximumf %8, %9 : vector<128x16xf32>
    %c0_9 = arith.constant 0 : index
    %c0_10 = arith.constant 0 : index
    %c0_11 = arith.constant 0 : index
    %11 = vector.load %arg5[%c0_9, %c0_10, %c0_11] : memref<1x128x16xf32, #tpu.memory_space<vmem>>, vector<1x128x16xf32>
    %12 = vector.shape_cast %11 : vector<1x128x16xf32> to vector<128x16xf32>
    %13 = vector.shape_cast %10 : vector<128x16xf32> to vector<1x128x16xf32>
    tpu.vector_store %arg5[%c0_9, %c0_10, %c0_11], %13 {strides = array<i32>} : memref<1x128x16xf32, #tpu.memory_space<vmem>>, vector<1x128x16xf32>,
    return
  }
  func.func @transform_0(%arg0: i32, %arg1: i32) -> (i32, i32, i32) {
    %c0_i32 = arith.constant 0 : i32
    %c0_i32_0 = arith.constant 0 : i32
    return %arg0, %arg1, %c0_i32 : i32, i32, i32
  }
  func.func @transform_1(%arg0: i32, %arg1: i32) -> (i32, i32, i32) {
    %c0_i32 = arith.constant 0 : i32
    %c0_i32_0 = arith.constant 0 : i32
    %c0_i32_1 = arith.constant 0 : i32
    return %arg0, %c0_i32, %c0_i32_0 : i32, i32, i32
  }
  func.func @transform_2(%arg0: i32, %arg1: i32) -> (i32, i32, i32) {
    %c0_i32 = arith.constant 0 : i32
    %c0_i32_0 = arith.constant 0 : i32
    %c0_i32_1 = arith.constant 0 : i32
    return %arg0, %c0_i32, %c0_i32_0 : i32, i32, i32
  }
  func.func @transform_3(%arg0: i32, %arg1: i32) -> (i32, i32, i32) {
    %c0_i32 = arith.constant 0 : i32
    %c0_i32_0 = arith.constant 0 : i32
    return %arg0, %arg1, %c0_i32 : i32, i32, i32
  }
}

module attributes {stable_mosaic.version = 11 : i64} {
  func.func @_mm_bias_act_kernel(%arg0: i32, %arg1: i32, %arg2: memref<1x128x80xbf16, #tpu.memory_space<vmem>>, %arg3: memref<1x80x16xbf16, #tpu.memory_space<vmem>>, %arg4: memref<1x1x16xf32, #tpu.memory_space<vmem>>, %arg5: memref<1x128x16xf32, #tpu.memory_space<vmem>>) attributes {dimension_semantics = [#tpu.dimension_semantics<parallel>, #tpu.dimension_semantics<parallel>], iteration_bounds = array<i64: 4, 1>, scalar_prefetch = 0 : i64, scratch_operands = 0 : i64, tpu.core_type = #tpu.core_type<tc>, window_params = [{transform_indices = @transform_0, window_bounds = array<i64: 1, 128, 80>}, {transform_indices = @transform_1, window_bounds = array<i64: 1, 80, 16>}, {transform_indices = @transform_2, window_bounds = array<i64: 1, 1, 16>}, {transform_indices = @transform_3, window_bounds = array<i64: 1, 128, 16>}]} {
    %c0 = arith.constant 0 : index
    %c0_0 = arith.constant 0 : index
    %c0_1 = arith.constant 0 : index
    %0 = vector.load %arg2[%c0, %c0_0, %c0_1] : memref<1x128x80xbf16, #tpu.memory_space<vmem>>, vector<1x128x80xbf16>
    %1 = vector.shape_cast %0 : vector<1x128x80xbf16> to vector<128x80xbf16>
    %c0_2 = arith.constant 0 : index
    %c0_3 = arith.constant 0 : index
    %c0_4 = arith.constant 0 : index
    %2 = vector.load %arg3[%c0_2, %c0_3, %c0_4] : memref<1x80x16xbf16, #tpu.memory_space<vmem>>, vector<1x80x16xbf16>
    %3 = vector.shape_cast %2 : vector<1x80x16xbf16> to vector<80x16xbf16>
    %cst = arith.constant dense<0.000000e+00> : vector<128x16xf32>
    %4 = tpu.matmul %1, %3, %cst {dimension_numbers = #tpu.dot_dimension_numbers<[1], [0], [0], [1], [0, 0, 1, 1], [], []>} : vector<128x80xbf16>, vector<80x16xbf16>, vector<128x16xf32> -> vector<128x16xf32>
    %c0_5 = arith.constant 0 : index
    %c0_6 = arith.constant 0 : index
    %c0_7 = arith.constant 0 : index
    %5 = vector.load %arg4[%c0_5, %c0_6, %c0_7] : memref<1x1x16xf32, #tpu.memory_space<vmem>>, vector<1x1x16xf32>
    %6 = vector.shape_cast %5 : vector<1x1x16xf32> to vector<1x16xf32>
    %7 = vector.broadcast %6 : vector<1x16xf32> to vector<128x16xf32>
    %8 = arith.addf %4, %7 : vector<128x16xf32>
    %cst_8 = arith.constant 0.000000e+00 : f32
    %9 = vector.broadcast %cst_8 : f32 to vector<128x16xf32>
    %10 = arith.maximumf %8, %9 : vector<128x16xf32>
    %c0_9 = arith.constant 0 : index
    %c0_10 = arith.constant 0 : index
    %c0_11 = arith.constant 0 : index
    %11 = vector.load %arg5[%c0_9, %c0_10, %c0_11] : memref<1x128x16xf32, #tpu.memory_space<vmem>>, vector<1x128x16xf32>
    %12 = vector.shape_cast %11 : vector<1x128x16xf32> to vector<128x16xf32>
    %13 = vector.shape_cast %10 : vector<128x16xf32> to vector<1x128x16xf32>
    tpu.vector_store %arg5[%c0_9, %c0_10, %c0_11], %13 {strides = array<i32>} : memref<1x128x16xf32, #tpu.memory_space<vmem>>, vector<1x128x16xf32>,
    return
  }
  func.func @transform_0(%arg0: i32, %arg1: i32) -> (i32, i32, i32) {
    %c0_i32 = arith.constant 0 : i32
    %c0_i32_0 = arith.constant 0 : i32
    return %arg0, %arg1, %c0_i32 : i32, i32, i32
  }
  func.func @transform_1(%arg0: i32, %arg1: i32) -> (i32, i32, i32) {
    %c0_i32 = arith.constant 0 : i32
    %c0_i32_0 = arith.constant 0 : i32
    %c0_i32_1 = arith.constant 0 : i32
    return %arg0, %c0_i32, %c0_i32_0 : i32, i32, i32
  }
  func.func @transform_2(%arg0: i32, %arg1: i32) -> (i32, i32, i32) {
    %c0_i32 = arith.constant 0 : i32
    %c0_i32_0 = arith.constant 0 : i32
    %c0_i32_1 = arith.constant 0 : i32
    return %arg0, %c0_i32, %c0_i32_0 : i32, i32, i32
  }
  func.func @transform_3(%arg0: i32, %arg1: i32) -> (i32, i32, i32) {
    %c0_i32 = arith.constant 0 : i32
    %c0_i32_0 = arith.constant 0 : i32
    return %arg0, %arg1, %c0_i32 : i32, i32, i32
  }
}

module attributes {stable_mosaic.version = 11 : i64} {
  func.func @_mm_bias_act_kernel(%arg0: i32, %arg1: i32, %arg2: memref<1x128x144xbf16, #tpu.memory_space<vmem>>, %arg3: memref<1x144x16xbf16, #tpu.memory_space<vmem>>, %arg4: memref<1x1x16xf32, #tpu.memory_space<vmem>>, %arg5: memref<1x128x16xf32, #tpu.memory_space<vmem>>) attributes {dimension_semantics = [#tpu.dimension_semantics<parallel>, #tpu.dimension_semantics<parallel>], iteration_bounds = array<i64: 4, 1>, scalar_prefetch = 0 : i64, scratch_operands = 0 : i64, tpu.core_type = #tpu.core_type<tc>, window_params = [{transform_indices = @transform_0, window_bounds = array<i64: 1, 128, 144>}, {transform_indices = @transform_1, window_bounds = array<i64: 1, 144, 16>}, {transform_indices = @transform_2, window_bounds = array<i64: 1, 1, 16>}, {transform_indices = @transform_3, window_bounds = array<i64: 1, 128, 16>}]} {
    %c0 = arith.constant 0 : index
    %c0_0 = arith.constant 0 : index
    %c0_1 = arith.constant 0 : index
    %0 = vector.load %arg2[%c0, %c0_0, %c0_1] : memref<1x128x144xbf16, #tpu.memory_space<vmem>>, vector<1x128x144xbf16>
    %1 = vector.shape_cast %0 : vector<1x128x144xbf16> to vector<128x144xbf16>
    %c0_2 = arith.constant 0 : index
    %c0_3 = arith.constant 0 : index
    %c0_4 = arith.constant 0 : index
    %2 = vector.load %arg3[%c0_2, %c0_3, %c0_4] : memref<1x144x16xbf16, #tpu.memory_space<vmem>>, vector<1x144x16xbf16>
    %3 = vector.shape_cast %2 : vector<1x144x16xbf16> to vector<144x16xbf16>
    %cst = arith.constant dense<0.000000e+00> : vector<128x16xf32>
    %4 = tpu.matmul %1, %3, %cst {dimension_numbers = #tpu.dot_dimension_numbers<[1], [0], [0], [1], [0, 0, 1, 1], [], []>} : vector<128x144xbf16>, vector<144x16xbf16>, vector<128x16xf32> -> vector<128x16xf32>
    %c0_5 = arith.constant 0 : index
    %c0_6 = arith.constant 0 : index
    %c0_7 = arith.constant 0 : index
    %5 = vector.load %arg4[%c0_5, %c0_6, %c0_7] : memref<1x1x16xf32, #tpu.memory_space<vmem>>, vector<1x1x16xf32>
    %6 = vector.shape_cast %5 : vector<1x1x16xf32> to vector<1x16xf32>
    %7 = vector.broadcast %6 : vector<1x16xf32> to vector<128x16xf32>
    %8 = arith.addf %4, %7 : vector<128x16xf32>
    %cst_8 = arith.constant 0.000000e+00 : f32
    %9 = vector.broadcast %cst_8 : f32 to vector<128x16xf32>
    %10 = arith.maximumf %8, %9 : vector<128x16xf32>
    %c0_9 = arith.constant 0 : index
    %c0_10 = arith.constant 0 : index
    %c0_11 = arith.constant 0 : index
    %11 = vector.load %arg5[%c0_9, %c0_10, %c0_11] : memref<1x128x16xf32, #tpu.memory_space<vmem>>, vector<1x128x16xf32>
    %12 = vector.shape_cast %11 : vector<1x128x16xf32> to vector<128x16xf32>
    %13 = vector.shape_cast %10 : vector<128x16xf32> to vector<1x128x16xf32>
    tpu.vector_store %arg5[%c0_9, %c0_10, %c0_11], %13 {strides = array<i32>} : memref<1x128x16xf32, #tpu.memory_space<vmem>>, vector<1x128x16xf32>,
    return
  }
  func.func @transform_0(%arg0: i32, %arg1: i32) -> (i32, i32, i32) {
    %c0_i32 = arith.constant 0 : i32
    %c0_i32_0 = arith.constant 0 : i32
    return %arg0, %arg1, %c0_i32 : i32, i32, i32
  }
  func.func @transform_1(%arg0: i32, %arg1: i32) -> (i32, i32, i32) {
    %c0_i32 = arith.constant 0 : i32
    %c0_i32_0 = arith.constant 0 : i32
    %c0_i32_1 = arith.constant 0 : i32
    return %arg0, %c0_i32, %c0_i32_0 : i32, i32, i32
  }
  func.func @transform_2(%arg0: i32, %arg1: i32) -> (i32, i32, i32) {
    %c0_i32 = arith.constant 0 : i32
    %c0_i32_0 = arith.constant 0 : i32
    %c0_i32_1 = arith.constant 0 : i32
    return %arg0, %c0_i32, %c0_i32_0 : i32, i32, i32
  }
  func.func @transform_3(%arg0: i32, %arg1: i32) -> (i32, i32, i32) {
    %c0_i32 = arith.constant 0 : i32
    %c0_i32_0 = arith.constant 0 : i32
    return %arg0, %arg1, %c0_i32 : i32, i32, i32
  }
}

module attributes {stable_mosaic.version = 11 : i64} {
  func.func @_mm_bias_act_kernel(%arg0: i32, %arg1: i32, %arg2: memref<1x128x16xbf16, #tpu.memory_space<vmem>>, %arg3: memref<1x16x17xbf16, #tpu.memory_space<vmem>>, %arg4: memref<1x1x17xf32, #tpu.memory_space<vmem>>, %arg5: memref<1x128x17xf32, #tpu.memory_space<vmem>>) attributes {dimension_semantics = [#tpu.dimension_semantics<parallel>, #tpu.dimension_semantics<parallel>], iteration_bounds = array<i64: 2, 1>, scalar_prefetch = 0 : i64, scratch_operands = 0 : i64, tpu.core_type = #tpu.core_type<tc>, window_params = [{transform_indices = @transform_0, window_bounds = array<i64: 1, 128, 16>}, {transform_indices = @transform_1, window_bounds = array<i64: 1, 16, 17>}, {transform_indices = @transform_2, window_bounds = array<i64: 1, 1, 17>}, {transform_indices = @transform_3, window_bounds = array<i64: 1, 128, 17>}]} {
    %c0 = arith.constant 0 : index
    %c0_0 = arith.constant 0 : index
    %c0_1 = arith.constant 0 : index
    %0 = vector.load %arg2[%c0, %c0_0, %c0_1] : memref<1x128x16xbf16, #tpu.memory_space<vmem>>, vector<1x128x16xbf16>
    %1 = vector.shape_cast %0 : vector<1x128x16xbf16> to vector<128x16xbf16>
    %c0_2 = arith.constant 0 : index
    %c0_3 = arith.constant 0 : index
    %c0_4 = arith.constant 0 : index
    %2 = vector.load %arg3[%c0_2, %c0_3, %c0_4] : memref<1x16x17xbf16, #tpu.memory_space<vmem>>, vector<1x16x17xbf16>
    %3 = vector.shape_cast %2 : vector<1x16x17xbf16> to vector<16x17xbf16>
    %cst = arith.constant dense<0.000000e+00> : vector<128x17xf32>
    %4 = tpu.matmul %1, %3, %cst {dimension_numbers = #tpu.dot_dimension_numbers<[1], [0], [0], [1], [0, 0, 1, 1], [], []>} : vector<128x16xbf16>, vector<16x17xbf16>, vector<128x17xf32> -> vector<128x17xf32>
    %c0_5 = arith.constant 0 : index
    %c0_6 = arith.constant 0 : index
    %c0_7 = arith.constant 0 : index
    %5 = vector.load %arg4[%c0_5, %c0_6, %c0_7] : memref<1x1x17xf32, #tpu.memory_space<vmem>>, vector<1x1x17xf32>
    %6 = vector.shape_cast %5 : vector<1x1x17xf32> to vector<1x17xf32>
    %7 = vector.broadcast %6 : vector<1x17xf32> to vector<128x17xf32>
    %8 = arith.addf %4, %7 : vector<128x17xf32>
    %c0_8 = arith.constant 0 : index
    %c0_9 = arith.constant 0 : index
    %c0_10 = arith.constant 0 : index
    %9 = vector.load %arg5[%c0_8, %c0_9, %c0_10] : memref<1x128x17xf32, #tpu.memory_space<vmem>>, vector<1x128x17xf32>
    %10 = vector.shape_cast %9 : vector<1x128x17xf32> to vector<128x17xf32>
    %11 = vector.shape_cast %8 : vector<128x17xf32> to vector<1x128x17xf32>
    tpu.vector_store %arg5[%c0_8, %c0_9, %c0_10], %11 {strides = array<i32>} : memref<1x128x17xf32, #tpu.memory_space<vmem>>, vector<1x128x17xf32>,
    return
  }
  func.func @transform_0(%arg0: i32, %arg1: i32) -> (i32, i32, i32) {
    %c0_i32 = arith.constant 0 : i32
    %c0_i32_0 = arith.constant 0 : i32
    return %arg0, %arg1, %c0_i32 : i32, i32, i32
  }
  func.func @transform_1(%arg0: i32, %arg1: i32) -> (i32, i32, i32) {
    %c0_i32 = arith.constant 0 : i32
    %c0_i32_0 = arith.constant 0 : i32
    %c0_i32_1 = arith.constant 0 : i32
    return %arg0, %c0_i32, %c0_i32_0 : i32, i32, i32
  }
  func.func @transform_2(%arg0: i32, %arg1: i32) -> (i32, i32, i32) {
    %c0_i32 = arith.constant 0 : i32
    %c0_i32_0 = arith.constant 0 : i32
    %c0_i32_1 = arith.constant 0 : i32
    return %arg0, %c0_i32, %c0_i32_0 : i32, i32, i32
  }
  func.func @transform_3(%arg0: i32, %arg1: i32) -> (i32, i32, i32) {
    %c0_i32 = arith.constant 0 : i32
    %c0_i32_0 = arith.constant 0 : i32
    return %arg0, %arg1, %c0_i32 : i32, i32, i32
  }
}

module attributes {stable_mosaic.version = 11 : i64} {
  func.func @_blend_resize_kernel(%arg0: i32, %arg1: memref<2xf32, #tpu.memory_space<smem>>, %arg2: memref<512x128xf32, #tpu.memory_space<vmem>>, %arg3: memref<128x17xf32, #tpu.memory_space<vmem>>, %arg4: memref<128x17xf32, #tpu.memory_space<vmem>>, %arg5: memref<512x17xf32, #tpu.memory_space<vmem>>) attributes {dimension_semantics = [#tpu.dimension_semantics<arbitrary>], iteration_bounds = array<i64: 1>, scalar_prefetch = 0 : i64, scratch_operands = 0 : i64, tpu.core_type = #tpu.core_type<tc>, window_params = [{transform_indices = @transform_0, window_bounds = array<i64: 2>}, {pipeline_mode = #tpu.pipeline_mode<synchronous>, transform_indices = @transform_1, window_bounds = array<i64: 512, 128>}, {pipeline_mode = #tpu.pipeline_mode<synchronous>, transform_indices = @transform_2, window_bounds = array<i64: 128, 17>}, {pipeline_mode = #tpu.pipeline_mode<synchronous>, transform_indices = @transform_3, window_bounds = array<i64: 128, 17>}, {pipeline_mode = #tpu.pipeline_mode<synchronous>, transform_indices = @transform_4, window_bounds = array<i64: 512, 17>}]} {
    %c0 = arith.constant 0 : index
    %0 = memref.load %arg1[%c0] : memref<2xf32, #tpu.memory_space<smem>>
    %c0_0 = arith.constant 0 : index
    %c0_1 = arith.constant 0 : index
    %1 = vector.load %arg3[%c0_0, %c0_1] : memref<128x17xf32, #tpu.memory_space<vmem>>, vector<128x17xf32>
    %2 = vector.broadcast %0 : f32 to vector<128x17xf32>
    %3 = arith.mulf %2, %1 : vector<128x17xf32>
    %c1 = arith.constant 1 : index
    %4 = memref.load %arg1[%c1] : memref<2xf32, #tpu.memory_space<smem>>
    %c0_2 = arith.constant 0 : index
    %c0_3 = arith.constant 0 : index
    %5 = vector.load %arg4[%c0_2, %c0_3] : memref<128x17xf32, #tpu.memory_space<vmem>>, vector<128x17xf32>
    %6 = vector.broadcast %4 : f32 to vector<128x17xf32>
    %7 = arith.mulf %6, %5 : vector<128x17xf32>
    %8 = arith.addf %3, %7 : vector<128x17xf32>
    %c0_4 = arith.constant 0 : index
    %c0_5 = arith.constant 0 : index
    %9 = vector.load %arg2[%c0_4, %c0_5] : memref<512x128xf32, #tpu.memory_space<vmem>>, vector<512x128xf32>
    %cst = arith.constant dense<0.000000e+00> : vector<512x17xf32>
    %10 = tpu.matmul %9, %8, %cst {dimension_numbers = #tpu.dot_dimension_numbers<[1], [0], [0], [1], [0, 0, 1, 1], [], []>} : vector<512x128xf32>, vector<128x17xf32>, vector<512x17xf32> -> vector<512x17xf32>
    %c0_6 = arith.constant 0 : index
    %c0_7 = arith.constant 0 : index
    %11 = vector.load %arg5[%c0_6, %c0_7] : memref<512x17xf32, #tpu.memory_space<vmem>>, vector<512x17xf32>
    tpu.vector_store %arg5[%c0_6, %c0_7], %10 {strides = array<i32>} : memref<512x17xf32, #tpu.memory_space<vmem>>, vector<512x17xf32>,
    return
  }
  func.func @transform_0(%arg0: i32) -> i32 {
    %c0_i32 = arith.constant 0 : i32
    %c0_i32_0 = arith.constant 0 : i32
    return %c0_i32 : i32
  }
  func.func @transform_1(%arg0: i32) -> (i32, i32) {
    %c0_i32 = arith.constant 0 : i32
    %c0_i32_0 = arith.constant 0 : i32
    %c0_i32_1 = arith.constant 0 : i32
    return %c0_i32, %c0_i32_0 : i32, i32
  }
  func.func @transform_2(%arg0: i32) -> (i32, i32) {
    %c0_i32 = arith.constant 0 : i32
    %c0_i32_0 = arith.constant 0 : i32
    %c0_i32_1 = arith.constant 0 : i32
    return %c0_i32, %c0_i32_0 : i32, i32
  }
  func.func @transform_3(%arg0: i32) -> (i32, i32) {
    %c0_i32 = arith.constant 0 : i32
    %c0_i32_0 = arith.constant 0 : i32
    %c0_i32_1 = arith.constant 0 : i32
    return %c0_i32, %c0_i32_0 : i32, i32
  }
  func.func @transform_4(%arg0: i32) -> (i32, i32) {
    %c0_i32 = arith.constant 0 : i32
    %c0_i32_0 = arith.constant 0 : i32
    %c0_i32_1 = arith.constant 0 : i32
    return %c0_i32, %c0_i32_0 : i32, i32
  }
}

module attributes {stable_mosaic.version = 11 : i64} {
  func.func @_mm_bias_act_kernel(%arg0: i32, %arg1: i32, %arg2: memref<1x128x16xbf16, #tpu.memory_space<vmem>>, %arg3: memref<1x16x1xbf16, #tpu.memory_space<vmem>>, %arg4: memref<1x1x1xf32, #tpu.memory_space<vmem>>, %arg5: memref<1x128x1xf32, #tpu.memory_space<vmem>>) attributes {dimension_semantics = [#tpu.dimension_semantics<parallel>, #tpu.dimension_semantics<parallel>], iteration_bounds = array<i64: 2, 1>, scalar_prefetch = 0 : i64, scratch_operands = 0 : i64, tpu.core_type = #tpu.core_type<tc>, window_params = [{transform_indices = @transform_0, window_bounds = array<i64: 1, 128, 16>}, {transform_indices = @transform_1, window_bounds = array<i64: 1, 16, 1>}, {transform_indices = @transform_2, window_bounds = array<i64: 1, 1, 1>}, {transform_indices = @transform_3, window_bounds = array<i64: 1, 128, 1>}]} {
    %c0 = arith.constant 0 : index
    %c0_0 = arith.constant 0 : index
    %c0_1 = arith.constant 0 : index
    %0 = vector.load %arg2[%c0, %c0_0, %c0_1] : memref<1x128x16xbf16, #tpu.memory_space<vmem>>, vector<1x128x16xbf16>
    %1 = vector.shape_cast %0 : vector<1x128x16xbf16> to vector<128x16xbf16>
    %c0_2 = arith.constant 0 : index
    %c0_3 = arith.constant 0 : index
    %c0_4 = arith.constant 0 : index
    %2 = vector.load %arg3[%c0_2, %c0_3, %c0_4] : memref<1x16x1xbf16, #tpu.memory_space<vmem>>, vector<1x16x1xbf16>
    %3 = vector.shape_cast %2 : vector<1x16x1xbf16> to vector<16x1xbf16>
    %cst = arith.constant dense<0.000000e+00> : vector<128x1xf32>
    %4 = tpu.matmul %1, %3, %cst {dimension_numbers = #tpu.dot_dimension_numbers<[1], [0], [0], [1], [0, 0, 1, 1], [], []>} : vector<128x16xbf16>, vector<16x1xbf16>, vector<128x1xf32> -> vector<128x1xf32>
    %c0_5 = arith.constant 0 : index
    %c0_6 = arith.constant 0 : index
    %c0_7 = arith.constant 0 : index
    %5 = vector.load %arg4[%c0_5, %c0_6, %c0_7] : memref<1x1x1xf32, #tpu.memory_space<vmem>>, vector<1x1x1xf32>
    %6 = vector.shape_cast %5 : vector<1x1x1xf32> to vector<1x1xf32>
    %7 = vector.broadcast %6 : vector<1x1xf32> to vector<128x1xf32>
    %8 = arith.addf %4, %7 : vector<128x1xf32>
    %c0_8 = arith.constant 0 : index
    %c0_9 = arith.constant 0 : index
    %c0_10 = arith.constant 0 : index
    %9 = vector.load %arg5[%c0_8, %c0_9, %c0_10] : memref<1x128x1xf32, #tpu.memory_space<vmem>>, vector<1x128x1xf32>
    %10 = vector.shape_cast %9 : vector<1x128x1xf32> to vector<128x1xf32>
    %11 = vector.shape_cast %8 : vector<128x1xf32> to vector<1x128x1xf32>
    tpu.vector_store %arg5[%c0_8, %c0_9, %c0_10], %11 {strides = array<i32>} : memref<1x128x1xf32, #tpu.memory_space<vmem>>, vector<1x128x1xf32>,
    return
  }
  func.func @transform_0(%arg0: i32, %arg1: i32) -> (i32, i32, i32) {
    %c0_i32 = arith.constant 0 : i32
    %c0_i32_0 = arith.constant 0 : i32
    return %arg0, %arg1, %c0_i32 : i32, i32, i32
  }
  func.func @transform_1(%arg0: i32, %arg1: i32) -> (i32, i32, i32) {
    %c0_i32 = arith.constant 0 : i32
    %c0_i32_0 = arith.constant 0 : i32
    %c0_i32_1 = arith.constant 0 : i32
    return %arg0, %c0_i32, %c0_i32_0 : i32, i32, i32
  }
  func.func @transform_2(%arg0: i32, %arg1: i32) -> (i32, i32, i32) {
    %c0_i32 = arith.constant 0 : i32
    %c0_i32_0 = arith.constant 0 : i32
    %c0_i32_1 = arith.constant 0 : i32
    return %arg0, %c0_i32, %c0_i32_0 : i32, i32, i32
  }
  func.func @transform_3(%arg0: i32, %arg1: i32) -> (i32, i32, i32) {
    %c0_i32 = arith.constant 0 : i32
    %c0_i32_0 = arith.constant 0 : i32
    return %arg0, %arg1, %c0_i32 : i32, i32, i32
  }
}

module attributes {stable_mosaic.version = 11 : i64} {
  func.func @_blend_resize_kernel(%arg0: i32, %arg1: memref<2xf32, #tpu.memory_space<smem>>, %arg2: memref<512x128xf32, #tpu.memory_space<vmem>>, %arg3: memref<128x1xf32, #tpu.memory_space<vmem>>, %arg4: memref<128x1xf32, #tpu.memory_space<vmem>>, %arg5: memref<512x1xf32, #tpu.memory_space<vmem>>) attributes {dimension_semantics = [#tpu.dimension_semantics<arbitrary>], iteration_bounds = array<i64: 1>, scalar_prefetch = 0 : i64, scratch_operands = 0 : i64, tpu.core_type = #tpu.core_type<tc>, window_params = [{transform_indices = @transform_0, window_bounds = array<i64: 2>}, {pipeline_mode = #tpu.pipeline_mode<synchronous>, transform_indices = @transform_1, window_bounds = array<i64: 512, 128>}, {pipeline_mode = #tpu.pipeline_mode<synchronous>, transform_indices = @transform_2, window_bounds = array<i64: 128, 1>}, {pipeline_mode = #tpu.pipeline_mode<synchronous>, transform_indices = @transform_3, window_bounds = array<i64: 128, 1>}, {pipeline_mode = #tpu.pipeline_mode<synchronous>, transform_indices = @transform_4, window_bounds = array<i64: 512, 1>}]} {
    %c0 = arith.constant 0 : index
    %0 = memref.load %arg1[%c0] : memref<2xf32, #tpu.memory_space<smem>>
    %c0_0 = arith.constant 0 : index
    %c0_1 = arith.constant 0 : index
    %1 = vector.load %arg3[%c0_0, %c0_1] : memref<128x1xf32, #tpu.memory_space<vmem>>, vector<128x1xf32>
    %2 = vector.broadcast %0 : f32 to vector<128x1xf32>
    %3 = arith.mulf %2, %1 : vector<128x1xf32>
    %c1 = arith.constant 1 : index
    %4 = memref.load %arg1[%c1] : memref<2xf32, #tpu.memory_space<smem>>
    %c0_2 = arith.constant 0 : index
    %c0_3 = arith.constant 0 : index
    %5 = vector.load %arg4[%c0_2, %c0_3] : memref<128x1xf32, #tpu.memory_space<vmem>>, vector<128x1xf32>
    %6 = vector.broadcast %4 : f32 to vector<128x1xf32>
    %7 = arith.mulf %6, %5 : vector<128x1xf32>
    %8 = arith.addf %3, %7 : vector<128x1xf32>
    %c0_4 = arith.constant 0 : index
    %c0_5 = arith.constant 0 : index
    %9 = vector.load %arg2[%c0_4, %c0_5] : memref<512x128xf32, #tpu.memory_space<vmem>>, vector<512x128xf32>
    %cst = arith.constant dense<0.000000e+00> : vector<512x1xf32>
    %10 = tpu.matmul %9, %8, %cst {dimension_numbers = #tpu.dot_dimension_numbers<[1], [0], [0], [1], [0, 0, 1, 1], [], []>} : vector<512x128xf32>, vector<128x1xf32>, vector<512x1xf32> -> vector<512x1xf32>
    %c0_6 = arith.constant 0 : index
    %c0_7 = arith.constant 0 : index
    %11 = vector.load %arg5[%c0_6, %c0_7] : memref<512x1xf32, #tpu.memory_space<vmem>>, vector<512x1xf32>
    tpu.vector_store %arg5[%c0_6, %c0_7], %10 {strides = array<i32>} : memref<512x1xf32, #tpu.memory_space<vmem>>, vector<512x1xf32>,
    return
  }
  func.func @transform_0(%arg0: i32) -> i32 {
    %c0_i32 = arith.constant 0 : i32
    %c0_i32_0 = arith.constant 0 : i32
    return %c0_i32 : i32
  }
  func.func @transform_1(%arg0: i32) -> (i32, i32) {
    %c0_i32 = arith.constant 0 : i32
    %c0_i32_0 = arith.constant 0 : i32
    %c0_i32_1 = arith.constant 0 : i32
    return %c0_i32, %c0_i32_0 : i32, i32
  }
  func.func @transform_2(%arg0: i32) -> (i32, i32) {
    %c0_i32 = arith.constant 0 : i32
    %c0_i32_0 = arith.constant 0 : i32
    %c0_i32_1 = arith.constant 0 : i32
    return %c0_i32, %c0_i32_0 : i32, i32
  }
  func.func @transform_3(%arg0: i32) -> (i32, i32) {
    %c0_i32 = arith.constant 0 : i32
    %c0_i32_0 = arith.constant 0 : i32
    %c0_i32_1 = arith.constant 0 : i32
    return %c0_i32, %c0_i32_0 : i32, i32
  }
  func.func @transform_4(%arg0: i32) -> (i32, i32) {
    %c0_i32 = arith.constant 0 : i32
    %c0_i32_0 = arith.constant 0 : i32
    %c0_i32_1 = arith.constant 0 : i32
    return %c0_i32, %c0_i32_0 : i32, i32
  }
}

</mosaic_0001>

<llo_original>
// kernel: smtl_forward.17
$region0: #{smtl_forward.17}
  #allocation0 [shape = 'u32[]', space=smem, size = 0x4, offset = 0x4, fixed_abs, tag = 'smem constant byte address 0x4 - core index']
  #allocation1 [shape = 'u32[144,128]{1,0:T(1,128)}', space=vmem, size = 0x12000, scoped, tag = 'internal scratch']
  %s0 = inlined_call_operand.vmem [shape: bf16[3,128,27], index: 0, kind: input, shape index: {}]
  %s1 = inlined_call_operand.vmem [shape: bf16[3,27,16], index: 1, kind: input, shape index: {}]
  %s2 = inlined_call_operand.vmem [shape: f32[3,1,16], index: 2, kind: input, shape index: {}]
  %s3 = inlined_call_operand.vmem [shape: f32[3,128,16], index: 3, kind: output, shape index: {}]
  %s4 = sld [smem:[#allocation0]]
  $region45: #{smtl_forward.17} parent=0
    _
  %s6 = ssub.s32 1, %s4
  %s7 = scalar_select 0, %s6, %s4
  loop: start=0, step=1, limit=5
  $region2: #{smtl_forward.17} parent=0 // loop_pre_header
    _
  $region3: #{smtl_forward.17} parent=0 // loop_header
    %s9 = sphi 0, %s13
    %p10 = scmp.ge.s32.totalorder %s9, 5
    %s16 = sphi 0, %s28
    %s17 = sphi 0, %s24
    %s18 = sphi 0, %s16
    %s19 = sphi 0, %s17
    %s20 = sphi 0, %s18
    %s21 = sphi 0, %s19
    %s33 = sphi 0, %s35
    %s36 = sphi 0, %s33
    %s37 = sphi 0, %s36
    %s53 = sphi 0, %s37
    %s59 = sphi 0, %s61
    %s62 = sphi 0, %s59
    %s63 = sphi 0, %s62
    %s79 = sphi 0, %s63
    %s85 = sphi 0, %s87
    %s88 = sphi 0, %s85
    %s89 = sphi 0, %s88
    %s105 = sphi 0, %s89
    %s113 = sphi 0, %s115
    %s116 = sphi 0, %s113
    %s117 = sphi 0, %s116
    %s133 = sphi 0, %s117
  $region4: #{smtl_forward.17} parent=0 // loop_header_branch
    %12 = sbr.rel (%p10) target = $region8
  $region5: #{smtl_forward.17} parent=0 // loop_body
    %s14 = ssub.s32 %s9, 1
    %s15 = ssub.s32 %s9, 2
    %s22 = sadd.s32 1, %s17
    %p23 = scmp.ge.s32.totalorder %s22, 1
    %s24 = scalar_select %p23, 0, %s22
    %s25 = sadd.s32 1, %s16
    %s26 = scalar_select %p23, %s25, %s16
    %p27 = scmp.ge.s32.totalorder %s26, 3
    %s28 = scalar_select %p27, 0, %s26
    %s29 = ssub.s32 %s16, %s28
    %s30 = ssub.s32 %s17, %s24
    %s31 = sor.u32 %s29, %s30
    %p32 = scmp.eq.s32.totalorder %s31, 0
    %s34 = sadd.s32 %s33, 1
    %s35 = scalar_select %p32, %s33, %s34
    %p38 = pneg %p32
    %p39 = scmp.eq.s32.totalorder %s9, 2
    %p40 = por %p38, %p39
    %p41 = scmp.ne.s32.totalorder %s33, %s36
    %p42 = scmp.eq.s32.totalorder %s9, 0
    %p43 = por %p41, %p42
    %p44 = scmp.ne.s32.totalorder %s33, %s36
    %p45 = scmp.eq.s32.totalorder %s14, 2
    %p46 = por %p44, %p45
    %p47 = scmp.ne.s32.totalorder %s36, %s37
    %p48 = scmp.eq.s32.totalorder %s14, 0
    %p49 = por %p47, %p48
    %p50 = scmp.ne.s32.totalorder %s36, %s37
    %p51 = scmp.eq.s32.totalorder %s15, 2
    %p52 = por %p50, %p51
    %p54 = scmp.ne.s32.totalorder %s37, %s53
    %p55 = scmp.eq.s32.totalorder %s15, 0
    %p56 = por %p54, %p55
    %s57 = ssub.s32 %s16, %s28
    %p58 = scmp.eq.s32.totalorder %s57, 0
    %s60 = sadd.s32 %s59, 1
    %s61 = scalar_select %p58, %s59, %s60
    %p64 = pneg %p58
    %p65 = scmp.eq.s32.totalorder %s9, 2
    %p66 = por %p64, %p65
    %p67 = scmp.ne.s32.totalorder %s59, %s62
    %p68 = scmp.eq.s32.totalorder %s9, 0
    %p69 = por %p67, %p68
    %p70 = scmp.ne.s32.totalorder %s59, %s62
    %p71 = scmp.eq.s32.totalorder %s14, 2
    %p72 = por %p70, %p71
    %p73 = scmp.ne.s32.totalorder %s62, %s63
    %p74 = scmp.eq.s32.totalorder %s14, 0
    %p75 = por %p73, %p74
    %p76 = scmp.ne.s32.totalorder %s62, %s63
    %p77 = scmp.eq.s32.totalorder %s15, 2
    %p78 = por %p76, %p77
    %p80 = scmp.ne.s32.totalorder %s63, %s79
    %p81 = scmp.eq.s32.totalorder %s15, 0
    %p82 = por %p80, %p81
    %s83 = ssub.s32 %s16, %s28
    %p84 = scmp.eq.s32.totalorder %s83, 0
    %s86 = sadd.s32 %s85, 1
    %s87 = scalar_select %p84, %s85, %s86
    %p90 = pneg %p84
    %p91 = scmp.eq.s32.totalorder %s9, 2
    %p92 = por %p90, %p91
    %p93 = scmp.ne.s32.totalorder %s85, %s88
    %p94 = scmp.eq.s32.totalorder %s9, 0
    %p95 = por %p93, %p94
    %p96 = scmp.ne.s32.totalorder %s85, %s88
    %p97 = scmp.eq.s32.totalorder %s14, 2
    %p98 = por %p96, %p97
    %p99 = scmp.ne.s32.totalorder %s88, %s89
    %p100 = scmp.eq.s32.totalorder %s14, 0
    %p101 = por %p99, %p100
    %p102 = scmp.ne.s32.totalorder %s88, %s89
    %p103 = scmp.eq.s32.totalorder %s15, 2
    %p104 = por %p102, %p103
    %p106 = scmp.ne.s32.totalorder %s89, %s105
    %p107 = scmp.eq.s32.totalorder %s15, 0
    %p108 = por %p106, %p107
    %s109 = ssub.s32 %s16, %s28
    %s110 = ssub.s32 %s17, %s24
    %s111 = sor.u32 %s109, %s110
    %p112 = scmp.eq.s32.totalorder %s111, 0
    %s114 = sadd.s32 %s113, 1
    %s115 = scalar_select %p112, %s113, %s114
    %p118 = pneg %p112
    %p119 = scmp.eq.s32.totalorder %s9, 2
    %p120 = por %p118, %p119
    %p121 = scmp.ne.s32.totalorder %s113, %s116
    %p122 = scmp.eq.s32.totalorder %s9, 0
    %p123 = por %p121, %p122
    %p124 = scmp.ne.s32.totalorder %s113, %s116
    %p125 = scmp.eq.s32.totalorder %s14, 2
    %p126 = por %p124, %p125
    %p127 = scmp.ne.s32.totalorder %s116, %s117
    %p128 = scmp.eq.s32.totalorder %s14, 0
    %p129 = por %p127, %p128
    %p130 = scmp.ne.s32.totalorder %s116, %s117
    %p131 = scmp.eq.s32.totalorder %s15, 2
    %p132 = por %p130, %p131
    %p134 = scmp.ne.s32.totalorder %s117, %s133
    %p135 = scmp.eq.s32.totalorder %s15, 0
    %p136 = por %p134, %p135
    %p137 = scmp.le.s32.totalorder 1, %s9
    %p138 = scmp.lt.s32.totalorder %s9, 4
    %p139 = pnand %p137, %p138
    %p140 = pneg %p139
    // Predicated region
    $region9: #{smtl_forward.17} parent=5 // pred_check
      _
    $region10: #{smtl_forward.17} parent=5 // pred_check_branch
      %142 = sbr.rel (%p139) target = $region12
    $region11: #{smtl_forward.17} parent=5 // pred_region
      %s143 = ssub.s32 %s9, 1
    $region12: #{smtl_forward.17} parent=5 // pred_fallthru
      _
    %p144 = scmp.lt.s32.totalorder %s9, 3
    // Predicated region
    $region13: #{smtl_forward.17} parent=5 // pred_check
      %p145 = pneg %p144
    $region14: #{smtl_forward.17} parent=5 // pred_check_branch
      %147 = sbr.rel (%p145) target = $region16
    $region15: #{smtl_forward.17} parent=5 // pred_region
      // Predicated region
      $region17: #{smtl_forward.17} parent=15 // pred_check
        %p148 = pneg %p43
      $region18: #{smtl_forward.17} parent=15 // pred_check_branch
        %150 = sbr.rel (%p148) target = $region20
      $region19: #{smtl_forward.17} parent=15 // pred_region
        %s151 = smul.u32 16, %s17
        %p152 = scmp.lt.s32.totalorder %s16, 2
        %s153 = scalar_select %p152, %s16, 2
        %p154 = scmp.lt.s32.totalorder %s151, 15
        %s155 = scalar_select %p154, %s151, 15
        %s156 = smul.addr %s153, 16
        %s157 = sadd.s32 %s155, %s156
        %s158 = smul.addr %s157, 4
        %s159 = scalar_lea.vmem %s0, %s158
        %s160 = smul.u32 16, %s17
      $region20: #{smtl_forward.17} parent=15 // pred_fallthru
        _
      // Predicated region
      $region21: #{smtl_forward.17} parent=15 // pred_check
        %p161 = pneg %p69
      $region22: #{smtl_forward.17} parent=15 // pred_check_branch
        %163 = sbr.rel (%p161) target = $region24
      $region23: #{smtl_forward.17} parent=15 // pred_region
        %p164 = scmp.lt.s32.totalorder %s16, 2
        %s165 = scalar_select %p164, %s16, 2
        %s166 = smul.addr %s165, 4
        %s167 = smul.addr %s166, 4
        %s168 = scalar_lea.vmem %s1, %s167
      $region24: #{smtl_forward.17} parent=15 // pred_fallthru
        _
      // Predicated region
      $region25: #{smtl_forward.17} parent=15 // pred_check
        %p169 = pneg %p95
      $region26: #{smtl_forward.17} parent=15 // pred_check_branch
        %171 = sbr.rel (%p169) target = $region28
      $region27: #{smtl_forward.17} parent=15 // pred_region
        %p172 = scmp.lt.s32.totalorder %s16, 2
        %s173 = scalar_select %p172, %s16, 2
        %s174 = scalar_lea.vmem %s2, %s173
      $region28: #{smtl_forward.17} parent=15 // pred_fallthru
        _
    $region16: #{smtl_forward.17} parent=5 // pred_fallthru
      _
    %p175 = scmp.le.s32.totalorder 1, %s9
    %p176 = scmp.lt.s32.totalorder %s9, 4
    %p177 = pnand %p175, %p176
    %p178 = pneg %p177
    // Predicated region
    $region29: #{smtl_forward.17} parent=5 // pred_check
      _
    $region30: #{smtl_forward.17} parent=5 // pred_check_branch
      %180 = sbr.rel (%p177) target = $region32
    $region31: #{smtl_forward.17} parent=5 // pred_region
      %s181 = ssub.s32 %s9, 1
      %s182 = smul.u32 16, %s19
      %p183 = scmp.lt.s32.totalorder %s18, 2
      %s184 = scalar_select %p183, %s18, 2
      %p185 = scmp.lt.s32.totalorder %s182, 15
      %s186 = scalar_select %p185, %s182, 15
      %s187 = smul.addr %s184, 16
      %s188 = sadd.s32 %s186, %s187
      %s189 = smul.addr %s188, 4
      %s190 = scalar_lea.vmem %s0, %s189
      %p191 = pneg %p49
      %p192 = pneg %p46
      %p193 = scmp.lt.s32.totalorder %s18, 2
      %s194 = scalar_select %p193, %s18, 2
      %s195 = smul.addr %s194, 4
      %s196 = smul.addr %s195, 4
      %s197 = scalar_lea.vmem %s1, %s196
      %p198 = pneg %p75
      %p199 = pneg %p72
      %p200 = scmp.lt.s32.totalorder %s18, 2
      %s201 = scalar_select %p200, %s18, 2
      %s202 = scalar_lea.vmem %s2, %s201
      %p203 = pneg %p101
      %p204 = pneg %p98
      %p205 = pneg %p129
      %p206 = pneg %p126
      %s207 = smul.u32 16, %s19
      %p208 = scmp.lt.s32.totalorder %s18, 2
      %s209 = scalar_select %p208, %s18, 2
      %p210 = scmp.lt.s32.totalorder %s207, 15
      %s211 = scalar_select %p210, %s207, 15
      %s212 = smul.addr %s209, 16
      %s213 = sadd.s32 %s211, %s212
      %s214 = smul.addr %s213, 8
      %s215 = scalar_lea.vmem %s3, %s214
      %s216 = smul.u32 16, %s19
      %p217 = scmp.lt.s32.totalorder %s18, 2
      %s218 = scalar_select %p217, %s18, 2
      %p219 = scmp.lt.s32.totalorder %s216, 15
      %s220 = scalar_select %p219, %s216, 15
      %s221 = smul.addr %s218, 16
      %s222 = sadd.s32 %s220, %s221
      %s223 = smul.addr %s222, 4
      %s224 = scalar_lea.vmem %s0, %s223
      %s225 = smul.u32 16, %s19
      %p226 = scmp.lt.s32.totalorder %s18, 2
      %s227 = scalar_select %p226, %s18, 2
      %s228 = smul.addr %s227, 4
      %s229 = smul.addr %s228, 4
      %s230 = scalar_lea.vmem %s1, %s229
      %p231 = scmp.lt.s32.totalorder %s18, 2
      %s232 = scalar_select %p231, %s18, 2
      %s233 = scalar_lea.vmem %s2, %s232
      %s234 = smul.u32 16, %s19
      %p235 = scmp.lt.s32.totalorder %s18, 2
      %s236 = scalar_select %p235, %s18, 2
      %p237 = scmp.lt.s32.totalorder %s234, 15
      %s238 = scalar_select %p237, %s234, 15
      %s239 = smul.addr %s236, 16
      %s240 = sadd.s32 %s238, %s239
      %s241 = smul.addr %s240, 8
      %s242 = scalar_lea.vmem %s3, %s241
      %s243 = smul.u32 16, %s19
      %v245 = vld [vmem:[%s224] sm:$0xf]
      %v246 = vld [vmem:[%s224 + $0x4] sm:$0xf]
      %v247 = vld [vmem:[%s224 + $0x8] sm:$0xf]
      %v248 = vld [vmem:[%s224 + $0xc] sm:$0xf]
      %v249 = vld [vmem:[%s224 + $0x10] sm:$0xf]
      %v250 = vld [vmem:[%s224 + $0x14] sm:$0xf]
      %v251 = vld [vmem:[%s224 + $0x18] sm:$0xf]
      %v252 = vld [vmem:[%s224 + $0x1c] sm:$0xf]
      %v253 = vld [vmem:[%s224 + $0x20] sm:$0xf]
      %v254 = vld [vmem:[%s224 + $0x24] sm:$0xf]
      %v255 = vld [vmem:[%s224 + $0x28] sm:$0xf]
      %v256 = vld [vmem:[%s224 + $0x2c] sm:$0xf]
      %v257 = vld [vmem:[%s224 + $0x30] sm:$0xf]
      %v258 = vld [vmem:[%s224 + $0x34] sm:$0xf]
      %v259 = vld [vmem:[%s224 + $0x38] sm:$0xf]
      %v260 = vld [vmem:[%s224 + $0x3c] sm:$0xf]
      %v261 = vld [vmem:[%s230] sm:$0xf]
      %v262 = vld [vmem:[%s230 + $0x4] sm:$0xf]
      %v263 = vld [vmem:[%s230 + $0x8] sm:$0xf]
      %v264 = vld [vmem:[%s230 + $0xc] sm:$0x3]
      %v265 = vld [vmem:[%s233] sm:$0x1]
      %v267 = vlaneseq
      %v268 = vshrl.u32 %v267, 7
      %v269 = vsub.s32 0, %v268
      %v270 = vrot.slane %v265, %v269
      %v288 = vunpack.c.l.b16 %v245
      %v289 = vunpack.c.l.b16 %v246
      %v290 = vunpack.c.l.b16 %v247
      %v291 = vunpack.c.l.b16 %v248
      %v292 = vunpack.c.l.b16 %v249
      %v293 = vunpack.c.l.b16 %v250
      %v294 = vunpack.c.l.b16 %v251
      %v295 = vunpack.c.l.b16 %v252
      %v296 = vunpack.c.l.b16 %v253
      %v297 = vunpack.c.l.b16 %v254
      %v298 = vunpack.c.l.b16 %v255
      %v299 = vunpack.c.l.b16 %v256
      %v300 = vunpack.c.l.b16 %v257
      %v301 = vunpack.c.l.b16 %v258
      %v302 = vunpack.c.l.b16 %v259
      %v303 = vunpack.c.l.b16 %v260
      %v304 = vpack.c.b16 %v289, %v288
      %v305 = vpack.c.b16 %v291, %v290
      %v306 = vpack.c.b16 %v293, %v292
      %v307 = vpack.c.b16 %v295, %v294
      %v308 = vpack.c.b16 %v297, %v296
      %v309 = vpack.c.b16 %v299, %v298
      %v310 = vpack.c.b16 %v301, %v300
      %v311 = vpack.c.b16 %v303, %v302
      %v316 = vunpack.c.l.b16 %v261
      %v317 = vunpack.c.l.b16 %v262
      %v318 = vunpack.c.l.b16 %v263
      %v319 = vunpack.c.l.b16 %v264
      %v320 = vpack.c.b16 %v317, %v316
      %v321 = vpack.c.b16 %v319, %v318
      %vm323 = vcmask 220160
      %v325 = vsel %vm323, %v304, 0
      %v328 = vsel %vm323, %v305, 0
      %v331 = vsel %vm323, %v306, 0
      %v334 = vsel %vm323, %v307, 0
      %v337 = vsel %vm323, %v308, 0
      %v340 = vsel %vm323, %v309, 0
      %v343 = vsel %vm323, %v310, 0
      %v346 = vsel %vm323, %v311, 0
      %vm348 = vcmask 1044480
      %vm349 = vcmask 1045504
      %v350 = vsel %vm348, 4294967295, 65535
      %v351 = vsel %vm349, %v350, 0
      %v353 = vand.u32 %v321, %v351
      %355 = vmatprep.subr.bf16.mxu0 0
      %356 = vmatpush1.bf16.msra.mxu0 %v320
      %357 = vmatprep.subr.bf16.mxu0 0
      %358 = vmatpush1.bf16.msra.mxu0 %v353
      %359 = vmatprep.subr.bf16.mxu0 0
      %360 = vmatpush1.bf16.msra.mxu0 0
      %361 = vmatprep.subr.bf16.mxu0 0
      %362 = vmatpush1.bf16.msra.mxu0 0
      %363 = vmatprep.subr.bf16.mxu0 0
      %364 = vmatpush1.bf16.msra.mxu0 0
      %365 = vmatprep.subr.bf16.mxu0 0
      %366 = vmatpush1.bf16.msra.mxu0 0
      %367 = vmatprep.subr.bf16.mxu0 0
      %368 = vmatpush1.bf16.msra.mxu0 0
      %369 = vmatprep.subr.bf16.mxu0 0
      %370 = vmatpush1.bf16.msra.mxu0 0
      %371 = vmatprep.subr.bf16.mxu0 0
      %372 = vmatpush1.bf16.msra.mxu0 0
      %373 = vmatprep.subr.bf16.mxu0 0
      %374 = vmatpush1.bf16.msra.mxu0 0
      %375 = vmatprep.subr.bf16.mxu0 0
      %376 = vmatpush1.bf16.msra.mxu0 0
      %377 = vmatprep.subr.bf16.mxu0 0
      %378 = vmatpush1.bf16.msra.mxu0 0
      %379 = vmatprep.subr.bf16.mxu0 0
      %380 = vmatpush1.bf16.msra.mxu0 0
      %381 = vmatprep.subr.bf16.mxu0 0
      %382 = vmatpush1.bf16.msra.mxu0 0
      %383 = vmatprep.subr.bf16.mxu0 0
      %384 = vmatpush1.bf16.msra.mxu0 0
      %385 = vmatprep.subr.bf16.mxu0 0
      %386 = vmatpush1.bf16.msra.mxu0 0
      %387 = vmatprep.mubr.bf16.mxu0 0
      %388 = vmatmul.mubr.bf16.gmra.mrb[0].mxu0 %v325
      %v389 = vpop.f32.mrb[0].mxu0
      %v390 = vadd.f32 %v270, %v389
      %v391 = vpop.f32.mrb[0].mxu0
      %v392 = vpop.f32.mrb[0].mxu0
      %v393 = vadd.f32 %v270, %v392
      %v394 = vpop.f32.mrb[0].mxu0
      %395 = vmatprep.mubr.bf16.mxu0 0
      %396 = vmatmul.mubr.bf16.gmra.mrb[0].mxu0 %v328
      %v397 = vpop.f32.mrb[0].mxu0
      %v398 = vadd.f32 %v270, %v397
      %v399 = vpop.f32.mrb[0].mxu0
      %v400 = vpop.f32.mrb[0].mxu0
      %v401 = vadd.f32 %v270, %v400
      %v402 = vpop.f32.mrb[0].mxu0
      %403 = vmatprep.mubr.bf16.mxu0 0
      %404 = vmatmul.mubr.bf16.gmra.mrb[0].mxu0 %v331
      %v405 = vpop.f32.mrb[0].mxu0
      %v406 = vadd.f32 %v270, %v405
      %v407 = vpop.f32.mrb[0].mxu0
      %v408 = vpop.f32.mrb[0].mxu0
      %v409 = vadd.f32 %v270, %v408
      %v410 = vpop.f32.mrb[0].mxu0
      %411 = vmatprep.mubr.bf16.mxu0 0
      %412 = vmatmul.mubr.bf16.gmra.mrb[0].mxu0 %v334
      %v413 = vpop.f32.mrb[0].mxu0
      %v414 = vadd.f32 %v270, %v413
      %v415 = vpop.f32.mrb[0].mxu0
      %v416 = vpop.f32.mrb[0].mxu0
      %v417 = vadd.f32 %v270, %v416
      %v418 = vpop.f32.mrb[0].mxu0
      %419 = vmatprep.mubr.bf16.mxu0 0
      %420 = vmatmul.mubr.bf16.gmra.mrb[0].mxu0 %v337
      %v421 = vpop.f32.mrb[0].mxu0
      %v422 = vadd.f32 %v270, %v421
      %v423 = vpop.f32.mrb[0].mxu0
      %v424 = vpop.f32.mrb[0].mxu0
      %v425 = vadd.f32 %v270, %v424
      %v426 = vpop.f32.mrb[0].mxu0
      %427 = vmatprep.mubr.bf16.mxu0 0
      %428 = vmatmul.mubr.bf16.gmra.mrb[0].mxu0 %v340
      %v429 = vpop.f32.mrb[0].mxu0
      %v430 = vadd.f32 %v270, %v429
      %v431 = vpop.f32.mrb[0].mxu0
      %v432 = vpop.f32.mrb[0].mxu0
      %v433 = vadd.f32 %v270, %v432
      %v434 = vpop.f32.mrb[0].mxu0
      %435 = vmatprep.mubr.bf16.mxu0 0
      %436 = vmatmul.mubr.bf16.gmra.mrb[0].mxu0 %v343
      %v437 = vpop.f32.mrb[0].mxu0
      %v438 = vadd.f32 %v270, %v437
      %v439 = vpop.f32.mrb[0].mxu0
      %v440 = vpop.f32.mrb[0].mxu0
      %v441 = vadd.f32 %v270, %v440
      %v442 = vpop.f32.mrb[0].mxu0
      %443 = vmatprep.mubr.bf16.mxu0 0
      %444 = vmatmul.mubr.bf16.gmra.mrb[0].mxu0 %v346
      %v445 = vpop.f32.mrb[0].mxu0
      %v446 = vadd.f32 %v270, %v445
      %v447 = vpop.f32.mrb[0].mxu0
      %v448 = vpop.f32.mrb[0].mxu0
      %v449 = vadd.f32 %v270, %v448
      %v450 = vpop.f32.mrb[0].mxu0
      %451 = vdwg.mxu0
      %v452 = vmax.f32 %v390, 0.0
      %v453 = vmax.f32 %v393, 0.0
      %v454 = vmax.f32 %v398, 0.0
      %v455 = vmax.f32 %v401, 0.0
      %v456 = vmax.f32 %v406, 0.0
      %v457 = vmax.f32 %v409, 0.0
      %v458 = vmax.f32 %v414, 0.0
      %v459 = vmax.f32 %v417, 0.0
      %v460 = vmax.f32 %v422, 0.0
      %v461 = vmax.f32 %v425, 0.0
      %v462 = vmax.f32 %v430, 0.0
      %v463 = vmax.f32 %v433, 0.0
      %v464 = vmax.f32 %v438, 0.0
      %v465 = vmax.f32 %v441, 0.0
      %v466 = vmax.f32 %v446, 0.0
      %v467 = vmax.f32 %v449, 0.0
      %vm468 = vcmask 130048
      %469 = vst.msk [vmem:[%s242] sm:$0xff] %vm468, %v452
      %470 = vst.msk [vmem:[%s242 + $0x8] sm:$0xff] %vm468, %v453
      %471 = vst.msk [vmem:[%s242 + $0x10] sm:$0xff] %vm468, %v454
      %472 = vst.msk [vmem:[%s242 + $0x18] sm:$0xff] %vm468, %v455
      %473 = vst.msk [vmem:[%s242 + $0x20] sm:$0xff] %vm468, %v456
      %474 = vst.msk [vmem:[%s242 + $0x28] sm:$0xff] %vm468, %v457
      %475 = vst.msk [vmem:[%s242 + $0x30] sm:$0xff] %vm468, %v458
      %476 = vst.msk [vmem:[%s242 + $0x38] sm:$0xff] %vm468, %v459
      %477 = vst.msk [vmem:[%s242 + $0x40] sm:$0xff] %vm468, %v460
      %478 = vst.msk [vmem:[%s242 + $0x48] sm:$0xff] %vm468, %v461
      %479 = vst.msk [vmem:[%s242 + $0x50] sm:$0xff] %vm468, %v462
      %480 = vst.msk [vmem:[%s242 + $0x58] sm:$0xff] %vm468, %v463
      %481 = vst.msk [vmem:[%s242 + $0x60] sm:$0xff] %vm468, %v464
      %482 = vst.msk [vmem:[%s242 + $0x68] sm:$0xff] %vm468, %v465
      %483 = vst.msk [vmem:[%s242 + $0x70] sm:$0xff] %vm468, %v466
      %484 = vst.msk [vmem:[%s242 + $0x78] sm:$0xff] %vm468, %v467
      %s485 = smul.u32 16, %s19
      %p486 = scmp.lt.s32.totalorder %s18, 2
      %s487 = scalar_select %p486, %s18, 2
      %p488 = scmp.lt.s32.totalorder %s485, 15
      %s489 = scalar_select %p488, %s485, 15
      %s490 = smul.addr %s487, 16
      %s491 = sadd.s32 %s489, %s490
      %s492 = smul.addr %s491, 8
      %s493 = scalar_lea.vmem %s3, %s492
      // Predicated region
      $region33: #{smtl_forward.17} parent=31 // pred_check
        %p494 = pneg %p126
      $region34: #{smtl_forward.17} parent=31 // pred_check_branch
        %496 = sbr.rel (%p494) target = $region36
      $region35: #{smtl_forward.17} parent=31 // pred_region
        %s497 = smul.u32 16, %s19
      $region36: #{smtl_forward.17} parent=31 // pred_fallthru
        _
    $region32: #{smtl_forward.17} parent=5 // pred_fallthru
      _
    %p498 = scmp.le.s32.totalorder 2, %s9
    // Predicated region
    $region37: #{smtl_forward.17} parent=5 // pred_check
      %p499 = pneg %p498
    $region38: #{smtl_forward.17} parent=5 // pred_check_branch
      %501 = sbr.rel (%p499) target = $region40
    $region39: #{smtl_forward.17} parent=5 // pred_region
      %s502 = ssub.s32 %s9, 2
      // Predicated region
      $region41: #{smtl_forward.17} parent=39 // pred_check
        %p503 = pneg %p132
      $region42: #{smtl_forward.17} parent=39 // pred_check_branch
        %505 = sbr.rel (%p503) target = $region44
      $region43: #{smtl_forward.17} parent=39 // pred_region
        %s506 = smul.u32 16, %s21
        %p507 = scmp.lt.s32.totalorder %s20, 2
        %s508 = scalar_select %p507, %s20, 2
        %p509 = scmp.lt.s32.totalorder %s506, 15
        %s510 = scalar_select %p509, %s506, 15
        %s511 = smul.addr %s508, 16
        %s512 = sadd.s32 %s510, %s511
        %s513 = smul.addr %s512, 8
        %s514 = scalar_lea.vmem %s3, %s513
      $region44: #{smtl_forward.17} parent=39 // pred_fallthru
        _
    $region40: #{smtl_forward.17} parent=5 // pred_fallthru
      _
  $region6: #{smtl_forward.17} parent=0 // loop_footer
    %s13 = sadd.s32 1, %s9
  $region7: #{smtl_forward.17} parent=0 // loop_footer_branch
    %8 = sbr.rel target = $region3
  $region8: #{smtl_forward.17} parent=0 // loop_exit
    _

// kernel: smtl_forward.19
$region0: #{smtl_forward.19}
  #allocation0 [shape = 'u32[]', space=smem, size = 0x4, offset = 0x4, fixed_abs, tag = 'smem constant byte address 0x4 - core index']
  #allocation1 [shape = 'u32[144,128]{1,0:T(1,128)}', space=vmem, size = 0x12000, scoped, tag = 'internal scratch']
  %s0 = inlined_call_operand.vmem [shape: bf16[3,128,144], index: 0, kind: input, shape index: {}]
  %s1 = inlined_call_operand.vmem [shape: bf16[3,144,32], index: 1, kind: input, shape index: {}]
  %s2 = inlined_call_operand.vmem [shape: f32[3,1,32], index: 2, kind: input, shape index: {}]
  %s3 = inlined_call_operand.vmem [shape: f32[3,128,32], index: 3, kind: output, shape index: {}]
  %s4 = sld [smem:[#allocation0]]
  $region45: #{smtl_forward.19} parent=0
    _
  %s6 = ssub.s32 1, %s4
  %s7 = scalar_select 0, %s6, %s4
  loop: start=0, step=1, limit=5
  $region2: #{smtl_forward.19} parent=0 // loop_pre_header
    _
  $region3: #{smtl_forward.19} parent=0 // loop_header
    %s9 = sphi 0, %s13
    %p10 = scmp.ge.s32.totalorder %s9, 5
    %s16 = sphi 0, %s28
    %s17 = sphi 0, %s24
    %s18 = sphi 0, %s16
    %s19 = sphi 0, %s17
    %s20 = sphi 0, %s18
    %s21 = sphi 0, %s19
    %s33 = sphi 0, %s35
    %s36 = sphi 0, %s33
    %s37 = sphi 0, %s36
    %s53 = sphi 0, %s37
    %s59 = sphi 0, %s61
    %s62 = sphi 0, %s59
    %s63 = sphi 0, %s62
    %s79 = sphi 0, %s63
    %s85 = sphi 0, %s87
    %s88 = sphi 0, %s85
    %s89 = sphi 0, %s88
    %s105 = sphi 0, %s89
    %s113 = sphi 0, %s115
    %s116 = sphi 0, %s113
    %s117 = sphi 0, %s116
    %s133 = sphi 0, %s117
  $region4: #{smtl_forward.19} parent=0 // loop_header_branch
    %12 = sbr.rel (%p10) target = $region8
  $region5: #{smtl_forward.19} parent=0 // loop_body
    %s14 = ssub.s32 %s9, 1
    %s15 = ssub.s32 %s9, 2
    %s22 = sadd.s32 1, %s17
    %p23 = scmp.ge.s32.totalorder %s22, 1
    %s24 = scalar_select %p23, 0, %s22
    %s25 = sadd.s32 1, %s16
    %s26 = scalar_select %p23, %s25, %s16
    %p27 = scmp.ge.s32.totalorder %s26, 3
    %s28 = scalar_select %p27, 0, %s26
    %s29 = ssub.s32 %s16, %s28
    %s30 = ssub.s32 %s17, %s24
    %s31 = sor.u32 %s29, %s30
    %p32 = scmp.eq.s32.totalorder %s31, 0
    %s34 = sadd.s32 %s33, 1
    %s35 = scalar_select %p32, %s33, %s34
    %p38 = pneg %p32
    %p39 = scmp.eq.s32.totalorder %s9, 2
    %p40 = por %p38, %p39
    %p41 = scmp.ne.s32.totalorder %s33, %s36
    %p42 = scmp.eq.s32.totalorder %s9, 0
    %p43 = por %p41, %p42
    %p44 = scmp.ne.s32.totalorder %s33, %s36
    %p45 = scmp.eq.s32.totalorder %s14, 2
    %p46 = por %p44, %p45
    %p47 = scmp.ne.s32.totalorder %s36, %s37
    %p48 = scmp.eq.s32.totalorder %s14, 0
    %p49 = por %p47, %p48
    %p50 = scmp.ne.s32.totalorder %s36, %s37
    %p51 = scmp.eq.s32.totalorder %s15, 2
    %p52 = por %p50, %p51
    %p54 = scmp.ne.s32.totalorder %s37, %s53
    %p55 = scmp.eq.s32.totalorder %s15, 0
    %p56 = por %p54, %p55
    %s57 = ssub.s32 %s16, %s28
    %p58 = scmp.eq.s32.totalorder %s57, 0
    %s60 = sadd.s32 %s59, 1
    %s61 = scalar_select %p58, %s59, %s60
    %p64 = pneg %p58
    %p65 = scmp.eq.s32.totalorder %s9, 2
    %p66 = por %p64, %p65
    %p67 = scmp.ne.s32.totalorder %s59, %s62
    %p68 = scmp.eq.s32.totalorder %s9, 0
    %p69 = por %p67, %p68
    %p70 = scmp.ne.s32.totalorder %s59, %s62
    %p71 = scmp.eq.s32.totalorder %s14, 2
    %p72 = por %p70, %p71
    %p73 = scmp.ne.s32.totalorder %s62, %s63
    %p74 = scmp.eq.s32.totalorder %s14, 0
    %p75 = por %p73, %p74
    %p76 = scmp.ne.s32.totalorder %s62, %s63
    %p77 = scmp.eq.s32.totalorder %s15, 2
    %p78 = por %p76, %p77
    %p80 = scmp.ne.s32.totalorder %s63, %s79
    %p81 = scmp.eq.s32.totalorder %s15, 0
    %p82 = por %p80, %p81
    %s83 = ssub.s32 %s16, %s28
    %p84 = scmp.eq.s32.totalorder %s83, 0
    %s86 = sadd.s32 %s85, 1
    %s87 = scalar_select %p84, %s85, %s86
    %p90 = pneg %p84
    %p91 = scmp.eq.s32.totalorder %s9, 2
    %p92 = por %p90, %p91
    %p93 = scmp.ne.s32.totalorder %s85, %s88
    %p94 = scmp.eq.s32.totalorder %s9, 0
    %p95 = por %p93, %p94
    %p96 = scmp.ne.s32.totalorder %s85, %s88
    %p97 = scmp.eq.s32.totalorder %s14, 2
    %p98 = por %p96, %p97
    %p99 = scmp.ne.s32.totalorder %s88, %s89
    %p100 = scmp.eq.s32.totalorder %s14, 0
    %p101 = por %p99, %p100
    %p102 = scmp.ne.s32.totalorder %s88, %s89
    %p103 = scmp.eq.s32.totalorder %s15, 2
    %p104 = por %p102, %p103
    %p106 = scmp.ne.s32.totalorder %s89, %s105
    %p107 = scmp.eq.s32.totalorder %s15, 0
    %p108 = por %p106, %p107
    %s109 = ssub.s32 %s16, %s28
    %s110 = ssub.s32 %s17, %s24
    %s111 = sor.u32 %s109, %s110
    %p112 = scmp.eq.s32.totalorder %s111, 0
    %s114 = sadd.s32 %s113, 1
    %s115 = scalar_select %p112, %s113, %s114
    %p118 = pneg %p112
    %p119 = scmp.eq.s32.totalorder %s9, 2
    %p120 = por %p118, %p119
    %p121 = scmp.ne.s32.totalorder %s113, %s116
    %p122 = scmp.eq.s32.totalorder %s9, 0
    %p123 = por %p121, %p122
    %p124 = scmp.ne.s32.totalorder %s113, %s116
    %p125 = scmp.eq.s32.totalorder %s14, 2
    %p126 = por %p124, %p125
    %p127 = scmp.ne.s32.totalorder %s116, %s117
    %p128 = scmp.eq.s32.totalorder %s14, 0
    %p129 = por %p127, %p128
    %p130 = scmp.ne.s32.totalorder %s116, %s117
    %p131 = scmp.eq.s32.totalorder %s15, 2
    %p132 = por %p130, %p131
    %p134 = scmp.ne.s32.totalorder %s117, %s133
    %p135 = scmp.eq.s32.totalorder %s15, 0
    %p136 = por %p134, %p135
    %p137 = scmp.le.s32.totalorder 1, %s9
    %p138 = scmp.lt.s32.totalorder %s9, 4
    %p139 = pnand %p137, %p138
    %p140 = pneg %p139
    // Predicated region
    $region9: #{smtl_forward.19} parent=5 // pred_check
      _
    $region10: #{smtl_forward.19} parent=5 // pred_check_branch
      %142 = sbr.rel (%p139) target = $region12
    $region11: #{smtl_forward.19} parent=5 // pred_region
      %s143 = ssub.s32 %s9, 1
    $region12: #{smtl_forward.19} parent=5 // pred_fallthru
      _
    %p144 = scmp.lt.s32.totalorder %s9, 3
    // Predicated region
    $region13: #{smtl_forward.19} parent=5 // pred_check
      %p145 = pneg %p144
    $region14: #{smtl_forward.19} parent=5 // pred_check_branch
      %147 = sbr.rel (%p145) target = $region16
    $region15: #{smtl_forward.19} parent=5 // pred_region
      // Predicated region
      $region17: #{smtl_forward.19} parent=15 // pred_check
        %p148 = pneg %p43
      $region18: #{smtl_forward.19} parent=15 // pred_check_branch
        %150 = sbr.rel (%p148) target = $region20
      $region19: #{smtl_forward.19} parent=15 // pred_region
        %s151 = smul.u32 16, %s17
        %p152 = scmp.lt.s32.totalorder %s16, 2
        %s153 = scalar_select %p152, %s16, 2
        %p154 = scmp.lt.s32.totalorder %s151, 15
        %s155 = scalar_select %p154, %s151, 15
        %s156 = smul.addr %s155, 2
        %s157 = smul.addr %s153, 32
        %s158 = sadd.s32 %s156, %s157
        %s159 = smul.addr %s158, 4
        %s160 = scalar_lea.vmem %s0, %s159
        %s161 = smul.u32 16, %s17
      $region20: #{smtl_forward.19} parent=15 // pred_fallthru
        _
      // Predicated region
      $region21: #{smtl_forward.19} parent=15 // pred_check
        %p162 = pneg %p69
      $region22: #{smtl_forward.19} parent=15 // pred_check_branch
        %164 = sbr.rel (%p162) target = $region24
      $region23: #{smtl_forward.19} parent=15 // pred_region
        %p165 = scmp.lt.s32.totalorder %s16, 2
        %s166 = scalar_select %p165, %s16, 2
        %s167 = smul.addr %s166, 18
        %s168 = smul.addr %s167, 4
        %s169 = scalar_lea.vmem %s1, %s168
      $region24: #{smtl_forward.19} parent=15 // pred_fallthru
        _
      // Predicated region
      $region25: #{smtl_forward.19} parent=15 // pred_check
        %p170 = pneg %p95
      $region26: #{smtl_forward.19} parent=15 // pred_check_branch
        %172 = sbr.rel (%p170) target = $region28
      $region27: #{smtl_forward.19} parent=15 // pred_region
        %p173 = scmp.lt.s32.totalorder %s16, 2
        %s174 = scalar_select %p173, %s16, 2
        %s175 = scalar_lea.vmem %s2, %s174
      $region28: #{smtl_forward.19} parent=15 // pred_fallthru
        _
    $region16: #{smtl_forward.19} parent=5 // pred_fallthru
      _
    %p176 = scmp.le.s32.totalorder 1, %s9
    %p177 = scmp.lt.s32.totalorder %s9, 4
    %p178 = pnand %p176, %p177
    %p179 = pneg %p178
    // Predicated region
    $region29: #{smtl_forward.19} parent=5 // pred_check
      _
    $region30: #{smtl_forward.19} parent=5 // pred_check_branch
      %181 = sbr.rel (%p178) target = $region32
    $region31: #{smtl_forward.19} parent=5 // pred_region
      %s182 = ssub.s32 %s9, 1
      %s183 = smul.u32 16, %s19
      %p184 = scmp.lt.s32.totalorder %s18, 2
      %s185 = scalar_select %p184, %s18, 2
      %p186 = scmp.lt.s32.totalorder %s183, 15
      %s187 = scalar_select %p186, %s183, 15
      %s188 = smul.addr %s187, 2
      %s189 = smul.addr %s185, 32
      %s190 = sadd.s32 %s188, %s189
      %s191 = smul.addr %s190, 4
      %s192 = scalar_lea.vmem %s0, %s191
      %p193 = pneg %p49
      %p194 = pneg %p46
      %p195 = scmp.lt.s32.totalorder %s18, 2
      %s196 = scalar_select %p195, %s18, 2
      %s197 = smul.addr %s196, 18
      %s198 = smul.addr %s197, 4
      %s199 = scalar_lea.vmem %s1, %s198
      %p200 = pneg %p75
      %p201 = pneg %p72
      %p202 = scmp.lt.s32.totalorder %s18, 2
      %s203 = scalar_select %p202, %s18, 2
      %s204 = scalar_lea.vmem %s2, %s203
      %p205 = pneg %p101
      %p206 = pneg %p98
      %p207 = pneg %p129
      %p208 = pneg %p126
      %s209 = smul.u32 16, %s19
      %p210 = scmp.lt.s32.totalorder %s18, 2
      %s211 = scalar_select %p210, %s18, 2
      %p212 = scmp.lt.s32.totalorder %s209, 15
      %s213 = scalar_select %p212, %s209, 15
      %s214 = smul.addr %s211, 16
      %s215 = sadd.s32 %s213, %s214
      %s216 = smul.addr %s215, 8
      %s217 = scalar_lea.vmem %s3, %s216
      %s218 = smul.u32 16, %s19
      %p219 = scmp.lt.s32.totalorder %s18, 2
      %s220 = scalar_select %p219, %s18, 2
      %p221 = scmp.lt.s32.totalorder %s218, 15
      %s222 = scalar_select %p221, %s218, 15
      %s223 = smul.addr %s222, 2
      %s224 = smul.addr %s220, 32
      %s225 = sadd.s32 %s223, %s224
      %s226 = smul.addr %s225, 4
      %s227 = scalar_lea.vmem %s0, %s226
      %s228 = smul.u32 16, %s19
      %p229 = scmp.lt.s32.totalorder %s18, 2
      %s230 = scalar_select %p229, %s18, 2
      %s231 = smul.addr %s230, 18
      %s232 = smul.addr %s231, 4
      %s233 = scalar_lea.vmem %s1, %s232
      %p234 = scmp.lt.s32.totalorder %s18, 2
      %s235 = scalar_select %p234, %s18, 2
      %s236 = scalar_lea.vmem %s2, %s235
      %s237 = smul.u32 16, %s19
      %p238 = scmp.lt.s32.totalorder %s18, 2
      %s239 = scalar_select %p238, %s18, 2
      %p240 = scmp.lt.s32.totalorder %s237, 15
      %s241 = scalar_select %p240, %s237, 15
      %s242 = smul.addr %s239, 16
      %s243 = sadd.s32 %s241, %s242
      %s244 = smul.addr %s243, 8
      %s245 = scalar_lea.vmem %s3, %s244
      %s246 = smul.u32 16, %s19
      %v248 = vld [vmem:[%s227] sm:$0xff]
      %v249 = vld [vmem:[%s227 + $0x8] sm:$0xff]
      %v250 = vld [vmem:[%s227 + $0x10] sm:$0xff]
      %v251 = vld [vmem:[%s227 + $0x18] sm:$0xff]
      %v252 = vld [vmem:[%s227 + $0x20] sm:$0xff]
      %v253 = vld [vmem:[%s227 + $0x28] sm:$0xff]
      %v254 = vld [vmem:[%s227 + $0x30] sm:$0xff]
      %v255 = vld [vmem:[%s227 + $0x38] sm:$0xff]
      %v256 = vld [vmem:[%s227 + $0x40] sm:$0xff]
      %v257 = vld [vmem:[%s227 + $0x48] sm:$0xff]
      %v258 = vld [vmem:[%s227 + $0x50] sm:$0xff]
      %v259 = vld [vmem:[%s227 + $0x58] sm:$0xff]
      %v260 = vld [vmem:[%s227 + $0x60] sm:$0xff]
      %v261 = vld [vmem:[%s227 + $0x68] sm:$0xff]
      %v262 = vld [vmem:[%s227 + $0x70] sm:$0xff]
      %v263 = vld [vmem:[%s227 + $0x78] sm:$0xff]
      %v264 = vld [vmem:[%s233] sm:$0xf]
      %v265 = vld [vmem:[%s233 + $0x4] sm:$0xf]
      %v266 = vld [vmem:[%s233 + $0x8] sm:$0xf]
      %v267 = vld [vmem:[%s233 + $0xc] sm:$0xf]
      %v268 = vld [vmem:[%s233 + $0x10] sm:$0xf]
      %v269 = vld [vmem:[%s233 + $0x14] sm:$0xf]
      %v270 = vld [vmem:[%s233 + $0x18] sm:$0xf]
      %v271 = vld [vmem:[%s233 + $0x1c] sm:$0xf]
      %v272 = vld [vmem:[%s233 + $0x20] sm:$0xf]
      %v273 = vld [vmem:[%s233 + $0x24] sm:$0xf]
      %v274 = vld [vmem:[%s233 + $0x28] sm:$0xf]
      %v275 = vld [vmem:[%s233 + $0x2c] sm:$0xf]
      %v276 = vld [vmem:[%s233 + $0x30] sm:$0xf]
      %v277 = vld [vmem:[%s233 + $0x34] sm:$0xf]
      %v278 = vld [vmem:[%s233 + $0x38] sm:$0xf]
      %v279 = vld [vmem:[%s233 + $0x3c] sm:$0xf]
      %v280 = vld [vmem:[%s233 + $0x40] sm:$0xf]
      %v281 = vld [vmem:[%s233 + $0x44] sm:$0xf]
      %v282 = vld [vmem:[%s236] sm:$0x1]
      %v284 = vlaneseq
      %v285 = vshrl.u32 %v284, 7
      %v286 = vsub.s32 0, %v285
      %v287 = vrot.slane %v282, %v286
      %v305 = vunpack.c.l.b16 %v248
      %v306 = vunpack.c.h.b16 %v248
      %v307 = vunpack.c.l.b16 %v249
      %v308 = vunpack.c.h.b16 %v249
      %v309 = vunpack.c.l.b16 %v250
      %v310 = vunpack.c.h.b16 %v250
      %v311 = vunpack.c.l.b16 %v251
      %v312 = vunpack.c.h.b16 %v251
      %v313 = vunpack.c.l.b16 %v252
      %v314 = vunpack.c.h.b16 %v252
      %v315 = vunpack.c.l.b16 %v253
      %v316 = vunpack.c.h.b16 %v253
      %v317 = vunpack.c.l.b16 %v254
      %v318 = vunpack.c.h.b16 %v254
      %v319 = vunpack.c.l.b16 %v255
      %v320 = vunpack.c.h.b16 %v255
      %v321 = vunpack.c.l.b16 %v256
      %v322 = vunpack.c.h.b16 %v256
      %v323 = vunpack.c.l.b16 %v257
      %v324 = vunpack.c.h.b16 %v257
      %v325 = vunpack.c.l.b16 %v258
      %v326 = vunpack.c.h.b16 %v258
      %v327 = vunpack.c.l.b16 %v259
      %v328 = vunpack.c.h.b16 %v259
      %v329 = vunpack.c.l.b16 %v260
      %v330 = vunpack.c.h.b16 %v260
      %v331 = vunpack.c.l.b16 %v261
      %v332 = vunpack.c.h.b16 %v261
      %v333 = vunpack.c.l.b16 %v262
      %v334 = vunpack.c.h.b16 %v262
      %v335 = vunpack.c.l.b16 %v263
      %v336 = vunpack.c.h.b16 %v263
      %v337 = vpack.c.b16 %v307, %v305
      %v338 = vpack.c.b16 %v308, %v306
      %v339 = vpack.c.b16 %v311, %v309
      %v340 = vpack.c.b16 %v312, %v310
      %v341 = vpack.c.b16 %v315, %v313
      %v342 = vpack.c.b16 %v316, %v314
      %v343 = vpack.c.b16 %v319, %v317
      %v344 = vpack.c.b16 %v320, %v318
      %v345 = vpack.c.b16 %v323, %v321
      %v346 = vpack.c.b16 %v324, %v322
      %v347 = vpack.c.b16 %v327, %v325
      %v348 = vpack.c.b16 %v328, %v326
      %v349 = vpack.c.b16 %v331, %v329
      %v350 = vpack.c.b16 %v332, %v330
      %v351 = vpack.c.b16 %v335, %v333
      %v352 = vpack.c.b16 %v336, %v334
      %v379 = vunpack.c.l.b16 %v264
      %v380 = vunpack.c.l.b16 %v265
      %v381 = vunpack.c.l.b16 %v266
      %v382 = vunpack.c.l.b16 %v267
      %v383 = vunpack.c.l.b16 %v268
      %v384 = vunpack.c.l.b16 %v269
      %v385 = vunpack.c.l.b16 %v270
      %v386 = vunpack.c.l.b16 %v271
      %v387 = vunpack.c.l.b16 %v272
      %v388 = vunpack.c.l.b16 %v273
      %v389 = vunpack.c.l.b16 %v274
      %v390 = vunpack.c.l.b16 %v275
      %v391 = vunpack.c.l.b16 %v276
      %v392 = vunpack.c.l.b16 %v277
      %v393 = vunpack.c.l.b16 %v278
      %v394 = vunpack.c.l.b16 %v279
      %v395 = vunpack.c.l.b16 %v280
      %v396 = vunpack.c.l.b16 %v281
      %v397 = vpack.c.b16 %v380, %v379
      %v398 = vpack.c.b16 %v382, %v381
      %v399 = vpack.c.b16 %v384, %v383
      %v400 = vpack.c.b16 %v386, %v385
      %v401 = vpack.c.b16 %v388, %v387
      %v402 = vpack.c.b16 %v390, %v389
      %v403 = vpack.c.b16 %v392, %v391
      %v404 = vpack.c.b16 %v394, %v393
      %v405 = vpack.c.b16 %v396, %v395
      %vm415 = vcmask 130048
      %v417 = vsel %vm415, %v338, 0
      %v420 = vsel %vm415, %v340, 0
      %v423 = vsel %vm415, %v342, 0
      %v426 = vsel %vm415, %v344, 0
      %v429 = vsel %vm415, %v346, 0
      %v432 = vsel %vm415, %v348, 0
      %v435 = vsel %vm415, %v350, 0
      %v438 = vsel %vm415, %v352, 0
      %440 = vmatprep.subr.bf16.mxu0 0
      %441 = vmatpush1.bf16.msra.mxu0 %v397
      %442 = vmatprep.subr.bf16.mxu0 0
      %443 = vmatpush1.bf16.msra.mxu0 %v398
      %444 = vmatprep.subr.bf16.mxu0 0
      %445 = vmatpush1.bf16.msra.mxu0 %v399
      %446 = vmatprep.subr.bf16.mxu0 0
      %447 = vmatpush1.bf16.msra.mxu0 %v400
      %448 = vmatprep.subr.bf16.mxu0 0
      %449 = vmatpush1.bf16.msra.mxu0 %v401
      %450 = vmatprep.subr.bf16.mxu0 0
      %451 = vmatpush1.bf16.msra.mxu0 %v402
      %452 = vmatprep.subr.bf16.mxu0 0
      %453 = vmatpush1.bf16.msra.mxu0 %v403
      %454 = vmatprep.subr.bf16.mxu0 0
      %455 = vmatpush1.bf16.msra.mxu0 %v404
      %456 = vmatprep.subr.bf16.mxu0 0
      %457 = vmatpush1.bf16.msra.mxu0 %v405
      %458 = vmatprep.subr.bf16.mxu0 0
      %459 = vmatpush1.bf16.msra.mxu0 0
      %460 = vmatprep.subr.bf16.mxu0 0
      %461 = vmatpush1.bf16.msra.mxu0 0
      %462 = vmatprep.subr.bf16.mxu0 0
      %463 = vmatpush1.bf16.msra.mxu0 0
      %464 = vmatprep.subr.bf16.mxu0 0
      %465 = vmatpush1.bf16.msra.mxu0 0
      %466 = vmatprep.subr.bf16.mxu0 0
      %467 = vmatpush1.bf16.msra.mxu0 0
      %468 = vmatprep.subr.bf16.mxu0 0
      %469 = vmatpush1.bf16.msra.mxu0 0
      %470 = vmatprep.subr.bf16.mxu0 0
      %471 = vmatpush1.bf16.msra.mxu0 0
      %472 = vmatprep.mubr.bf16.mxu0 %v417
      %473 = vmatmul.mubr.bf16.gmra.mrb[0].mxu0 %v337
      %v474 = vpop.f32.mrb[0].mxu0
      %v475 = vadd.f32 %v287, %v474
      %v476 = vpop.f32.mrb[0].mxu0
      %v477 = vpop.f32.mrb[0].mxu0
      %v478 = vadd.f32 %v287, %v477
      %v479 = vpop.f32.mrb[0].mxu0
      %480 = vmatprep.mubr.bf16.mxu0 %v420
      %481 = vmatmul.mubr.bf16.gmra.mrb[0].mxu0 %v339
      %v482 = vpop.f32.mrb[0].mxu0
      %v483 = vadd.f32 %v287, %v482
      %v484 = vpop.f32.mrb[0].mxu0
      %v485 = vpop.f32.mrb[0].mxu0
      %v486 = vadd.f32 %v287, %v485
      %v487 = vpop.f32.mrb[0].mxu0
      %488 = vmatprep.mubr.bf16.mxu0 %v423
      %489 = vmatmul.mubr.bf16.gmra.mrb[0].mxu0 %v341
      %v490 = vpop.f32.mrb[0].mxu0
      %v491 = vadd.f32 %v287, %v490
      %v492 = vpop.f32.mrb[0].mxu0
      %v493 = vpop.f32.mrb[0].mxu0
      %v494 = vadd.f32 %v287, %v493
      %v495 = vpop.f32.mrb[0].mxu0
      %496 = vmatprep.mubr.bf16.mxu0 %v426
      %497 = vmatmul.mubr.bf16.gmra.mrb[0].mxu0 %v343
      %v498 = vpop.f32.mrb[0].mxu0
      %v499 = vadd.f32 %v287, %v498
      %v500 = vpop.f32.mrb[0].mxu0
      %v501 = vpop.f32.mrb[0].mxu0
      %v502 = vadd.f32 %v287, %v501
      %v503 = vpop.f32.mrb[0].mxu0
      %504 = vmatprep.mubr.bf16.mxu0 %v429
      %505 = vmatmul.mubr.bf16.gmra.mrb[0].mxu0 %v345
      %v506 = vpop.f32.mrb[0].mxu0
      %v507 = vadd.f32 %v287, %v506
      %v508 = vpop.f32.mrb[0].mxu0
      %v509 = vpop.f32.mrb[0].mxu0
      %v510 = vadd.f32 %v287, %v509
      %v511 = vpop.f32.mrb[0].mxu0
      %512 = vmatprep.mubr.bf16.mxu0 %v432
      %513 = vmatmul.mubr.bf16.gmra.mrb[0].mxu0 %v347
      %v514 = vpop.f32.mrb[0].mxu0
      %v515 = vadd.f32 %v287, %v514
      %v516 = vpop.f32.mrb[0].mxu0
      %v517 = vpop.f32.mrb[0].mxu0
      %v518 = vadd.f32 %v287, %v517
      %v519 = vpop.f32.mrb[0].mxu0
      %520 = vmatprep.mubr.bf16.mxu0 %v435
      %521 = vmatmul.mubr.bf16.gmra.mrb[0].mxu0 %v349
      %v522 = vpop.f32.mrb[0].mxu0
      %v523 = vadd.f32 %v287, %v522
      %v524 = vpop.f32.mrb[0].mxu0
      %v525 = vpop.f32.mrb[0].mxu0
      %v526 = vadd.f32 %v287, %v525
      %v527 = vpop.f32.mrb[0].mxu0
      %528 = vmatprep.mubr.bf16.mxu0 %v438
      %529 = vmatmul.mubr.bf16.gmra.mrb[0].mxu0 %v351
      %v530 = vpop.f32.mrb[0].mxu0
      %v531 = vadd.f32 %v287, %v530
      %v532 = vpop.f32.mrb[0].mxu0
      %v533 = vpop.f32.mrb[0].mxu0
      %v534 = vadd.f32 %v287, %v533
      %v535 = vpop.f32.mrb[0].mxu0
      %536 = vdwg.mxu0
      %v537 = vmax.f32 %v475, 0.0
      %v538 = vmax.f32 %v478, 0.0
      %v539 = vmax.f32 %v483, 0.0
      %v540 = vmax.f32 %v486, 0.0
      %v541 = vmax.f32 %v491, 0.0
      %v542 = vmax.f32 %v494, 0.0
      %v543 = vmax.f32 %v499, 0.0
      %v544 = vmax.f32 %v502, 0.0
      %v545 = vmax.f32 %v507, 0.0
      %v546 = vmax.f32 %v510, 0.0
      %v547 = vmax.f32 %v515, 0.0
      %v548 = vmax.f32 %v518, 0.0
      %v549 = vmax.f32 %v523, 0.0
      %v550 = vmax.f32 %v526, 0.0
      %v551 = vmax.f32 %v531, 0.0
      %v552 = vmax.f32 %v534, 0.0
      %vm553 = vcmask 261120
      %554 = vst.msk [vmem:[%s245] sm:$0xff] %vm553, %v537
      %555 = vst.msk [vmem:[%s245 + $0x8] sm:$0xff] %vm553, %v538
      %556 = vst.msk [vmem:[%s245 + $0x10] sm:$0xff] %vm553, %v539
      %557 = vst.msk [vmem:[%s245 + $0x18] sm:$0xff] %vm553, %v540
      %558 = vst.msk [vmem:[%s245 + $0x20] sm:$0xff] %vm553, %v541
      %559 = vst.msk [vmem:[%s245 + $0x28] sm:$0xff] %vm553, %v542
      %560 = vst.msk [vmem:[%s245 + $0x30] sm:$0xff] %vm553, %v543
      %561 = vst.msk [vmem:[%s245 + $0x38] sm:$0xff] %vm553, %v544
      %562 = vst.msk [vmem:[%s245 + $0x40] sm:$0xff] %vm553, %v545
      %563 = vst.msk [vmem:[%s245 + $0x48] sm:$0xff] %vm553, %v546
      %564 = vst.msk [vmem:[%s245 + $0x50] sm:$0xff] %vm553, %v547
      %565 = vst.msk [vmem:[%s245 + $0x58] sm:$0xff] %vm553, %v548
      %566 = vst.msk [vmem:[%s245 + $0x60] sm:$0xff] %vm553, %v549
      %567 = vst.msk [vmem:[%s245 + $0x68] sm:$0xff] %vm553, %v550
      %568 = vst.msk [vmem:[%s245 + $0x70] sm:$0xff] %vm553, %v551
      %569 = vst.msk [vmem:[%s245 + $0x78] sm:$0xff] %vm553, %v552
      %s570 = smul.u32 16, %s19
      %p571 = scmp.lt.s32.totalorder %s18, 2
      %s572 = scalar_select %p571, %s18, 2
      %p573 = scmp.lt.s32.totalorder %s570, 15
      %s574 = scalar_select %p573, %s570, 15
      %s575 = smul.addr %s572, 16
      %s576 = sadd.s32 %s574, %s575
      %s577 = smul.addr %s576, 8
      %s578 = scalar_lea.vmem %s3, %s577
      // Predicated region
      $region33: #{smtl_forward.19} parent=31 // pred_check
        %p579 = pneg %p126
      $region34: #{smtl_forward.19} parent=31 // pred_check_branch
        %581 = sbr.rel (%p579) target = $region36
      $region35: #{smtl_forward.19} parent=31 // pred_region
        %s582 = smul.u32 16, %s19
      $region36: #{smtl_forward.19} parent=31 // pred_fallthru
        _
    $region32: #{smtl_forward.19} parent=5 // pred_fallthru
      _
    %p583 = scmp.le.s32.totalorder 2, %s9
    // Predicated region
    $region37: #{smtl_forward.19} parent=5 // pred_check
      %p584 = pneg %p583
    $region38: #{smtl_forward.19} parent=5 // pred_check_branch
      %586 = sbr.rel (%p584) target = $region40
    $region39: #{smtl_forward.19} parent=5 // pred_region
      %s587 = ssub.s32 %s9, 2
      // Predicated region
      $region41: #{smtl_forward.19} parent=39 // pred_check
        %p588 = pneg %p132
      $region42: #{smtl_forward.19} parent=39 // pred_check_branch
        %590 = sbr.rel (%p588) target = $region44
      $region43: #{smtl_forward.19} parent=39 // pred_region
        %s591 = smul.u32 16, %s21
        %p592 = scmp.lt.s32.totalorder %s20, 2
        %s593 = scalar_select %p592, %s20, 2
        %p594 = scmp.lt.s32.totalorder %s591, 15
        %s595 = scalar_select %p594, %s591, 15
        %s596 = smul.addr %s593, 16
        %s597 = sadd.s32 %s595, %s596
        %s598 = smul.addr %s597, 8
        %s599 = scalar_lea.vmem %s3, %s598
      $region44: #{smtl_forward.19} parent=39 // pred_fallthru
        _
    $region40: #{smtl_forward.19} parent=5 // pred_fallthru
      _
  $region6: #{smtl_forward.19} parent=0 // loop_footer
    %s13 = sadd.s32 1, %s9
  $region7: #{smtl_forward.19} parent=0 // loop_footer_branch
    %8 = sbr.rel target = $region3
  $region8: #{smtl_forward.19} parent=0 // loop_exit
    _

// kernel: smtl_forward.18
$region0: #{smtl_forward.18}
  #allocation0 [shape = 'u32[]', space=smem, size = 0x4, offset = 0x4, fixed_abs, tag = 'smem constant byte address 0x4 - core index']
  #allocation1 [shape = 'u32[144,128]{1,0:T(1,128)}', space=vmem, size = 0x12000, scoped, tag = 'internal scratch']
  %s0 = inlined_call_operand.vmem [shape: bf16[3,128,16], index: 0, kind: input, shape index: {}]
  %s1 = inlined_call_operand.vmem [shape: bf16[3,16,32], index: 1, kind: input, shape index: {}]
  %s2 = inlined_call_operand.vmem [shape: f32[3,1,32], index: 2, kind: input, shape index: {}]
  %s3 = inlined_call_operand.vmem [shape: f32[3,128,32], index: 3, kind: output, shape index: {}]
  %s4 = sld [smem:[#allocation0]]
  $region45: #{smtl_forward.18} parent=0
    _
  %s6 = ssub.s32 1, %s4
  %s7 = scalar_select 0, %s6, %s4
  loop: start=0, step=1, limit=5
  $region2: #{smtl_forward.18} parent=0 // loop_pre_header
    _
  $region3: #{smtl_forward.18} parent=0 // loop_header
    %s9 = sphi 0, %s13
    %p10 = scmp.ge.s32.totalorder %s9, 5
    %s16 = sphi 0, %s28
    %s17 = sphi 0, %s24
    %s18 = sphi 0, %s16
    %s19 = sphi 0, %s17
    %s20 = sphi 0, %s18
    %s21 = sphi 0, %s19
    %s33 = sphi 0, %s35
    %s36 = sphi 0, %s33
    %s37 = sphi 0, %s36
    %s53 = sphi 0, %s37
    %s59 = sphi 0, %s61
    %s62 = sphi 0, %s59
    %s63 = sphi 0, %s62
    %s79 = sphi 0, %s63
    %s85 = sphi 0, %s87
    %s88 = sphi 0, %s85
    %s89 = sphi 0, %s88
    %s105 = sphi 0, %s89
    %s113 = sphi 0, %s115
    %s116 = sphi 0, %s113
    %s117 = sphi 0, %s116
    %s133 = sphi 0, %s117
  $region4: #{smtl_forward.18} parent=0 // loop_header_branch
    %12 = sbr.rel (%p10) target = $region8
  $region5: #{smtl_forward.18} parent=0 // loop_body
    %s14 = ssub.s32 %s9, 1
    %s15 = ssub.s32 %s9, 2
    %s22 = sadd.s32 1, %s17
    %p23 = scmp.ge.s32.totalorder %s22, 1
    %s24 = scalar_select %p23, 0, %s22
    %s25 = sadd.s32 1, %s16
    %s26 = scalar_select %p23, %s25, %s16
    %p27 = scmp.ge.s32.totalorder %s26, 3
    %s28 = scalar_select %p27, 0, %s26
    %s29 = ssub.s32 %s16, %s28
    %s30 = ssub.s32 %s17, %s24
    %s31 = sor.u32 %s29, %s30
    %p32 = scmp.eq.s32.totalorder %s31, 0
    %s34 = sadd.s32 %s33, 1
    %s35 = scalar_select %p32, %s33, %s34
    %p38 = pneg %p32
    %p39 = scmp.eq.s32.totalorder %s9, 2
    %p40 = por %p38, %p39
    %p41 = scmp.ne.s32.totalorder %s33, %s36
    %p42 = scmp.eq.s32.totalorder %s9, 0
    %p43 = por %p41, %p42
    %p44 = scmp.ne.s32.totalorder %s33, %s36
    %p45 = scmp.eq.s32.totalorder %s14, 2
    %p46 = por %p44, %p45
    %p47 = scmp.ne.s32.totalorder %s36, %s37
    %p48 = scmp.eq.s32.totalorder %s14, 0
    %p49 = por %p47, %p48
    %p50 = scmp.ne.s32.totalorder %s36, %s37
    %p51 = scmp.eq.s32.totalorder %s15, 2
    %p52 = por %p50, %p51
    %p54 = scmp.ne.s32.totalorder %s37, %s53
    %p55 = scmp.eq.s32.totalorder %s15, 0
    %p56 = por %p54, %p55
    %s57 = ssub.s32 %s16, %s28
    %p58 = scmp.eq.s32.totalorder %s57, 0
    %s60 = sadd.s32 %s59, 1
    %s61 = scalar_select %p58, %s59, %s60
    %p64 = pneg %p58
    %p65 = scmp.eq.s32.totalorder %s9, 2
    %p66 = por %p64, %p65
    %p67 = scmp.ne.s32.totalorder %s59, %s62
    %p68 = scmp.eq.s32.totalorder %s9, 0
    %p69 = por %p67, %p68
    %p70 = scmp.ne.s32.totalorder %s59, %s62
    %p71 = scmp.eq.s32.totalorder %s14, 2
    %p72 = por %p70, %p71
    %p73 = scmp.ne.s32.totalorder %s62, %s63
    %p74 = scmp.eq.s32.totalorder %s14, 0
    %p75 = por %p73, %p74
    %p76 = scmp.ne.s32.totalorder %s62, %s63
    %p77 = scmp.eq.s32.totalorder %s15, 2
    %p78 = por %p76, %p77
    %p80 = scmp.ne.s32.totalorder %s63, %s79
    %p81 = scmp.eq.s32.totalorder %s15, 0
    %p82 = por %p80, %p81
    %s83 = ssub.s32 %s16, %s28
    %p84 = scmp.eq.s32.totalorder %s83, 0
    %s86 = sadd.s32 %s85, 1
    %s87 = scalar_select %p84, %s85, %s86
    %p90 = pneg %p84
    %p91 = scmp.eq.s32.totalorder %s9, 2
    %p92 = por %p90, %p91
    %p93 = scmp.ne.s32.totalorder %s85, %s88
    %p94 = scmp.eq.s32.totalorder %s9, 0
    %p95 = por %p93, %p94
    %p96 = scmp.ne.s32.totalorder %s85, %s88
    %p97 = scmp.eq.s32.totalorder %s14, 2
    %p98 = por %p96, %p97
    %p99 = scmp.ne.s32.totalorder %s88, %s89
    %p100 = scmp.eq.s32.totalorder %s14, 0
    %p101 = por %p99, %p100
    %p102 = scmp.ne.s32.totalorder %s88, %s89
    %p103 = scmp.eq.s32.totalorder %s15, 2
    %p104 = por %p102, %p103
    %p106 = scmp.ne.s32.totalorder %s89, %s105
    %p107 = scmp.eq.s32.totalorder %s15, 0
    %p108 = por %p106, %p107
    %s109 = ssub.s32 %s16, %s28
    %s110 = ssub.s32 %s17, %s24
    %s111 = sor.u32 %s109, %s110
    %p112 = scmp.eq.s32.totalorder %s111, 0
    %s114 = sadd.s32 %s113, 1
    %s115 = scalar_select %p112, %s113, %s114
    %p118 = pneg %p112
    %p119 = scmp.eq.s32.totalorder %s9, 2
    %p120 = por %p118, %p119
    %p121 = scmp.ne.s32.totalorder %s113, %s116
    %p122 = scmp.eq.s32.totalorder %s9, 0
    %p123 = por %p121, %p122
    %p124 = scmp.ne.s32.totalorder %s113, %s116
    %p125 = scmp.eq.s32.totalorder %s14, 2
    %p126 = por %p124, %p125
    %p127 = scmp.ne.s32.totalorder %s116, %s117
    %p128 = scmp.eq.s32.totalorder %s14, 0
    %p129 = por %p127, %p128
    %p130 = scmp.ne.s32.totalorder %s116, %s117
    %p131 = scmp.eq.s32.totalorder %s15, 2
    %p132 = por %p130, %p131
    %p134 = scmp.ne.s32.totalorder %s117, %s133
    %p135 = scmp.eq.s32.totalorder %s15, 0
    %p136 = por %p134, %p135
    %p137 = scmp.le.s32.totalorder 1, %s9
    %p138 = scmp.lt.s32.totalorder %s9, 4
    %p139 = pnand %p137, %p138
    %p140 = pneg %p139
    // Predicated region
    $region9: #{smtl_forward.18} parent=5 // pred_check
      _
    $region10: #{smtl_forward.18} parent=5 // pred_check_branch
      %142 = sbr.rel (%p139) target = $region12
    $region11: #{smtl_forward.18} parent=5 // pred_region
      %s143 = ssub.s32 %s9, 1
    $region12: #{smtl_forward.18} parent=5 // pred_fallthru
      _
    %p144 = scmp.lt.s32.totalorder %s9, 3
    // Predicated region
    $region13: #{smtl_forward.18} parent=5 // pred_check
      %p145 = pneg %p144
    $region14: #{smtl_forward.18} parent=5 // pred_check_branch
      %147 = sbr.rel (%p145) target = $region16
    $region15: #{smtl_forward.18} parent=5 // pred_region
      // Predicated region
      $region17: #{smtl_forward.18} parent=15 // pred_check
        %p148 = pneg %p43
      $region18: #{smtl_forward.18} parent=15 // pred_check_branch
        %150 = sbr.rel (%p148) target = $region20
      $region19: #{smtl_forward.18} parent=15 // pred_region
        %s151 = smul.u32 16, %s17
        %p152 = scmp.lt.s32.totalorder %s16, 2
        %s153 = scalar_select %p152, %s16, 2
        %p154 = scmp.lt.s32.totalorder %s151, 15
        %s155 = scalar_select %p154, %s151, 15
        %s156 = smul.addr %s153, 16
        %s157 = sadd.s32 %s155, %s156
        %s158 = smul.addr %s157, 4
        %s159 = scalar_lea.vmem %s0, %s158
        %s160 = smul.u32 16, %s17
      $region20: #{smtl_forward.18} parent=15 // pred_fallthru
        _
      // Predicated region
      $region21: #{smtl_forward.18} parent=15 // pred_check
        %p161 = pneg %p69
      $region22: #{smtl_forward.18} parent=15 // pred_check_branch
        %163 = sbr.rel (%p161) target = $region24
      $region23: #{smtl_forward.18} parent=15 // pred_region
        %p164 = scmp.lt.s32.totalorder %s16, 2
        %s165 = scalar_select %p164, %s16, 2
        %s166 = smul.addr %s165, 2
        %s167 = smul.addr %s166, 4
        %s168 = scalar_lea.vmem %s1, %s167
      $region24: #{smtl_forward.18} parent=15 // pred_fallthru
        _
      // Predicated region
      $region25: #{smtl_forward.18} parent=15 // pred_check
        %p169 = pneg %p95
      $region26: #{smtl_forward.18} parent=15 // pred_check_branch
        %171 = sbr.rel (%p169) target = $region28
      $region27: #{smtl_forward.18} parent=15 // pred_region
        %p172 = scmp.lt.s32.totalorder %s16, 2
        %s173 = scalar_select %p172, %s16, 2
        %s174 = scalar_lea.vmem %s2, %s173
      $region28: #{smtl_forward.18} parent=15 // pred_fallthru
        _
    $region16: #{smtl_forward.18} parent=5 // pred_fallthru
      _
    %p175 = scmp.le.s32.totalorder 1, %s9
    %p176 = scmp.lt.s32.totalorder %s9, 4
    %p177 = pnand %p175, %p176
    %p178 = pneg %p177
    // Predicated region
    $region29: #{smtl_forward.18} parent=5 // pred_check
      _
    $region30: #{smtl_forward.18} parent=5 // pred_check_branch
      %180 = sbr.rel (%p177) target = $region32
    $region31: #{smtl_forward.18} parent=5 // pred_region
      %s181 = ssub.s32 %s9, 1
      %s182 = smul.u32 16, %s19
      %p183 = scmp.lt.s32.totalorder %s18, 2
      %s184 = scalar_select %p183, %s18, 2
      %p185 = scmp.lt.s32.totalorder %s182, 15
      %s186 = scalar_select %p185, %s182, 15
      %s187 = smul.addr %s184, 16
      %s188 = sadd.s32 %s186, %s187
      %s189 = smul.addr %s188, 4
      %s190 = scalar_lea.vmem %s0, %s189
      %p191 = pneg %p49
      %p192 = pneg %p46
      %p193 = scmp.lt.s32.totalorder %s18, 2
      %s194 = scalar_select %p193, %s18, 2
      %s195 = smul.addr %s194, 2
      %s196 = smul.addr %s195, 4
      %s197 = scalar_lea.vmem %s1, %s196
      %p198 = pneg %p75
      %p199 = pneg %p72
      %p200 = scmp.lt.s32.totalorder %s18, 2
      %s201 = scalar_select %p200, %s18, 2
      %s202 = scalar_lea.vmem %s2, %s201
      %p203 = pneg %p101
      %p204 = pneg %p98
      %p205 = pneg %p129
      %p206 = pneg %p126
      %s207 = smul.u32 16, %s19
      %p208 = scmp.lt.s32.totalorder %s18, 2
      %s209 = scalar_select %p208, %s18, 2
      %p210 = scmp.lt.s32.totalorder %s207, 15
      %s211 = scalar_select %p210, %s207, 15
      %s212 = smul.addr %s209, 16
      %s213 = sadd.s32 %s211, %s212
      %s214 = smul.addr %s213, 8
      %s215 = scalar_lea.vmem %s3, %s214
      %s216 = smul.u32 16, %s19
      %p217 = scmp.lt.s32.totalorder %s18, 2
      %s218 = scalar_select %p217, %s18, 2
      %p219 = scmp.lt.s32.totalorder %s216, 15
      %s220 = scalar_select %p219, %s216, 15
      %s221 = smul.addr %s218, 16
      %s222 = sadd.s32 %s220, %s221
      %s223 = smul.addr %s222, 4
      %s224 = scalar_lea.vmem %s0, %s223
      %s225 = smul.u32 16, %s19
      %p226 = scmp.lt.s32.totalorder %s18, 2
      %s227 = scalar_select %p226, %s18, 2
      %s228 = smul.addr %s227, 2
      %s229 = smul.addr %s228, 4
      %s230 = scalar_lea.vmem %s1, %s229
      %p231 = scmp.lt.s32.totalorder %s18, 2
      %s232 = scalar_select %p231, %s18, 2
      %s233 = scalar_lea.vmem %s2, %s232
      %s234 = smul.u32 16, %s19
      %p235 = scmp.lt.s32.totalorder %s18, 2
      %s236 = scalar_select %p235, %s18, 2
      %p237 = scmp.lt.s32.totalorder %s234, 15
      %s238 = scalar_select %p237, %s234, 15
      %s239 = smul.addr %s236, 16
      %s240 = sadd.s32 %s238, %s239
      %s241 = smul.addr %s240, 8
      %s242 = scalar_lea.vmem %s3, %s241
      %s243 = smul.u32 16, %s19
      %v245 = vld [vmem:[%s224] sm:$0xf]
      %v246 = vld [vmem:[%s224 + $0x4] sm:$0xf]
      %v247 = vld [vmem:[%s224 + $0x8] sm:$0xf]
      %v248 = vld [vmem:[%s224 + $0xc] sm:$0xf]
      %v249 = vld [vmem:[%s224 + $0x10] sm:$0xf]
      %v250 = vld [vmem:[%s224 + $0x14] sm:$0xf]
      %v251 = vld [vmem:[%s224 + $0x18] sm:$0xf]
      %v252 = vld [vmem:[%s224 + $0x1c] sm:$0xf]
      %v253 = vld [vmem:[%s224 + $0x20] sm:$0xf]
      %v254 = vld [vmem:[%s224 + $0x24] sm:$0xf]
      %v255 = vld [vmem:[%s224 + $0x28] sm:$0xf]
      %v256 = vld [vmem:[%s224 + $0x2c] sm:$0xf]
      %v257 = vld [vmem:[%s224 + $0x30] sm:$0xf]
      %v258 = vld [vmem:[%s224 + $0x34] sm:$0xf]
      %v259 = vld [vmem:[%s224 + $0x38] sm:$0xf]
      %v260 = vld [vmem:[%s224 + $0x3c] sm:$0xf]
      %v261 = vld [vmem:[%s230] sm:$0xf]
      %v262 = vld [vmem:[%s230 + $0x4] sm:$0xf]
      %v263 = vld [vmem:[%s233] sm:$0x1]
      %v265 = vlaneseq
      %v266 = vshrl.u32 %v265, 7
      %v267 = vsub.s32 0, %v266
      %v268 = vrot.slane %v263, %v267
      %v286 = vunpack.c.l.b16 %v245
      %v287 = vunpack.c.l.b16 %v246
      %v288 = vunpack.c.l.b16 %v247
      %v289 = vunpack.c.l.b16 %v248
      %v290 = vunpack.c.l.b16 %v249
      %v291 = vunpack.c.l.b16 %v250
      %v292 = vunpack.c.l.b16 %v251
      %v293 = vunpack.c.l.b16 %v252
      %v294 = vunpack.c.l.b16 %v253
      %v295 = vunpack.c.l.b16 %v254
      %v296 = vunpack.c.l.b16 %v255
      %v297 = vunpack.c.l.b16 %v256
      %v298 = vunpack.c.l.b16 %v257
      %v299 = vunpack.c.l.b16 %v258
      %v300 = vunpack.c.l.b16 %v259
      %v301 = vunpack.c.l.b16 %v260
      %v302 = vpack.c.b16 %v287, %v286
      %v303 = vpack.c.b16 %v289, %v288
      %v304 = vpack.c.b16 %v291, %v290
      %v305 = vpack.c.b16 %v293, %v292
      %v306 = vpack.c.b16 %v295, %v294
      %v307 = vpack.c.b16 %v297, %v296
      %v308 = vpack.c.b16 %v299, %v298
      %v309 = vpack.c.b16 %v301, %v300
      %v312 = vunpack.c.l.b16 %v261
      %v313 = vunpack.c.l.b16 %v262
      %v314 = vpack.c.b16 %v313, %v312
      %vm316 = vcmask 130048
      %v318 = vsel %vm316, %v302, 0
      %v321 = vsel %vm316, %v303, 0
      %v324 = vsel %vm316, %v304, 0
      %v327 = vsel %vm316, %v305, 0
      %v330 = vsel %vm316, %v306, 0
      %v333 = vsel %vm316, %v307, 0
      %v336 = vsel %vm316, %v308, 0
      %v339 = vsel %vm316, %v309, 0
      %341 = vmatprep.subr.bf16.mxu0 0
      %342 = vmatpush1.bf16.msra.mxu0 %v314
      %343 = vmatprep.subr.bf16.mxu0 0
      %344 = vmatpush1.bf16.msra.mxu0 0
      %345 = vmatprep.subr.bf16.mxu0 0
      %346 = vmatpush1.bf16.msra.mxu0 0
      %347 = vmatprep.subr.bf16.mxu0 0
      %348 = vmatpush1.bf16.msra.mxu0 0
      %349 = vmatprep.subr.bf16.mxu0 0
      %350 = vmatpush1.bf16.msra.mxu0 0
      %351 = vmatprep.subr.bf16.mxu0 0
      %352 = vmatpush1.bf16.msra.mxu0 0
      %353 = vmatprep.subr.bf16.mxu0 0
      %354 = vmatpush1.bf16.msra.mxu0 0
      %355 = vmatprep.subr.bf16.mxu0 0
      %356 = vmatpush1.bf16.msra.mxu0 0
      %357 = vmatprep.subr.bf16.mxu0 0
      %358 = vmatpush1.bf16.msra.mxu0 0
      %359 = vmatprep.subr.bf16.mxu0 0
      %360 = vmatpush1.bf16.msra.mxu0 0
      %361 = vmatprep.subr.bf16.mxu0 0
      %362 = vmatpush1.bf16.msra.mxu0 0
      %363 = vmatprep.subr.bf16.mxu0 0
      %364 = vmatpush1.bf16.msra.mxu0 0
      %365 = vmatprep.subr.bf16.mxu0 0
      %366 = vmatpush1.bf16.msra.mxu0 0
      %367 = vmatprep.subr.bf16.mxu0 0
      %368 = vmatpush1.bf16.msra.mxu0 0
      %369 = vmatprep.subr.bf16.mxu0 0
      %370 = vmatpush1.bf16.msra.mxu0 0
      %371 = vmatprep.subr.bf16.mxu0 0
      %372 = vmatpush1.bf16.msra.mxu0 0
      %373 = vmatprep.mubr.bf16.mxu0 0
      %374 = vmatmul.mubr.bf16.gmra.mrb[0].mxu0 %v318
      %v375 = vpop.f32.mrb[0].mxu0
      %v376 = vadd.f32 %v268, %v375
      %v377 = vpop.f32.mrb[0].mxu0
      %v378 = vpop.f32.mrb[0].mxu0
      %v379 = vadd.f32 %v268, %v378
      %v380 = vpop.f32.mrb[0].mxu0
      %381 = vmatprep.mubr.bf16.mxu0 0
      %382 = vmatmul.mubr.bf16.gmra.mrb[0].mxu0 %v321
      %v383 = vpop.f32.mrb[0].mxu0
      %v384 = vadd.f32 %v268, %v383
      %v385 = vpop.f32.mrb[0].mxu0
      %v386 = vpop.f32.mrb[0].mxu0
      %v387 = vadd.f32 %v268, %v386
      %v388 = vpop.f32.mrb[0].mxu0
      %389 = vmatprep.mubr.bf16.mxu0 0
      %390 = vmatmul.mubr.bf16.gmra.mrb[0].mxu0 %v324
      %v391 = vpop.f32.mrb[0].mxu0
      %v392 = vadd.f32 %v268, %v391
      %v393 = vpop.f32.mrb[0].mxu0
      %v394 = vpop.f32.mrb[0].mxu0
      %v395 = vadd.f32 %v268, %v394
      %v396 = vpop.f32.mrb[0].mxu0
      %397 = vmatprep.mubr.bf16.mxu0 0
      %398 = vmatmul.mubr.bf16.gmra.mrb[0].mxu0 %v327
      %v399 = vpop.f32.mrb[0].mxu0
      %v400 = vadd.f32 %v268, %v399
      %v401 = vpop.f32.mrb[0].mxu0
      %v402 = vpop.f32.mrb[0].mxu0
      %v403 = vadd.f32 %v268, %v402
      %v404 = vpop.f32.mrb[0].mxu0
      %405 = vmatprep.mubr.bf16.mxu0 0
      %406 = vmatmul.mubr.bf16.gmra.mrb[0].mxu0 %v330
      %v407 = vpop.f32.mrb[0].mxu0
      %v408 = vadd.f32 %v268, %v407
      %v409 = vpop.f32.mrb[0].mxu0
      %v410 = vpop.f32.mrb[0].mxu0
      %v411 = vadd.f32 %v268, %v410
      %v412 = vpop.f32.mrb[0].mxu0
      %413 = vmatprep.mubr.bf16.mxu0 0
      %414 = vmatmul.mubr.bf16.gmra.mrb[0].mxu0 %v333
      %v415 = vpop.f32.mrb[0].mxu0
      %v416 = vadd.f32 %v268, %v415
      %v417 = vpop.f32.mrb[0].mxu0
      %v418 = vpop.f32.mrb[0].mxu0
      %v419 = vadd.f32 %v268, %v418
      %v420 = vpop.f32.mrb[0].mxu0
      %421 = vmatprep.mubr.bf16.mxu0 0
      %422 = vmatmul.mubr.bf16.gmra.mrb[0].mxu0 %v336
      %v423 = vpop.f32.mrb[0].mxu0
      %v424 = vadd.f32 %v268, %v423
      %v425 = vpop.f32.mrb[0].mxu0
      %v426 = vpop.f32.mrb[0].mxu0
      %v427 = vadd.f32 %v268, %v426
      %v428 = vpop.f32.mrb[0].mxu0
      %429 = vmatprep.mubr.bf16.mxu0 0
      %430 = vmatmul.mubr.bf16.gmra.mrb[0].mxu0 %v339
      %v431 = vpop.f32.mrb[0].mxu0
      %v432 = vadd.f32 %v268, %v431
      %v433 = vpop.f32.mrb[0].mxu0
      %v434 = vpop.f32.mrb[0].mxu0
      %v435 = vadd.f32 %v268, %v434
      %v436 = vpop.f32.mrb[0].mxu0
      %437 = vdwg.mxu0
      %vm438 = vcmask 261120
      %439 = vst.msk [vmem:[%s242] sm:$0xff] %vm438, %v376
      %440 = vst.msk [vmem:[%s242 + $0x8] sm:$0xff] %vm438, %v379
      %441 = vst.msk [vmem:[%s242 + $0x10] sm:$0xff] %vm438, %v384
      %442 = vst.msk [vmem:[%s242 + $0x18] sm:$0xff] %vm438, %v387
      %443 = vst.msk [vmem:[%s242 + $0x20] sm:$0xff] %vm438, %v392
      %444 = vst.msk [vmem:[%s242 + $0x28] sm:$0xff] %vm438, %v395
      %445 = vst.msk [vmem:[%s242 + $0x30] sm:$0xff] %vm438, %v400
      %446 = vst.msk [vmem:[%s242 + $0x38] sm:$0xff] %vm438, %v403
      %447 = vst.msk [vmem:[%s242 + $0x40] sm:$0xff] %vm438, %v408
      %448 = vst.msk [vmem:[%s242 + $0x48] sm:$0xff] %vm438, %v411
      %449 = vst.msk [vmem:[%s242 + $0x50] sm:$0xff] %vm438, %v416
      %450 = vst.msk [vmem:[%s242 + $0x58] sm:$0xff] %vm438, %v419
      %451 = vst.msk [vmem:[%s242 + $0x60] sm:$0xff] %vm438, %v424
      %452 = vst.msk [vmem:[%s242 + $0x68] sm:$0xff] %vm438, %v427
      %453 = vst.msk [vmem:[%s242 + $0x70] sm:$0xff] %vm438, %v432
      %454 = vst.msk [vmem:[%s242 + $0x78] sm:$0xff] %vm438, %v435
      %s455 = smul.u32 16, %s19
      %p456 = scmp.lt.s32.totalorder %s18, 2
      %s457 = scalar_select %p456, %s18, 2
      %p458 = scmp.lt.s32.totalorder %s455, 15
      %s459 = scalar_select %p458, %s455, 15
      %s460 = smul.addr %s457, 16
      %s461 = sadd.s32 %s459, %s460
      %s462 = smul.addr %s461, 8
      %s463 = scalar_lea.vmem %s3, %s462
      // Predicated region
      $region33: #{smtl_forward.18} parent=31 // pred_check
        %p464 = pneg %p126
      $region34: #{smtl_forward.18} parent=31 // pred_check_branch
        %466 = sbr.rel (%p464) target = $region36
      $region35: #{smtl_forward.18} parent=31 // pred_region
        %s467 = smul.u32 16, %s19
      $region36: #{smtl_forward.18} parent=31 // pred_fallthru
        _
    $region32: #{smtl_forward.18} parent=5 // pred_fallthru
      _
    %p468 = scmp.le.s32.totalorder 2, %s9
    // Predicated region
    $region37: #{smtl_forward.18} parent=5 // pred_check
      %p469 = pneg %p468
    $region38: #{smtl_forward.18} parent=5 // pred_check_branch
      %471 = sbr.rel (%p469) target = $region40
    $region39: #{smtl_forward.18} parent=5 // pred_region
      %s472 = ssub.s32 %s9, 2
      // Predicated region
      $region41: #{smtl_forward.18} parent=39 // pred_check
        %p473 = pneg %p132
      $region42: #{smtl_forward.18} parent=39 // pred_check_branch
        %475 = sbr.rel (%p473) target = $region44
      $region43: #{smtl_forward.18} parent=39 // pred_region
        %s476 = smul.u32 16, %s21
        %p477 = scmp.lt.s32.totalorder %s20, 2
        %s478 = scalar_select %p477, %s20, 2
        %p479 = scmp.lt.s32.totalorder %s476, 15
        %s480 = scalar_select %p479, %s476, 15
        %s481 = smul.addr %s478, 16
        %s482 = sadd.s32 %s480, %s481
        %s483 = smul.addr %s482, 8
        %s484 = scalar_lea.vmem %s3, %s483
      $region44: #{smtl_forward.18} parent=39 // pred_fallthru
        _
    $region40: #{smtl_forward.18} parent=5 // pred_fallthru
      _
  $region6: #{smtl_forward.18} parent=0 // loop_footer
    %s13 = sadd.s32 1, %s9
  $region7: #{smtl_forward.18} parent=0 // loop_footer_branch
    %8 = sbr.rel target = $region3
  $region8: #{smtl_forward.18} parent=0 // loop_exit
    _

// kernel: smtl_forward.20
$region0: #{smtl_forward.20}
  #allocation0 [shape = 'u32[]', space=smem, size = 0x4, offset = 0x4, fixed_abs, tag = 'smem constant byte address 0x4 - core index']
  #allocation1 [shape = 'u32[144,128]{1,0:T(1,128)}', space=vmem, size = 0x12000, scoped, tag = 'internal scratch']
  %s0 = inlined_call_operand.vmem [shape: bf16[3,128,288], index: 0, kind: input, shape index: {}]
  %s1 = inlined_call_operand.vmem [shape: bf16[3,288,32], index: 1, kind: input, shape index: {}]
  %s2 = inlined_call_operand.vmem [shape: f32[3,1,32], index: 2, kind: input, shape index: {}]
  %s3 = inlined_call_operand.vmem [shape: f32[3,128,32], index: 3, kind: input, shape index: {}]
  %s4 = inlined_call_operand.vmem [shape: f32[3,128,32], index: 4, kind: output, shape index: {}]
  %s5 = sld [smem:[#allocation0]]
  $region49: #{smtl_forward.20} parent=0
    _
  %s7 = ssub.s32 1, %s5
  %s8 = scalar_select 0, %s7, %s5
  loop: start=0, step=1, limit=5
  $region2: #{smtl_forward.20} parent=0 // loop_pre_header
    _
  $region3: #{smtl_forward.20} parent=0 // loop_header
    %s10 = sphi 0, %s14
    %p11 = scmp.ge.s32.totalorder %s10, 5
    %s17 = sphi 0, %s29
    %s18 = sphi 0, %s25
    %s19 = sphi 0, %s17
    %s20 = sphi 0, %s18
    %s21 = sphi 0, %s19
    %s22 = sphi 0, %s20
    %s34 = sphi 0, %s36
    %s37 = sphi 0, %s34
    %s38 = sphi 0, %s37
    %s54 = sphi 0, %s38
    %s60 = sphi 0, %s62
    %s63 = sphi 0, %s60
    %s64 = sphi 0, %s63
    %s80 = sphi 0, %s64
    %s86 = sphi 0, %s88
    %s89 = sphi 0, %s86
    %s90 = sphi 0, %s89
    %s106 = sphi 0, %s90
    %s114 = sphi 0, %s116
    %s117 = sphi 0, %s114
    %s118 = sphi 0, %s117
    %s134 = sphi 0, %s118
    %s142 = sphi 0, %s144
    %s145 = sphi 0, %s142
    %s146 = sphi 0, %s145
    %s162 = sphi 0, %s146
  $region4: #{smtl_forward.20} parent=0 // loop_header_branch
    %13 = sbr.rel (%p11) target = $region8
  $region5: #{smtl_forward.20} parent=0 // loop_body
    %s15 = ssub.s32 %s10, 1
    %s16 = ssub.s32 %s10, 2
    %s23 = sadd.s32 1, %s18
    %p24 = scmp.ge.s32.totalorder %s23, 1
    %s25 = scalar_select %p24, 0, %s23
    %s26 = sadd.s32 1, %s17
    %s27 = scalar_select %p24, %s26, %s17
    %p28 = scmp.ge.s32.totalorder %s27, 3
    %s29 = scalar_select %p28, 0, %s27
    %s30 = ssub.s32 %s17, %s29
    %s31 = ssub.s32 %s18, %s25
    %s32 = sor.u32 %s30, %s31
    %p33 = scmp.eq.s32.totalorder %s32, 0
    %s35 = sadd.s32 %s34, 1
    %s36 = scalar_select %p33, %s34, %s35
    %p39 = pneg %p33
    %p40 = scmp.eq.s32.totalorder %s10, 2
    %p41 = por %p39, %p40
    %p42 = scmp.ne.s32.totalorder %s34, %s37
    %p43 = scmp.eq.s32.totalorder %s10, 0
    %p44 = por %p42, %p43
    %p45 = scmp.ne.s32.totalorder %s34, %s37
    %p46 = scmp.eq.s32.totalorder %s15, 2
    %p47 = por %p45, %p46
    %p48 = scmp.ne.s32.totalorder %s37, %s38
    %p49 = scmp.eq.s32.totalorder %s15, 0
    %p50 = por %p48, %p49
    %p51 = scmp.ne.s32.totalorder %s37, %s38
    %p52 = scmp.eq.s32.totalorder %s16, 2
    %p53 = por %p51, %p52
    %p55 = scmp.ne.s32.totalorder %s38, %s54
    %p56 = scmp.eq.s32.totalorder %s16, 0
    %p57 = por %p55, %p56
    %s58 = ssub.s32 %s17, %s29
    %p59 = scmp.eq.s32.totalorder %s58, 0
    %s61 = sadd.s32 %s60, 1
    %s62 = scalar_select %p59, %s60, %s61
    %p65 = pneg %p59
    %p66 = scmp.eq.s32.totalorder %s10, 2
    %p67 = por %p65, %p66
    %p68 = scmp.ne.s32.totalorder %s60, %s63
    %p69 = scmp.eq.s32.totalorder %s10, 0
    %p70 = por %p68, %p69
    %p71 = scmp.ne.s32.totalorder %s60, %s63
    %p72 = scmp.eq.s32.totalorder %s15, 2
    %p73 = por %p71, %p72
    %p74 = scmp.ne.s32.totalorder %s63, %s64
    %p75 = scmp.eq.s32.totalorder %s15, 0
    %p76 = por %p74, %p75
    %p77 = scmp.ne.s32.totalorder %s63, %s64
    %p78 = scmp.eq.s32.totalorder %s16, 2
    %p79 = por %p77, %p78
    %p81 = scmp.ne.s32.totalorder %s64, %s80
    %p82 = scmp.eq.s32.totalorder %s16, 0
    %p83 = por %p81, %p82
    %s84 = ssub.s32 %s17, %s29
    %p85 = scmp.eq.s32.totalorder %s84, 0
    %s87 = sadd.s32 %s86, 1
    %s88 = scalar_select %p85, %s86, %s87
    %p91 = pneg %p85
    %p92 = scmp.eq.s32.totalorder %s10, 2
    %p93 = por %p91, %p92
    %p94 = scmp.ne.s32.totalorder %s86, %s89
    %p95 = scmp.eq.s32.totalorder %s10, 0
    %p96 = por %p94, %p95
    %p97 = scmp.ne.s32.totalorder %s86, %s89
    %p98 = scmp.eq.s32.totalorder %s15, 2
    %p99 = por %p97, %p98
    %p100 = scmp.ne.s32.totalorder %s89, %s90
    %p101 = scmp.eq.s32.totalorder %s15, 0
    %p102 = por %p100, %p101
    %p103 = scmp.ne.s32.totalorder %s89, %s90
    %p104 = scmp.eq.s32.totalorder %s16, 2
    %p105 = por %p103, %p104
    %p107 = scmp.ne.s32.totalorder %s90, %s106
    %p108 = scmp.eq.s32.totalorder %s16, 0
    %p109 = por %p107, %p108
    %s110 = ssub.s32 %s17, %s29
    %s111 = ssub.s32 %s18, %s25
    %s112 = sor.u32 %s110, %s111
    %p113 = scmp.eq.s32.totalorder %s112, 0
    %s115 = sadd.s32 %s114, 1
    %s116 = scalar_select %p113, %s114, %s115
    %p119 = pneg %p113
    %p120 = scmp.eq.s32.totalorder %s10, 2
    %p121 = por %p119, %p120
    %p122 = scmp.ne.s32.totalorder %s114, %s117
    %p123 = scmp.eq.s32.totalorder %s10, 0
    %p124 = por %p122, %p123
    %p125 = scmp.ne.s32.totalorder %s114, %s117
    %p126 = scmp.eq.s32.totalorder %s15, 2
    %p127 = por %p125, %p126
    %p128 = scmp.ne.s32.totalorder %s117, %s118
    %p129 = scmp.eq.s32.totalorder %s15, 0
    %p130 = por %p128, %p129
    %p131 = scmp.ne.s32.totalorder %s117, %s118
    %p132 = scmp.eq.s32.totalorder %s16, 2
    %p133 = por %p131, %p132
    %p135 = scmp.ne.s32.totalorder %s118, %s134
    %p136 = scmp.eq.s32.totalorder %s16, 0
    %p137 = por %p135, %p136
    %s138 = ssub.s32 %s17, %s29
    %s139 = ssub.s32 %s18, %s25
    %s140 = sor.u32 %s138, %s139
    %p141 = scmp.eq.s32.totalorder %s140, 0
    %s143 = sadd.s32 %s142, 1
    %s144 = scalar_select %p141, %s142, %s143
    %p147 = pneg %p141
    %p148 = scmp.eq.s32.totalorder %s10, 2
    %p149 = por %p147, %p148
    %p150 = scmp.ne.s32.totalorder %s142, %s145
    %p151 = scmp.eq.s32.totalorder %s10, 0
    %p152 = por %p150, %p151
    %p153 = scmp.ne.s32.totalorder %s142, %s145
    %p154 = scmp.eq.s32.totalorder %s15, 2
    %p155 = por %p153, %p154
    %p156 = scmp.ne.s32.totalorder %s145, %s146
    %p157 = scmp.eq.s32.totalorder %s15, 0
    %p158 = por %p156, %p157
    %p159 = scmp.ne.s32.totalorder %s145, %s146
    %p160 = scmp.eq.s32.totalorder %s16, 2
    %p161 = por %p159, %p160
    %p163 = scmp.ne.s32.totalorder %s146, %s162
    %p164 = scmp.eq.s32.totalorder %s16, 0
    %p165 = por %p163, %p164
    %p166 = scmp.le.s32.totalorder 1, %s10
    %p167 = scmp.lt.s32.totalorder %s10, 4
    %p168 = pnand %p166, %p167
    %p169 = pneg %p168
    // Predicated region
    $region9: #{smtl_forward.20} parent=5 // pred_check
      _
    $region10: #{smtl_forward.20} parent=5 // pred_check_branch
      %171 = sbr.rel (%p168) target = $region12
    $region11: #{smtl_forward.20} parent=5 // pred_region
      %s172 = ssub.s32 %s10, 1
    $region12: #{smtl_forward.20} parent=5 // pred_fallthru
      _
    %p173 = scmp.lt.s32.totalorder %s10, 3
    // Predicated region
    $region13: #{smtl_forward.20} parent=5 // pred_check
      %p174 = pneg %p173
    $region14: #{smtl_forward.20} parent=5 // pred_check_branch
      %176 = sbr.rel (%p174) target = $region16
    $region15: #{smtl_forward.20} parent=5 // pred_region
      // Predicated region
      $region17: #{smtl_forward.20} parent=15 // pred_check
        %p177 = pneg %p44
      $region18: #{smtl_forward.20} parent=15 // pred_check_branch
        %179 = sbr.rel (%p177) target = $region20
      $region19: #{smtl_forward.20} parent=15 // pred_region
        %s180 = smul.u32 16, %s18
        %p181 = scmp.lt.s32.totalorder %s17, 2
        %s182 = scalar_select %p181, %s17, 2
        %p183 = scmp.lt.s32.totalorder %s180, 15
        %s184 = scalar_select %p183, %s180, 15
        %s185 = smul.addr %s184, 3
        %s186 = smul.addr %s182, 48
        %s187 = sadd.s32 %s185, %s186
        %s188 = smul.addr %s187, 4
        %s189 = scalar_lea.vmem %s0, %s188
        %s190 = smul.u32 16, %s18
      $region20: #{smtl_forward.20} parent=15 // pred_fallthru
        _
      // Predicated region
      $region21: #{smtl_forward.20} parent=15 // pred_check
        %p191 = pneg %p70
      $region22: #{smtl_forward.20} parent=15 // pred_check_branch
        %193 = sbr.rel (%p191) target = $region24
      $region23: #{smtl_forward.20} parent=15 // pred_region
        %p194 = scmp.lt.s32.totalorder %s17, 2
        %s195 = scalar_select %p194, %s17, 2
        %s196 = smul.addr %s195, 36
        %s197 = smul.addr %s196, 4
        %s198 = scalar_lea.vmem %s1, %s197
      $region24: #{smtl_forward.20} parent=15 // pred_fallthru
        _
      // Predicated region
      $region25: #{smtl_forward.20} parent=15 // pred_check
        %p199 = pneg %p96
      $region26: #{smtl_forward.20} parent=15 // pred_check_branch
        %201 = sbr.rel (%p199) target = $region28
      $region27: #{smtl_forward.20} parent=15 // pred_region
        %p202 = scmp.lt.s32.totalorder %s17, 2
        %s203 = scalar_select %p202, %s17, 2
        %s204 = scalar_lea.vmem %s2, %s203
      $region28: #{smtl_forward.20} parent=15 // pred_fallthru
        _
      // Predicated region
      $region29: #{smtl_forward.20} parent=15 // pred_check
        %p205 = pneg %p124
      $region30: #{smtl_forward.20} parent=15 // pred_check_branch
        %207 = sbr.rel (%p205) target = $region32
      $region31: #{smtl_forward.20} parent=15 // pred_region
        %s208 = smul.u32 16, %s18
        %p209 = scmp.lt.s32.totalorder %s17, 2
        %s210 = scalar_select %p209, %s17, 2
        %p211 = scmp.lt.s32.totalorder %s208, 15
        %s212 = scalar_select %p211, %s208, 15
        %s213 = smul.addr %s210, 16
        %s214 = sadd.s32 %s212, %s213
        %s215 = smul.addr %s214, 8
        %s216 = scalar_lea.vmem %s3, %s215
        %s217 = smul.u32 16, %s18
      $region32: #{smtl_forward.20} parent=15 // pred_fallthru
        _
    $region16: #{smtl_forward.20} parent=5 // pred_fallthru
      _
    %p218 = scmp.le.s32.totalorder 1, %s10
    %p219 = scmp.lt.s32.totalorder %s10, 4
    %p220 = pnand %p218, %p219
    %p221 = pneg %p220
    // Predicated region
    $region33: #{smtl_forward.20} parent=5 // pred_check
      _
    $region34: #{smtl_forward.20} parent=5 // pred_check_branch
      %223 = sbr.rel (%p220) target = $region36
    $region35: #{smtl_forward.20} parent=5 // pred_region
      %s224 = ssub.s32 %s10, 1
      %s225 = smul.u32 16, %s20
      %p226 = scmp.lt.s32.totalorder %s19, 2
      %s227 = scalar_select %p226, %s19, 2
      %p228 = scmp.lt.s32.totalorder %s225, 15
      %s229 = scalar_select %p228, %s225, 15
      %s230 = smul.addr %s229, 3
      %s231 = smul.addr %s227, 48
      %s232 = sadd.s32 %s230, %s231
      %s233 = smul.addr %s232, 4
      %s234 = scalar_lea.vmem %s0, %s233
      %p235 = pneg %p50
      %p236 = pneg %p47
      %p237 = scmp.lt.s32.totalorder %s19, 2
      %s238 = scalar_select %p237, %s19, 2
      %s239 = smul.addr %s238, 36
      %s240 = smul.addr %s239, 4
      %s241 = scalar_lea.vmem %s1, %s240
      %p242 = pneg %p76
      %p243 = pneg %p73
      %p244 = scmp.lt.s32.totalorder %s19, 2
      %s245 = scalar_select %p244, %s19, 2
      %s246 = scalar_lea.vmem %s2, %s245
      %p247 = pneg %p102
      %p248 = pneg %p99
      %s249 = smul.u32 16, %s20
      %p250 = scmp.lt.s32.totalorder %s19, 2
      %s251 = scalar_select %p250, %s19, 2
      %p252 = scmp.lt.s32.totalorder %s249, 15
      %s253 = scalar_select %p252, %s249, 15
      %s254 = smul.addr %s251, 16
      %s255 = sadd.s32 %s253, %s254
      %s256 = smul.addr %s255, 8
      %s257 = scalar_lea.vmem %s3, %s256
      %p258 = pneg %p130
      %p259 = pneg %p127
      %p260 = pneg %p158
      %p261 = pneg %p155
      %s262 = smul.u32 16, %s20
      %p263 = scmp.lt.s32.totalorder %s19, 2
      %s264 = scalar_select %p263, %s19, 2
      %p265 = scmp.lt.s32.totalorder %s262, 15
      %s266 = scalar_select %p265, %s262, 15
      %s267 = smul.addr %s264, 16
      %s268 = sadd.s32 %s266, %s267
      %s269 = smul.addr %s268, 8
      %s270 = scalar_lea.vmem %s4, %s269
      %s271 = smul.u32 16, %s20
      %p272 = scmp.lt.s32.totalorder %s19, 2
      %s273 = scalar_select %p272, %s19, 2
      %p274 = scmp.lt.s32.totalorder %s271, 15
      %s275 = scalar_select %p274, %s271, 15
      %s276 = smul.addr %s275, 3
      %s277 = smul.addr %s273, 48
      %s278 = sadd.s32 %s276, %s277
      %s279 = smul.addr %s278, 4
      %s280 = scalar_lea.vmem %s0, %s279
      %s281 = smul.u32 16, %s20
      %p282 = scmp.lt.s32.totalorder %s19, 2
      %s283 = scalar_select %p282, %s19, 2
      %s284 = smul.addr %s283, 36
      %s285 = smul.addr %s284, 4
      %s286 = scalar_lea.vmem %s1, %s285
      %p287 = scmp.lt.s32.totalorder %s19, 2
      %s288 = scalar_select %p287, %s19, 2
      %s289 = scalar_lea.vmem %s2, %s288
      %s290 = smul.u32 16, %s20
      %p291 = scmp.lt.s32.totalorder %s19, 2
      %s292 = scalar_select %p291, %s19, 2
      %p293 = scmp.lt.s32.totalorder %s290, 15
      %s294 = scalar_select %p293, %s290, 15
      %s295 = smul.addr %s292, 16
      %s296 = sadd.s32 %s294, %s295
      %s297 = smul.addr %s296, 8
      %s298 = scalar_lea.vmem %s3, %s297
      %s299 = smul.u32 16, %s20
      %s300 = smul.u32 16, %s20
      %p301 = scmp.lt.s32.totalorder %s19, 2
      %s302 = scalar_select %p301, %s19, 2
      %p303 = scmp.lt.s32.totalorder %s300, 15
      %s304 = scalar_select %p303, %s300, 15
      %s305 = smul.addr %s302, 16
      %s306 = sadd.s32 %s304, %s305
      %s307 = smul.addr %s306, 8
      %s308 = scalar_lea.vmem %s4, %s307
      %s309 = smul.u32 16, %s20
      %v311 = vld [vmem:[%s280] sm:$0xff]
      %v312 = vld [vmem:[%s280 + $0x8] sm:$0xf]
      %v313 = vld [vmem:[%s280 + $0xc] sm:$0xff]
      %v314 = vld [vmem:[%s280 + $0x14] sm:$0xf]
      %v315 = vld [vmem:[%s280 + $0x18] sm:$0xff]
      %v316 = vld [vmem:[%s280 + $0x20] sm:$0xf]
      %v317 = vld [vmem:[%s280 + $0x24] sm:$0xff]
      %v318 = vld [vmem:[%s280 + $0x2c] sm:$0xf]
      %v319 = vld [vmem:[%s280 + $0x30] sm:$0xff]
      %v320 = vld [vmem:[%s280 + $0x38] sm:$0xf]
      %v321 = vld [vmem:[%s280 + $0x3c] sm:$0xff]
      %v322 = vld [vmem:[%s280 + $0x44] sm:$0xf]
      %v323 = vld [vmem:[%s280 + $0x48] sm:$0xff]
      %v324 = vld [vmem:[%s280 + $0x50] sm:$0xf]
      %v325 = vld [vmem:[%s280 + $0x54] sm:$0xff]
      %v326 = vld [vmem:[%s280 + $0x5c] sm:$0xf]
      %v327 = vld [vmem:[%s280 + $0x60] sm:$0xff]
      %v328 = vld [vmem:[%s280 + $0x68] sm:$0xf]
      %v329 = vld [vmem:[%s280 + $0x6c] sm:$0xff]
      %v330 = vld [vmem:[%s280 + $0x74] sm:$0xf]
      %v331 = vld [vmem:[%s280 + $0x78] sm:$0xff]
      %v332 = vld [vmem:[%s280 + $0x80] sm:$0xf]
      %v333 = vld [vmem:[%s280 + $0x84] sm:$0xff]
      %v334 = vld [vmem:[%s280 + $0x8c] sm:$0xf]
      %v335 = vld [vmem:[%s280 + $0x90] sm:$0xff]
      %v336 = vld [vmem:[%s280 + $0x98] sm:$0xf]
      %v337 = vld [vmem:[%s280 + $0x9c] sm:$0xff]
      %v338 = vld [vmem:[%s280 + $0xa4] sm:$0xf]
      %v339 = vld [vmem:[%s280 + $0xa8] sm:$0xff]
      %v340 = vld [vmem:[%s280 + $0xb0] sm:$0xf]
      %v341 = vld [vmem:[%s280 + $0xb4] sm:$0xff]
      %v342 = vld [vmem:[%s280 + $0xbc] sm:$0xf]
      %v343 = vld [vmem:[%s286] sm:$0xf]
      %v344 = vld [vmem:[%s286 + $0x4] sm:$0xf]
      %v345 = vld [vmem:[%s286 + $0x8] sm:$0xf]
      %v346 = vld [vmem:[%s286 + $0xc] sm:$0xf]
      %v347 = vld [vmem:[%s286 + $0x10] sm:$0xf]
      %v348 = vld [vmem:[%s286 + $0x14] sm:$0xf]
      %v349 = vld [vmem:[%s286 + $0x18] sm:$0xf]
      %v350 = vld [vmem:[%s286 + $0x1c] sm:$0xf]
      %v351 = vld [vmem:[%s286 + $0x20] sm:$0xf]
      %v352 = vld [vmem:[%s286 + $0x24] sm:$0xf]
      %v353 = vld [vmem:[%s286 + $0x28] sm:$0xf]
      %v354 = vld [vmem:[%s286 + $0x2c] sm:$0xf]
      %v355 = vld [vmem:[%s286 + $0x30] sm:$0xf]
      %v356 = vld [vmem:[%s286 + $0x34] sm:$0xf]
      %v357 = vld [vmem:[%s286 + $0x38] sm:$0xf]
      %v358 = vld [vmem:[%s286 + $0x3c] sm:$0xf]
      %v359 = vld [vmem:[%s286 + $0x40] sm:$0xf]
      %v360 = vld [vmem:[%s286 + $0x44] sm:$0xf]
      %v361 = vld [vmem:[%s286 + $0x48] sm:$0xf]
      %v362 = vld [vmem:[%s286 + $0x4c] sm:$0xf]
      %v363 = vld [vmem:[%s286 + $0x50] sm:$0xf]
      %v364 = vld [vmem:[%s286 + $0x54] sm:$0xf]
      %v365 = vld [vmem:[%s286 + $0x58] sm:$0xf]
      %v366 = vld [vmem:[%s286 + $0x5c] sm:$0xf]
      %v367 = vld [vmem:[%s286 + $0x60] sm:$0xf]
      %v368 = vld [vmem:[%s286 + $0x64] sm:$0xf]
      %v369 = vld [vmem:[%s286 + $0x68] sm:$0xf]
      %v370 = vld [vmem:[%s286 + $0x6c] sm:$0xf]
      %v371 = vld [vmem:[%s286 + $0x70] sm:$0xf]
      %v372 = vld [vmem:[%s286 + $0x74] sm:$0xf]
      %v373 = vld [vmem:[%s286 + $0x78] sm:$0xf]
      %v374 = vld [vmem:[%s286 + $0x7c] sm:$0xf]
      %v375 = vld [vmem:[%s286 + $0x80] sm:$0xf]
      %v376 = vld [vmem:[%s286 + $0x84] sm:$0xf]
      %v377 = vld [vmem:[%s286 + $0x88] sm:$0xf]
      %v378 = vld [vmem:[%s286 + $0x8c] sm:$0xf]
      %v379 = vld [vmem:[%s289] sm:$0x1]
      %v381 = vlaneseq
      %v382 = vshrl.u32 %v381, 7
      %v383 = vsub.s32 0, %v382
      %v384 = vrot.slane %v379, %v383
      %v418 = vunpack.c.l.b16 %v311
      %v419 = vunpack.c.h.b16 %v311
      %v420 = vunpack.c.l.b16 %v312
      %v421 = vunpack.c.l.b16 %v313
      %v422 = vunpack.c.h.b16 %v313
      %v423 = vunpack.c.l.b16 %v314
      %v424 = vunpack.c.l.b16 %v315
      %v425 = vunpack.c.h.b16 %v315
      %v426 = vunpack.c.l.b16 %v316
      %v427 = vunpack.c.l.b16 %v317
      %v428 = vunpack.c.h.b16 %v317
      %v429 = vunpack.c.l.b16 %v318
      %v430 = vunpack.c.l.b16 %v319
      %v431 = vunpack.c.h.b16 %v319
      %v432 = vunpack.c.l.b16 %v320
      %v433 = vunpack.c.l.b16 %v321
      %v434 = vunpack.c.h.b16 %v321
      %v435 = vunpack.c.l.b16 %v322
      %v436 = vunpack.c.l.b16 %v323
      %v437 = vunpack.c.h.b16 %v323
      %v438 = vunpack.c.l.b16 %v324
      %v439 = vunpack.c.l.b16 %v325
      %v440 = vunpack.c.h.b16 %v325
      %v441 = vunpack.c.l.b16 %v326
      %v442 = vunpack.c.l.b16 %v327
      %v443 = vunpack.c.h.b16 %v327
      %v444 = vunpack.c.l.b16 %v328
      %v445 = vunpack.c.l.b16 %v329
      %v446 = vunpack.c.h.b16 %v329
      %v447 = vunpack.c.l.b16 %v330
      %v448 = vunpack.c.l.b16 %v331
      %v449 = vunpack.c.h.b16 %v331
      %v450 = vunpack.c.l.b16 %v332
      %v451 = vunpack.c.l.b16 %v333
      %v452 = vunpack.c.h.b16 %v333
      %v453 = vunpack.c.l.b16 %v334
      %v454 = vunpack.c.l.b16 %v335
      %v455 = vunpack.c.h.b16 %v335
      %v456 = vunpack.c.l.b16 %v336
      %v457 = vunpack.c.l.b16 %v337
      %v458 = vunpack.c.h.b16 %v337
      %v459 = vunpack.c.l.b16 %v338
      %v460 = vunpack.c.l.b16 %v339
      %v461 = vunpack.c.h.b16 %v339
      %v462 = vunpack.c.l.b16 %v340
      %v463 = vunpack.c.l.b16 %v341
      %v464 = vunpack.c.h.b16 %v341
      %v465 = vunpack.c.l.b16 %v342
      %v466 = vpack.c.b16 %v421, %v418
      %v467 = vpack.c.b16 %v422, %v419
      %v468 = vpack.c.b16 %v423, %v420
      %v469 = vpack.c.b16 %v427, %v424
      %v470 = vpack.c.b16 %v428, %v425
      %v471 = vpack.c.b16 %v429, %v426
      %v472 = vpack.c.b16 %v433, %v430
      %v473 = vpack.c.b16 %v434, %v431
      %v474 = vpack.c.b16 %v435, %v432
      %v475 = vpack.c.b16 %v439, %v436
      %v476 = vpack.c.b16 %v440, %v437
      %v477 = vpack.c.b16 %v441, %v438
      %v478 = vpack.c.b16 %v445, %v442
      %v479 = vpack.c.b16 %v446, %v443
      %v480 = vpack.c.b16 %v447, %v444
      %v481 = vpack.c.b16 %v451, %v448
      %v482 = vpack.c.b16 %v452, %v449
      %v483 = vpack.c.b16 %v453, %v450
      %v484 = vpack.c.b16 %v457, %v454
      %v485 = vpack.c.b16 %v458, %v455
      %v486 = vpack.c.b16 %v459, %v456
      %v487 = vpack.c.b16 %v463, %v460
      %v488 = vpack.c.b16 %v464, %v461
      %v489 = vpack.c.b16 %v465, %v462
      %v542 = vunpack.c.l.b16 %v343
      %v543 = vunpack.c.l.b16 %v344
      %v544 = vunpack.c.l.b16 %v345
      %v545 = vunpack.c.l.b16 %v346
      %v546 = vunpack.c.l.b16 %v347
      %v547 = vunpack.c.l.b16 %v348
      %v548 = vunpack.c.l.b16 %v349
      %v549 = vunpack.c.l.b16 %v350
      %v550 = vunpack.c.l.b16 %v351
      %v551 = vunpack.c.l.b16 %v352
      %v552 = vunpack.c.l.b16 %v353
      %v553 = vunpack.c.l.b16 %v354
      %v554 = vunpack.c.l.b16 %v355
      %v555 = vunpack.c.l.b16 %v356
      %v556 = vunpack.c.l.b16 %v357
      %v557 = vunpack.c.l.b16 %v358
      %v558 = vunpack.c.l.b16 %v359
      %v559 = vunpack.c.l.b16 %v360
      %v560 = vunpack.c.l.b16 %v361
      %v561 = vunpack.c.l.b16 %v362
      %v562 = vunpack.c.l.b16 %v363
      %v563 = vunpack.c.l.b16 %v364
      %v564 = vunpack.c.l.b16 %v365
      %v565 = vunpack.c.l.b16 %v366
      %v566 = vunpack.c.l.b16 %v367
      %v567 = vunpack.c.l.b16 %v368
      %v568 = vunpack.c.l.b16 %v369
      %v569 = vunpack.c.l.b16 %v370
      %v570 = vunpack.c.l.b16 %v371
      %v571 = vunpack.c.l.b16 %v372
      %v572 = vunpack.c.l.b16 %v373
      %v573 = vunpack.c.l.b16 %v374
      %v574 = vunpack.c.l.b16 %v375
      %v575 = vunpack.c.l.b16 %v376
      %v576 = vunpack.c.l.b16 %v377
      %v577 = vunpack.c.l.b16 %v378
      %v578 = vpack.c.b16 %v543, %v542
      %v579 = vpack.c.b16 %v545, %v544
      %v580 = vpack.c.b16 %v547, %v546
      %v581 = vpack.c.b16 %v549, %v548
      %v582 = vpack.c.b16 %v551, %v550
      %v583 = vpack.c.b16 %v553, %v552
      %v584 = vpack.c.b16 %v555, %v554
      %v585 = vpack.c.b16 %v557, %v556
      %v586 = vpack.c.b16 %v559, %v558
      %v587 = vpack.c.b16 %v561, %v560
      %v588 = vpack.c.b16 %v563, %v562
      %v589 = vpack.c.b16 %v565, %v564
      %v590 = vpack.c.b16 %v567, %v566
      %v591 = vpack.c.b16 %v569, %v568
      %v592 = vpack.c.b16 %v571, %v570
      %v593 = vpack.c.b16 %v573, %v572
      %v594 = vpack.c.b16 %v575, %v574
      %v595 = vpack.c.b16 %v577, %v576
      %vm614 = vcmask 261120
      %v616 = vsel %vm614, %v468, 0
      %v619 = vsel %vm614, %v471, 0
      %v622 = vsel %vm614, %v474, 0
      %v625 = vsel %vm614, %v477, 0
      %v628 = vsel %vm614, %v480, 0
      %v631 = vsel %vm614, %v483, 0
      %v634 = vsel %vm614, %v486, 0
      %v637 = vsel %vm614, %v489, 0
      %639 = vmatprep.subr.bf16.mxu0 0
      %640 = vmatpush1.bf16.msra.mxu0 %v578
      %641 = vmatprep.subr.bf16.mxu0 0
      %642 = vmatpush1.bf16.msra.mxu0 %v579
      %643 = vmatprep.subr.bf16.mxu0 0
      %644 = vmatpush1.bf16.msra.mxu0 %v580
      %645 = vmatprep.subr.bf16.mxu0 0
      %646 = vmatpush1.bf16.msra.mxu0 %v581
      %647 = vmatprep.subr.bf16.mxu0 0
      %648 = vmatpush1.bf16.msra.mxu0 %v582
      %649 = vmatprep.subr.bf16.mxu0 0
      %650 = vmatpush1.bf16.msra.mxu0 %v583
      %651 = vmatprep.subr.bf16.mxu0 0
      %652 = vmatpush1.bf16.msra.mxu0 %v584
      %653 = vmatprep.subr.bf16.mxu0 0
      %654 = vmatpush1.bf16.msra.mxu0 %v585
      %655 = vmatprep.subr.bf16.mxu0 0
      %656 = vmatpush1.bf16.msra.mxu0 %v586
      %657 = vmatprep.subr.bf16.mxu0 0
      %658 = vmatpush1.bf16.msra.mxu0 %v587
      %659 = vmatprep.subr.bf16.mxu0 0
      %660 = vmatpush1.bf16.msra.mxu0 %v588
      %661 = vmatprep.subr.bf16.mxu0 0
      %662 = vmatpush1.bf16.msra.mxu0 %v589
      %663 = vmatprep.subr.bf16.mxu0 0
      %664 = vmatpush1.bf16.msra.mxu0 %v590
      %665 = vmatprep.subr.bf16.mxu0 0
      %666 = vmatpush1.bf16.msra.mxu0 %v591
      %667 = vmatprep.subr.bf16.mxu0 0
      %668 = vmatpush1.bf16.msra.mxu0 %v592
      %669 = vmatprep.subr.bf16.mxu0 0
      %670 = vmatpush1.bf16.msra.mxu0 %v593
      %671 = vmatprep.mubr.bf16.mxu0 %v467
      %672 = vmatmul.mubr.bf16.gmra.mrb[0].mxu0 %v466
      %v673 = vpop.f32.mrb[0].mxu0
      %v674 = vadd.f32 %v384, %v673
      %v675 = vpop.f32.mrb[0].mxu0
      %v676 = vpop.f32.mrb[0].mxu0
      %v677 = vadd.f32 %v384, %v676
      %v678 = vpop.f32.mrb[0].mxu0
      %679 = vmatprep.mubr.bf16.mxu0 %v470
      %680 = vmatmul.mubr.bf16.gmra.mrb[0].mxu0 %v469
      %v681 = vpop.f32.mrb[0].mxu0
      %v682 = vadd.f32 %v384, %v681
      %v683 = vpop.f32.mrb[0].mxu0
      %v684 = vpop.f32.mrb[0].mxu0
      %v685 = vadd.f32 %v384, %v684
      %v686 = vpop.f32.mrb[0].mxu0
      %687 = vmatprep.mubr.bf16.mxu0 %v473
      %688 = vmatmul.mubr.bf16.gmra.mrb[0].mxu0 %v472
      %v689 = vpop.f32.mrb[0].mxu0
      %v690 = vadd.f32 %v384, %v689
      %v691 = vpop.f32.mrb[0].mxu0
      %v692 = vpop.f32.mrb[0].mxu0
      %v693 = vadd.f32 %v384, %v692
      %v694 = vpop.f32.mrb[0].mxu0
      %695 = vmatprep.mubr.bf16.mxu0 %v476
      %696 = vmatmul.mubr.bf16.gmra.mrb[0].mxu0 %v475
      %v697 = vpop.f32.mrb[0].mxu0
      %v698 = vadd.f32 %v384, %v697
      %v699 = vpop.f32.mrb[0].mxu0
      %v700 = vpop.f32.mrb[0].mxu0
      %v701 = vadd.f32 %v384, %v700
      %v702 = vpop.f32.mrb[0].mxu0
      %703 = vmatprep.mubr.bf16.mxu0 %v479
      %704 = vmatmul.mubr.bf16.gmra.mrb[0].mxu0 %v478
      %v705 = vpop.f32.mrb[0].mxu0
      %v706 = vadd.f32 %v384, %v705
      %v707 = vpop.f32.mrb[0].mxu0
      %v708 = vpop.f32.mrb[0].mxu0
      %v709 = vadd.f32 %v384, %v708
      %v710 = vpop.f32.mrb[0].mxu0
      %711 = vmatprep.mubr.bf16.mxu0 %v482
      %712 = vmatmul.mubr.bf16.gmra.mrb[0].mxu0 %v481
      %v713 = vpop.f32.mrb[0].mxu0
      %v714 = vadd.f32 %v384, %v713
      %v715 = vpop.f32.mrb[0].mxu0
      %v716 = vpop.f32.mrb[0].mxu0
      %v717 = vadd.f32 %v384, %v716
      %v718 = vpop.f32.mrb[0].mxu0
      %719 = vmatprep.mubr.bf16.mxu0 %v485
      %720 = vmatmul.mubr.bf16.gmra.mrb[0].mxu0 %v484
      %v721 = vpop.f32.mrb[0].mxu0
      %v722 = vadd.f32 %v384, %v721
      %v723 = vpop.f32.mrb[0].mxu0
      %v724 = vpop.f32.mrb[0].mxu0
      %v725 = vadd.f32 %v384, %v724
      %v726 = vpop.f32.mrb[0].mxu0
      %727 = vmatprep.mubr.bf16.mxu0 %v488
      %728 = vmatmul.mubr.bf16.gmra.mrb[0].mxu0 %v487
      %v729 = vpop.f32.mrb[0].mxu0
      %v730 = vadd.f32 %v384, %v729
      %v731 = vpop.f32.mrb[0].mxu0
      %v732 = vpop.f32.mrb[0].mxu0
      %v733 = vadd.f32 %v384, %v732
      %v734 = vpop.f32.mrb[0].mxu0
      %735 = vdwg.mxu0
      %736 = vmatprep.subr.bf16.mxu0 0
      %737 = vmatpush1.bf16.msra.mxu0 %v594
      %738 = vmatprep.subr.bf16.mxu0 0
      %739 = vmatpush1.bf16.msra.mxu0 %v595
      %740 = vmatprep.subr.bf16.mxu0 0
      %741 = vmatpush1.bf16.msra.mxu0 0
      %742 = vmatprep.subr.bf16.mxu0 0
      %743 = vmatpush1.bf16.msra.mxu0 0
      %744 = vmatprep.subr.bf16.mxu0 0
      %745 = vmatpush1.bf16.msra.mxu0 0
      %746 = vmatprep.subr.bf16.mxu0 0
      %747 = vmatpush1.bf16.msra.mxu0 0
      %748 = vmatprep.subr.bf16.mxu0 0
      %749 = vmatpush1.bf16.msra.mxu0 0
      %750 = vmatprep.subr.bf16.mxu0 0
      %751 = vmatpush1.bf16.msra.mxu0 0
      %752 = vmatprep.subr.bf16.mxu0 0
      %753 = vmatpush1.bf16.msra.mxu0 0
      %754 = vmatprep.subr.bf16.mxu0 0
      %755 = vmatpush1.bf16.msra.mxu0 0
      %756 = vmatprep.subr.bf16.mxu0 0
      %757 = vmatpush1.bf16.msra.mxu0 0
      %758 = vmatprep.subr.bf16.mxu0 0
      %759 = vmatpush1.bf16.msra.mxu0 0
      %760 = vmatprep.subr.bf16.mxu0 0
      %761 = vmatpush1.bf16.msra.mxu0 0
      %762 = vmatprep.subr.bf16.mxu0 0
      %763 = vmatpush1.bf16.msra.mxu0 0
      %764 = vmatprep.subr.bf16.mxu0 0
      %765 = vmatpush1.bf16.msra.mxu0 0
      %766 = vmatprep.subr.bf16.mxu0 0
      %767 = vmatpush1.bf16.msra.mxu0 0
      %768 = vmatprep.mubr.bf16.mxu0 0
      %769 = vmatmul.mubr.bf16.gmra.mrb[0].mxu0 %v616
      %v770 = vpop.f32.mrb[0].mxu0
      %v771 = vadd.f32 %v674, %v770
      %v772 = vpop.f32.mrb[0].mxu0
      %v773 = vpop.f32.mrb[0].mxu0
      %v774 = vadd.f32 %v677, %v773
      %v775 = vpop.f32.mrb[0].mxu0
      %776 = vmatprep.mubr.bf16.mxu0 0
      %777 = vmatmul.mubr.bf16.gmra.mrb[0].mxu0 %v619
      %v778 = vpop.f32.mrb[0].mxu0
      %v779 = vadd.f32 %v682, %v778
      %v780 = vpop.f32.mrb[0].mxu0
      %v781 = vpop.f32.mrb[0].mxu0
      %v782 = vadd.f32 %v685, %v781
      %v783 = vpop.f32.mrb[0].mxu0
      %784 = vmatprep.mubr.bf16.mxu0 0
      %785 = vmatmul.mubr.bf16.gmra.mrb[0].mxu0 %v622
      %v786 = vpop.f32.mrb[0].mxu0
      %v787 = vadd.f32 %v690, %v786
      %v788 = vpop.f32.mrb[0].mxu0
      %v789 = vpop.f32.mrb[0].mxu0
      %v790 = vadd.f32 %v693, %v789
      %v791 = vpop.f32.mrb[0].mxu0
      %792 = vmatprep.mubr.bf16.mxu0 0
      %793 = vmatmul.mubr.bf16.gmra.mrb[0].mxu0 %v625
      %v794 = vpop.f32.mrb[0].mxu0
      %v795 = vadd.f32 %v698, %v794
      %v796 = vpop.f32.mrb[0].mxu0
      %v797 = vpop.f32.mrb[0].mxu0
      %v798 = vadd.f32 %v701, %v797
      %v799 = vpop.f32.mrb[0].mxu0
      %800 = vmatprep.mubr.bf16.mxu0 0
      %801 = vmatmul.mubr.bf16.gmra.mrb[0].mxu0 %v628
      %v802 = vpop.f32.mrb[0].mxu0
      %v803 = vadd.f32 %v706, %v802
      %v804 = vpop.f32.mrb[0].mxu0
      %v805 = vpop.f32.mrb[0].mxu0
      %v806 = vadd.f32 %v709, %v805
      %v807 = vpop.f32.mrb[0].mxu0
      %808 = vmatprep.mubr.bf16.mxu0 0
      %809 = vmatmul.mubr.bf16.gmra.mrb[0].mxu0 %v631
      %v810 = vpop.f32.mrb[0].mxu0
      %v811 = vadd.f32 %v714, %v810
      %v812 = vpop.f32.mrb[0].mxu0
      %v813 = vpop.f32.mrb[0].mxu0
      %v814 = vadd.f32 %v717, %v813
      %v815 = vpop.f32.mrb[0].mxu0
      %816 = vmatprep.mubr.bf16.mxu0 0
      %817 = vmatmul.mubr.bf16.gmra.mrb[0].mxu0 %v634
      %v818 = vpop.f32.mrb[0].mxu0
      %v819 = vadd.f32 %v722, %v818
      %v820 = vpop.f32.mrb[0].mxu0
      %v821 = vpop.f32.mrb[0].mxu0
      %v822 = vadd.f32 %v725, %v821
      %v823 = vpop.f32.mrb[0].mxu0
      %824 = vmatprep.mubr.bf16.mxu0 0
      %825 = vmatmul.mubr.bf16.gmra.mrb[0].mxu0 %v637
      %v826 = vpop.f32.mrb[0].mxu0
      %v827 = vadd.f32 %v730, %v826
      %v828 = vpop.f32.mrb[0].mxu0
      %v829 = vpop.f32.mrb[0].mxu0
      %v830 = vadd.f32 %v733, %v829
      %v831 = vpop.f32.mrb[0].mxu0
      %832 = vdwg.mxu0
      %v833 = vld [vmem:[%s298] sm:$0xff]
      %v834 = vld [vmem:[%s298 + $0x8] sm:$0xff]
      %v835 = vld [vmem:[%s298 + $0x10] sm:$0xff]
      %v836 = vld [vmem:[%s298 + $0x18] sm:$0xff]
      %v837 = vld [vmem:[%s298 + $0x20] sm:$0xff]
      %v838 = vld [vmem:[%s298 + $0x28] sm:$0xff]
      %v839 = vld [vmem:[%s298 + $0x30] sm:$0xff]
      %v840 = vld [vmem:[%s298 + $0x38] sm:$0xff]
      %v841 = vld [vmem:[%s298 + $0x40] sm:$0xff]
      %v842 = vld [vmem:[%s298 + $0x48] sm:$0xff]
      %v843 = vld [vmem:[%s298 + $0x50] sm:$0xff]
      %v844 = vld [vmem:[%s298 + $0x58] sm:$0xff]
      %v845 = vld [vmem:[%s298 + $0x60] sm:$0xff]
      %v846 = vld [vmem:[%s298 + $0x68] sm:$0xff]
      %v847 = vld [vmem:[%s298 + $0x70] sm:$0xff]
      %v848 = vld [vmem:[%s298 + $0x78] sm:$0xff]
      %v849 = vadd.f32 %v771, %v833
      %v850 = vadd.f32 %v774, %v834
      %v851 = vadd.f32 %v779, %v835
      %v852 = vadd.f32 %v782, %v836
      %v853 = vadd.f32 %v787, %v837
      %v854 = vadd.f32 %v790, %v838
      %v855 = vadd.f32 %v795, %v839
      %v856 = vadd.f32 %v798, %v840
      %v857 = vadd.f32 %v803, %v841
      %v858 = vadd.f32 %v806, %v842
      %v859 = vadd.f32 %v811, %v843
      %v860 = vadd.f32 %v814, %v844
      %v861 = vadd.f32 %v819, %v845
      %v862 = vadd.f32 %v822, %v846
      %v863 = vadd.f32 %v827, %v847
      %v864 = vadd.f32 %v830, %v848
      %v865 = vmax.f32 %v849, 0.0
      %v866 = vmax.f32 %v850, 0.0
      %v867 = vmax.f32 %v851, 0.0
      %v868 = vmax.f32 %v852, 0.0
      %v869 = vmax.f32 %v853, 0.0
      %v870 = vmax.f32 %v854, 0.0
      %v871 = vmax.f32 %v855, 0.0
      %v872 = vmax.f32 %v856, 0.0
      %v873 = vmax.f32 %v857, 0.0
      %v874 = vmax.f32 %v858, 0.0
      %v875 = vmax.f32 %v859, 0.0
      %v876 = vmax.f32 %v860, 0.0
      %v877 = vmax.f32 %v861, 0.0
      %v878 = vmax.f32 %v862, 0.0
      %v879 = vmax.f32 %v863, 0.0
      %v880 = vmax.f32 %v864, 0.0
      %881 = vst.msk [vmem:[%s308] sm:$0xff] %vm614, %v865
      %882 = vst.msk [vmem:[%s308 + $0x8] sm:$0xff] %vm614, %v866
      %883 = vst.msk [vmem:[%s308 + $0x10] sm:$0xff] %vm614, %v867
      %884 = vst.msk [vmem:[%s308 + $0x18] sm:$0xff] %vm614, %v868
      %885 = vst.msk [vmem:[%s308 + $0x20] sm:$0xff] %vm614, %v869
      %886 = vst.msk [vmem:[%s308 + $0x28] sm:$0xff] %vm614, %v870
      %887 = vst.msk [vmem:[%s308 + $0x30] sm:$0xff] %vm614, %v871
      %888 = vst.msk [vmem:[%s308 + $0x38] sm:$0xff] %vm614, %v872
      %889 = vst.msk [vmem:[%s308 + $0x40] sm:$0xff] %vm614, %v873
      %890 = vst.msk [vmem:[%s308 + $0x48] sm:$0xff] %vm614, %v874
      %891 = vst.msk [vmem:[%s308 + $0x50] sm:$0xff] %vm614, %v875
      %892 = vst.msk [vmem:[%s308 + $0x58] sm:$0xff] %vm614, %v876
      %893 = vst.msk [vmem:[%s308 + $0x60] sm:$0xff] %vm614, %v877
      %894 = vst.msk [vmem:[%s308 + $0x68] sm:$0xff] %vm614, %v878
      %895 = vst.msk [vmem:[%s308 + $0x70] sm:$0xff] %vm614, %v879
      %896 = vst.msk [vmem:[%s308 + $0x78] sm:$0xff] %vm614, %v880
      %s897 = smul.u32 16, %s20
      %p898 = scmp.lt.s32.totalorder %s19, 2
      %s899 = scalar_select %p898, %s19, 2
      %p900 = scmp.lt.s32.totalorder %s897, 15
      %s901 = scalar_select %p900, %s897, 15
      %s902 = smul.addr %s899, 16
      %s903 = sadd.s32 %s901, %s902
      %s904 = smul.addr %s903, 8
      %s905 = scalar_lea.vmem %s4, %s904
      // Predicated region
      $region37: #{smtl_forward.20} parent=35 // pred_check
        %p906 = pneg %p155
      $region38: #{smtl_forward.20} parent=35 // pred_check_branch
        %908 = sbr.rel (%p906) target = $region40
      $region39: #{smtl_forward.20} parent=35 // pred_region
        %s909 = smul.u32 16, %s20
      $region40: #{smtl_forward.20} parent=35 // pred_fallthru
        _
    $region36: #{smtl_forward.20} parent=5 // pred_fallthru
      _
    %p910 = scmp.le.s32.totalorder 2, %s10
    // Predicated region
    $region41: #{smtl_forward.20} parent=5 // pred_check
      %p911 = pneg %p910
    $region42: #{smtl_forward.20} parent=5 // pred_check_branch
      %913 = sbr.rel (%p911) target = $region44
    $region43: #{smtl_forward.20} parent=5 // pred_region
      %s914 = ssub.s32 %s10, 2
      // Predicated region
      $region45: #{smtl_forward.20} parent=43 // pred_check
        %p915 = pneg %p161
      $region46: #{smtl_forward.20} parent=43 // pred_check_branch
        %917 = sbr.rel (%p915) target = $region48
      $region47: #{smtl_forward.20} parent=43 // pred_region
        %s918 = smul.u32 16, %s22
        %p919 = scmp.lt.s32.totalorder %s21, 2
        %s920 = scalar_select %p919, %s21, 2
        %p921 = scmp.lt.s32.totalorder %s918, 15
        %s922 = scalar_select %p921, %s918, 15
        %s923 = smul.addr %s920, 16
        %s924 = sadd.s32 %s922, %s923
        %s925 = smul.addr %s924, 8
        %s926 = scalar_lea.vmem %s4, %s925
      $region48: #{smtl_forward.20} parent=43 // pred_fallthru
        _
    $region44: #{smtl_forward.20} parent=5 // pred_fallthru
      _
  $region6: #{smtl_forward.20} parent=0 // loop_footer
    %s14 = sadd.s32 1, %s10
  $region7: #{smtl_forward.20} parent=0 // loop_footer_branch
    %9 = sbr.rel target = $region3
  $region8: #{smtl_forward.20} parent=0 // loop_exit
    _

// kernel: smtl_forward.21
$region0: #{smtl_forward.21}
  #allocation0 [shape = 'u32[]', space=smem, size = 0x4, offset = 0x4, fixed_abs, tag = 'smem constant byte address 0x4 - core index']
  #allocation1 [shape = 'u32[144,128]{1,0:T(1,128)}', space=vmem, size = 0x12000, scoped, tag = 'internal scratch']
  %s0 = inlined_call_operand.vmem [shape: bf16[3,128,288], index: 0, kind: input, shape index: {}]
  %s1 = inlined_call_operand.vmem [shape: bf16[3,288,32], index: 1, kind: input, shape index: {}]
  %s2 = inlined_call_operand.vmem [shape: f32[3,1,32], index: 2, kind: input, shape index: {}]
  %s3 = inlined_call_operand.vmem [shape: f32[3,128,32], index: 3, kind: output, shape index: {}]
  %s4 = sld [smem:[#allocation0]]
  $region45: #{smtl_forward.21} parent=0
    _
  %s6 = ssub.s32 1, %s4
  %s7 = scalar_select 0, %s6, %s4
  loop: start=0, step=1, limit=5
  $region2: #{smtl_forward.21} parent=0 // loop_pre_header
    _
  $region3: #{smtl_forward.21} parent=0 // loop_header
    %s9 = sphi 0, %s13
    %p10 = scmp.ge.s32.totalorder %s9, 5
    %s16 = sphi 0, %s28
    %s17 = sphi 0, %s24
    %s18 = sphi 0, %s16
    %s19 = sphi 0, %s17
    %s20 = sphi 0, %s18
    %s21 = sphi 0, %s19
    %s33 = sphi 0, %s35
    %s36 = sphi 0, %s33
    %s37 = sphi 0, %s36
    %s53 = sphi 0, %s37
    %s59 = sphi 0, %s61
    %s62 = sphi 0, %s59
    %s63 = sphi 0, %s62
    %s79 = sphi 0, %s63
    %s85 = sphi 0, %s87
    %s88 = sphi 0, %s85
    %s89 = sphi 0, %s88
    %s105 = sphi 0, %s89
    %s113 = sphi 0, %s115
    %s116 = sphi 0, %s113
    %s117 = sphi 0, %s116
    %s133 = sphi 0, %s117
  $region4: #{smtl_forward.21} parent=0 // loop_header_branch
    %12 = sbr.rel (%p10) target = $region8
  $region5: #{smtl_forward.21} parent=0 // loop_body
    %s14 = ssub.s32 %s9, 1
    %s15 = ssub.s32 %s9, 2
    %s22 = sadd.s32 1, %s17
    %p23 = scmp.ge.s32.totalorder %s22, 1
    %s24 = scalar_select %p23, 0, %s22
    %s25 = sadd.s32 1, %s16
    %s26 = scalar_select %p23, %s25, %s16
    %p27 = scmp.ge.s32.totalorder %s26, 3
    %s28 = scalar_select %p27, 0, %s26
    %s29 = ssub.s32 %s16, %s28
    %s30 = ssub.s32 %s17, %s24
    %s31 = sor.u32 %s29, %s30
    %p32 = scmp.eq.s32.totalorder %s31, 0
    %s34 = sadd.s32 %s33, 1
    %s35 = scalar_select %p32, %s33, %s34
    %p38 = pneg %p32
    %p39 = scmp.eq.s32.totalorder %s9, 2
    %p40 = por %p38, %p39
    %p41 = scmp.ne.s32.totalorder %s33, %s36
    %p42 = scmp.eq.s32.totalorder %s9, 0
    %p43 = por %p41, %p42
    %p44 = scmp.ne.s32.totalorder %s33, %s36
    %p45 = scmp.eq.s32.totalorder %s14, 2
    %p46 = por %p44, %p45
    %p47 = scmp.ne.s32.totalorder %s36, %s37
    %p48 = scmp.eq.s32.totalorder %s14, 0
    %p49 = por %p47, %p48
    %p50 = scmp.ne.s32.totalorder %s36, %s37
    %p51 = scmp.eq.s32.totalorder %s15, 2
    %p52 = por %p50, %p51
    %p54 = scmp.ne.s32.totalorder %s37, %s53
    %p55 = scmp.eq.s32.totalorder %s15, 0
    %p56 = por %p54, %p55
    %s57 = ssub.s32 %s16, %s28
    %p58 = scmp.eq.s32.totalorder %s57, 0
    %s60 = sadd.s32 %s59, 1
    %s61 = scalar_select %p58, %s59, %s60
    %p64 = pneg %p58
    %p65 = scmp.eq.s32.totalorder %s9, 2
    %p66 = por %p64, %p65
    %p67 = scmp.ne.s32.totalorder %s59, %s62
    %p68 = scmp.eq.s32.totalorder %s9, 0
    %p69 = por %p67, %p68
    %p70 = scmp.ne.s32.totalorder %s59, %s62
    %p71 = scmp.eq.s32.totalorder %s14, 2
    %p72 = por %p70, %p71
    %p73 = scmp.ne.s32.totalorder %s62, %s63
    %p74 = scmp.eq.s32.totalorder %s14, 0
    %p75 = por %p73, %p74
    %p76 = scmp.ne.s32.totalorder %s62, %s63
    %p77 = scmp.eq.s32.totalorder %s15, 2
    %p78 = por %p76, %p77
    %p80 = scmp.ne.s32.totalorder %s63, %s79
    %p81 = scmp.eq.s32.totalorder %s15, 0
    %p82 = por %p80, %p81
    %s83 = ssub.s32 %s16, %s28
    %p84 = scmp.eq.s32.totalorder %s83, 0
    %s86 = sadd.s32 %s85, 1
    %s87 = scalar_select %p84, %s85, %s86
    %p90 = pneg %p84
    %p91 = scmp.eq.s32.totalorder %s9, 2
    %p92 = por %p90, %p91
    %p93 = scmp.ne.s32.totalorder %s85, %s88
    %p94 = scmp.eq.s32.totalorder %s9, 0
    %p95 = por %p93, %p94
    %p96 = scmp.ne.s32.totalorder %s85, %s88
    %p97 = scmp.eq.s32.totalorder %s14, 2
    %p98 = por %p96, %p97
    %p99 = scmp.ne.s32.totalorder %s88, %s89
    %p100 = scmp.eq.s32.totalorder %s14, 0
    %p101 = por %p99, %p100
    %p102 = scmp.ne.s32.totalorder %s88, %s89
    %p103 = scmp.eq.s32.totalorder %s15, 2
    %p104 = por %p102, %p103
    %p106 = scmp.ne.s32.totalorder %s89, %s105
    %p107 = scmp.eq.s32.totalorder %s15, 0
    %p108 = por %p106, %p107
    %s109 = ssub.s32 %s16, %s28
    %s110 = ssub.s32 %s17, %s24
    %s111 = sor.u32 %s109, %s110
    %p112 = scmp.eq.s32.totalorder %s111, 0
    %s114 = sadd.s32 %s113, 1
    %s115 = scalar_select %p112, %s113, %s114
    %p118 = pneg %p112
    %p119 = scmp.eq.s32.totalorder %s9, 2
    %p120 = por %p118, %p119
    %p121 = scmp.ne.s32.totalorder %s113, %s116
    %p122 = scmp.eq.s32.totalorder %s9, 0
    %p123 = por %p121, %p122
    %p124 = scmp.ne.s32.totalorder %s113, %s116
    %p125 = scmp.eq.s32.totalorder %s14, 2
    %p126 = por %p124, %p125
    %p127 = scmp.ne.s32.totalorder %s116, %s117
    %p128 = scmp.eq.s32.totalorder %s14, 0
    %p129 = por %p127, %p128
    %p130 = scmp.ne.s32.totalorder %s116, %s117
    %p131 = scmp.eq.s32.totalorder %s15, 2
    %p132 = por %p130, %p131
    %p134 = scmp.ne.s32.totalorder %s117, %s133
    %p135 = scmp.eq.s32.totalorder %s15, 0
    %p136 = por %p134, %p135
    %p137 = scmp.le.s32.totalorder 1, %s9
    %p138 = scmp.lt.s32.totalorder %s9, 4
    %p139 = pnand %p137, %p138
    %p140 = pneg %p139
    // Predicated region
    $region9: #{smtl_forward.21} parent=5 // pred_check
      _
    $region10: #{smtl_forward.21} parent=5 // pred_check_branch
      %142 = sbr.rel (%p139) target = $region12
    $region11: #{smtl_forward.21} parent=5 // pred_region
      %s143 = ssub.s32 %s9, 1
    $region12: #{smtl_forward.21} parent=5 // pred_fallthru
      _
    %p144 = scmp.lt.s32.totalorder %s9, 3
    // Predicated region
    $region13: #{smtl_forward.21} parent=5 // pred_check
      %p145 = pneg %p144
    $region14: #{smtl_forward.21} parent=5 // pred_check_branch
      %147 = sbr.rel (%p145) target = $region16
    $region15: #{smtl_forward.21} parent=5 // pred_region
      // Predicated region
      $region17: #{smtl_forward.21} parent=15 // pred_check
        %p148 = pneg %p43
      $region18: #{smtl_forward.21} parent=15 // pred_check_branch
        %150 = sbr.rel (%p148) target = $region20
      $region19: #{smtl_forward.21} parent=15 // pred_region
        %s151 = smul.u32 16, %s17
        %p152 = scmp.lt.s32.totalorder %s16, 2
        %s153 = scalar_select %p152, %s16, 2
        %p154 = scmp.lt.s32.totalorder %s151, 15
        %s155 = scalar_select %p154, %s151, 15
        %s156 = smul.addr %s155, 3
        %s157 = smul.addr %s153, 48
        %s158 = sadd.s32 %s156, %s157
        %s159 = smul.addr %s158, 4
        %s160 = scalar_lea.vmem %s0, %s159
        %s161 = smul.u32 16, %s17
      $region20: #{smtl_forward.21} parent=15 // pred_fallthru
        _
      // Predicated region
      $region21: #{smtl_forward.21} parent=15 // pred_check
        %p162 = pneg %p69
      $region22: #{smtl_forward.21} parent=15 // pred_check_branch
        %164 = sbr.rel (%p162) target = $region24
      $region23: #{smtl_forward.21} parent=15 // pred_region
        %p165 = scmp.lt.s32.totalorder %s16, 2
        %s166 = scalar_select %p165, %s16, 2
        %s167 = smul.addr %s166, 36
        %s168 = smul.addr %s167, 4
        %s169 = scalar_lea.vmem %s1, %s168
      $region24: #{smtl_forward.21} parent=15 // pred_fallthru
        _
      // Predicated region
      $region25: #{smtl_forward.21} parent=15 // pred_check
        %p170 = pneg %p95
      $region26: #{smtl_forward.21} parent=15 // pred_check_branch
        %172 = sbr.rel (%p170) target = $region28
      $region27: #{smtl_forward.21} parent=15 // pred_region
        %p173 = scmp.lt.s32.totalorder %s16, 2
        %s174 = scalar_select %p173, %s16, 2
        %s175 = scalar_lea.vmem %s2, %s174
      $region28: #{smtl_forward.21} parent=15 // pred_fallthru
        _
    $region16: #{smtl_forward.21} parent=5 // pred_fallthru
      _
    %p176 = scmp.le.s32.totalorder 1, %s9
    %p177 = scmp.lt.s32.totalorder %s9, 4
    %p178 = pnand %p176, %p177
    %p179 = pneg %p178
    // Predicated region
    $region29: #{smtl_forward.21} parent=5 // pred_check
      _
    $region30: #{smtl_forward.21} parent=5 // pred_check_branch
      %181 = sbr.rel (%p178) target = $region32
    $region31: #{smtl_forward.21} parent=5 // pred_region
      %s182 = ssub.s32 %s9, 1
      %s183 = smul.u32 16, %s19
      %p184 = scmp.lt.s32.totalorder %s18, 2
      %s185 = scalar_select %p184, %s18, 2
      %p186 = scmp.lt.s32.totalorder %s183, 15
      %s187 = scalar_select %p186, %s183, 15
      %s188 = smul.addr %s187, 3
      %s189 = smul.addr %s185, 48
      %s190 = sadd.s32 %s188, %s189
      %s191 = smul.addr %s190, 4
      %s192 = scalar_lea.vmem %s0, %s191
      %p193 = pneg %p49
      %p194 = pneg %p46
      %p195 = scmp.lt.s32.totalorder %s18, 2
      %s196 = scalar_select %p195, %s18, 2
      %s197 = smul.addr %s196, 36
      %s198 = smul.addr %s197, 4
      %s199 = scalar_lea.vmem %s1, %s198
      %p200 = pneg %p75
      %p201 = pneg %p72
      %p202 = scmp.lt.s32.totalorder %s18, 2
      %s203 = scalar_select %p202, %s18, 2
      %s204 = scalar_lea.vmem %s2, %s203
      %p205 = pneg %p101
      %p206 = pneg %p98
      %p207 = pneg %p129
      %p208 = pneg %p126
      %s209 = smul.u32 16, %s19
      %p210 = scmp.lt.s32.totalorder %s18, 2
      %s211 = scalar_select %p210, %s18, 2
      %p212 = scmp.lt.s32.totalorder %s209, 15
      %s213 = scalar_select %p212, %s209, 15
      %s214 = smul.addr %s211, 16
      %s215 = sadd.s32 %s213, %s214
      %s216 = smul.addr %s215, 8
      %s217 = scalar_lea.vmem %s3, %s216
      %s218 = smul.u32 16, %s19
      %p219 = scmp.lt.s32.totalorder %s18, 2
      %s220 = scalar_select %p219, %s18, 2
      %p221 = scmp.lt.s32.totalorder %s218, 15
      %s222 = scalar_select %p221, %s218, 15
      %s223 = smul.addr %s222, 3
      %s224 = smul.addr %s220, 48
      %s225 = sadd.s32 %s223, %s224
      %s226 = smul.addr %s225, 4
      %s227 = scalar_lea.vmem %s0, %s226
      %s228 = smul.u32 16, %s19
      %p229 = scmp.lt.s32.totalorder %s18, 2
      %s230 = scalar_select %p229, %s18, 2
      %s231 = smul.addr %s230, 36
      %s232 = smul.addr %s231, 4
      %s233 = scalar_lea.vmem %s1, %s232
      %p234 = scmp.lt.s32.totalorder %s18, 2
      %s235 = scalar_select %p234, %s18, 2
      %s236 = scalar_lea.vmem %s2, %s235
      %s237 = smul.u32 16, %s19
      %p238 = scmp.lt.s32.totalorder %s18, 2
      %s239 = scalar_select %p238, %s18, 2
      %p240 = scmp.lt.s32.totalorder %s237, 15
      %s241 = scalar_select %p240, %s237, 15
      %s242 = smul.addr %s239, 16
      %s243 = sadd.s32 %s241, %s242
      %s244 = smul.addr %s243, 8
      %s245 = scalar_lea.vmem %s3, %s244
      %s246 = smul.u32 16, %s19
      %v248 = vld [vmem:[%s227] sm:$0xff]
      %v249 = vld [vmem:[%s227 + $0x8] sm:$0xf]
      %v250 = vld [vmem:[%s227 + $0xc] sm:$0xff]
      %v251 = vld [vmem:[%s227 + $0x14] sm:$0xf]
      %v252 = vld [vmem:[%s227 + $0x18] sm:$0xff]
      %v253 = vld [vmem:[%s227 + $0x20] sm:$0xf]
      %v254 = vld [vmem:[%s227 + $0x24] sm:$0xff]
      %v255 = vld [vmem:[%s227 + $0x2c] sm:$0xf]
      %v256 = vld [vmem:[%s227 + $0x30] sm:$0xff]
      %v257 = vld [vmem:[%s227 + $0x38] sm:$0xf]
      %v258 = vld [vmem:[%s227 + $0x3c] sm:$0xff]
      %v259 = vld [vmem:[%s227 + $0x44] sm:$0xf]
      %v260 = vld [vmem:[%s227 + $0x48] sm:$0xff]
      %v261 = vld [vmem:[%s227 + $0x50] sm:$0xf]
      %v262 = vld [vmem:[%s227 + $0x54] sm:$0xff]
      %v263 = vld [vmem:[%s227 + $0x5c] sm:$0xf]
      %v264 = vld [vmem:[%s227 + $0x60] sm:$0xff]
      %v265 = vld [vmem:[%s227 + $0x68] sm:$0xf]
      %v266 = vld [vmem:[%s227 + $0x6c] sm:$0xff]
      %v267 = vld [vmem:[%s227 + $0x74] sm:$0xf]
      %v268 = vld [vmem:[%s227 + $0x78] sm:$0xff]
      %v269 = vld [vmem:[%s227 + $0x80] sm:$0xf]
      %v270 = vld [vmem:[%s227 + $0x84] sm:$0xff]
      %v271 = vld [vmem:[%s227 + $0x8c] sm:$0xf]
      %v272 = vld [vmem:[%s227 + $0x90] sm:$0xff]
      %v273 = vld [vmem:[%s227 + $0x98] sm:$0xf]
      %v274 = vld [vmem:[%s227 + $0x9c] sm:$0xff]
      %v275 = vld [vmem:[%s227 + $0xa4] sm:$0xf]
      %v276 = vld [vmem:[%s227 + $0xa8] sm:$0xff]
      %v277 = vld [vmem:[%s227 + $0xb0] sm:$0xf]
      %v278 = vld [vmem:[%s227 + $0xb4] sm:$0xff]
      %v279 = vld [vmem:[%s227 + $0xbc] sm:$0xf]
      %v280 = vld [vmem:[%s233] sm:$0xf]
      %v281 = vld [vmem:[%s233 + $0x4] sm:$0xf]
      %v282 = vld [vmem:[%s233 + $0x8] sm:$0xf]
      %v283 = vld [vmem:[%s233 + $0xc] sm:$0xf]
      %v284 = vld [vmem:[%s233 + $0x10] sm:$0xf]
      %v285 = vld [vmem:[%s233 + $0x14] sm:$0xf]
      %v286 = vld [vmem:[%s233 + $0x18] sm:$0xf]
      %v287 = vld [vmem:[%s233 + $0x1c] sm:$0xf]
      %v288 = vld [vmem:[%s233 + $0x20] sm:$0xf]
      %v289 = vld [vmem:[%s233 + $0x24] sm:$0xf]
      %v290 = vld [vmem:[%s233 + $0x28] sm:$0xf]
      %v291 = vld [vmem:[%s233 + $0x2c] sm:$0xf]
      %v292 = vld [vmem:[%s233 + $0x30] sm:$0xf]
      %v293 = vld [vmem:[%s233 + $0x34] sm:$0xf]
      %v294 = vld [vmem:[%s233 + $0x38] sm:$0xf]
      %v295 = vld [vmem:[%s233 + $0x3c] sm:$0xf]
      %v296 = vld [vmem:[%s233 + $0x40] sm:$0xf]
      %v297 = vld [vmem:[%s233 + $0x44] sm:$0xf]
      %v298 = vld [vmem:[%s233 + $0x48] sm:$0xf]
      %v299 = vld [vmem:[%s233 + $0x4c] sm:$0xf]
      %v300 = vld [vmem:[%s233 + $0x50] sm:$0xf]
      %v301 = vld [vmem:[%s233 + $0x54] sm:$0xf]
      %v302 = vld [vmem:[%s233 + $0x58] sm:$0xf]
      %v303 = vld [vmem:[%s233 + $0x5c] sm:$0xf]
      %v304 = vld [vmem:[%s233 + $0x60] sm:$0xf]
      %v305 = vld [vmem:[%s233 + $0x64] sm:$0xf]
      %v306 = vld [vmem:[%s233 + $0x68] sm:$0xf]
      %v307 = vld [vmem:[%s233 + $0x6c] sm:$0xf]
      %v308 = vld [vmem:[%s233 + $0x70] sm:$0xf]
      %v309 = vld [vmem:[%s233 + $0x74] sm:$0xf]
      %v310 = vld [vmem:[%s233 + $0x78] sm:$0xf]
      %v311 = vld [vmem:[%s233 + $0x7c] sm:$0xf]
      %v312 = vld [vmem:[%s233 + $0x80] sm:$0xf]
      %v313 = vld [vmem:[%s233 + $0x84] sm:$0xf]
      %v314 = vld [vmem:[%s233 + $0x88] sm:$0xf]
      %v315 = vld [vmem:[%s233 + $0x8c] sm:$0xf]
      %v316 = vld [vmem:[%s236] sm:$0x1]
      %v318 = vlaneseq
      %v319 = vshrl.u32 %v318, 7
      %v320 = vsub.s32 0, %v319
      %v321 = vrot.slane %v316, %v320
      %v355 = vunpack.c.l.b16 %v248
      %v356 = vunpack.c.h.b16 %v248
      %v357 = vunpack.c.l.b16 %v249
      %v358 = vunpack.c.l.b16 %v250
      %v359 = vunpack.c.h.b16 %v250
      %v360 = vunpack.c.l.b16 %v251
      %v361 = vunpack.c.l.b16 %v252
      %v362 = vunpack.c.h.b16 %v252
      %v363 = vunpack.c.l.b16 %v253
      %v364 = vunpack.c.l.b16 %v254
      %v365 = vunpack.c.h.b16 %v254
      %v366 = vunpack.c.l.b16 %v255
      %v367 = vunpack.c.l.b16 %v256
      %v368 = vunpack.c.h.b16 %v256
      %v369 = vunpack.c.l.b16 %v257
      %v370 = vunpack.c.l.b16 %v258
      %v371 = vunpack.c.h.b16 %v258
      %v372 = vunpack.c.l.b16 %v259
      %v373 = vunpack.c.l.b16 %v260
      %v374 = vunpack.c.h.b16 %v260
      %v375 = vunpack.c.l.b16 %v261
      %v376 = vunpack.c.l.b16 %v262
      %v377 = vunpack.c.h.b16 %v262
      %v378 = vunpack.c.l.b16 %v263
      %v379 = vunpack.c.l.b16 %v264
      %v380 = vunpack.c.h.b16 %v264
      %v381 = vunpack.c.l.b16 %v265
      %v382 = vunpack.c.l.b16 %v266
      %v383 = vunpack.c.h.b16 %v266
      %v384 = vunpack.c.l.b16 %v267
      %v385 = vunpack.c.l.b16 %v268
      %v386 = vunpack.c.h.b16 %v268
      %v387 = vunpack.c.l.b16 %v269
      %v388 = vunpack.c.l.b16 %v270
      %v389 = vunpack.c.h.b16 %v270
      %v390 = vunpack.c.l.b16 %v271
      %v391 = vunpack.c.l.b16 %v272
      %v392 = vunpack.c.h.b16 %v272
      %v393 = vunpack.c.l.b16 %v273
      %v394 = vunpack.c.l.b16 %v274
      %v395 = vunpack.c.h.b16 %v274
      %v396 = vunpack.c.l.b16 %v275
      %v397 = vunpack.c.l.b16 %v276
      %v398 = vunpack.c.h.b16 %v276
      %v399 = vunpack.c.l.b16 %v277
      %v400 = vunpack.c.l.b16 %v278
      %v401 = vunpack.c.h.b16 %v278
      %v402 = vunpack.c.l.b16 %v279
      %v403 = vpack.c.b16 %v358, %v355
      %v404 = vpack.c.b16 %v359, %v356
      %v405 = vpack.c.b16 %v360, %v357
      %v406 = vpack.c.b16 %v364, %v361
      %v407 = vpack.c.b16 %v365, %v362
      %v408 = vpack.c.b16 %v366, %v363
      %v409 = vpack.c.b16 %v370, %v367
      %v410 = vpack.c.b16 %v371, %v368
      %v411 = vpack.c.b16 %v372, %v369
      %v412 = vpack.c.b16 %v376, %v373
      %v413 = vpack.c.b16 %v377, %v374
      %v414 = vpack.c.b16 %v378, %v375
      %v415 = vpack.c.b16 %v382, %v379
      %v416 = vpack.c.b16 %v383, %v380
      %v417 = vpack.c.b16 %v384, %v381
      %v418 = vpack.c.b16 %v388, %v385
      %v419 = vpack.c.b16 %v389, %v386
      %v420 = vpack.c.b16 %v390, %v387
      %v421 = vpack.c.b16 %v394, %v391
      %v422 = vpack.c.b16 %v395, %v392
      %v423 = vpack.c.b16 %v396, %v393
      %v424 = vpack.c.b16 %v400, %v397
      %v425 = vpack.c.b16 %v401, %v398
      %v426 = vpack.c.b16 %v402, %v399
      %v479 = vunpack.c.l.b16 %v280
      %v480 = vunpack.c.l.b16 %v281
      %v481 = vunpack.c.l.b16 %v282
      %v482 = vunpack.c.l.b16 %v283
      %v483 = vunpack.c.l.b16 %v284
      %v484 = vunpack.c.l.b16 %v285
      %v485 = vunpack.c.l.b16 %v286
      %v486 = vunpack.c.l.b16 %v287
      %v487 = vunpack.c.l.b16 %v288
      %v488 = vunpack.c.l.b16 %v289
      %v489 = vunpack.c.l.b16 %v290
      %v490 = vunpack.c.l.b16 %v291
      %v491 = vunpack.c.l.b16 %v292
      %v492 = vunpack.c.l.b16 %v293
      %v493 = vunpack.c.l.b16 %v294
      %v494 = vunpack.c.l.b16 %v295
      %v495 = vunpack.c.l.b16 %v296
      %v496 = vunpack.c.l.b16 %v297
      %v497 = vunpack.c.l.b16 %v298
      %v498 = vunpack.c.l.b16 %v299
      %v499 = vunpack.c.l.b16 %v300
      %v500 = vunpack.c.l.b16 %v301
      %v501 = vunpack.c.l.b16 %v302
      %v502 = vunpack.c.l.b16 %v303
      %v503 = vunpack.c.l.b16 %v304
      %v504 = vunpack.c.l.b16 %v305
      %v505 = vunpack.c.l.b16 %v306
      %v506 = vunpack.c.l.b16 %v307
      %v507 = vunpack.c.l.b16 %v308
      %v508 = vunpack.c.l.b16 %v309
      %v509 = vunpack.c.l.b16 %v310
      %v510 = vunpack.c.l.b16 %v311
      %v511 = vunpack.c.l.b16 %v312
      %v512 = vunpack.c.l.b16 %v313
      %v513 = vunpack.c.l.b16 %v314
      %v514 = vunpack.c.l.b16 %v315
      %v515 = vpack.c.b16 %v480, %v479
      %v516 = vpack.c.b16 %v482, %v481
      %v517 = vpack.c.b16 %v484, %v483
      %v518 = vpack.c.b16 %v486, %v485
      %v519 = vpack.c.b16 %v488, %v487
      %v520 = vpack.c.b16 %v490, %v489
      %v521 = vpack.c.b16 %v492, %v491
      %v522 = vpack.c.b16 %v494, %v493
      %v523 = vpack.c.b16 %v496, %v495
      %v524 = vpack.c.b16 %v498, %v497
      %v525 = vpack.c.b16 %v500, %v499
      %v526 = vpack.c.b16 %v502, %v501
      %v527 = vpack.c.b16 %v504, %v503
      %v528 = vpack.c.b16 %v506, %v505
      %v529 = vpack.c.b16 %v508, %v507
      %v530 = vpack.c.b16 %v510, %v509
      %v531 = vpack.c.b16 %v512, %v511
      %v532 = vpack.c.b16 %v514, %v513
      %vm551 = vcmask 261120
      %v553 = vsel %vm551, %v405, 0
      %v556 = vsel %vm551, %v408, 0
      %v559 = vsel %vm551, %v411, 0
      %v562 = vsel %vm551, %v414, 0
      %v565 = vsel %vm551, %v417, 0
      %v568 = vsel %vm551, %v420, 0
      %v571 = vsel %vm551, %v423, 0
      %v574 = vsel %vm551, %v426, 0
      %576 = vmatprep.subr.bf16.mxu0 0
      %577 = vmatpush1.bf16.msra.mxu0 %v515
      %578 = vmatprep.subr.bf16.mxu0 0
      %579 = vmatpush1.bf16.msra.mxu0 %v516
      %580 = vmatprep.subr.bf16.mxu0 0
      %581 = vmatpush1.bf16.msra.mxu0 %v517
      %582 = vmatprep.subr.bf16.mxu0 0
      %583 = vmatpush1.bf16.msra.mxu0 %v518
      %584 = vmatprep.subr.bf16.mxu0 0
      %585 = vmatpush1.bf16.msra.mxu0 %v519
      %586 = vmatprep.subr.bf16.mxu0 0
      %587 = vmatpush1.bf16.msra.mxu0 %v520
      %588 = vmatprep.subr.bf16.mxu0 0
      %589 = vmatpush1.bf16.msra.mxu0 %v521
      %590 = vmatprep.subr.bf16.mxu0 0
      %591 = vmatpush1.bf16.msra.mxu0 %v522
      %592 = vmatprep.subr.bf16.mxu0 0
      %593 = vmatpush1.bf16.msra.mxu0 %v523
      %594 = vmatprep.subr.bf16.mxu0 0
      %595 = vmatpush1.bf16.msra.mxu0 %v524
      %596 = vmatprep.subr.bf16.mxu0 0
      %597 = vmatpush1.bf16.msra.mxu0 %v525
      %598 = vmatprep.subr.bf16.mxu0 0
      %599 = vmatpush1.bf16.msra.mxu0 %v526
      %600 = vmatprep.subr.bf16.mxu0 0
      %601 = vmatpush1.bf16.msra.mxu0 %v527
      %602 = vmatprep.subr.bf16.mxu0 0
      %603 = vmatpush1.bf16.msra.mxu0 %v528
      %604 = vmatprep.subr.bf16.mxu0 0
      %605 = vmatpush1.bf16.msra.mxu0 %v529
      %606 = vmatprep.subr.bf16.mxu0 0
      %607 = vmatpush1.bf16.msra.mxu0 %v530
      %608 = vmatprep.mubr.bf16.mxu0 %v404
      %609 = vmatmul.mubr.bf16.gmra.mrb[0].mxu0 %v403
      %v610 = vpop.f32.mrb[0].mxu0
      %v611 = vadd.f32 %v321, %v610
      %v612 = vpop.f32.mrb[0].mxu0
      %v613 = vpop.f32.mrb[0].mxu0
      %v614 = vadd.f32 %v321, %v613
      %v615 = vpop.f32.mrb[0].mxu0
      %616 = vmatprep.mubr.bf16.mxu0 %v407
      %617 = vmatmul.mubr.bf16.gmra.mrb[0].mxu0 %v406
      %v618 = vpop.f32.mrb[0].mxu0
      %v619 = vadd.f32 %v321, %v618
      %v620 = vpop.f32.mrb[0].mxu0
      %v621 = vpop.f32.mrb[0].mxu0
      %v622 = vadd.f32 %v321, %v621
      %v623 = vpop.f32.mrb[0].mxu0
      %624 = vmatprep.mubr.bf16.mxu0 %v410
      %625 = vmatmul.mubr.bf16.gmra.mrb[0].mxu0 %v409
      %v626 = vpop.f32.mrb[0].mxu0
      %v627 = vadd.f32 %v321, %v626
      %v628 = vpop.f32.mrb[0].mxu0
      %v629 = vpop.f32.mrb[0].mxu0
      %v630 = vadd.f32 %v321, %v629
      %v631 = vpop.f32.mrb[0].mxu0
      %632 = vmatprep.mubr.bf16.mxu0 %v413
      %633 = vmatmul.mubr.bf16.gmra.mrb[0].mxu0 %v412
      %v634 = vpop.f32.mrb[0].mxu0
      %v635 = vadd.f32 %v321, %v634
      %v636 = vpop.f32.mrb[0].mxu0
      %v637 = vpop.f32.mrb[0].mxu0
      %v638 = vadd.f32 %v321, %v637
      %v639 = vpop.f32.mrb[0].mxu0
      %640 = vmatprep.mubr.bf16.mxu0 %v416
      %641 = vmatmul.mubr.bf16.gmra.mrb[0].mxu0 %v415
      %v642 = vpop.f32.mrb[0].mxu0
      %v643 = vadd.f32 %v321, %v642
      %v644 = vpop.f32.mrb[0].mxu0
      %v645 = vpop.f32.mrb[0].mxu0
      %v646 = vadd.f32 %v321, %v645
      %v647 = vpop.f32.mrb[0].mxu0
      %648 = vmatprep.mubr.bf16.mxu0 %v419
      %649 = vmatmul.mubr.bf16.gmra.mrb[0].mxu0 %v418
      %v650 = vpop.f32.mrb[0].mxu0
      %v651 = vadd.f32 %v321, %v650
      %v652 = vpop.f32.mrb[0].mxu0
      %v653 = vpop.f32.mrb[0].mxu0
      %v654 = vadd.f32 %v321, %v653
      %v655 = vpop.f32.mrb[0].mxu0
      %656 = vmatprep.mubr.bf16.mxu0 %v422
      %657 = vmatmul.mubr.bf16.gmra.mrb[0].mxu0 %v421
      %v658 = vpop.f32.mrb[0].mxu0
      %v659 = vadd.f32 %v321, %v658
      %v660 = vpop.f32.mrb[0].mxu0
      %v661 = vpop.f32.mrb[0].mxu0
      %v662 = vadd.f32 %v321, %v661
      %v663 = vpop.f32.mrb[0].mxu0
      %664 = vmatprep.mubr.bf16.mxu0 %v425
      %665 = vmatmul.mubr.bf16.gmra.mrb[0].mxu0 %v424
      %v666 = vpop.f32.mrb[0].mxu0
      %v667 = vadd.f32 %v321, %v666
      %v668 = vpop.f32.mrb[0].mxu0
      %v669 = vpop.f32.mrb[0].mxu0
      %v670 = vadd.f32 %v321, %v669
      %v671 = vpop.f32.mrb[0].mxu0
      %672 = vdwg.mxu0
      %673 = vmatprep.subr.bf16.mxu0 0
      %674 = vmatpush1.bf16.msra.mxu0 %v531
      %675 = vmatprep.subr.bf16.mxu0 0
      %676 = vmatpush1.bf16.msra.mxu0 %v532
      %677 = vmatprep.subr.bf16.mxu0 0
      %678 = vmatpush1.bf16.msra.mxu0 0
      %679 = vmatprep.subr.bf16.mxu0 0
      %680 = vmatpush1.bf16.msra.mxu0 0
      %681 = vmatprep.subr.bf16.mxu0 0
      %682 = vmatpush1.bf16.msra.mxu0 0
      %683 = vmatprep.subr.bf16.mxu0 0
      %684 = vmatpush1.bf16.msra.mxu0 0
      %685 = vmatprep.subr.bf16.mxu0 0
      %686 = vmatpush1.bf16.msra.mxu0 0
      %687 = vmatprep.subr.bf16.mxu0 0
      %688 = vmatpush1.bf16.msra.mxu0 0
      %689 = vmatprep.subr.bf16.mxu0 0
      %690 = vmatpush1.bf16.msra.mxu0 0
      %691 = vmatprep.subr.bf16.mxu0 0
      %692 = vmatpush1.bf16.msra.mxu0 0
      %693 = vmatprep.subr.bf16.mxu0 0
      %694 = vmatpush1.bf16.msra.mxu0 0
      %695 = vmatprep.subr.bf16.mxu0 0
      %696 = vmatpush1.bf16.msra.mxu0 0
      %697 = vmatprep.subr.bf16.mxu0 0
      %698 = vmatpush1.bf16.msra.mxu0 0
      %699 = vmatprep.subr.bf16.mxu0 0
      %700 = vmatpush1.bf16.msra.mxu0 0
      %701 = vmatprep.subr.bf16.mxu0 0
      %702 = vmatpush1.bf16.msra.mxu0 0
      %703 = vmatprep.subr.bf16.mxu0 0
      %704 = vmatpush1.bf16.msra.mxu0 0
      %705 = vmatprep.mubr.bf16.mxu0 0
      %706 = vmatmul.mubr.bf16.gmra.mrb[0].mxu0 %v553
      %v707 = vpop.f32.mrb[0].mxu0
      %v708 = vadd.f32 %v611, %v707
      %v709 = vpop.f32.mrb[0].mxu0
      %v710 = vpop.f32.mrb[0].mxu0
      %v711 = vadd.f32 %v614, %v710
      %v712 = vpop.f32.mrb[0].mxu0
      %713 = vmatprep.mubr.bf16.mxu0 0
      %714 = vmatmul.mubr.bf16.gmra.mrb[0].mxu0 %v556
      %v715 = vpop.f32.mrb[0].mxu0
      %v716 = vadd.f32 %v619, %v715
      %v717 = vpop.f32.mrb[0].mxu0
      %v718 = vpop.f32.mrb[0].mxu0
      %v719 = vadd.f32 %v622, %v718
      %v720 = vpop.f32.mrb[0].mxu0
      %721 = vmatprep.mubr.bf16.mxu0 0
      %722 = vmatmul.mubr.bf16.gmra.mrb[0].mxu0 %v559
      %v723 = vpop.f32.mrb[0].mxu0
      %v724 = vadd.f32 %v627, %v723
      %v725 = vpop.f32.mrb[0].mxu0
      %v726 = vpop.f32.mrb[0].mxu0
      %v727 = vadd.f32 %v630, %v726
      %v728 = vpop.f32.mrb[0].mxu0
      %729 = vmatprep.mubr.bf16.mxu0 0
      %730 = vmatmul.mubr.bf16.gmra.mrb[0].mxu0 %v562
      %v731 = vpop.f32.mrb[0].mxu0
      %v732 = vadd.f32 %v635, %v731
      %v733 = vpop.f32.mrb[0].mxu0
      %v734 = vpop.f32.mrb[0].mxu0
      %v735 = vadd.f32 %v638, %v734
      %v736 = vpop.f32.mrb[0].mxu0
      %737 = vmatprep.mubr.bf16.mxu0 0
      %738 = vmatmul.mubr.bf16.gmra.mrb[0].mxu0 %v565
      %v739 = vpop.f32.mrb[0].mxu0
      %v740 = vadd.f32 %v643, %v739
      %v741 = vpop.f32.mrb[0].mxu0
      %v742 = vpop.f32.mrb[0].mxu0
      %v743 = vadd.f32 %v646, %v742
      %v744 = vpop.f32.mrb[0].mxu0
      %745 = vmatprep.mubr.bf16.mxu0 0
      %746 = vmatmul.mubr.bf16.gmra.mrb[0].mxu0 %v568
      %v747 = vpop.f32.mrb[0].mxu0
      %v748 = vadd.f32 %v651, %v747
      %v749 = vpop.f32.mrb[0].mxu0
      %v750 = vpop.f32.mrb[0].mxu0
      %v751 = vadd.f32 %v654, %v750
      %v752 = vpop.f32.mrb[0].mxu0
      %753 = vmatprep.mubr.bf16.mxu0 0
      %754 = vmatmul.mubr.bf16.gmra.mrb[0].mxu0 %v571
      %v755 = vpop.f32.mrb[0].mxu0
      %v756 = vadd.f32 %v659, %v755
      %v757 = vpop.f32.mrb[0].mxu0
      %v758 = vpop.f32.mrb[0].mxu0
      %v759 = vadd.f32 %v662, %v758
      %v760 = vpop.f32.mrb[0].mxu0
      %761 = vmatprep.mubr.bf16.mxu0 0
      %762 = vmatmul.mubr.bf16.gmra.mrb[0].mxu0 %v574
      %v763 = vpop.f32.mrb[0].mxu0
      %v764 = vadd.f32 %v667, %v763
      %v765 = vpop.f32.mrb[0].mxu0
      %v766 = vpop.f32.mrb[0].mxu0
      %v767 = vadd.f32 %v670, %v766
      %v768 = vpop.f32.mrb[0].mxu0
      %769 = vdwg.mxu0
      %v770 = vmax.f32 %v708, 0.0
      %v771 = vmax.f32 %v711, 0.0
      %v772 = vmax.f32 %v716, 0.0
      %v773 = vmax.f32 %v719, 0.0
      %v774 = vmax.f32 %v724, 0.0
      %v775 = vmax.f32 %v727, 0.0
      %v776 = vmax.f32 %v732, 0.0
      %v777 = vmax.f32 %v735, 0.0
      %v778 = vmax.f32 %v740, 0.0
      %v779 = vmax.f32 %v743, 0.0
      %v780 = vmax.f32 %v748, 0.0
      %v781 = vmax.f32 %v751, 0.0
      %v782 = vmax.f32 %v756, 0.0
      %v783 = vmax.f32 %v759, 0.0
      %v784 = vmax.f32 %v764, 0.0
      %v785 = vmax.f32 %v767, 0.0
      %786 = vst.msk [vmem:[%s245] sm:$0xff] %vm551, %v770
      %787 = vst.msk [vmem:[%s245 + $0x8] sm:$0xff] %vm551, %v771
      %788 = vst.msk [vmem:[%s245 + $0x10] sm:$0xff] %vm551, %v772
      %789 = vst.msk [vmem:[%s245 + $0x18] sm:$0xff] %vm551, %v773
      %790 = vst.msk [vmem:[%s245 + $0x20] sm:$0xff] %vm551, %v774
      %791 = vst.msk [vmem:[%s245 + $0x28] sm:$0xff] %vm551, %v775
      %792 = vst.msk [vmem:[%s245 + $0x30] sm:$0xff] %vm551, %v776
      %793 = vst.msk [vmem:[%s245 + $0x38] sm:$0xff] %vm551, %v777
      %794 = vst.msk [vmem:[%s245 + $0x40] sm:$0xff] %vm551, %v778
      %795 = vst.msk [vmem:[%s245 + $0x48] sm:$0xff] %vm551, %v779
      %796 = vst.msk [vmem:[%s245 + $0x50] sm:$0xff] %vm551, %v780
      %797 = vst.msk [vmem:[%s245 + $0x58] sm:$0xff] %vm551, %v781
      %798 = vst.msk [vmem:[%s245 + $0x60] sm:$0xff] %vm551, %v782
      %799 = vst.msk [vmem:[%s245 + $0x68] sm:$0xff] %vm551, %v783
      %800 = vst.msk [vmem:[%s245 + $0x70] sm:$0xff] %vm551, %v784
      %801 = vst.msk [vmem:[%s245 + $0x78] sm:$0xff] %vm551, %v785
      %s802 = smul.u32 16, %s19
      %p803 = scmp.lt.s32.totalorder %s18, 2
      %s804 = scalar_select %p803, %s18, 2
      %p805 = scmp.lt.s32.totalorder %s802, 15
      %s806 = scalar_select %p805, %s802, 15
      %s807 = smul.addr %s804, 16
      %s808 = sadd.s32 %s806, %s807
      %s809 = smul.addr %s808, 8
      %s810 = scalar_lea.vmem %s3, %s809
      // Predicated region
      $region33: #{smtl_forward.21} parent=31 // pred_check
        %p811 = pneg %p126
      $region34: #{smtl_forward.21} parent=31 // pred_check_branch
        %813 = sbr.rel (%p811) target = $region36
      $region35: #{smtl_forward.21} parent=31 // pred_region
        %s814 = smul.u32 16, %s19
      $region36: #{smtl_forward.21} parent=31 // pred_fallthru
        _
    $region32: #{smtl_forward.21} parent=5 // pred_fallthru
      _
    %p815 = scmp.le.s32.totalorder 2, %s9
    // Predicated region
    $region37: #{smtl_forward.21} parent=5 // pred_check
      %p816 = pneg %p815
    $region38: #{smtl_forward.21} parent=5 // pred_check_branch
      %818 = sbr.rel (%p816) target = $region40
    $region39: #{smtl_forward.21} parent=5 // pred_region
      %s819 = ssub.s32 %s9, 2
      // Predicated region
      $region41: #{smtl_forward.21} parent=39 // pred_check
        %p820 = pneg %p132
      $region42: #{smtl_forward.21} parent=39 // pred_check_branch
        %822 = sbr.rel (%p820) target = $region44
      $region43: #{smtl_forward.21} parent=39 // pred_region
        %s823 = smul.u32 16, %s21
        %p824 = scmp.lt.s32.totalorder %s20, 2
        %s825 = scalar_select %p824, %s20, 2
        %p826 = scmp.lt.s32.totalorder %s823, 15
        %s827 = scalar_select %p826, %s823, 15
        %s828 = smul.addr %s825, 16
        %s829 = sadd.s32 %s827, %s828
        %s830 = smul.addr %s829, 8
        %s831 = scalar_lea.vmem %s3, %s830
      $region44: #{smtl_forward.21} parent=39 // pred_fallthru
        _
    $region40: #{smtl_forward.21} parent=5 // pred_fallthru
      _
  $region6: #{smtl_forward.21} parent=0 // loop_footer
    %s13 = sadd.s32 1, %s9
  $region7: #{smtl_forward.21} parent=0 // loop_footer_branch
    %8 = sbr.rel target = $region3
  $region8: #{smtl_forward.21} parent=0 // loop_exit
    _

// kernel: smtl_forward.27
$region0: #{smtl_forward.27}
  #allocation0 [shape = 'u32[]', space=smem, size = 0x4, offset = 0x4, fixed_abs, tag = 'smem constant byte address 0x4 - core index']
  #allocation1 [shape = 'u32[144,128]{1,0:T(1,128)}', space=vmem, size = 0x12000, scoped, tag = 'internal scratch']
  %s0 = inlined_call_operand.vmem [shape: f32[4,2,64,32], index: 0, kind: input, shape index: {}]
  %s1 = inlined_call_operand.vmem [shape: bf16[4,32,16], index: 1, kind: input, shape index: {}]
  %s2 = inlined_call_operand.vmem [shape: f32[4,1,16], index: 2, kind: input, shape index: {}]
  %s3 = inlined_call_operand.vmem [shape: f32[4,2,16], index: 3, kind: output, shape index: {}]
  %s4 = sld [smem:[#allocation0]]
  $region45: #{smtl_forward.27} parent=0
    _
  %s6 = ssub.s32 1, %s4
  %s7 = scalar_select 0, %s6, %s4
  loop: start=0, step=1, limit=6
  $region2: #{smtl_forward.27} parent=0 // loop_pre_header
    _
  $region3: #{smtl_forward.27} parent=0 // loop_header
    %s9 = sphi 0, %s13
    %p10 = scmp.ge.s32.totalorder %s9, 6
    %s19 = sphi 0, %s21
    %s22 = sphi 0, %s19
    %s23 = sphi 0, %s22
    %s39 = sphi 0, %s23
    %s45 = sphi 0, %s47
    %s48 = sphi 0, %s45
    %s49 = sphi 0, %s48
    %s65 = sphi 0, %s49
    %s71 = sphi 0, %s73
    %s74 = sphi 0, %s71
    %s75 = sphi 0, %s74
    %s91 = sphi 0, %s75
    %s97 = sphi 0, %s99
    %s100 = sphi 0, %s97
    %s101 = sphi 0, %s100
    %s117 = sphi 0, %s101
  $region4: #{smtl_forward.27} parent=0 // loop_header_branch
    %12 = sbr.rel (%p10) target = $region8
  $region5: #{smtl_forward.27} parent=0 // loop_body
    %s14 = ssub.s32 %s9, 1
    %s15 = ssub.s32 %s9, 2
    %s16 = sadd.s32 %s9, 1
    %s17 = ssub.s32 %s9, %s16
    %p18 = scmp.eq.s32.totalorder %s17, 0
    %s20 = sadd.s32 %s19, 1
    %s21 = scalar_select %p18, %s19, %s20
    %p24 = pneg %p18
    %p25 = scmp.eq.s32.totalorder %s9, 3
    %p26 = por %p24, %p25
    %p27 = scmp.ne.s32.totalorder %s19, %s22
    %p28 = scmp.eq.s32.totalorder %s9, 0
    %p29 = por %p27, %p28
    %p30 = scmp.ne.s32.totalorder %s19, %s22
    %p31 = scmp.eq.s32.totalorder %s14, 3
    %p32 = por %p30, %p31
    %p33 = scmp.ne.s32.totalorder %s22, %s23
    %p34 = scmp.eq.s32.totalorder %s14, 0
    %p35 = por %p33, %p34
    %p36 = scmp.ne.s32.totalorder %s22, %s23
    %p37 = scmp.eq.s32.totalorder %s15, 3
    %p38 = por %p36, %p37
    %p40 = scmp.ne.s32.totalorder %s23, %s39
    %p41 = scmp.eq.s32.totalorder %s15, 0
    %p42 = por %p40, %p41
    %s43 = ssub.s32 %s9, %s16
    %p44 = scmp.eq.s32.totalorder %s43, 0
    %s46 = sadd.s32 %s45, 1
    %s47 = scalar_select %p44, %s45, %s46
    %p50 = pneg %p44
    %p51 = scmp.eq.s32.totalorder %s9, 3
    %p52 = por %p50, %p51
    %p53 = scmp.ne.s32.totalorder %s45, %s48
    %p54 = scmp.eq.s32.totalorder %s9, 0
    %p55 = por %p53, %p54
    %p56 = scmp.ne.s32.totalorder %s45, %s48
    %p57 = scmp.eq.s32.totalorder %s14, 3
    %p58 = por %p56, %p57
    %p59 = scmp.ne.s32.totalorder %s48, %s49
    %p60 = scmp.eq.s32.totalorder %s14, 0
    %p61 = por %p59, %p60
    %p62 = scmp.ne.s32.totalorder %s48, %s49
    %p63 = scmp.eq.s32.totalorder %s15, 3
    %p64 = por %p62, %p63
    %p66 = scmp.ne.s32.totalorder %s49, %s65
    %p67 = scmp.eq.s32.totalorder %s15, 0
    %p68 = por %p66, %p67
    %s69 = ssub.s32 %s9, %s16
    %p70 = scmp.eq.s32.totalorder %s69, 0
    %s72 = sadd.s32 %s71, 1
    %s73 = scalar_select %p70, %s71, %s72
    %p76 = pneg %p70
    %p77 = scmp.eq.s32.totalorder %s9, 3
    %p78 = por %p76, %p77
    %p79 = scmp.ne.s32.totalorder %s71, %s74
    %p80 = scmp.eq.s32.totalorder %s9, 0
    %p81 = por %p79, %p80
    %p82 = scmp.ne.s32.totalorder %s71, %s74
    %p83 = scmp.eq.s32.totalorder %s14, 3
    %p84 = por %p82, %p83
    %p85 = scmp.ne.s32.totalorder %s74, %s75
    %p86 = scmp.eq.s32.totalorder %s14, 0
    %p87 = por %p85, %p86
    %p88 = scmp.ne.s32.totalorder %s74, %s75
    %p89 = scmp.eq.s32.totalorder %s15, 3
    %p90 = por %p88, %p89
    %p92 = scmp.ne.s32.totalorder %s75, %s91
    %p93 = scmp.eq.s32.totalorder %s15, 0
    %p94 = por %p92, %p93
    %s95 = ssub.s32 %s9, %s16
    %p96 = scmp.eq.s32.totalorder %s95, 0
    %s98 = sadd.s32 %s97, 1
    %s99 = scalar_select %p96, %s97, %s98
    %p102 = pneg %p96
    %p103 = scmp.eq.s32.totalorder %s9, 3
    %p104 = por %p102, %p103
    %p105 = scmp.ne.s32.totalorder %s97, %s100
    %p106 = scmp.eq.s32.totalorder %s9, 0
    %p107 = por %p105, %p106
    %p108 = scmp.ne.s32.totalorder %s97, %s100
    %p109 = scmp.eq.s32.totalorder %s14, 3
    %p110 = por %p108, %p109
    %p111 = scmp.ne.s32.totalorder %s100, %s101
    %p112 = scmp.eq.s32.totalorder %s14, 0
    %p113 = por %p111, %p112
    %p114 = scmp.ne.s32.totalorder %s100, %s101
    %p115 = scmp.eq.s32.totalorder %s15, 3
    %p116 = por %p114, %p115
    %p118 = scmp.ne.s32.totalorder %s101, %s117
    %p119 = scmp.eq.s32.totalorder %s15, 0
    %p120 = por %p118, %p119
    %p121 = scmp.le.s32.totalorder 1, %s9
    %p122 = scmp.lt.s32.totalorder %s9, 5
    %p123 = pnand %p121, %p122
    %p124 = pneg %p123
    // Predicated region
    $region9: #{smtl_forward.27} parent=5 // pred_check
      _
    $region10: #{smtl_forward.27} parent=5 // pred_check_branch
      %126 = sbr.rel (%p123) target = $region12
    $region11: #{smtl_forward.27} parent=5 // pred_region
      %s127 = ssub.s32 %s9, 1
    $region12: #{smtl_forward.27} parent=5 // pred_fallthru
      _
    %p128 = scmp.lt.s32.totalorder %s9, 4
    // Predicated region
    $region13: #{smtl_forward.27} parent=5 // pred_check
      %p129 = pneg %p128
    $region14: #{smtl_forward.27} parent=5 // pred_check_branch
      %131 = sbr.rel (%p129) target = $region16
    $region15: #{smtl_forward.27} parent=5 // pred_region
      // Predicated region
      $region17: #{smtl_forward.27} parent=15 // pred_check
        %p132 = pneg %p29
      $region18: #{smtl_forward.27} parent=15 // pred_check_branch
        %134 = sbr.rel (%p132) target = $region20
      $region19: #{smtl_forward.27} parent=15 // pred_region
        %p135 = scmp.lt.s32.totalorder %s9, 3
        %s136 = scalar_select %p135, %s9, 3
        %s137 = smul.addr %s136, 16
        %s138 = smul.addr %s137, 8
        %s139 = scalar_lea.vmem %s0, %s138
      $region20: #{smtl_forward.27} parent=15 // pred_fallthru
        _
      // Predicated region
      $region21: #{smtl_forward.27} parent=15 // pred_check
        %p140 = pneg %p55
      $region22: #{smtl_forward.27} parent=15 // pred_check_branch
        %142 = sbr.rel (%p140) target = $region24
      $region23: #{smtl_forward.27} parent=15 // pred_region
        %p143 = scmp.lt.s32.totalorder %s9, 3
        %s144 = scalar_select %p143, %s9, 3
        %s145 = smul.addr %s144, 4
        %s146 = smul.addr %s145, 4
        %s147 = scalar_lea.vmem %s1, %s146
      $region24: #{smtl_forward.27} parent=15 // pred_fallthru
        _
      // Predicated region
      $region25: #{smtl_forward.27} parent=15 // pred_check
        %p148 = pneg %p81
      $region26: #{smtl_forward.27} parent=15 // pred_check_branch
        %150 = sbr.rel (%p148) target = $region28
      $region27: #{smtl_forward.27} parent=15 // pred_region
        %p151 = scmp.lt.s32.totalorder %s9, 3
        %s152 = scalar_select %p151, %s9, 3
        %s153 = scalar_lea.vmem %s2, %s152
      $region28: #{smtl_forward.27} parent=15 // pred_fallthru
        _
    $region16: #{smtl_forward.27} parent=5 // pred_fallthru
      _
    %p154 = scmp.le.s32.totalorder 1, %s9
    %p155 = scmp.lt.s32.totalorder %s9, 5
    %p156 = pnand %p154, %p155
    %p157 = pneg %p156
    // Predicated region
    $region29: #{smtl_forward.27} parent=5 // pred_check
      _
    $region30: #{smtl_forward.27} parent=5 // pred_check_branch
      %159 = sbr.rel (%p156) target = $region32
    $region31: #{smtl_forward.27} parent=5 // pred_region
      %s160 = ssub.s32 %s9, 1
      %p161 = scmp.lt.s32.totalorder %s14, 3
      %s162 = scalar_select %p161, %s14, 3
      %s163 = smul.addr %s162, 16
      %s164 = smul.addr %s163, 8
      %s165 = scalar_lea.vmem %s0, %s164
      %p166 = pneg %p35
      %p167 = pneg %p32
      %p168 = scmp.lt.s32.totalorder %s14, 3
      %s169 = scalar_select %p168, %s14, 3
      %s170 = smul.addr %s169, 4
      %s171 = smul.addr %s170, 4
      %s172 = scalar_lea.vmem %s1, %s171
      %p173 = pneg %p61
      %p174 = pneg %p58
      %p175 = scmp.lt.s32.totalorder %s14, 3
      %s176 = scalar_select %p175, %s14, 3
      %s177 = scalar_lea.vmem %s2, %s176
      %p178 = pneg %p87
      %p179 = pneg %p84
      %p180 = pneg %p113
      %p181 = pneg %p110
      %p182 = scmp.lt.s32.totalorder %s14, 3
      %s183 = scalar_select %p182, %s14, 3
      %s184 = smul.addr %s183, 2
      %s185 = scalar_lea.vmem %s3, %s184
      %p186 = scmp.lt.s32.totalorder %s14, 3
      %s187 = scalar_select %p186, %s14, 3
      %s188 = smul.addr %s187, 16
      %s189 = smul.addr %s188, 8
      %s190 = scalar_lea.vmem %s0, %s189
      %p191 = scmp.lt.s32.totalorder %s14, 3
      %s192 = scalar_select %p191, %s14, 3
      %s193 = smul.addr %s192, 4
      %s194 = smul.addr %s193, 4
      %s195 = scalar_lea.vmem %s1, %s194
      %p196 = scmp.lt.s32.totalorder %s14, 3
      %s197 = scalar_select %p196, %s14, 3
      %s198 = scalar_lea.vmem %s2, %s197
      %p199 = scmp.lt.s32.totalorder %s14, 3
      %s200 = scalar_select %p199, %s14, 3
      %s201 = smul.addr %s200, 2
      %s202 = scalar_lea.vmem %s3, %s201
      %v204 = vld [vmem:[%s190] sm:$0xff]
      %v205 = vld [vmem:[%s190 + $0x8] sm:$0xff]
      %v206 = vld [vmem:[%s190 + $0x10] sm:$0xff]
      %v207 = vld [vmem:[%s190 + $0x18] sm:$0xff]
      %v208 = vld [vmem:[%s190 + $0x20] sm:$0xff]
      %v209 = vld [vmem:[%s190 + $0x28] sm:$0xff]
      %v210 = vld [vmem:[%s190 + $0x30] sm:$0xff]
      %v211 = vld [vmem:[%s190 + $0x38] sm:$0xff]
      %v212 = vld [vmem:[%s190 + $0x40] sm:$0xff]
      %v213 = vld [vmem:[%s190 + $0x48] sm:$0xff]
      %v214 = vld [vmem:[%s190 + $0x50] sm:$0xff]
      %v215 = vld [vmem:[%s190 + $0x58] sm:$0xff]
      %v216 = vld [vmem:[%s190 + $0x60] sm:$0xff]
      %v217 = vld [vmem:[%s190 + $0x68] sm:$0xff]
      %v218 = vld [vmem:[%s190 + $0x70] sm:$0xff]
      %v219 = vld [vmem:[%s190 + $0x78] sm:$0xff]
      %vm220 = vcmask 261120
      %v221 = vsel %vm220, %v204, 0.0
      %v222 = vsel %vm220, %v205, 0.0
      %v223 = vadd.f32 %v221, %v222
      %v224 = vsel %vm220, %v206, 0.0
      %v225 = vadd.f32 %v223, %v224
      %v226 = vsel %vm220, %v207, 0.0
      %v227 = vadd.f32 %v225, %v226
      %v228 = vsel %vm220, %v208, 0.0
      %v229 = vadd.f32 %v227, %v228
      %v230 = vsel %vm220, %v209, 0.0
      %v231 = vadd.f32 %v229, %v230
      %v232 = vsel %vm220, %v210, 0.0
      %v233 = vadd.f32 %v231, %v232
      %v234 = vsel %vm220, %v211, 0.0
      %v235 = vadd.f32 %v233, %v234
      %v236 = vrot.slane %v235, 4
      %v237 = vadd.f32 %v235, %v236
      %v238 = vrot.slane %v237, 2
      %v239 = vadd.f32 %v237, %v238
      %v240 = vrot.slane %v239, 1
      %v241 = vadd.f32 %v239, %v240
      %v242 = vsel %vm220, %v212, 0.0
      %v243 = vsel %vm220, %v213, 0.0
      %v244 = vadd.f32 %v242, %v243
      %v245 = vsel %vm220, %v214, 0.0
      %v246 = vadd.f32 %v244, %v245
      %v247 = vsel %vm220, %v215, 0.0
      %v248 = vadd.f32 %v246, %v247
      %v249 = vsel %vm220, %v216, 0.0
      %v250 = vadd.f32 %v248, %v249
      %v251 = vsel %vm220, %v217, 0.0
      %v252 = vadd.f32 %v250, %v251
      %v253 = vsel %vm220, %v218, 0.0
      %v254 = vadd.f32 %v252, %v253
      %v255 = vsel %vm220, %v219, 0.0
      %v256 = vadd.f32 %v254, %v255
      %v257 = vrot.slane %v256, 4
      %v258 = vadd.f32 %v256, %v257
      %v259 = vrot.slane %v258, 2
      %v260 = vadd.f32 %v258, %v259
      %v261 = vrot.slane %v260, 1
      %v262 = vadd.f32 %v260, %v261
      %v263 = vrcp.pop 64.0
      %v264 = vmul.f32 %v241, %v263
      %v265 = vmul.f32 %v262, %v263
      %v266 = vpack.c.bf16 %v264, %v264
      %v267 = vpack.c.bf16 %v265, %v265
      %v268 = vld [vmem:[%s195] sm:$0xf]
      %v269 = vld [vmem:[%s195 + $0x4] sm:$0xf]
      %v270 = vld [vmem:[%s195 + $0x8] sm:$0xf]
      %v271 = vld [vmem:[%s195 + $0xc] sm:$0xf]
      %v272 = vld [vmem:[%s198] sm:$0x1]
      %v274 = vlaneseq
      %v275 = vshrl.u32 %v274, 7
      %v276 = vsub.s32 0, %v275
      %v277 = vrot.slane %v272, %v276
      %v281 = vunpack.c.l.b16 %v266
      %v282 = vunpack.c.l.b16 %v267
      %vm283 = vcmask 1041409
      %v284 = vsel %vm283, %v282, %v281
      %v285 = vpack.c.b16 %v284, %v284
      %v290 = vunpack.c.l.b16 %v268
      %v291 = vunpack.c.l.b16 %v269
      %v292 = vunpack.c.l.b16 %v270
      %v293 = vunpack.c.l.b16 %v271
      %v294 = vpack.c.b16 %v291, %v290
      %v295 = vpack.c.b16 %v293, %v292
      %v299 = vsel %vm220, %v285, 0
      %301 = vmatprep.subr.bf16.mxu0 0
      %302 = vmatpush1.bf16.msra.mxu0 %v294
      %303 = vmatprep.subr.bf16.mxu0 0
      %304 = vmatpush1.bf16.msra.mxu0 %v295
      %305 = vmatprep.subr.bf16.mxu0 0
      %306 = vmatpush1.bf16.msra.mxu0 0
      %307 = vmatprep.subr.bf16.mxu0 0
      %308 = vmatpush1.bf16.msra.mxu0 0
      %309 = vmatprep.subr.bf16.mxu0 0
      %310 = vmatpush1.bf16.msra.mxu0 0
      %311 = vmatprep.subr.bf16.mxu0 0
      %312 = vmatpush1.bf16.msra.mxu0 0
      %313 = vmatprep.subr.bf16.mxu0 0
      %314 = vmatpush1.bf16.msra.mxu0 0
      %315 = vmatprep.subr.bf16.mxu0 0
      %316 = vmatpush1.bf16.msra.mxu0 0
      %317 = vmatprep.subr.bf16.mxu0 0
      %318 = vmatpush1.bf16.msra.mxu0 0
      %319 = vmatprep.subr.bf16.mxu0 0
      %320 = vmatpush1.bf16.msra.mxu0 0
      %321 = vmatprep.subr.bf16.mxu0 0
      %322 = vmatpush1.bf16.msra.mxu0 0
      %323 = vmatprep.subr.bf16.mxu0 0
      %324 = vmatpush1.bf16.msra.mxu0 0
      %325 = vmatprep.subr.bf16.mxu0 0
      %326 = vmatpush1.bf16.msra.mxu0 0
      %327 = vmatprep.subr.bf16.mxu0 0
      %328 = vmatpush1.bf16.msra.mxu0 0
      %329 = vmatprep.subr.bf16.mxu0 0
      %330 = vmatpush1.bf16.msra.mxu0 0
      %331 = vmatprep.subr.bf16.mxu0 0
      %332 = vmatpush1.bf16.msra.mxu0 0
      %333 = vmatprep.mubr.bf16.mxu0 0
      %334 = vmatmul.mubr.bf16.gmra.mrb[0].mxu0 %v299
      %v335 = vpop.f32.mrb[0].mxu0
      %v336 = vadd.f32 %v277, %v335
      %v337 = vpop.f32.mrb[0].mxu0
      %v338 = vpop.f32.mrb[0].mxu0
      %v339 = vpop.f32.mrb[0].mxu0
      %340 = vdwg.mxu0
      %v341 = vmax.f32 %v336, 0.0
      %vm342 = vcmask 123904
      %343 = vst.msk [vmem:[%s202] sm:$0x3] %vm342, %v341
      %p344 = scmp.lt.s32.totalorder %s14, 3
      %s345 = scalar_select %p344, %s14, 3
      %s346 = smul.addr %s345, 2
      %s347 = scalar_lea.vmem %s3, %s346
      // Predicated region
      $region33: #{smtl_forward.27} parent=31 // pred_check
        %p348 = pneg %p110
      $region34: #{smtl_forward.27} parent=31 // pred_check_branch
        %350 = sbr.rel (%p348) target = $region36
      $region35: #{smtl_forward.27} parent=31 // pred_region
        _
      $region36: #{smtl_forward.27} parent=31 // pred_fallthru
        _
    $region32: #{smtl_forward.27} parent=5 // pred_fallthru
      _
    %p351 = scmp.le.s32.totalorder 2, %s9
    // Predicated region
    $region37: #{smtl_forward.27} parent=5 // pred_check
      %p352 = pneg %p351
    $region38: #{smtl_forward.27} parent=5 // pred_check_branch
      %354 = sbr.rel (%p352) target = $region40
    $region39: #{smtl_forward.27} parent=5 // pred_region
      %s355 = ssub.s32 %s9, 2
      // Predicated region
      $region41: #{smtl_forward.27} parent=39 // pred_check
        %p356 = pneg %p116
      $region42: #{smtl_forward.27} parent=39 // pred_check_branch
        %358 = sbr.rel (%p356) target = $region44
      $region43: #{smtl_forward.27} parent=39 // pred_region
        %p359 = scmp.lt.s32.totalorder %s15, 3
        %s360 = scalar_select %p359, %s15, 3
        %s361 = smul.addr %s360, 2
        %s362 = scalar_lea.vmem %s3, %s361
      $region44: #{smtl_forward.27} parent=39 // pred_fallthru
        _
    $region40: #{smtl_forward.27} parent=5 // pred_fallthru
      _
  $region6: #{smtl_forward.27} parent=0 // loop_footer
    %s13 = sadd.s32 1, %s9
  $region7: #{smtl_forward.27} parent=0 // loop_footer_branch
    %8 = sbr.rel target = $region3
  $region8: #{smtl_forward.27} parent=0 // loop_exit
    _

// kernel: smtl_forward.26
$region0: #{smtl_forward.26}
  #allocation0 [shape = 'u32[]', space=smem, size = 0x4, offset = 0x4, fixed_abs, tag = 'smem constant byte address 0x4 - core index']
  #allocation1 [shape = 'u32[144,128]{1,0:T(1,128)}', space=vmem, size = 0x12000, scoped, tag = 'internal scratch']
  %s0 = inlined_call_operand.vmem [shape: bf16[4,128,288], index: 0, kind: input, shape index: {}]
  %s1 = inlined_call_operand.vmem [shape: bf16[4,288,16], index: 1, kind: input, shape index: {}]
  %s2 = inlined_call_operand.vmem [shape: f32[4,1,16], index: 2, kind: input, shape index: {}]
  %s3 = inlined_call_operand.vmem [shape: f32[4,128,16], index: 3, kind: output, shape index: {}]
  %s4 = sld [smem:[#allocation0]]
  $region45: #{smtl_forward.26} parent=0
    _
  %s6 = ssub.s32 1, %s4
  %s7 = scalar_select 0, %s6, %s4
  loop: start=0, step=1, limit=6
  $region2: #{smtl_forward.26} parent=0 // loop_pre_header
    _
  $region3: #{smtl_forward.26} parent=0 // loop_header
    %s9 = sphi 0, %s13
    %p10 = scmp.ge.s32.totalorder %s9, 6
    %s16 = sphi 0, %s28
    %s17 = sphi 0, %s24
    %s18 = sphi 0, %s16
    %s19 = sphi 0, %s17
    %s20 = sphi 0, %s18
    %s21 = sphi 0, %s19
    %s33 = sphi 0, %s35
    %s36 = sphi 0, %s33
    %s37 = sphi 0, %s36
    %s53 = sphi 0, %s37
    %s59 = sphi 0, %s61
    %s62 = sphi 0, %s59
    %s63 = sphi 0, %s62
    %s79 = sphi 0, %s63
    %s85 = sphi 0, %s87
    %s88 = sphi 0, %s85
    %s89 = sphi 0, %s88
    %s105 = sphi 0, %s89
    %s113 = sphi 0, %s115
    %s116 = sphi 0, %s113
    %s117 = sphi 0, %s116
    %s133 = sphi 0, %s117
  $region4: #{smtl_forward.26} parent=0 // loop_header_branch
    %12 = sbr.rel (%p10) target = $region8
  $region5: #{smtl_forward.26} parent=0 // loop_body
    %s14 = ssub.s32 %s9, 1
    %s15 = ssub.s32 %s9, 2
    %s22 = sadd.s32 1, %s17
    %p23 = scmp.ge.s32.totalorder %s22, 1
    %s24 = scalar_select %p23, 0, %s22
    %s25 = sadd.s32 1, %s16
    %s26 = scalar_select %p23, %s25, %s16
    %p27 = scmp.ge.s32.totalorder %s26, 4
    %s28 = scalar_select %p27, 0, %s26
    %s29 = ssub.s32 %s16, %s28
    %s30 = ssub.s32 %s17, %s24
    %s31 = sor.u32 %s29, %s30
    %p32 = scmp.eq.s32.totalorder %s31, 0
    %s34 = sadd.s32 %s33, 1
    %s35 = scalar_select %p32, %s33, %s34
    %p38 = pneg %p32
    %p39 = scmp.eq.s32.totalorder %s9, 3
    %p40 = por %p38, %p39
    %p41 = scmp.ne.s32.totalorder %s33, %s36
    %p42 = scmp.eq.s32.totalorder %s9, 0
    %p43 = por %p41, %p42
    %p44 = scmp.ne.s32.totalorder %s33, %s36
    %p45 = scmp.eq.s32.totalorder %s14, 3
    %p46 = por %p44, %p45
    %p47 = scmp.ne.s32.totalorder %s36, %s37
    %p48 = scmp.eq.s32.totalorder %s14, 0
    %p49 = por %p47, %p48
    %p50 = scmp.ne.s32.totalorder %s36, %s37
    %p51 = scmp.eq.s32.totalorder %s15, 3
    %p52 = por %p50, %p51
    %p54 = scmp.ne.s32.totalorder %s37, %s53
    %p55 = scmp.eq.s32.totalorder %s15, 0
    %p56 = por %p54, %p55
    %s57 = ssub.s32 %s16, %s28
    %p58 = scmp.eq.s32.totalorder %s57, 0
    %s60 = sadd.s32 %s59, 1
    %s61 = scalar_select %p58, %s59, %s60
    %p64 = pneg %p58
    %p65 = scmp.eq.s32.totalorder %s9, 3
    %p66 = por %p64, %p65
    %p67 = scmp.ne.s32.totalorder %s59, %s62
    %p68 = scmp.eq.s32.totalorder %s9, 0
    %p69 = por %p67, %p68
    %p70 = scmp.ne.s32.totalorder %s59, %s62
    %p71 = scmp.eq.s32.totalorder %s14, 3
    %p72 = por %p70, %p71
    %p73 = scmp.ne.s32.totalorder %s62, %s63
    %p74 = scmp.eq.s32.totalorder %s14, 0
    %p75 = por %p73, %p74
    %p76 = scmp.ne.s32.totalorder %s62, %s63
    %p77 = scmp.eq.s32.totalorder %s15, 3
    %p78 = por %p76, %p77
    %p80 = scmp.ne.s32.totalorder %s63, %s79
    %p81 = scmp.eq.s32.totalorder %s15, 0
    %p82 = por %p80, %p81
    %s83 = ssub.s32 %s16, %s28
    %p84 = scmp.eq.s32.totalorder %s83, 0
    %s86 = sadd.s32 %s85, 1
    %s87 = scalar_select %p84, %s85, %s86
    %p90 = pneg %p84
    %p91 = scmp.eq.s32.totalorder %s9, 3
    %p92 = por %p90, %p91
    %p93 = scmp.ne.s32.totalorder %s85, %s88
    %p94 = scmp.eq.s32.totalorder %s9, 0
    %p95 = por %p93, %p94
    %p96 = scmp.ne.s32.totalorder %s85, %s88
    %p97 = scmp.eq.s32.totalorder %s14, 3
    %p98 = por %p96, %p97
    %p99 = scmp.ne.s32.totalorder %s88, %s89
    %p100 = scmp.eq.s32.totalorder %s14, 0
    %p101 = por %p99, %p100
    %p102 = scmp.ne.s32.totalorder %s88, %s89
    %p103 = scmp.eq.s32.totalorder %s15, 3
    %p104 = por %p102, %p103
    %p106 = scmp.ne.s32.totalorder %s89, %s105
    %p107 = scmp.eq.s32.totalorder %s15, 0
    %p108 = por %p106, %p107
    %s109 = ssub.s32 %s16, %s28
    %s110 = ssub.s32 %s17, %s24
    %s111 = sor.u32 %s109, %s110
    %p112 = scmp.eq.s32.totalorder %s111, 0
    %s114 = sadd.s32 %s113, 1
    %s115 = scalar_select %p112, %s113, %s114
    %p118 = pneg %p112
    %p119 = scmp.eq.s32.totalorder %s9, 3
    %p120 = por %p118, %p119
    %p121 = scmp.ne.s32.totalorder %s113, %s116
    %p122 = scmp.eq.s32.totalorder %s9, 0
    %p123 = por %p121, %p122
    %p124 = scmp.ne.s32.totalorder %s113, %s116
    %p125 = scmp.eq.s32.totalorder %s14, 3
    %p126 = por %p124, %p125
    %p127 = scmp.ne.s32.totalorder %s116, %s117
    %p128 = scmp.eq.s32.totalorder %s14, 0
    %p129 = por %p127, %p128
    %p130 = scmp.ne.s32.totalorder %s116, %s117
    %p131 = scmp.eq.s32.totalorder %s15, 3
    %p132 = por %p130, %p131
    %p134 = scmp.ne.s32.totalorder %s117, %s133
    %p135 = scmp.eq.s32.totalorder %s15, 0
    %p136 = por %p134, %p135
    %p137 = scmp.le.s32.totalorder 1, %s9
    %p138 = scmp.lt.s32.totalorder %s9, 5
    %p139 = pnand %p137, %p138
    %p140 = pneg %p139
    // Predicated region
    $region9: #{smtl_forward.26} parent=5 // pred_check
      _
    $region10: #{smtl_forward.26} parent=5 // pred_check_branch
      %142 = sbr.rel (%p139) target = $region12
    $region11: #{smtl_forward.26} parent=5 // pred_region
      %s143 = ssub.s32 %s9, 1
    $region12: #{smtl_forward.26} parent=5 // pred_fallthru
      _
    %p144 = scmp.lt.s32.totalorder %s9, 4
    // Predicated region
    $region13: #{smtl_forward.26} parent=5 // pred_check
      %p145 = pneg %p144
    $region14: #{smtl_forward.26} parent=5 // pred_check_branch
      %147 = sbr.rel (%p145) target = $region16
    $region15: #{smtl_forward.26} parent=5 // pred_region
      // Predicated region
      $region17: #{smtl_forward.26} parent=15 // pred_check
        %p148 = pneg %p43
      $region18: #{smtl_forward.26} parent=15 // pred_check_branch
        %150 = sbr.rel (%p148) target = $region20
      $region19: #{smtl_forward.26} parent=15 // pred_region
        %s151 = smul.u32 16, %s17
        %p152 = scmp.lt.s32.totalorder %s16, 3
        %s153 = scalar_select %p152, %s16, 3
        %p154 = scmp.lt.s32.totalorder %s151, 15
        %s155 = scalar_select %p154, %s151, 15
        %s156 = smul.addr %s155, 3
        %s157 = smul.addr %s153, 48
        %s158 = sadd.s32 %s156, %s157
        %s159 = smul.addr %s158, 4
        %s160 = scalar_lea.vmem %s0, %s159
        %s161 = smul.u32 16, %s17
      $region20: #{smtl_forward.26} parent=15 // pred_fallthru
        _
      // Predicated region
      $region21: #{smtl_forward.26} parent=15 // pred_check
        %p162 = pneg %p69
      $region22: #{smtl_forward.26} parent=15 // pred_check_branch
        %164 = sbr.rel (%p162) target = $region24
      $region23: #{smtl_forward.26} parent=15 // pred_region
        %p165 = scmp.lt.s32.totalorder %s16, 3
        %s166 = scalar_select %p165, %s16, 3
        %s167 = smul.addr %s166, 36
        %s168 = smul.addr %s167, 4
        %s169 = scalar_lea.vmem %s1, %s168
      $region24: #{smtl_forward.26} parent=15 // pred_fallthru
        _
      // Predicated region
      $region25: #{smtl_forward.26} parent=15 // pred_check
        %p170 = pneg %p95
      $region26: #{smtl_forward.26} parent=15 // pred_check_branch
        %172 = sbr.rel (%p170) target = $region28
      $region27: #{smtl_forward.26} parent=15 // pred_region
        %p173 = scmp.lt.s32.totalorder %s16, 3
        %s174 = scalar_select %p173, %s16, 3
        %s175 = scalar_lea.vmem %s2, %s174
      $region28: #{smtl_forward.26} parent=15 // pred_fallthru
        _
    $region16: #{smtl_forward.26} parent=5 // pred_fallthru
      _
    %p176 = scmp.le.s32.totalorder 1, %s9
    %p177 = scmp.lt.s32.totalorder %s9, 5
    %p178 = pnand %p176, %p177
    %p179 = pneg %p178
    // Predicated region
    $region29: #{smtl_forward.26} parent=5 // pred_check
      _
    $region30: #{smtl_forward.26} parent=5 // pred_check_branch
      %181 = sbr.rel (%p178) target = $region32
    $region31: #{smtl_forward.26} parent=5 // pred_region
      %s182 = ssub.s32 %s9, 1
      %s183 = smul.u32 16, %s19
      %p184 = scmp.lt.s32.totalorder %s18, 3
      %s185 = scalar_select %p184, %s18, 3
      %p186 = scmp.lt.s32.totalorder %s183, 15
      %s187 = scalar_select %p186, %s183, 15
      %s188 = smul.addr %s187, 3
      %s189 = smul.addr %s185, 48
      %s190 = sadd.s32 %s188, %s189
      %s191 = smul.addr %s190, 4
      %s192 = scalar_lea.vmem %s0, %s191
      %p193 = pneg %p49
      %p194 = pneg %p46
      %p195 = scmp.lt.s32.totalorder %s18, 3
      %s196 = scalar_select %p195, %s18, 3
      %s197 = smul.addr %s196, 36
      %s198 = smul.addr %s197, 4
      %s199 = scalar_lea.vmem %s1, %s198
      %p200 = pneg %p75
      %p201 = pneg %p72
      %p202 = scmp.lt.s32.totalorder %s18, 3
      %s203 = scalar_select %p202, %s18, 3
      %s204 = scalar_lea.vmem %s2, %s203
      %p205 = pneg %p101
      %p206 = pneg %p98
      %p207 = pneg %p129
      %p208 = pneg %p126
      %s209 = smul.u32 16, %s19
      %p210 = scmp.lt.s32.totalorder %s18, 3
      %s211 = scalar_select %p210, %s18, 3
      %p212 = scmp.lt.s32.totalorder %s209, 15
      %s213 = scalar_select %p212, %s209, 15
      %s214 = smul.addr %s211, 16
      %s215 = sadd.s32 %s213, %s214
      %s216 = smul.addr %s215, 8
      %s217 = scalar_lea.vmem %s3, %s216
      %s218 = smul.u32 16, %s19
      %p219 = scmp.lt.s32.totalorder %s18, 3
      %s220 = scalar_select %p219, %s18, 3
      %p221 = scmp.lt.s32.totalorder %s218, 15
      %s222 = scalar_select %p221, %s218, 15
      %s223 = smul.addr %s222, 3
      %s224 = smul.addr %s220, 48
      %s225 = sadd.s32 %s223, %s224
      %s226 = smul.addr %s225, 4
      %s227 = scalar_lea.vmem %s0, %s226
      %s228 = smul.u32 16, %s19
      %p229 = scmp.lt.s32.totalorder %s18, 3
      %s230 = scalar_select %p229, %s18, 3
      %s231 = smul.addr %s230, 36
      %s232 = smul.addr %s231, 4
      %s233 = scalar_lea.vmem %s1, %s232
      %p234 = scmp.lt.s32.totalorder %s18, 3
      %s235 = scalar_select %p234, %s18, 3
      %s236 = scalar_lea.vmem %s2, %s235
      %s237 = smul.u32 16, %s19
      %p238 = scmp.lt.s32.totalorder %s18, 3
      %s239 = scalar_select %p238, %s18, 3
      %p240 = scmp.lt.s32.totalorder %s237, 15
      %s241 = scalar_select %p240, %s237, 15
      %s242 = smul.addr %s239, 16
      %s243 = sadd.s32 %s241, %s242
      %s244 = smul.addr %s243, 8
      %s245 = scalar_lea.vmem %s3, %s244
      %s246 = smul.u32 16, %s19
      %v248 = vld [vmem:[%s227] sm:$0xff]
      %v249 = vld [vmem:[%s227 + $0x8] sm:$0xf]
      %v250 = vld [vmem:[%s227 + $0xc] sm:$0xff]
      %v251 = vld [vmem:[%s227 + $0x14] sm:$0xf]
      %v252 = vld [vmem:[%s227 + $0x18] sm:$0xff]
      %v253 = vld [vmem:[%s227 + $0x20] sm:$0xf]
      %v254 = vld [vmem:[%s227 + $0x24] sm:$0xff]
      %v255 = vld [vmem:[%s227 + $0x2c] sm:$0xf]
      %v256 = vld [vmem:[%s227 + $0x30] sm:$0xff]
      %v257 = vld [vmem:[%s227 + $0x38] sm:$0xf]
      %v258 = vld [vmem:[%s227 + $0x3c] sm:$0xff]
      %v259 = vld [vmem:[%s227 + $0x44] sm:$0xf]
      %v260 = vld [vmem:[%s227 + $0x48] sm:$0xff]
      %v261 = vld [vmem:[%s227 + $0x50] sm:$0xf]
      %v262 = vld [vmem:[%s227 + $0x54] sm:$0xff]
      %v263 = vld [vmem:[%s227 + $0x5c] sm:$0xf]
      %v264 = vld [vmem:[%s227 + $0x60] sm:$0xff]
      %v265 = vld [vmem:[%s227 + $0x68] sm:$0xf]
      %v266 = vld [vmem:[%s227 + $0x6c] sm:$0xff]
      %v267 = vld [vmem:[%s227 + $0x74] sm:$0xf]
      %v268 = vld [vmem:[%s227 + $0x78] sm:$0xff]
      %v269 = vld [vmem:[%s227 + $0x80] sm:$0xf]
      %v270 = vld [vmem:[%s227 + $0x84] sm:$0xff]
      %v271 = vld [vmem:[%s227 + $0x8c] sm:$0xf]
      %v272 = vld [vmem:[%s227 + $0x90] sm:$0xff]
      %v273 = vld [vmem:[%s227 + $0x98] sm:$0xf]
      %v274 = vld [vmem:[%s227 + $0x9c] sm:$0xff]
      %v275 = vld [vmem:[%s227 + $0xa4] sm:$0xf]
      %v276 = vld [vmem:[%s227 + $0xa8] sm:$0xff]
      %v277 = vld [vmem:[%s227 + $0xb0] sm:$0xf]
      %v278 = vld [vmem:[%s227 + $0xb4] sm:$0xff]
      %v279 = vld [vmem:[%s227 + $0xbc] sm:$0xf]
      %v280 = vld [vmem:[%s233] sm:$0xf]
      %v281 = vld [vmem:[%s233 + $0x4] sm:$0xf]
      %v282 = vld [vmem:[%s233 + $0x8] sm:$0xf]
      %v283 = vld [vmem:[%s233 + $0xc] sm:$0xf]
      %v284 = vld [vmem:[%s233 + $0x10] sm:$0xf]
      %v285 = vld [vmem:[%s233 + $0x14] sm:$0xf]
      %v286 = vld [vmem:[%s233 + $0x18] sm:$0xf]
      %v287 = vld [vmem:[%s233 + $0x1c] sm:$0xf]
      %v288 = vld [vmem:[%s233 + $0x20] sm:$0xf]
      %v289 = vld [vmem:[%s233 + $0x24] sm:$0xf]
      %v290 = vld [vmem:[%s233 + $0x28] sm:$0xf]
      %v291 = vld [vmem:[%s233 + $0x2c] sm:$0xf]
      %v292 = vld [vmem:[%s233 + $0x30] sm:$0xf]
      %v293 = vld [vmem:[%s233 + $0x34] sm:$0xf]
      %v294 = vld [vmem:[%s233 + $0x38] sm:$0xf]
      %v295 = vld [vmem:[%s233 + $0x3c] sm:$0xf]
      %v296 = vld [vmem:[%s233 + $0x40] sm:$0xf]
      %v297 = vld [vmem:[%s233 + $0x44] sm:$0xf]
      %v298 = vld [vmem:[%s233 + $0x48] sm:$0xf]
      %v299 = vld [vmem:[%s233 + $0x4c] sm:$0xf]
      %v300 = vld [vmem:[%s233 + $0x50] sm:$0xf]
      %v301 = vld [vmem:[%s233 + $0x54] sm:$0xf]
      %v302 = vld [vmem:[%s233 + $0x58] sm:$0xf]
      %v303 = vld [vmem:[%s233 + $0x5c] sm:$0xf]
      %v304 = vld [vmem:[%s233 + $0x60] sm:$0xf]
      %v305 = vld [vmem:[%s233 + $0x64] sm:$0xf]
      %v306 = vld [vmem:[%s233 + $0x68] sm:$0xf]
      %v307 = vld [vmem:[%s233 + $0x6c] sm:$0xf]
      %v308 = vld [vmem:[%s233 + $0x70] sm:$0xf]
      %v309 = vld [vmem:[%s233 + $0x74] sm:$0xf]
      %v310 = vld [vmem:[%s233 + $0x78] sm:$0xf]
      %v311 = vld [vmem:[%s233 + $0x7c] sm:$0xf]
      %v312 = vld [vmem:[%s233 + $0x80] sm:$0xf]
      %v313 = vld [vmem:[%s233 + $0x84] sm:$0xf]
      %v314 = vld [vmem:[%s233 + $0x88] sm:$0xf]
      %v315 = vld [vmem:[%s233 + $0x8c] sm:$0xf]
      %v316 = vld [vmem:[%s236] sm:$0x1]
      %v318 = vlaneseq
      %v319 = vshrl.u32 %v318, 7
      %v320 = vsub.s32 0, %v319
      %v321 = vrot.slane %v316, %v320
      %v355 = vunpack.c.l.b16 %v248
      %v356 = vunpack.c.h.b16 %v248
      %v357 = vunpack.c.l.b16 %v249
      %v358 = vunpack.c.l.b16 %v250
      %v359 = vunpack.c.h.b16 %v250
      %v360 = vunpack.c.l.b16 %v251
      %v361 = vunpack.c.l.b16 %v252
      %v362 = vunpack.c.h.b16 %v252
      %v363 = vunpack.c.l.b16 %v253
      %v364 = vunpack.c.l.b16 %v254
      %v365 = vunpack.c.h.b16 %v254
      %v366 = vunpack.c.l.b16 %v255
      %v367 = vunpack.c.l.b16 %v256
      %v368 = vunpack.c.h.b16 %v256
      %v369 = vunpack.c.l.b16 %v257
      %v370 = vunpack.c.l.b16 %v258
      %v371 = vunpack.c.h.b16 %v258
      %v372 = vunpack.c.l.b16 %v259
      %v373 = vunpack.c.l.b16 %v260
      %v374 = vunpack.c.h.b16 %v260
      %v375 = vunpack.c.l.b16 %v261
      %v376 = vunpack.c.l.b16 %v262
      %v377 = vunpack.c.h.b16 %v262
      %v378 = vunpack.c.l.b16 %v263
      %v379 = vunpack.c.l.b16 %v264
      %v380 = vunpack.c.h.b16 %v264
      %v381 = vunpack.c.l.b16 %v265
      %v382 = vunpack.c.l.b16 %v266
      %v383 = vunpack.c.h.b16 %v266
      %v384 = vunpack.c.l.b16 %v267
      %v385 = vunpack.c.l.b16 %v268
      %v386 = vunpack.c.h.b16 %v268
      %v387 = vunpack.c.l.b16 %v269
      %v388 = vunpack.c.l.b16 %v270
      %v389 = vunpack.c.h.b16 %v270
      %v390 = vunpack.c.l.b16 %v271
      %v391 = vunpack.c.l.b16 %v272
      %v392 = vunpack.c.h.b16 %v272
      %v393 = vunpack.c.l.b16 %v273
      %v394 = vunpack.c.l.b16 %v274
      %v395 = vunpack.c.h.b16 %v274
      %v396 = vunpack.c.l.b16 %v275
      %v397 = vunpack.c.l.b16 %v276
      %v398 = vunpack.c.h.b16 %v276
      %v399 = vunpack.c.l.b16 %v277
      %v400 = vunpack.c.l.b16 %v278
      %v401 = vunpack.c.h.b16 %v278
      %v402 = vunpack.c.l.b16 %v279
      %v403 = vpack.c.b16 %v358, %v355
      %v404 = vpack.c.b16 %v359, %v356
      %v405 = vpack.c.b16 %v360, %v357
      %v406 = vpack.c.b16 %v364, %v361
      %v407 = vpack.c.b16 %v365, %v362
      %v408 = vpack.c.b16 %v366, %v363
      %v409 = vpack.c.b16 %v370, %v367
      %v410 = vpack.c.b16 %v371, %v368
      %v411 = vpack.c.b16 %v372, %v369
      %v412 = vpack.c.b16 %v376, %v373
      %v413 = vpack.c.b16 %v377, %v374
      %v414 = vpack.c.b16 %v378, %v375
      %v415 = vpack.c.b16 %v382, %v379
      %v416 = vpack.c.b16 %v383, %v380
      %v417 = vpack.c.b16 %v384, %v381
      %v418 = vpack.c.b16 %v388, %v385
      %v419 = vpack.c.b16 %v389, %v386
      %v420 = vpack.c.b16 %v390, %v387
      %v421 = vpack.c.b16 %v394, %v391
      %v422 = vpack.c.b16 %v395, %v392
      %v423 = vpack.c.b16 %v396, %v393
      %v424 = vpack.c.b16 %v400, %v397
      %v425 = vpack.c.b16 %v401, %v398
      %v426 = vpack.c.b16 %v402, %v399
      %v479 = vunpack.c.l.b16 %v280
      %v480 = vunpack.c.l.b16 %v281
      %v481 = vunpack.c.l.b16 %v282
      %v482 = vunpack.c.l.b16 %v283
      %v483 = vunpack.c.l.b16 %v284
      %v484 = vunpack.c.l.b16 %v285
      %v485 = vunpack.c.l.b16 %v286
      %v486 = vunpack.c.l.b16 %v287
      %v487 = vunpack.c.l.b16 %v288
      %v488 = vunpack.c.l.b16 %v289
      %v489 = vunpack.c.l.b16 %v290
      %v490 = vunpack.c.l.b16 %v291
      %v491 = vunpack.c.l.b16 %v292
      %v492 = vunpack.c.l.b16 %v293
      %v493 = vunpack.c.l.b16 %v294
      %v494 = vunpack.c.l.b16 %v295
      %v495 = vunpack.c.l.b16 %v296
      %v496 = vunpack.c.l.b16 %v297
      %v497 = vunpack.c.l.b16 %v298
      %v498 = vunpack.c.l.b16 %v299
      %v499 = vunpack.c.l.b16 %v300
      %v500 = vunpack.c.l.b16 %v301
      %v501 = vunpack.c.l.b16 %v302
      %v502 = vunpack.c.l.b16 %v303
      %v503 = vunpack.c.l.b16 %v304
      %v504 = vunpack.c.l.b16 %v305
      %v505 = vunpack.c.l.b16 %v306
      %v506 = vunpack.c.l.b16 %v307
      %v507 = vunpack.c.l.b16 %v308
      %v508 = vunpack.c.l.b16 %v309
      %v509 = vunpack.c.l.b16 %v310
      %v510 = vunpack.c.l.b16 %v311
      %v511 = vunpack.c.l.b16 %v312
      %v512 = vunpack.c.l.b16 %v313
      %v513 = vunpack.c.l.b16 %v314
      %v514 = vunpack.c.l.b16 %v315
      %v515 = vpack.c.b16 %v480, %v479
      %v516 = vpack.c.b16 %v482, %v481
      %v517 = vpack.c.b16 %v484, %v483
      %v518 = vpack.c.b16 %v486, %v485
      %v519 = vpack.c.b16 %v488, %v487
      %v520 = vpack.c.b16 %v490, %v489
      %v521 = vpack.c.b16 %v492, %v491
      %v522 = vpack.c.b16 %v494, %v493
      %v523 = vpack.c.b16 %v496, %v495
      %v524 = vpack.c.b16 %v498, %v497
      %v525 = vpack.c.b16 %v500, %v499
      %v526 = vpack.c.b16 %v502, %v501
      %v527 = vpack.c.b16 %v504, %v503
      %v528 = vpack.c.b16 %v506, %v505
      %v529 = vpack.c.b16 %v508, %v507
      %v530 = vpack.c.b16 %v510, %v509
      %v531 = vpack.c.b16 %v512, %v511
      %v532 = vpack.c.b16 %v514, %v513
      %vm551 = vcmask 261120
      %v553 = vsel %vm551, %v405, 0
      %v556 = vsel %vm551, %v408, 0
      %v559 = vsel %vm551, %v411, 0
      %v562 = vsel %vm551, %v414, 0
      %v565 = vsel %vm551, %v417, 0
      %v568 = vsel %vm551, %v420, 0
      %v571 = vsel %vm551, %v423, 0
      %v574 = vsel %vm551, %v426, 0
      %576 = vmatprep.subr.bf16.mxu0 0
      %577 = vmatpush1.bf16.msra.mxu0 %v515
      %578 = vmatprep.subr.bf16.mxu0 0
      %579 = vmatpush1.bf16.msra.mxu0 %v516
      %580 = vmatprep.subr.bf16.mxu0 0
      %581 = vmatpush1.bf16.msra.mxu0 %v517
      %582 = vmatprep.subr.bf16.mxu0 0
      %583 = vmatpush1.bf16.msra.mxu0 %v518
      %584 = vmatprep.subr.bf16.mxu0 0
      %585 = vmatpush1.bf16.msra.mxu0 %v519
      %586 = vmatprep.subr.bf16.mxu0 0
      %587 = vmatpush1.bf16.msra.mxu0 %v520
      %588 = vmatprep.subr.bf16.mxu0 0
      %589 = vmatpush1.bf16.msra.mxu0 %v521
      %590 = vmatprep.subr.bf16.mxu0 0
      %591 = vmatpush1.bf16.msra.mxu0 %v522
      %592 = vmatprep.subr.bf16.mxu0 0
      %593 = vmatpush1.bf16.msra.mxu0 %v523
      %594 = vmatprep.subr.bf16.mxu0 0
      %595 = vmatpush1.bf16.msra.mxu0 %v524
      %596 = vmatprep.subr.bf16.mxu0 0
      %597 = vmatpush1.bf16.msra.mxu0 %v525
      %598 = vmatprep.subr.bf16.mxu0 0
      %599 = vmatpush1.bf16.msra.mxu0 %v526
      %600 = vmatprep.subr.bf16.mxu0 0
      %601 = vmatpush1.bf16.msra.mxu0 %v527
      %602 = vmatprep.subr.bf16.mxu0 0
      %603 = vmatpush1.bf16.msra.mxu0 %v528
      %604 = vmatprep.subr.bf16.mxu0 0
      %605 = vmatpush1.bf16.msra.mxu0 %v529
      %606 = vmatprep.subr.bf16.mxu0 0
      %607 = vmatpush1.bf16.msra.mxu0 %v530
      %608 = vmatprep.mubr.bf16.mxu0 %v404
      %609 = vmatmul.mubr.bf16.gmra.mrb[0].mxu0 %v403
      %v610 = vpop.f32.mrb[0].mxu0
      %v611 = vadd.f32 %v321, %v610
      %v612 = vpop.f32.mrb[0].mxu0
      %v613 = vpop.f32.mrb[0].mxu0
      %v614 = vadd.f32 %v321, %v613
      %v615 = vpop.f32.mrb[0].mxu0
      %616 = vmatprep.mubr.bf16.mxu0 %v407
      %617 = vmatmul.mubr.bf16.gmra.mrb[0].mxu0 %v406
      %v618 = vpop.f32.mrb[0].mxu0
      %v619 = vadd.f32 %v321, %v618
      %v620 = vpop.f32.mrb[0].mxu0
      %v621 = vpop.f32.mrb[0].mxu0
      %v622 = vadd.f32 %v321, %v621
      %v623 = vpop.f32.mrb[0].mxu0
      %624 = vmatprep.mubr.bf16.mxu0 %v410
      %625 = vmatmul.mubr.bf16.gmra.mrb[0].mxu0 %v409
      %v626 = vpop.f32.mrb[0].mxu0
      %v627 = vadd.f32 %v321, %v626
      %v628 = vpop.f32.mrb[0].mxu0
      %v629 = vpop.f32.mrb[0].mxu0
      %v630 = vadd.f32 %v321, %v629
      %v631 = vpop.f32.mrb[0].mxu0
      %632 = vmatprep.mubr.bf16.mxu0 %v413
      %633 = vmatmul.mubr.bf16.gmra.mrb[0].mxu0 %v412
      %v634 = vpop.f32.mrb[0].mxu0
      %v635 = vadd.f32 %v321, %v634
      %v636 = vpop.f32.mrb[0].mxu0
      %v637 = vpop.f32.mrb[0].mxu0
      %v638 = vadd.f32 %v321, %v637
      %v639 = vpop.f32.mrb[0].mxu0
      %640 = vmatprep.mubr.bf16.mxu0 %v416
      %641 = vmatmul.mubr.bf16.gmra.mrb[0].mxu0 %v415
      %v642 = vpop.f32.mrb[0].mxu0
      %v643 = vadd.f32 %v321, %v642
      %v644 = vpop.f32.mrb[0].mxu0
      %v645 = vpop.f32.mrb[0].mxu0
      %v646 = vadd.f32 %v321, %v645
      %v647 = vpop.f32.mrb[0].mxu0
      %648 = vmatprep.mubr.bf16.mxu0 %v419
      %649 = vmatmul.mubr.bf16.gmra.mrb[0].mxu0 %v418
      %v650 = vpop.f32.mrb[0].mxu0
      %v651 = vadd.f32 %v321, %v650
      %v652 = vpop.f32.mrb[0].mxu0
      %v653 = vpop.f32.mrb[0].mxu0
      %v654 = vadd.f32 %v321, %v653
      %v655 = vpop.f32.mrb[0].mxu0
      %656 = vmatprep.mubr.bf16.mxu0 %v422
      %657 = vmatmul.mubr.bf16.gmra.mrb[0].mxu0 %v421
      %v658 = vpop.f32.mrb[0].mxu0
      %v659 = vadd.f32 %v321, %v658
      %v660 = vpop.f32.mrb[0].mxu0
      %v661 = vpop.f32.mrb[0].mxu0
      %v662 = vadd.f32 %v321, %v661
      %v663 = vpop.f32.mrb[0].mxu0
      %664 = vmatprep.mubr.bf16.mxu0 %v425
      %665 = vmatmul.mubr.bf16.gmra.mrb[0].mxu0 %v424
      %v666 = vpop.f32.mrb[0].mxu0
      %v667 = vadd.f32 %v321, %v666
      %v668 = vpop.f32.mrb[0].mxu0
      %v669 = vpop.f32.mrb[0].mxu0
      %v670 = vadd.f32 %v321, %v669
      %v671 = vpop.f32.mrb[0].mxu0
      %672 = vdwg.mxu0
      %673 = vmatprep.subr.bf16.mxu0 0
      %674 = vmatpush1.bf16.msra.mxu0 %v531
      %675 = vmatprep.subr.bf16.mxu0 0
      %676 = vmatpush1.bf16.msra.mxu0 %v532
      %677 = vmatprep.subr.bf16.mxu0 0
      %678 = vmatpush1.bf16.msra.mxu0 0
      %679 = vmatprep.subr.bf16.mxu0 0
      %680 = vmatpush1.bf16.msra.mxu0 0
      %681 = vmatprep.subr.bf16.mxu0 0
      %682 = vmatpush1.bf16.msra.mxu0 0
      %683 = vmatprep.subr.bf16.mxu0 0
      %684 = vmatpush1.bf16.msra.mxu0 0
      %685 = vmatprep.subr.bf16.mxu0 0
      %686 = vmatpush1.bf16.msra.mxu0 0
      %687 = vmatprep.subr.bf16.mxu0 0
      %688 = vmatpush1.bf16.msra.mxu0 0
      %689 = vmatprep.subr.bf16.mxu0 0
      %690 = vmatpush1.bf16.msra.mxu0 0
      %691 = vmatprep.subr.bf16.mxu0 0
      %692 = vmatpush1.bf16.msra.mxu0 0
      %693 = vmatprep.subr.bf16.mxu0 0
      %694 = vmatpush1.bf16.msra.mxu0 0
      %695 = vmatprep.subr.bf16.mxu0 0
      %696 = vmatpush1.bf16.msra.mxu0 0
      %697 = vmatprep.subr.bf16.mxu0 0
      %698 = vmatpush1.bf16.msra.mxu0 0
      %699 = vmatprep.subr.bf16.mxu0 0
      %700 = vmatpush1.bf16.msra.mxu0 0
      %701 = vmatprep.subr.bf16.mxu0 0
      %702 = vmatpush1.bf16.msra.mxu0 0
      %703 = vmatprep.subr.bf16.mxu0 0
      %704 = vmatpush1.bf16.msra.mxu0 0
      %705 = vmatprep.mubr.bf16.mxu0 0
      %706 = vmatmul.mubr.bf16.gmra.mrb[0].mxu0 %v553
      %v707 = vpop.f32.mrb[0].mxu0
      %v708 = vadd.f32 %v611, %v707
      %v709 = vpop.f32.mrb[0].mxu0
      %v710 = vpop.f32.mrb[0].mxu0
      %v711 = vadd.f32 %v614, %v710
      %v712 = vpop.f32.mrb[0].mxu0
      %713 = vmatprep.mubr.bf16.mxu0 0
      %714 = vmatmul.mubr.bf16.gmra.mrb[0].mxu0 %v556
      %v715 = vpop.f32.mrb[0].mxu0
      %v716 = vadd.f32 %v619, %v715
      %v717 = vpop.f32.mrb[0].mxu0
      %v718 = vpop.f32.mrb[0].mxu0
      %v719 = vadd.f32 %v622, %v718
      %v720 = vpop.f32.mrb[0].mxu0
      %721 = vmatprep.mubr.bf16.mxu0 0
      %722 = vmatmul.mubr.bf16.gmra.mrb[0].mxu0 %v559
      %v723 = vpop.f32.mrb[0].mxu0
      %v724 = vadd.f32 %v627, %v723
      %v725 = vpop.f32.mrb[0].mxu0
      %v726 = vpop.f32.mrb[0].mxu0
      %v727 = vadd.f32 %v630, %v726
      %v728 = vpop.f32.mrb[0].mxu0
      %729 = vmatprep.mubr.bf16.mxu0 0
      %730 = vmatmul.mubr.bf16.gmra.mrb[0].mxu0 %v562
      %v731 = vpop.f32.mrb[0].mxu0
      %v732 = vadd.f32 %v635, %v731
      %v733 = vpop.f32.mrb[0].mxu0
      %v734 = vpop.f32.mrb[0].mxu0
      %v735 = vadd.f32 %v638, %v734
      %v736 = vpop.f32.mrb[0].mxu0
      %737 = vmatprep.mubr.bf16.mxu0 0
      %738 = vmatmul.mubr.bf16.gmra.mrb[0].mxu0 %v565
      %v739 = vpop.f32.mrb[0].mxu0
      %v740 = vadd.f32 %v643, %v739
      %v741 = vpop.f32.mrb[0].mxu0
      %v742 = vpop.f32.mrb[0].mxu0
      %v743 = vadd.f32 %v646, %v742
      %v744 = vpop.f32.mrb[0].mxu0
      %745 = vmatprep.mubr.bf16.mxu0 0
      %746 = vmatmul.mubr.bf16.gmra.mrb[0].mxu0 %v568
      %v747 = vpop.f32.mrb[0].mxu0
      %v748 = vadd.f32 %v651, %v747
      %v749 = vpop.f32.mrb[0].mxu0
      %v750 = vpop.f32.mrb[0].mxu0
      %v751 = vadd.f32 %v654, %v750
      %v752 = vpop.f32.mrb[0].mxu0
      %753 = vmatprep.mubr.bf16.mxu0 0
      %754 = vmatmul.mubr.bf16.gmra.mrb[0].mxu0 %v571
      %v755 = vpop.f32.mrb[0].mxu0
      %v756 = vadd.f32 %v659, %v755
      %v757 = vpop.f32.mrb[0].mxu0
      %v758 = vpop.f32.mrb[0].mxu0
      %v759 = vadd.f32 %v662, %v758
      %v760 = vpop.f32.mrb[0].mxu0
      %761 = vmatprep.mubr.bf16.mxu0 0
      %762 = vmatmul.mubr.bf16.gmra.mrb[0].mxu0 %v574
      %v763 = vpop.f32.mrb[0].mxu0
      %v764 = vadd.f32 %v667, %v763
      %v765 = vpop.f32.mrb[0].mxu0
      %v766 = vpop.f32.mrb[0].mxu0
      %v767 = vadd.f32 %v670, %v766
      %v768 = vpop.f32.mrb[0].mxu0
      %769 = vdwg.mxu0
      %v770 = vmax.f32 %v708, 0.0
      %v771 = vmax.f32 %v711, 0.0
      %v772 = vmax.f32 %v716, 0.0
      %v773 = vmax.f32 %v719, 0.0
      %v774 = vmax.f32 %v724, 0.0
      %v775 = vmax.f32 %v727, 0.0
      %v776 = vmax.f32 %v732, 0.0
      %v777 = vmax.f32 %v735, 0.0
      %v778 = vmax.f32 %v740, 0.0
      %v779 = vmax.f32 %v743, 0.0
      %v780 = vmax.f32 %v748, 0.0
      %v781 = vmax.f32 %v751, 0.0
      %v782 = vmax.f32 %v756, 0.0
      %v783 = vmax.f32 %v759, 0.0
      %v784 = vmax.f32 %v764, 0.0
      %v785 = vmax.f32 %v767, 0.0
      %vm786 = vcmask 130048
      %787 = vst.msk [vmem:[%s245] sm:$0xff] %vm786, %v770
      %788 = vst.msk [vmem:[%s245 + $0x8] sm:$0xff] %vm786, %v771
      %789 = vst.msk [vmem:[%s245 + $0x10] sm:$0xff] %vm786, %v772
      %790 = vst.msk [vmem:[%s245 + $0x18] sm:$0xff] %vm786, %v773
      %791 = vst.msk [vmem:[%s245 + $0x20] sm:$0xff] %vm786, %v774
      %792 = vst.msk [vmem:[%s245 + $0x28] sm:$0xff] %vm786, %v775
      %793 = vst.msk [vmem:[%s245 + $0x30] sm:$0xff] %vm786, %v776
      %794 = vst.msk [vmem:[%s245 + $0x38] sm:$0xff] %vm786, %v777
      %795 = vst.msk [vmem:[%s245 + $0x40] sm:$0xff] %vm786, %v778
      %796 = vst.msk [vmem:[%s245 + $0x48] sm:$0xff] %vm786, %v779
      %797 = vst.msk [vmem:[%s245 + $0x50] sm:$0xff] %vm786, %v780
      %798 = vst.msk [vmem:[%s245 + $0x58] sm:$0xff] %vm786, %v781
      %799 = vst.msk [vmem:[%s245 + $0x60] sm:$0xff] %vm786, %v782
      %800 = vst.msk [vmem:[%s245 + $0x68] sm:$0xff] %vm786, %v783
      %801 = vst.msk [vmem:[%s245 + $0x70] sm:$0xff] %vm786, %v784
      %802 = vst.msk [vmem:[%s245 + $0x78] sm:$0xff] %vm786, %v785
      %s803 = smul.u32 16, %s19
      %p804 = scmp.lt.s32.totalorder %s18, 3
      %s805 = scalar_select %p804, %s18, 3
      %p806 = scmp.lt.s32.totalorder %s803, 15
      %s807 = scalar_select %p806, %s803, 15
      %s808 = smul.addr %s805, 16
      %s809 = sadd.s32 %s807, %s808
      %s810 = smul.addr %s809, 8
      %s811 = scalar_lea.vmem %s3, %s810
      // Predicated region
      $region33: #{smtl_forward.26} parent=31 // pred_check
        %p812 = pneg %p126
      $region34: #{smtl_forward.26} parent=31 // pred_check_branch
        %814 = sbr.rel (%p812) target = $region36
      $region35: #{smtl_forward.26} parent=31 // pred_region
        %s815 = smul.u32 16, %s19
      $region36: #{smtl_forward.26} parent=31 // pred_fallthru
        _
    $region32: #{smtl_forward.26} parent=5 // pred_fallthru
      _
    %p816 = scmp.le.s32.totalorder 2, %s9
    // Predicated region
    $region37: #{smtl_forward.26} parent=5 // pred_check
      %p817 = pneg %p816
    $region38: #{smtl_forward.26} parent=5 // pred_check_branch
      %819 = sbr.rel (%p817) target = $region40
    $region39: #{smtl_forward.26} parent=5 // pred_region
      %s820 = ssub.s32 %s9, 2
      // Predicated region
      $region41: #{smtl_forward.26} parent=39 // pred_check
        %p821 = pneg %p132
      $region42: #{smtl_forward.26} parent=39 // pred_check_branch
        %823 = sbr.rel (%p821) target = $region44
      $region43: #{smtl_forward.26} parent=39 // pred_region
        %s824 = smul.u32 16, %s21
        %p825 = scmp.lt.s32.totalorder %s20, 3
        %s826 = scalar_select %p825, %s20, 3
        %p827 = scmp.lt.s32.totalorder %s824, 15
        %s828 = scalar_select %p827, %s824, 15
        %s829 = smul.addr %s826, 16
        %s830 = sadd.s32 %s828, %s829
        %s831 = smul.addr %s830, 8
        %s832 = scalar_lea.vmem %s3, %s831
      $region44: #{smtl_forward.26} parent=39 // pred_fallthru
        _
    $region40: #{smtl_forward.26} parent=5 // pred_fallthru
      _
  $region6: #{smtl_forward.26} parent=0 // loop_footer
    %s13 = sadd.s32 1, %s9
  $region7: #{smtl_forward.26} parent=0 // loop_footer_branch
    %8 = sbr.rel target = $region3
  $region8: #{smtl_forward.26} parent=0 // loop_exit
    _

// kernel: smtl_forward.23
$region0: #{smtl_forward.23}
  #allocation0 [shape = 'u32[]', space=smem, size = 0x4, offset = 0x4, fixed_abs, tag = 'smem constant byte address 0x4 - core index']
  #allocation1 [shape = 'u32[144,128]{1,0:T(1,128)}', space=vmem, size = 0x12000, scoped, tag = 'internal scratch']
  %s0 = inlined_call_operand.vmem [shape: bf16[4,128,32], index: 0, kind: input, shape index: {}]
  %s1 = inlined_call_operand.vmem [shape: bf16[4,32,16], index: 1, kind: input, shape index: {}]
  %s2 = inlined_call_operand.vmem [shape: f32[4,1,16], index: 2, kind: input, shape index: {}]
  %s3 = inlined_call_operand.vmem [shape: f32[4,128,16], index: 3, kind: output, shape index: {}]
  %s4 = sld [smem:[#allocation0]]
  $region45: #{smtl_forward.23} parent=0
    _
  %s6 = ssub.s32 1, %s4
  %s7 = scalar_select 0, %s6, %s4
  loop: start=0, step=1, limit=6
  $region2: #{smtl_forward.23} parent=0 // loop_pre_header
    _
  $region3: #{smtl_forward.23} parent=0 // loop_header
    %s9 = sphi 0, %s13
    %p10 = scmp.ge.s32.totalorder %s9, 6
    %s16 = sphi 0, %s28
    %s17 = sphi 0, %s24
    %s18 = sphi 0, %s16
    %s19 = sphi 0, %s17
    %s20 = sphi 0, %s18
    %s21 = sphi 0, %s19
    %s33 = sphi 0, %s35
    %s36 = sphi 0, %s33
    %s37 = sphi 0, %s36
    %s53 = sphi 0, %s37
    %s59 = sphi 0, %s61
    %s62 = sphi 0, %s59
    %s63 = sphi 0, %s62
    %s79 = sphi 0, %s63
    %s85 = sphi 0, %s87
    %s88 = sphi 0, %s85
    %s89 = sphi 0, %s88
    %s105 = sphi 0, %s89
    %s113 = sphi 0, %s115
    %s116 = sphi 0, %s113
    %s117 = sphi 0, %s116
    %s133 = sphi 0, %s117
  $region4: #{smtl_forward.23} parent=0 // loop_header_branch
    %12 = sbr.rel (%p10) target = $region8
  $region5: #{smtl_forward.23} parent=0 // loop_body
    %s14 = ssub.s32 %s9, 1
    %s15 = ssub.s32 %s9, 2
    %s22 = sadd.s32 1, %s17
    %p23 = scmp.ge.s32.totalorder %s22, 1
    %s24 = scalar_select %p23, 0, %s22
    %s25 = sadd.s32 1, %s16
    %s26 = scalar_select %p23, %s25, %s16
    %p27 = scmp.ge.s32.totalorder %s26, 4
    %s28 = scalar_select %p27, 0, %s26
    %s29 = ssub.s32 %s16, %s28
    %s30 = ssub.s32 %s17, %s24
    %s31 = sor.u32 %s29, %s30
    %p32 = scmp.eq.s32.totalorder %s31, 0
    %s34 = sadd.s32 %s33, 1
    %s35 = scalar_select %p32, %s33, %s34
    %p38 = pneg %p32
    %p39 = scmp.eq.s32.totalorder %s9, 3
    %p40 = por %p38, %p39
    %p41 = scmp.ne.s32.totalorder %s33, %s36
    %p42 = scmp.eq.s32.totalorder %s9, 0
    %p43 = por %p41, %p42
    %p44 = scmp.ne.s32.totalorder %s33, %s36
    %p45 = scmp.eq.s32.totalorder %s14, 3
    %p46 = por %p44, %p45
    %p47 = scmp.ne.s32.totalorder %s36, %s37
    %p48 = scmp.eq.s32.totalorder %s14, 0
    %p49 = por %p47, %p48
    %p50 = scmp.ne.s32.totalorder %s36, %s37
    %p51 = scmp.eq.s32.totalorder %s15, 3
    %p52 = por %p50, %p51
    %p54 = scmp.ne.s32.totalorder %s37, %s53
    %p55 = scmp.eq.s32.totalorder %s15, 0
    %p56 = por %p54, %p55
    %s57 = ssub.s32 %s16, %s28
    %p58 = scmp.eq.s32.totalorder %s57, 0
    %s60 = sadd.s32 %s59, 1
    %s61 = scalar_select %p58, %s59, %s60
    %p64 = pneg %p58
    %p65 = scmp.eq.s32.totalorder %s9, 3
    %p66 = por %p64, %p65
    %p67 = scmp.ne.s32.totalorder %s59, %s62
    %p68 = scmp.eq.s32.totalorder %s9, 0
    %p69 = por %p67, %p68
    %p70 = scmp.ne.s32.totalorder %s59, %s62
    %p71 = scmp.eq.s32.totalorder %s14, 3
    %p72 = por %p70, %p71
    %p73 = scmp.ne.s32.totalorder %s62, %s63
    %p74 = scmp.eq.s32.totalorder %s14, 0
    %p75 = por %p73, %p74
    %p76 = scmp.ne.s32.totalorder %s62, %s63
    %p77 = scmp.eq.s32.totalorder %s15, 3
    %p78 = por %p76, %p77
    %p80 = scmp.ne.s32.totalorder %s63, %s79
    %p81 = scmp.eq.s32.totalorder %s15, 0
    %p82 = por %p80, %p81
    %s83 = ssub.s32 %s16, %s28
    %p84 = scmp.eq.s32.totalorder %s83, 0
    %s86 = sadd.s32 %s85, 1
    %s87 = scalar_select %p84, %s85, %s86
    %p90 = pneg %p84
    %p91 = scmp.eq.s32.totalorder %s9, 3
    %p92 = por %p90, %p91
    %p93 = scmp.ne.s32.totalorder %s85, %s88
    %p94 = scmp.eq.s32.totalorder %s9, 0
    %p95 = por %p93, %p94
    %p96 = scmp.ne.s32.totalorder %s85, %s88
    %p97 = scmp.eq.s32.totalorder %s14, 3
    %p98 = por %p96, %p97
    %p99 = scmp.ne.s32.totalorder %s88, %s89
    %p100 = scmp.eq.s32.totalorder %s14, 0
    %p101 = por %p99, %p100
    %p102 = scmp.ne.s32.totalorder %s88, %s89
    %p103 = scmp.eq.s32.totalorder %s15, 3
    %p104 = por %p102, %p103
    %p106 = scmp.ne.s32.totalorder %s89, %s105
    %p107 = scmp.eq.s32.totalorder %s15, 0
    %p108 = por %p106, %p107
    %s109 = ssub.s32 %s16, %s28
    %s110 = ssub.s32 %s17, %s24
    %s111 = sor.u32 %s109, %s110
    %p112 = scmp.eq.s32.totalorder %s111, 0
    %s114 = sadd.s32 %s113, 1
    %s115 = scalar_select %p112, %s113, %s114
    %p118 = pneg %p112
    %p119 = scmp.eq.s32.totalorder %s9, 3
    %p120 = por %p118, %p119
    %p121 = scmp.ne.s32.totalorder %s113, %s116
    %p122 = scmp.eq.s32.totalorder %s9, 0
    %p123 = por %p121, %p122
    %p124 = scmp.ne.s32.totalorder %s113, %s116
    %p125 = scmp.eq.s32.totalorder %s14, 3
    %p126 = por %p124, %p125
    %p127 = scmp.ne.s32.totalorder %s116, %s117
    %p128 = scmp.eq.s32.totalorder %s14, 0
    %p129 = por %p127, %p128
    %p130 = scmp.ne.s32.totalorder %s116, %s117
    %p131 = scmp.eq.s32.totalorder %s15, 3
    %p132 = por %p130, %p131
    %p134 = scmp.ne.s32.totalorder %s117, %s133
    %p135 = scmp.eq.s32.totalorder %s15, 0
    %p136 = por %p134, %p135
    %p137 = scmp.le.s32.totalorder 1, %s9
    %p138 = scmp.lt.s32.totalorder %s9, 5
    %p139 = pnand %p137, %p138
    %p140 = pneg %p139
    // Predicated region
    $region9: #{smtl_forward.23} parent=5 // pred_check
      _
    $region10: #{smtl_forward.23} parent=5 // pred_check_branch
      %142 = sbr.rel (%p139) target = $region12
    $region11: #{smtl_forward.23} parent=5 // pred_region
      %s143 = ssub.s32 %s9, 1
    $region12: #{smtl_forward.23} parent=5 // pred_fallthru
      _
    %p144 = scmp.lt.s32.totalorder %s9, 4
    // Predicated region
    $region13: #{smtl_forward.23} parent=5 // pred_check
      %p145 = pneg %p144
    $region14: #{smtl_forward.23} parent=5 // pred_check_branch
      %147 = sbr.rel (%p145) target = $region16
    $region15: #{smtl_forward.23} parent=5 // pred_region
      // Predicated region
      $region17: #{smtl_forward.23} parent=15 // pred_check
        %p148 = pneg %p43
      $region18: #{smtl_forward.23} parent=15 // pred_check_branch
        %150 = sbr.rel (%p148) target = $region20
      $region19: #{smtl_forward.23} parent=15 // pred_region
        %s151 = smul.u32 16, %s17
        %p152 = scmp.lt.s32.totalorder %s16, 3
        %s153 = scalar_select %p152, %s16, 3
        %p154 = scmp.lt.s32.totalorder %s151, 15
        %s155 = scalar_select %p154, %s151, 15
        %s156 = smul.addr %s153, 16
        %s157 = sadd.s32 %s155, %s156
        %s158 = smul.addr %s157, 4
        %s159 = scalar_lea.vmem %s0, %s158
        %s160 = smul.u32 16, %s17
      $region20: #{smtl_forward.23} parent=15 // pred_fallthru
        _
      // Predicated region
      $region21: #{smtl_forward.23} parent=15 // pred_check
        %p161 = pneg %p69
      $region22: #{smtl_forward.23} parent=15 // pred_check_branch
        %163 = sbr.rel (%p161) target = $region24
      $region23: #{smtl_forward.23} parent=15 // pred_region
        %p164 = scmp.lt.s32.totalorder %s16, 3
        %s165 = scalar_select %p164, %s16, 3
        %s166 = smul.addr %s165, 4
        %s167 = smul.addr %s166, 4
        %s168 = scalar_lea.vmem %s1, %s167
      $region24: #{smtl_forward.23} parent=15 // pred_fallthru
        _
      // Predicated region
      $region25: #{smtl_forward.23} parent=15 // pred_check
        %p169 = pneg %p95
      $region26: #{smtl_forward.23} parent=15 // pred_check_branch
        %171 = sbr.rel (%p169) target = $region28
      $region27: #{smtl_forward.23} parent=15 // pred_region
        %p172 = scmp.lt.s32.totalorder %s16, 3
        %s173 = scalar_select %p172, %s16, 3
        %s174 = scalar_lea.vmem %s2, %s173
      $region28: #{smtl_forward.23} parent=15 // pred_fallthru
        _
    $region16: #{smtl_forward.23} parent=5 // pred_fallthru
      _
    %p175 = scmp.le.s32.totalorder 1, %s9
    %p176 = scmp.lt.s32.totalorder %s9, 5
    %p177 = pnand %p175, %p176
    %p178 = pneg %p177
    // Predicated region
    $region29: #{smtl_forward.23} parent=5 // pred_check
      _
    $region30: #{smtl_forward.23} parent=5 // pred_check_branch
      %180 = sbr.rel (%p177) target = $region32
    $region31: #{smtl_forward.23} parent=5 // pred_region
      %s181 = ssub.s32 %s9, 1
      %s182 = smul.u32 16, %s19
      %p183 = scmp.lt.s32.totalorder %s18, 3
      %s184 = scalar_select %p183, %s18, 3
      %p185 = scmp.lt.s32.totalorder %s182, 15
      %s186 = scalar_select %p185, %s182, 15
      %s187 = smul.addr %s184, 16
      %s188 = sadd.s32 %s186, %s187
      %s189 = smul.addr %s188, 4
      %s190 = scalar_lea.vmem %s0, %s189
      %p191 = pneg %p49
      %p192 = pneg %p46
      %p193 = scmp.lt.s32.totalorder %s18, 3
      %s194 = scalar_select %p193, %s18, 3
      %s195 = smul.addr %s194, 4
      %s196 = smul.addr %s195, 4
      %s197 = scalar_lea.vmem %s1, %s196
      %p198 = pneg %p75
      %p199 = pneg %p72
      %p200 = scmp.lt.s32.totalorder %s18, 3
      %s201 = scalar_select %p200, %s18, 3
      %s202 = scalar_lea.vmem %s2, %s201
      %p203 = pneg %p101
      %p204 = pneg %p98
      %p205 = pneg %p129
      %p206 = pneg %p126
      %s207 = smul.u32 16, %s19
      %p208 = scmp.lt.s32.totalorder %s18, 3
      %s209 = scalar_select %p208, %s18, 3
      %p210 = scmp.lt.s32.totalorder %s207, 15
      %s211 = scalar_select %p210, %s207, 15
      %s212 = smul.addr %s209, 16
      %s213 = sadd.s32 %s211, %s212
      %s214 = smul.addr %s213, 8
      %s215 = scalar_lea.vmem %s3, %s214
      %s216 = smul.u32 16, %s19
      %p217 = scmp.lt.s32.totalorder %s18, 3
      %s218 = scalar_select %p217, %s18, 3
      %p219 = scmp.lt.s32.totalorder %s216, 15
      %s220 = scalar_select %p219, %s216, 15
      %s221 = smul.addr %s218, 16
      %s222 = sadd.s32 %s220, %s221
      %s223 = smul.addr %s222, 4
      %s224 = scalar_lea.vmem %s0, %s223
      %s225 = smul.u32 16, %s19
      %p226 = scmp.lt.s32.totalorder %s18, 3
      %s227 = scalar_select %p226, %s18, 3
      %s228 = smul.addr %s227, 4
      %s229 = smul.addr %s228, 4
      %s230 = scalar_lea.vmem %s1, %s229
      %p231 = scmp.lt.s32.totalorder %s18, 3
      %s232 = scalar_select %p231, %s18, 3
      %s233 = scalar_lea.vmem %s2, %s232
      %s234 = smul.u32 16, %s19
      %p235 = scmp.lt.s32.totalorder %s18, 3
      %s236 = scalar_select %p235, %s18, 3
      %p237 = scmp.lt.s32.totalorder %s234, 15
      %s238 = scalar_select %p237, %s234, 15
      %s239 = smul.addr %s236, 16
      %s240 = sadd.s32 %s238, %s239
      %s241 = smul.addr %s240, 8
      %s242 = scalar_lea.vmem %s3, %s241
      %s243 = smul.u32 16, %s19
      %v245 = vld [vmem:[%s224] sm:$0xf]
      %v246 = vld [vmem:[%s224 + $0x4] sm:$0xf]
      %v247 = vld [vmem:[%s224 + $0x8] sm:$0xf]
      %v248 = vld [vmem:[%s224 + $0xc] sm:$0xf]
      %v249 = vld [vmem:[%s224 + $0x10] sm:$0xf]
      %v250 = vld [vmem:[%s224 + $0x14] sm:$0xf]
      %v251 = vld [vmem:[%s224 + $0x18] sm:$0xf]
      %v252 = vld [vmem:[%s224 + $0x1c] sm:$0xf]
      %v253 = vld [vmem:[%s224 + $0x20] sm:$0xf]
      %v254 = vld [vmem:[%s224 + $0x24] sm:$0xf]
      %v255 = vld [vmem:[%s224 + $0x28] sm:$0xf]
      %v256 = vld [vmem:[%s224 + $0x2c] sm:$0xf]
      %v257 = vld [vmem:[%s224 + $0x30] sm:$0xf]
      %v258 = vld [vmem:[%s224 + $0x34] sm:$0xf]
      %v259 = vld [vmem:[%s224 + $0x38] sm:$0xf]
      %v260 = vld [vmem:[%s224 + $0x3c] sm:$0xf]
      %v261 = vld [vmem:[%s230] sm:$0xf]
      %v262 = vld [vmem:[%s230 + $0x4] sm:$0xf]
      %v263 = vld [vmem:[%s230 + $0x8] sm:$0xf]
      %v264 = vld [vmem:[%s230 + $0xc] sm:$0xf]
      %v265 = vld [vmem:[%s233] sm:$0x1]
      %v267 = vlaneseq
      %v268 = vshrl.u32 %v267, 7
      %v269 = vsub.s32 0, %v268
      %v270 = vrot.slane %v265, %v269
      %v288 = vunpack.c.l.b16 %v245
      %v289 = vunpack.c.l.b16 %v246
      %v290 = vunpack.c.l.b16 %v247
      %v291 = vunpack.c.l.b16 %v248
      %v292 = vunpack.c.l.b16 %v249
      %v293 = vunpack.c.l.b16 %v250
      %v294 = vunpack.c.l.b16 %v251
      %v295 = vunpack.c.l.b16 %v252
      %v296 = vunpack.c.l.b16 %v253
      %v297 = vunpack.c.l.b16 %v254
      %v298 = vunpack.c.l.b16 %v255
      %v299 = vunpack.c.l.b16 %v256
      %v300 = vunpack.c.l.b16 %v257
      %v301 = vunpack.c.l.b16 %v258
      %v302 = vunpack.c.l.b16 %v259
      %v303 = vunpack.c.l.b16 %v260
      %v304 = vpack.c.b16 %v289, %v288
      %v305 = vpack.c.b16 %v291, %v290
      %v306 = vpack.c.b16 %v293, %v292
      %v307 = vpack.c.b16 %v295, %v294
      %v308 = vpack.c.b16 %v297, %v296
      %v309 = vpack.c.b16 %v299, %v298
      %v310 = vpack.c.b16 %v301, %v300
      %v311 = vpack.c.b16 %v303, %v302
      %v316 = vunpack.c.l.b16 %v261
      %v317 = vunpack.c.l.b16 %v262
      %v318 = vunpack.c.l.b16 %v263
      %v319 = vunpack.c.l.b16 %v264
      %v320 = vpack.c.b16 %v317, %v316
      %v321 = vpack.c.b16 %v319, %v318
      %vm324 = vcmask 261120
      %v326 = vsel %vm324, %v304, 0
      %v329 = vsel %vm324, %v305, 0
      %v332 = vsel %vm324, %v306, 0
      %v335 = vsel %vm324, %v307, 0
      %v338 = vsel %vm324, %v308, 0
      %v341 = vsel %vm324, %v309, 0
      %v344 = vsel %vm324, %v310, 0
      %v347 = vsel %vm324, %v311, 0
      %349 = vmatprep.subr.bf16.mxu0 0
      %350 = vmatpush1.bf16.msra.mxu0 %v320
      %351 = vmatprep.subr.bf16.mxu0 0
      %352 = vmatpush1.bf16.msra.mxu0 %v321
      %353 = vmatprep.subr.bf16.mxu0 0
      %354 = vmatpush1.bf16.msra.mxu0 0
      %355 = vmatprep.subr.bf16.mxu0 0
      %356 = vmatpush1.bf16.msra.mxu0 0
      %357 = vmatprep.subr.bf16.mxu0 0
      %358 = vmatpush1.bf16.msra.mxu0 0
      %359 = vmatprep.subr.bf16.mxu0 0
      %360 = vmatpush1.bf16.msra.mxu0 0
      %361 = vmatprep.subr.bf16.mxu0 0
      %362 = vmatpush1.bf16.msra.mxu0 0
      %363 = vmatprep.subr.bf16.mxu0 0
      %364 = vmatpush1.bf16.msra.mxu0 0
      %365 = vmatprep.subr.bf16.mxu0 0
      %366 = vmatpush1.bf16.msra.mxu0 0
      %367 = vmatprep.subr.bf16.mxu0 0
      %368 = vmatpush1.bf16.msra.mxu0 0
      %369 = vmatprep.subr.bf16.mxu0 0
      %370 = vmatpush1.bf16.msra.mxu0 0
      %371 = vmatprep.subr.bf16.mxu0 0
      %372 = vmatpush1.bf16.msra.mxu0 0
      %373 = vmatprep.subr.bf16.mxu0 0
      %374 = vmatpush1.bf16.msra.mxu0 0
      %375 = vmatprep.subr.bf16.mxu0 0
      %376 = vmatpush1.bf16.msra.mxu0 0
      %377 = vmatprep.subr.bf16.mxu0 0
      %378 = vmatpush1.bf16.msra.mxu0 0
      %379 = vmatprep.subr.bf16.mxu0 0
      %380 = vmatpush1.bf16.msra.mxu0 0
      %381 = vmatprep.mubr.bf16.mxu0 0
      %382 = vmatmul.mubr.bf16.gmra.mrb[0].mxu0 %v326
      %v383 = vpop.f32.mrb[0].mxu0
      %v384 = vadd.f32 %v270, %v383
      %v385 = vpop.f32.mrb[0].mxu0
      %v386 = vpop.f32.mrb[0].mxu0
      %v387 = vadd.f32 %v270, %v386
      %v388 = vpop.f32.mrb[0].mxu0
      %389 = vmatprep.mubr.bf16.mxu0 0
      %390 = vmatmul.mubr.bf16.gmra.mrb[0].mxu0 %v329
      %v391 = vpop.f32.mrb[0].mxu0
      %v392 = vadd.f32 %v270, %v391
      %v393 = vpop.f32.mrb[0].mxu0
      %v394 = vpop.f32.mrb[0].mxu0
      %v395 = vadd.f32 %v270, %v394
      %v396 = vpop.f32.mrb[0].mxu0
      %397 = vmatprep.mubr.bf16.mxu0 0
      %398 = vmatmul.mubr.bf16.gmra.mrb[0].mxu0 %v332
      %v399 = vpop.f32.mrb[0].mxu0
      %v400 = vadd.f32 %v270, %v399
      %v401 = vpop.f32.mrb[0].mxu0
      %v402 = vpop.f32.mrb[0].mxu0
      %v403 = vadd.f32 %v270, %v402
      %v404 = vpop.f32.mrb[0].mxu0
      %405 = vmatprep.mubr.bf16.mxu0 0
      %406 = vmatmul.mubr.bf16.gmra.mrb[0].mxu0 %v335
      %v407 = vpop.f32.mrb[0].mxu0
      %v408 = vadd.f32 %v270, %v407
      %v409 = vpop.f32.mrb[0].mxu0
      %v410 = vpop.f32.mrb[0].mxu0
      %v411 = vadd.f32 %v270, %v410
      %v412 = vpop.f32.mrb[0].mxu0
      %413 = vmatprep.mubr.bf16.mxu0 0
      %414 = vmatmul.mubr.bf16.gmra.mrb[0].mxu0 %v338
      %v415 = vpop.f32.mrb[0].mxu0
      %v416 = vadd.f32 %v270, %v415
      %v417 = vpop.f32.mrb[0].mxu0
      %v418 = vpop.f32.mrb[0].mxu0
      %v419 = vadd.f32 %v270, %v418
      %v420 = vpop.f32.mrb[0].mxu0
      %421 = vmatprep.mubr.bf16.mxu0 0
      %422 = vmatmul.mubr.bf16.gmra.mrb[0].mxu0 %v341
      %v423 = vpop.f32.mrb[0].mxu0
      %v424 = vadd.f32 %v270, %v423
      %v425 = vpop.f32.mrb[0].mxu0
      %v426 = vpop.f32.mrb[0].mxu0
      %v427 = vadd.f32 %v270, %v426
      %v428 = vpop.f32.mrb[0].mxu0
      %429 = vmatprep.mubr.bf16.mxu0 0
      %430 = vmatmul.mubr.bf16.gmra.mrb[0].mxu0 %v344
      %v431 = vpop.f32.mrb[0].mxu0
      %v432 = vadd.f32 %v270, %v431
      %v433 = vpop.f32.mrb[0].mxu0
      %v434 = vpop.f32.mrb[0].mxu0
      %v435 = vadd.f32 %v270, %v434
      %v436 = vpop.f32.mrb[0].mxu0
      %437 = vmatprep.mubr.bf16.mxu0 0
      %438 = vmatmul.mubr.bf16.gmra.mrb[0].mxu0 %v347
      %v439 = vpop.f32.mrb[0].mxu0
      %v440 = vadd.f32 %v270, %v439
      %v441 = vpop.f32.mrb[0].mxu0
      %v442 = vpop.f32.mrb[0].mxu0
      %v443 = vadd.f32 %v270, %v442
      %v444 = vpop.f32.mrb[0].mxu0
      %445 = vdwg.mxu0
      %v446 = vmax.f32 %v384, 0.0
      %v447 = vmax.f32 %v387, 0.0
      %v448 = vmax.f32 %v392, 0.0
      %v449 = vmax.f32 %v395, 0.0
      %v450 = vmax.f32 %v400, 0.0
      %v451 = vmax.f32 %v403, 0.0
      %v452 = vmax.f32 %v408, 0.0
      %v453 = vmax.f32 %v411, 0.0
      %v454 = vmax.f32 %v416, 0.0
      %v455 = vmax.f32 %v419, 0.0
      %v456 = vmax.f32 %v424, 0.0
      %v457 = vmax.f32 %v427, 0.0
      %v458 = vmax.f32 %v432, 0.0
      %v459 = vmax.f32 %v435, 0.0
      %v460 = vmax.f32 %v440, 0.0
      %v461 = vmax.f32 %v443, 0.0
      %vm462 = vcmask 130048
      %463 = vst.msk [vmem:[%s242] sm:$0xff] %vm462, %v446
      %464 = vst.msk [vmem:[%s242 + $0x8] sm:$0xff] %vm462, %v447
      %465 = vst.msk [vmem:[%s242 + $0x10] sm:$0xff] %vm462, %v448
      %466 = vst.msk [vmem:[%s242 + $0x18] sm:$0xff] %vm462, %v449
      %467 = vst.msk [vmem:[%s242 + $0x20] sm:$0xff] %vm462, %v450
      %468 = vst.msk [vmem:[%s242 + $0x28] sm:$0xff] %vm462, %v451
      %469 = vst.msk [vmem:[%s242 + $0x30] sm:$0xff] %vm462, %v452
      %470 = vst.msk [vmem:[%s242 + $0x38] sm:$0xff] %vm462, %v453
      %471 = vst.msk [vmem:[%s242 + $0x40] sm:$0xff] %vm462, %v454
      %472 = vst.msk [vmem:[%s242 + $0x48] sm:$0xff] %vm462, %v455
      %473 = vst.msk [vmem:[%s242 + $0x50] sm:$0xff] %vm462, %v456
      %474 = vst.msk [vmem:[%s242 + $0x58] sm:$0xff] %vm462, %v457
      %475 = vst.msk [vmem:[%s242 + $0x60] sm:$0xff] %vm462, %v458
      %476 = vst.msk [vmem:[%s242 + $0x68] sm:$0xff] %vm462, %v459
      %477 = vst.msk [vmem:[%s242 + $0x70] sm:$0xff] %vm462, %v460
      %478 = vst.msk [vmem:[%s242 + $0x78] sm:$0xff] %vm462, %v461
      %s479 = smul.u32 16, %s19
      %p480 = scmp.lt.s32.totalorder %s18, 3
      %s481 = scalar_select %p480, %s18, 3
      %p482 = scmp.lt.s32.totalorder %s479, 15
      %s483 = scalar_select %p482, %s479, 15
      %s484 = smul.addr %s481, 16
      %s485 = sadd.s32 %s483, %s484
      %s486 = smul.addr %s485, 8
      %s487 = scalar_lea.vmem %s3, %s486
      // Predicated region
      $region33: #{smtl_forward.23} parent=31 // pred_check
        %p488 = pneg %p126
      $region34: #{smtl_forward.23} parent=31 // pred_check_branch
        %490 = sbr.rel (%p488) target = $region36
      $region35: #{smtl_forward.23} parent=31 // pred_region
        %s491 = smul.u32 16, %s19
      $region36: #{smtl_forward.23} parent=31 // pred_fallthru
        _
    $region32: #{smtl_forward.23} parent=5 // pred_fallthru
      _
    %p492 = scmp.le.s32.totalorder 2, %s9
    // Predicated region
    $region37: #{smtl_forward.23} parent=5 // pred_check
      %p493 = pneg %p492
    $region38: #{smtl_forward.23} parent=5 // pred_check_branch
      %495 = sbr.rel (%p493) target = $region40
    $region39: #{smtl_forward.23} parent=5 // pred_region
      %s496 = ssub.s32 %s9, 2
      // Predicated region
      $region41: #{smtl_forward.23} parent=39 // pred_check
        %p497 = pneg %p132
      $region42: #{smtl_forward.23} parent=39 // pred_check_branch
        %499 = sbr.rel (%p497) target = $region44
      $region43: #{smtl_forward.23} parent=39 // pred_region
        %s500 = smul.u32 16, %s21
        %p501 = scmp.lt.s32.totalorder %s20, 3
        %s502 = scalar_select %p501, %s20, 3
        %p503 = scmp.lt.s32.totalorder %s500, 15
        %s504 = scalar_select %p503, %s500, 15
        %s505 = smul.addr %s502, 16
        %s506 = sadd.s32 %s504, %s505
        %s507 = smul.addr %s506, 8
        %s508 = scalar_lea.vmem %s3, %s507
      $region44: #{smtl_forward.23} parent=39 // pred_fallthru
        _
    $region40: #{smtl_forward.23} parent=5 // pred_fallthru
      _
  $region6: #{smtl_forward.23} parent=0 // loop_footer
    %s13 = sadd.s32 1, %s9
  $region7: #{smtl_forward.23} parent=0 // loop_footer_branch
    %8 = sbr.rel target = $region3
  $region8: #{smtl_forward.23} parent=0 // loop_exit
    _

// kernel: smtl_forward.28
$region0: #{smtl_forward.28}
  #allocation0 [shape = 'u32[]', space=smem, size = 0x4, offset = 0x4, fixed_abs, tag = 'smem constant byte address 0x4 - core index']
  #allocation1 [shape = 'u32[144,128]{1,0:T(1,128)}', space=vmem, size = 0x12000, scoped, tag = 'internal scratch']
  %s0 = inlined_call_operand.vmem [shape: bf16[4,128,80], index: 0, kind: input, shape index: {}]
  %s1 = inlined_call_operand.vmem [shape: bf16[4,80,16], index: 1, kind: input, shape index: {}]
  %s2 = inlined_call_operand.vmem [shape: f32[4,1,16], index: 2, kind: input, shape index: {}]
  %s3 = inlined_call_operand.vmem [shape: f32[4,128,16], index: 3, kind: output, shape index: {}]
  %s4 = sld [smem:[#allocation0]]
  $region45: #{smtl_forward.28} parent=0
    _
  %s6 = ssub.s32 1, %s4
  %s7 = scalar_select 0, %s6, %s4
  loop: start=0, step=1, limit=6
  $region2: #{smtl_forward.28} parent=0 // loop_pre_header
    _
  $region3: #{smtl_forward.28} parent=0 // loop_header
    %s9 = sphi 0, %s13
    %p10 = scmp.ge.s32.totalorder %s9, 6
    %s16 = sphi 0, %s28
    %s17 = sphi 0, %s24
    %s18 = sphi 0, %s16
    %s19 = sphi 0, %s17
    %s20 = sphi 0, %s18
    %s21 = sphi 0, %s19
    %s33 = sphi 0, %s35
    %s36 = sphi 0, %s33
    %s37 = sphi 0, %s36
    %s53 = sphi 0, %s37
    %s59 = sphi 0, %s61
    %s62 = sphi 0, %s59
    %s63 = sphi 0, %s62
    %s79 = sphi 0, %s63
    %s85 = sphi 0, %s87
    %s88 = sphi 0, %s85
    %s89 = sphi 0, %s88
    %s105 = sphi 0, %s89
    %s113 = sphi 0, %s115
    %s116 = sphi 0, %s113
    %s117 = sphi 0, %s116
    %s133 = sphi 0, %s117
  $region4: #{smtl_forward.28} parent=0 // loop_header_branch
    %12 = sbr.rel (%p10) target = $region8
  $region5: #{smtl_forward.28} parent=0 // loop_body
    %s14 = ssub.s32 %s9, 1
    %s15 = ssub.s32 %s9, 2
    %s22 = sadd.s32 1, %s17
    %p23 = scmp.ge.s32.totalorder %s22, 1
    %s24 = scalar_select %p23, 0, %s22
    %s25 = sadd.s32 1, %s16
    %s26 = scalar_select %p23, %s25, %s16
    %p27 = scmp.ge.s32.totalorder %s26, 4
    %s28 = scalar_select %p27, 0, %s26
    %s29 = ssub.s32 %s16, %s28
    %s30 = ssub.s32 %s17, %s24
    %s31 = sor.u32 %s29, %s30
    %p32 = scmp.eq.s32.totalorder %s31, 0
    %s34 = sadd.s32 %s33, 1
    %s35 = scalar_select %p32, %s33, %s34
    %p38 = pneg %p32
    %p39 = scmp.eq.s32.totalorder %s9, 3
    %p40 = por %p38, %p39
    %p41 = scmp.ne.s32.totalorder %s33, %s36
    %p42 = scmp.eq.s32.totalorder %s9, 0
    %p43 = por %p41, %p42
    %p44 = scmp.ne.s32.totalorder %s33, %s36
    %p45 = scmp.eq.s32.totalorder %s14, 3
    %p46 = por %p44, %p45
    %p47 = scmp.ne.s32.totalorder %s36, %s37
    %p48 = scmp.eq.s32.totalorder %s14, 0
    %p49 = por %p47, %p48
    %p50 = scmp.ne.s32.totalorder %s36, %s37
    %p51 = scmp.eq.s32.totalorder %s15, 3
    %p52 = por %p50, %p51
    %p54 = scmp.ne.s32.totalorder %s37, %s53
    %p55 = scmp.eq.s32.totalorder %s15, 0
    %p56 = por %p54, %p55
    %s57 = ssub.s32 %s16, %s28
    %p58 = scmp.eq.s32.totalorder %s57, 0
    %s60 = sadd.s32 %s59, 1
    %s61 = scalar_select %p58, %s59, %s60
    %p64 = pneg %p58
    %p65 = scmp.eq.s32.totalorder %s9, 3
    %p66 = por %p64, %p65
    %p67 = scmp.ne.s32.totalorder %s59, %s62
    %p68 = scmp.eq.s32.totalorder %s9, 0
    %p69 = por %p67, %p68
    %p70 = scmp.ne.s32.totalorder %s59, %s62
    %p71 = scmp.eq.s32.totalorder %s14, 3
    %p72 = por %p70, %p71
    %p73 = scmp.ne.s32.totalorder %s62, %s63
    %p74 = scmp.eq.s32.totalorder %s14, 0
    %p75 = por %p73, %p74
    %p76 = scmp.ne.s32.totalorder %s62, %s63
    %p77 = scmp.eq.s32.totalorder %s15, 3
    %p78 = por %p76, %p77
    %p80 = scmp.ne.s32.totalorder %s63, %s79
    %p81 = scmp.eq.s32.totalorder %s15, 0
    %p82 = por %p80, %p81
    %s83 = ssub.s32 %s16, %s28
    %p84 = scmp.eq.s32.totalorder %s83, 0
    %s86 = sadd.s32 %s85, 1
    %s87 = scalar_select %p84, %s85, %s86
    %p90 = pneg %p84
    %p91 = scmp.eq.s32.totalorder %s9, 3
    %p92 = por %p90, %p91
    %p93 = scmp.ne.s32.totalorder %s85, %s88
    %p94 = scmp.eq.s32.totalorder %s9, 0
    %p95 = por %p93, %p94
    %p96 = scmp.ne.s32.totalorder %s85, %s88
    %p97 = scmp.eq.s32.totalorder %s14, 3
    %p98 = por %p96, %p97
    %p99 = scmp.ne.s32.totalorder %s88, %s89
    %p100 = scmp.eq.s32.totalorder %s14, 0
    %p101 = por %p99, %p100
    %p102 = scmp.ne.s32.totalorder %s88, %s89
    %p103 = scmp.eq.s32.totalorder %s15, 3
    %p104 = por %p102, %p103
    %p106 = scmp.ne.s32.totalorder %s89, %s105
    %p107 = scmp.eq.s32.totalorder %s15, 0
    %p108 = por %p106, %p107
    %s109 = ssub.s32 %s16, %s28
    %s110 = ssub.s32 %s17, %s24
    %s111 = sor.u32 %s109, %s110
    %p112 = scmp.eq.s32.totalorder %s111, 0
    %s114 = sadd.s32 %s113, 1
    %s115 = scalar_select %p112, %s113, %s114
    %p118 = pneg %p112
    %p119 = scmp.eq.s32.totalorder %s9, 3
    %p120 = por %p118, %p119
    %p121 = scmp.ne.s32.totalorder %s113, %s116
    %p122 = scmp.eq.s32.totalorder %s9, 0
    %p123 = por %p121, %p122
    %p124 = scmp.ne.s32.totalorder %s113, %s116
    %p125 = scmp.eq.s32.totalorder %s14, 3
    %p126 = por %p124, %p125
    %p127 = scmp.ne.s32.totalorder %s116, %s117
    %p128 = scmp.eq.s32.totalorder %s14, 0
    %p129 = por %p127, %p128
    %p130 = scmp.ne.s32.totalorder %s116, %s117
    %p131 = scmp.eq.s32.totalorder %s15, 3
    %p132 = por %p130, %p131
    %p134 = scmp.ne.s32.totalorder %s117, %s133
    %p135 = scmp.eq.s32.totalorder %s15, 0
    %p136 = por %p134, %p135
    %p137 = scmp.le.s32.totalorder 1, %s9
    %p138 = scmp.lt.s32.totalorder %s9, 5
    %p139 = pnand %p137, %p138
    %p140 = pneg %p139
    // Predicated region
    $region9: #{smtl_forward.28} parent=5 // pred_check
      _
    $region10: #{smtl_forward.28} parent=5 // pred_check_branch
      %142 = sbr.rel (%p139) target = $region12
    $region11: #{smtl_forward.28} parent=5 // pred_region
      %s143 = ssub.s32 %s9, 1
    $region12: #{smtl_forward.28} parent=5 // pred_fallthru
      _
    %p144 = scmp.lt.s32.totalorder %s9, 4
    // Predicated region
    $region13: #{smtl_forward.28} parent=5 // pred_check
      %p145 = pneg %p144
    $region14: #{smtl_forward.28} parent=5 // pred_check_branch
      %147 = sbr.rel (%p145) target = $region16
    $region15: #{smtl_forward.28} parent=5 // pred_region
      // Predicated region
      $region17: #{smtl_forward.28} parent=15 // pred_check
        %p148 = pneg %p43
      $region18: #{smtl_forward.28} parent=15 // pred_check_branch
        %150 = sbr.rel (%p148) target = $region20
      $region19: #{smtl_forward.28} parent=15 // pred_region
        %s151 = smul.u32 16, %s17
        %p152 = scmp.lt.s32.totalorder %s16, 3
        %s153 = scalar_select %p152, %s16, 3
        %p154 = scmp.lt.s32.totalorder %s151, 15
        %s155 = scalar_select %p154, %s151, 15
        %s156 = smul.addr %s153, 16
        %s157 = sadd.s32 %s155, %s156
        %s158 = smul.addr %s157, 4
        %s159 = scalar_lea.vmem %s0, %s158
        %s160 = smul.u32 16, %s17
      $region20: #{smtl_forward.28} parent=15 // pred_fallthru
        _
      // Predicated region
      $region21: #{smtl_forward.28} parent=15 // pred_check
        %p161 = pneg %p69
      $region22: #{smtl_forward.28} parent=15 // pred_check_branch
        %163 = sbr.rel (%p161) target = $region24
      $region23: #{smtl_forward.28} parent=15 // pred_region
        %p164 = scmp.lt.s32.totalorder %s16, 3
        %s165 = scalar_select %p164, %s16, 3
        %s166 = smul.addr %s165, 10
        %s167 = smul.addr %s166, 4
        %s168 = scalar_lea.vmem %s1, %s167
      $region24: #{smtl_forward.28} parent=15 // pred_fallthru
        _
      // Predicated region
      $region25: #{smtl_forward.28} parent=15 // pred_check
        %p169 = pneg %p95
      $region26: #{smtl_forward.28} parent=15 // pred_check_branch
        %171 = sbr.rel (%p169) target = $region28
      $region27: #{smtl_forward.28} parent=15 // pred_region
        %p172 = scmp.lt.s32.totalorder %s16, 3
        %s173 = scalar_select %p172, %s16, 3
        %s174 = scalar_lea.vmem %s2, %s173
      $region28: #{smtl_forward.28} parent=15 // pred_fallthru
        _
    $region16: #{smtl_forward.28} parent=5 // pred_fallthru
      _
    %p175 = scmp.le.s32.totalorder 1, %s9
    %p176 = scmp.lt.s32.totalorder %s9, 5
    %p177 = pnand %p175, %p176
    %p178 = pneg %p177
    // Predicated region
    $region29: #{smtl_forward.28} parent=5 // pred_check
      _
    $region30: #{smtl_forward.28} parent=5 // pred_check_branch
      %180 = sbr.rel (%p177) target = $region32
    $region31: #{smtl_forward.28} parent=5 // pred_region
      %s181 = ssub.s32 %s9, 1
      %s182 = smul.u32 16, %s19
      %p183 = scmp.lt.s32.totalorder %s18, 3
      %s184 = scalar_select %p183, %s18, 3
      %p185 = scmp.lt.s32.totalorder %s182, 15
      %s186 = scalar_select %p185, %s182, 15
      %s187 = smul.addr %s184, 16
      %s188 = sadd.s32 %s186, %s187
      %s189 = smul.addr %s188, 4
      %s190 = scalar_lea.vmem %s0, %s189
      %p191 = pneg %p49
      %p192 = pneg %p46
      %p193 = scmp.lt.s32.totalorder %s18, 3
      %s194 = scalar_select %p193, %s18, 3
      %s195 = smul.addr %s194, 10
      %s196 = smul.addr %s195, 4
      %s197 = scalar_lea.vmem %s1, %s196
      %p198 = pneg %p75
      %p199 = pneg %p72
      %p200 = scmp.lt.s32.totalorder %s18, 3
      %s201 = scalar_select %p200, %s18, 3
      %s202 = scalar_lea.vmem %s2, %s201
      %p203 = pneg %p101
      %p204 = pneg %p98
      %p205 = pneg %p129
      %p206 = pneg %p126
      %s207 = smul.u32 16, %s19
      %p208 = scmp.lt.s32.totalorder %s18, 3
      %s209 = scalar_select %p208, %s18, 3
      %p210 = scmp.lt.s32.totalorder %s207, 15
      %s211 = scalar_select %p210, %s207, 15
      %s212 = smul.addr %s209, 16
      %s213 = sadd.s32 %s211, %s212
      %s214 = smul.addr %s213, 8
      %s215 = scalar_lea.vmem %s3, %s214
      %s216 = smul.u32 16, %s19
      %p217 = scmp.lt.s32.totalorder %s18, 3
      %s218 = scalar_select %p217, %s18, 3
      %p219 = scmp.lt.s32.totalorder %s216, 15
      %s220 = scalar_select %p219, %s216, 15
      %s221 = smul.addr %s218, 16
      %s222 = sadd.s32 %s220, %s221
      %s223 = smul.addr %s222, 4
      %s224 = scalar_lea.vmem %s0, %s223
      %s225 = smul.u32 16, %s19
      %p226 = scmp.lt.s32.totalorder %s18, 3
      %s227 = scalar_select %p226, %s18, 3
      %s228 = smul.addr %s227, 10
      %s229 = smul.addr %s228, 4
      %s230 = scalar_lea.vmem %s1, %s229
      %p231 = scmp.lt.s32.totalorder %s18, 3
      %s232 = scalar_select %p231, %s18, 3
      %s233 = scalar_lea.vmem %s2, %s232
      %s234 = smul.u32 16, %s19
      %p235 = scmp.lt.s32.totalorder %s18, 3
      %s236 = scalar_select %p235, %s18, 3
      %p237 = scmp.lt.s32.totalorder %s234, 15
      %s238 = scalar_select %p237, %s234, 15
      %s239 = smul.addr %s236, 16
      %s240 = sadd.s32 %s238, %s239
      %s241 = smul.addr %s240, 8
      %s242 = scalar_lea.vmem %s3, %s241
      %s243 = smul.u32 16, %s19
      %v245 = vld [vmem:[%s224] sm:$0xf]
      %v246 = vld [vmem:[%s224 + $0x4] sm:$0xf]
      %v247 = vld [vmem:[%s224 + $0x8] sm:$0xf]
      %v248 = vld [vmem:[%s224 + $0xc] sm:$0xf]
      %v249 = vld [vmem:[%s224 + $0x10] sm:$0xf]
      %v250 = vld [vmem:[%s224 + $0x14] sm:$0xf]
      %v251 = vld [vmem:[%s224 + $0x18] sm:$0xf]
      %v252 = vld [vmem:[%s224 + $0x1c] sm:$0xf]
      %v253 = vld [vmem:[%s224 + $0x20] sm:$0xf]
      %v254 = vld [vmem:[%s224 + $0x24] sm:$0xf]
      %v255 = vld [vmem:[%s224 + $0x28] sm:$0xf]
      %v256 = vld [vmem:[%s224 + $0x2c] sm:$0xf]
      %v257 = vld [vmem:[%s224 + $0x30] sm:$0xf]
      %v258 = vld [vmem:[%s224 + $0x34] sm:$0xf]
      %v259 = vld [vmem:[%s224 + $0x38] sm:$0xf]
      %v260 = vld [vmem:[%s224 + $0x3c] sm:$0xf]
      %v261 = vld [vmem:[%s230] sm:$0xf]
      %v262 = vld [vmem:[%s230 + $0x4] sm:$0xf]
      %v263 = vld [vmem:[%s230 + $0x8] sm:$0xf]
      %v264 = vld [vmem:[%s230 + $0xc] sm:$0xf]
      %v265 = vld [vmem:[%s230 + $0x10] sm:$0xf]
      %v266 = vld [vmem:[%s230 + $0x14] sm:$0xf]
      %v267 = vld [vmem:[%s230 + $0x18] sm:$0xf]
      %v268 = vld [vmem:[%s230 + $0x1c] sm:$0xf]
      %v269 = vld [vmem:[%s230 + $0x20] sm:$0xf]
      %v270 = vld [vmem:[%s230 + $0x24] sm:$0xf]
      %v271 = vld [vmem:[%s233] sm:$0x1]
      %v273 = vlaneseq
      %v274 = vshrl.u32 %v273, 7
      %v275 = vsub.s32 0, %v274
      %v276 = vrot.slane %v271, %v275
      %v294 = vunpack.c.l.b16 %v245
      %v295 = vunpack.c.l.b16 %v246
      %v296 = vunpack.c.l.b16 %v247
      %v297 = vunpack.c.l.b16 %v248
      %v298 = vunpack.c.l.b16 %v249
      %v299 = vunpack.c.l.b16 %v250
      %v300 = vunpack.c.l.b16 %v251
      %v301 = vunpack.c.l.b16 %v252
      %v302 = vunpack.c.l.b16 %v253
      %v303 = vunpack.c.l.b16 %v254
      %v304 = vunpack.c.l.b16 %v255
      %v305 = vunpack.c.l.b16 %v256
      %v306 = vunpack.c.l.b16 %v257
      %v307 = vunpack.c.l.b16 %v258
      %v308 = vunpack.c.l.b16 %v259
      %v309 = vunpack.c.l.b16 %v260
      %v310 = vpack.c.b16 %v295, %v294
      %v311 = vpack.c.b16 %v297, %v296
      %v312 = vpack.c.b16 %v299, %v298
      %v313 = vpack.c.b16 %v301, %v300
      %v314 = vpack.c.b16 %v303, %v302
      %v315 = vpack.c.b16 %v305, %v304
      %v316 = vpack.c.b16 %v307, %v306
      %v317 = vpack.c.b16 %v309, %v308
      %v328 = vunpack.c.l.b16 %v261
      %v329 = vunpack.c.l.b16 %v262
      %v330 = vunpack.c.l.b16 %v263
      %v331 = vunpack.c.l.b16 %v264
      %v332 = vunpack.c.l.b16 %v265
      %v333 = vunpack.c.l.b16 %v266
      %v334 = vunpack.c.l.b16 %v267
      %v335 = vunpack.c.l.b16 %v268
      %v336 = vunpack.c.l.b16 %v269
      %v337 = vunpack.c.l.b16 %v270
      %v338 = vpack.c.b16 %v329, %v328
      %v339 = vpack.c.b16 %v331, %v330
      %v340 = vpack.c.b16 %v333, %v332
      %v341 = vpack.c.b16 %v335, %v334
      %v342 = vpack.c.b16 %v337, %v336
      %vm348 = vcmask 654336
      %v350 = vsel %vm348, %v310, 0
      %v353 = vsel %vm348, %v311, 0
      %v356 = vsel %vm348, %v312, 0
      %v359 = vsel %vm348, %v313, 0
      %v362 = vsel %vm348, %v314, 0
      %v365 = vsel %vm348, %v315, 0
      %v368 = vsel %vm348, %v316, 0
      %v371 = vsel %vm348, %v317, 0
      %373 = vmatprep.subr.bf16.mxu0 0
      %374 = vmatpush1.bf16.msra.mxu0 %v338
      %375 = vmatprep.subr.bf16.mxu0 0
      %376 = vmatpush1.bf16.msra.mxu0 %v339
      %377 = vmatprep.subr.bf16.mxu0 0
      %378 = vmatpush1.bf16.msra.mxu0 %v340
      %379 = vmatprep.subr.bf16.mxu0 0
      %380 = vmatpush1.bf16.msra.mxu0 %v341
      %381 = vmatprep.subr.bf16.mxu0 0
      %382 = vmatpush1.bf16.msra.mxu0 %v342
      %383 = vmatprep.subr.bf16.mxu0 0
      %384 = vmatpush1.bf16.msra.mxu0 0
      %385 = vmatprep.subr.bf16.mxu0 0
      %386 = vmatpush1.bf16.msra.mxu0 0
      %387 = vmatprep.subr.bf16.mxu0 0
      %388 = vmatpush1.bf16.msra.mxu0 0
      %389 = vmatprep.subr.bf16.mxu0 0
      %390 = vmatpush1.bf16.msra.mxu0 0
      %391 = vmatprep.subr.bf16.mxu0 0
      %392 = vmatpush1.bf16.msra.mxu0 0
      %393 = vmatprep.subr.bf16.mxu0 0
      %394 = vmatpush1.bf16.msra.mxu0 0
      %395 = vmatprep.subr.bf16.mxu0 0
      %396 = vmatpush1.bf16.msra.mxu0 0
      %397 = vmatprep.subr.bf16.mxu0 0
      %398 = vmatpush1.bf16.msra.mxu0 0
      %399 = vmatprep.subr.bf16.mxu0 0
      %400 = vmatpush1.bf16.msra.mxu0 0
      %401 = vmatprep.subr.bf16.mxu0 0
      %402 = vmatpush1.bf16.msra.mxu0 0
      %403 = vmatprep.subr.bf16.mxu0 0
      %404 = vmatpush1.bf16.msra.mxu0 0
      %405 = vmatprep.mubr.bf16.mxu0 0
      %406 = vmatmul.mubr.bf16.gmra.mrb[0].mxu0 %v350
      %v407 = vpop.f32.mrb[0].mxu0
      %v408 = vadd.f32 %v276, %v407
      %v409 = vpop.f32.mrb[0].mxu0
      %v410 = vpop.f32.mrb[0].mxu0
      %v411 = vadd.f32 %v276, %v410
      %v412 = vpop.f32.mrb[0].mxu0
      %413 = vmatprep.mubr.bf16.mxu0 0
      %414 = vmatmul.mubr.bf16.gmra.mrb[0].mxu0 %v353
      %v415 = vpop.f32.mrb[0].mxu0
      %v416 = vadd.f32 %v276, %v415
      %v417 = vpop.f32.mrb[0].mxu0
      %v418 = vpop.f32.mrb[0].mxu0
      %v419 = vadd.f32 %v276, %v418
      %v420 = vpop.f32.mrb[0].mxu0
      %421 = vmatprep.mubr.bf16.mxu0 0
      %422 = vmatmul.mubr.bf16.gmra.mrb[0].mxu0 %v356
      %v423 = vpop.f32.mrb[0].mxu0
      %v424 = vadd.f32 %v276, %v423
      %v425 = vpop.f32.mrb[0].mxu0
      %v426 = vpop.f32.mrb[0].mxu0
      %v427 = vadd.f32 %v276, %v426
      %v428 = vpop.f32.mrb[0].mxu0
      %429 = vmatprep.mubr.bf16.mxu0 0
      %430 = vmatmul.mubr.bf16.gmra.mrb[0].mxu0 %v359
      %v431 = vpop.f32.mrb[0].mxu0
      %v432 = vadd.f32 %v276, %v431
      %v433 = vpop.f32.mrb[0].mxu0
      %v434 = vpop.f32.mrb[0].mxu0
      %v435 = vadd.f32 %v276, %v434
      %v436 = vpop.f32.mrb[0].mxu0
      %437 = vmatprep.mubr.bf16.mxu0 0
      %438 = vmatmul.mubr.bf16.gmra.mrb[0].mxu0 %v362
      %v439 = vpop.f32.mrb[0].mxu0
      %v440 = vadd.f32 %v276, %v439
      %v441 = vpop.f32.mrb[0].mxu0
      %v442 = vpop.f32.mrb[0].mxu0
      %v443 = vadd.f32 %v276, %v442
      %v444 = vpop.f32.mrb[0].mxu0
      %445 = vmatprep.mubr.bf16.mxu0 0
      %446 = vmatmul.mubr.bf16.gmra.mrb[0].mxu0 %v365
      %v447 = vpop.f32.mrb[0].mxu0
      %v448 = vadd.f32 %v276, %v447
      %v449 = vpop.f32.mrb[0].mxu0
      %v450 = vpop.f32.mrb[0].mxu0
      %v451 = vadd.f32 %v276, %v450
      %v452 = vpop.f32.mrb[0].mxu0
      %453 = vmatprep.mubr.bf16.mxu0 0
      %454 = vmatmul.mubr.bf16.gmra.mrb[0].mxu0 %v368
      %v455 = vpop.f32.mrb[0].mxu0
      %v456 = vadd.f32 %v276, %v455
      %v457 = vpop.f32.mrb[0].mxu0
      %v458 = vpop.f32.mrb[0].mxu0
      %v459 = vadd.f32 %v276, %v458
      %v460 = vpop.f32.mrb[0].mxu0
      %461 = vmatprep.mubr.bf16.mxu0 0
      %462 = vmatmul.mubr.bf16.gmra.mrb[0].mxu0 %v371
      %v463 = vpop.f32.mrb[0].mxu0
      %v464 = vadd.f32 %v276, %v463
      %v465 = vpop.f32.mrb[0].mxu0
      %v466 = vpop.f32.mrb[0].mxu0
      %v467 = vadd.f32 %v276, %v466
      %v468 = vpop.f32.mrb[0].mxu0
      %469 = vdwg.mxu0
      %v470 = vmax.f32 %v408, 0.0
      %v471 = vmax.f32 %v411, 0.0
      %v472 = vmax.f32 %v416, 0.0
      %v473 = vmax.f32 %v419, 0.0
      %v474 = vmax.f32 %v424, 0.0
      %v475 = vmax.f32 %v427, 0.0
      %v476 = vmax.f32 %v432, 0.0
      %v477 = vmax.f32 %v435, 0.0
      %v478 = vmax.f32 %v440, 0.0
      %v479 = vmax.f32 %v443, 0.0
      %v480 = vmax.f32 %v448, 0.0
      %v481 = vmax.f32 %v451, 0.0
      %v482 = vmax.f32 %v456, 0.0
      %v483 = vmax.f32 %v459, 0.0
      %v484 = vmax.f32 %v464, 0.0
      %v485 = vmax.f32 %v467, 0.0
      %vm486 = vcmask 130048
      %487 = vst.msk [vmem:[%s242] sm:$0xff] %vm486, %v470
      %488 = vst.msk [vmem:[%s242 + $0x8] sm:$0xff] %vm486, %v471
      %489 = vst.msk [vmem:[%s242 + $0x10] sm:$0xff] %vm486, %v472
      %490 = vst.msk [vmem:[%s242 + $0x18] sm:$0xff] %vm486, %v473
      %491 = vst.msk [vmem:[%s242 + $0x20] sm:$0xff] %vm486, %v474
      %492 = vst.msk [vmem:[%s242 + $0x28] sm:$0xff] %vm486, %v475
      %493 = vst.msk [vmem:[%s242 + $0x30] sm:$0xff] %vm486, %v476
      %494 = vst.msk [vmem:[%s242 + $0x38] sm:$0xff] %vm486, %v477
      %495 = vst.msk [vmem:[%s242 + $0x40] sm:$0xff] %vm486, %v478
      %496 = vst.msk [vmem:[%s242 + $0x48] sm:$0xff] %vm486, %v479
      %497 = vst.msk [vmem:[%s242 + $0x50] sm:$0xff] %vm486, %v480
      %498 = vst.msk [vmem:[%s242 + $0x58] sm:$0xff] %vm486, %v481
      %499 = vst.msk [vmem:[%s242 + $0x60] sm:$0xff] %vm486, %v482
      %500 = vst.msk [vmem:[%s242 + $0x68] sm:$0xff] %vm486, %v483
      %501 = vst.msk [vmem:[%s242 + $0x70] sm:$0xff] %vm486, %v484
      %502 = vst.msk [vmem:[%s242 + $0x78] sm:$0xff] %vm486, %v485
      %s503 = smul.u32 16, %s19
      %p504 = scmp.lt.s32.totalorder %s18, 3
      %s505 = scalar_select %p504, %s18, 3
      %p506 = scmp.lt.s32.totalorder %s503, 15
      %s507 = scalar_select %p506, %s503, 15
      %s508 = smul.addr %s505, 16
      %s509 = sadd.s32 %s507, %s508
      %s510 = smul.addr %s509, 8
      %s511 = scalar_lea.vmem %s3, %s510
      // Predicated region
      $region33: #{smtl_forward.28} parent=31 // pred_check
        %p512 = pneg %p126
      $region34: #{smtl_forward.28} parent=31 // pred_check_branch
        %514 = sbr.rel (%p512) target = $region36
      $region35: #{smtl_forward.28} parent=31 // pred_region
        %s515 = smul.u32 16, %s19
      $region36: #{smtl_forward.28} parent=31 // pred_fallthru
        _
    $region32: #{smtl_forward.28} parent=5 // pred_fallthru
      _
    %p516 = scmp.le.s32.totalorder 2, %s9
    // Predicated region
    $region37: #{smtl_forward.28} parent=5 // pred_check
      %p517 = pneg %p516
    $region38: #{smtl_forward.28} parent=5 // pred_check_branch
      %519 = sbr.rel (%p517) target = $region40
    $region39: #{smtl_forward.28} parent=5 // pred_region
      %s520 = ssub.s32 %s9, 2
      // Predicated region
      $region41: #{smtl_forward.28} parent=39 // pred_check
        %p521 = pneg %p132
      $region42: #{smtl_forward.28} parent=39 // pred_check_branch
        %523 = sbr.rel (%p521) target = $region44
      $region43: #{smtl_forward.28} parent=39 // pred_region
        %s524 = smul.u32 16, %s21
        %p525 = scmp.lt.s32.totalorder %s20, 3
        %s526 = scalar_select %p525, %s20, 3
        %p527 = scmp.lt.s32.totalorder %s524, 15
        %s528 = scalar_select %p527, %s524, 15
        %s529 = smul.addr %s526, 16
        %s530 = sadd.s32 %s528, %s529
        %s531 = smul.addr %s530, 8
        %s532 = scalar_lea.vmem %s3, %s531
      $region44: #{smtl_forward.28} parent=39 // pred_fallthru
        _
    $region40: #{smtl_forward.28} parent=5 // pred_fallthru
      _
  $region6: #{smtl_forward.28} parent=0 // loop_footer
    %s13 = sadd.s32 1, %s9
  $region7: #{smtl_forward.28} parent=0 // loop_footer_branch
    %8 = sbr.rel target = $region3
  $region8: #{smtl_forward.28} parent=0 // loop_exit
    _

// kernel: smtl_forward.29
$region0: #{smtl_forward.29}
  #allocation0 [shape = 'u32[]', space=smem, size = 0x4, offset = 0x4, fixed_abs, tag = 'smem constant byte address 0x4 - core index']
  #allocation1 [shape = 'u32[144,128]{1,0:T(1,128)}', space=vmem, size = 0x12000, scoped, tag = 'internal scratch']
  %s0 = inlined_call_operand.vmem [shape: bf16[4,128,144], index: 0, kind: input, shape index: {}]
  %s1 = inlined_call_operand.vmem [shape: bf16[4,144,16], index: 1, kind: input, shape index: {}]
  %s2 = inlined_call_operand.vmem [shape: f32[4,1,16], index: 2, kind: input, shape index: {}]
  %s3 = inlined_call_operand.vmem [shape: f32[4,128,16], index: 3, kind: output, shape index: {}]
  %s4 = sld [smem:[#allocation0]]
  $region45: #{smtl_forward.29} parent=0
    _
  %s6 = ssub.s32 1, %s4
  %s7 = scalar_select 0, %s6, %s4
  loop: start=0, step=1, limit=6
  $region2: #{smtl_forward.29} parent=0 // loop_pre_header
    _
  $region3: #{smtl_forward.29} parent=0 // loop_header
    %s9 = sphi 0, %s13
    %p10 = scmp.ge.s32.totalorder %s9, 6
    %s16 = sphi 0, %s28
    %s17 = sphi 0, %s24
    %s18 = sphi 0, %s16
    %s19 = sphi 0, %s17
    %s20 = sphi 0, %s18
    %s21 = sphi 0, %s19
    %s33 = sphi 0, %s35
    %s36 = sphi 0, %s33
    %s37 = sphi 0, %s36
    %s53 = sphi 0, %s37
    %s59 = sphi 0, %s61
    %s62 = sphi 0, %s59
    %s63 = sphi 0, %s62
    %s79 = sphi 0, %s63
    %s85 = sphi 0, %s87
    %s88 = sphi 0, %s85
    %s89 = sphi 0, %s88
    %s105 = sphi 0, %s89
    %s113 = sphi 0, %s115
    %s116 = sphi 0, %s113
    %s117 = sphi 0, %s116
    %s133 = sphi 0, %s117
  $region4: #{smtl_forward.29} parent=0 // loop_header_branch
    %12 = sbr.rel (%p10) target = $region8
  $region5: #{smtl_forward.29} parent=0 // loop_body
    %s14 = ssub.s32 %s9, 1
    %s15 = ssub.s32 %s9, 2
    %s22 = sadd.s32 1, %s17
    %p23 = scmp.ge.s32.totalorder %s22, 1
    %s24 = scalar_select %p23, 0, %s22
    %s25 = sadd.s32 1, %s16
    %s26 = scalar_select %p23, %s25, %s16
    %p27 = scmp.ge.s32.totalorder %s26, 4
    %s28 = scalar_select %p27, 0, %s26
    %s29 = ssub.s32 %s16, %s28
    %s30 = ssub.s32 %s17, %s24
    %s31 = sor.u32 %s29, %s30
    %p32 = scmp.eq.s32.totalorder %s31, 0
    %s34 = sadd.s32 %s33, 1
    %s35 = scalar_select %p32, %s33, %s34
    %p38 = pneg %p32
    %p39 = scmp.eq.s32.totalorder %s9, 3
    %p40 = por %p38, %p39
    %p41 = scmp.ne.s32.totalorder %s33, %s36
    %p42 = scmp.eq.s32.totalorder %s9, 0
    %p43 = por %p41, %p42
    %p44 = scmp.ne.s32.totalorder %s33, %s36
    %p45 = scmp.eq.s32.totalorder %s14, 3
    %p46 = por %p44, %p45
    %p47 = scmp.ne.s32.totalorder %s36, %s37
    %p48 = scmp.eq.s32.totalorder %s14, 0
    %p49 = por %p47, %p48
    %p50 = scmp.ne.s32.totalorder %s36, %s37
    %p51 = scmp.eq.s32.totalorder %s15, 3
    %p52 = por %p50, %p51
    %p54 = scmp.ne.s32.totalorder %s37, %s53
    %p55 = scmp.eq.s32.totalorder %s15, 0
    %p56 = por %p54, %p55
    %s57 = ssub.s32 %s16, %s28
    %p58 = scmp.eq.s32.totalorder %s57, 0
    %s60 = sadd.s32 %s59, 1
    %s61 = scalar_select %p58, %s59, %s60
    %p64 = pneg %p58
    %p65 = scmp.eq.s32.totalorder %s9, 3
    %p66 = por %p64, %p65
    %p67 = scmp.ne.s32.totalorder %s59, %s62
    %p68 = scmp.eq.s32.totalorder %s9, 0
    %p69 = por %p67, %p68
    %p70 = scmp.ne.s32.totalorder %s59, %s62
    %p71 = scmp.eq.s32.totalorder %s14, 3
    %p72 = por %p70, %p71
    %p73 = scmp.ne.s32.totalorder %s62, %s63
    %p74 = scmp.eq.s32.totalorder %s14, 0
    %p75 = por %p73, %p74
    %p76 = scmp.ne.s32.totalorder %s62, %s63
    %p77 = scmp.eq.s32.totalorder %s15, 3
    %p78 = por %p76, %p77
    %p80 = scmp.ne.s32.totalorder %s63, %s79
    %p81 = scmp.eq.s32.totalorder %s15, 0
    %p82 = por %p80, %p81
    %s83 = ssub.s32 %s16, %s28
    %p84 = scmp.eq.s32.totalorder %s83, 0
    %s86 = sadd.s32 %s85, 1
    %s87 = scalar_select %p84, %s85, %s86
    %p90 = pneg %p84
    %p91 = scmp.eq.s32.totalorder %s9, 3
    %p92 = por %p90, %p91
    %p93 = scmp.ne.s32.totalorder %s85, %s88
    %p94 = scmp.eq.s32.totalorder %s9, 0
    %p95 = por %p93, %p94
    %p96 = scmp.ne.s32.totalorder %s85, %s88
    %p97 = scmp.eq.s32.totalorder %s14, 3
    %p98 = por %p96, %p97
    %p99 = scmp.ne.s32.totalorder %s88, %s89
    %p100 = scmp.eq.s32.totalorder %s14, 0
    %p101 = por %p99, %p100
    %p102 = scmp.ne.s32.totalorder %s88, %s89
    %p103 = scmp.eq.s32.totalorder %s15, 3
    %p104 = por %p102, %p103
    %p106 = scmp.ne.s32.totalorder %s89, %s105
    %p107 = scmp.eq.s32.totalorder %s15, 0
    %p108 = por %p106, %p107
    %s109 = ssub.s32 %s16, %s28
    %s110 = ssub.s32 %s17, %s24
    %s111 = sor.u32 %s109, %s110
    %p112 = scmp.eq.s32.totalorder %s111, 0
    %s114 = sadd.s32 %s113, 1
    %s115 = scalar_select %p112, %s113, %s114
    %p118 = pneg %p112
    %p119 = scmp.eq.s32.totalorder %s9, 3
    %p120 = por %p118, %p119
    %p121 = scmp.ne.s32.totalorder %s113, %s116
    %p122 = scmp.eq.s32.totalorder %s9, 0
    %p123 = por %p121, %p122
    %p124 = scmp.ne.s32.totalorder %s113, %s116
    %p125 = scmp.eq.s32.totalorder %s14, 3
    %p126 = por %p124, %p125
    %p127 = scmp.ne.s32.totalorder %s116, %s117
    %p128 = scmp.eq.s32.totalorder %s14, 0
    %p129 = por %p127, %p128
    %p130 = scmp.ne.s32.totalorder %s116, %s117
    %p131 = scmp.eq.s32.totalorder %s15, 3
    %p132 = por %p130, %p131
    %p134 = scmp.ne.s32.totalorder %s117, %s133
    %p135 = scmp.eq.s32.totalorder %s15, 0
    %p136 = por %p134, %p135
    %p137 = scmp.le.s32.totalorder 1, %s9
    %p138 = scmp.lt.s32.totalorder %s9, 5
    %p139 = pnand %p137, %p138
    %p140 = pneg %p139
    // Predicated region
    $region9: #{smtl_forward.29} parent=5 // pred_check
      _
    $region10: #{smtl_forward.29} parent=5 // pred_check_branch
      %142 = sbr.rel (%p139) target = $region12
    $region11: #{smtl_forward.29} parent=5 // pred_region
      %s143 = ssub.s32 %s9, 1
    $region12: #{smtl_forward.29} parent=5 // pred_fallthru
      _
    %p144 = scmp.lt.s32.totalorder %s9, 4
    // Predicated region
    $region13: #{smtl_forward.29} parent=5 // pred_check
      %p145 = pneg %p144
    $region14: #{smtl_forward.29} parent=5 // pred_check_branch
      %147 = sbr.rel (%p145) target = $region16
    $region15: #{smtl_forward.29} parent=5 // pred_region
      // Predicated region
      $region17: #{smtl_forward.29} parent=15 // pred_check
        %p148 = pneg %p43
      $region18: #{smtl_forward.29} parent=15 // pred_check_branch
        %150 = sbr.rel (%p148) target = $region20
      $region19: #{smtl_forward.29} parent=15 // pred_region
        %s151 = smul.u32 16, %s17
        %p152 = scmp.lt.s32.totalorder %s16, 3
        %s153 = scalar_select %p152, %s16, 3
        %p154 = scmp.lt.s32.totalorder %s151, 15
        %s155 = scalar_select %p154, %s151, 15
        %s156 = smul.addr %s155, 2
        %s157 = smul.addr %s153, 32
        %s158 = sadd.s32 %s156, %s157
        %s159 = smul.addr %s158, 4
        %s160 = scalar_lea.vmem %s0, %s159
        %s161 = smul.u32 16, %s17
      $region20: #{smtl_forward.29} parent=15 // pred_fallthru
        _
      // Predicated region
      $region21: #{smtl_forward.29} parent=15 // pred_check
        %p162 = pneg %p69
      $region22: #{smtl_forward.29} parent=15 // pred_check_branch
        %164 = sbr.rel (%p162) target = $region24
      $region23: #{smtl_forward.29} parent=15 // pred_region
        %p165 = scmp.lt.s32.totalorder %s16, 3
        %s166 = scalar_select %p165, %s16, 3
        %s167 = smul.addr %s166, 18
        %s168 = smul.addr %s167, 4
        %s169 = scalar_lea.vmem %s1, %s168
      $region24: #{smtl_forward.29} parent=15 // pred_fallthru
        _
      // Predicated region
      $region25: #{smtl_forward.29} parent=15 // pred_check
        %p170 = pneg %p95
      $region26: #{smtl_forward.29} parent=15 // pred_check_branch
        %172 = sbr.rel (%p170) target = $region28
      $region27: #{smtl_forward.29} parent=15 // pred_region
        %p173 = scmp.lt.s32.totalorder %s16, 3
        %s174 = scalar_select %p173, %s16, 3
        %s175 = scalar_lea.vmem %s2, %s174
      $region28: #{smtl_forward.29} parent=15 // pred_fallthru
        _
    $region16: #{smtl_forward.29} parent=5 // pred_fallthru
      _
    %p176 = scmp.le.s32.totalorder 1, %s9
    %p177 = scmp.lt.s32.totalorder %s9, 5
    %p178 = pnand %p176, %p177
    %p179 = pneg %p178
    // Predicated region
    $region29: #{smtl_forward.29} parent=5 // pred_check
      _
    $region30: #{smtl_forward.29} parent=5 // pred_check_branch
      %181 = sbr.rel (%p178) target = $region32
    $region31: #{smtl_forward.29} parent=5 // pred_region
      %s182 = ssub.s32 %s9, 1
      %s183 = smul.u32 16, %s19
      %p184 = scmp.lt.s32.totalorder %s18, 3
      %s185 = scalar_select %p184, %s18, 3
      %p186 = scmp.lt.s32.totalorder %s183, 15
      %s187 = scalar_select %p186, %s183, 15
      %s188 = smul.addr %s187, 2
      %s189 = smul.addr %s185, 32
      %s190 = sadd.s32 %s188, %s189
      %s191 = smul.addr %s190, 4
      %s192 = scalar_lea.vmem %s0, %s191
      %p193 = pneg %p49
      %p194 = pneg %p46
      %p195 = scmp.lt.s32.totalorder %s18, 3
      %s196 = scalar_select %p195, %s18, 3
      %s197 = smul.addr %s196, 18
      %s198 = smul.addr %s197, 4
      %s199 = scalar_lea.vmem %s1, %s198
      %p200 = pneg %p75
      %p201 = pneg %p72
      %p202 = scmp.lt.s32.totalorder %s18, 3
      %s203 = scalar_select %p202, %s18, 3
      %s204 = scalar_lea.vmem %s2, %s203
      %p205 = pneg %p101
      %p206 = pneg %p98
      %p207 = pneg %p129
      %p208 = pneg %p126
      %s209 = smul.u32 16, %s19
      %p210 = scmp.lt.s32.totalorder %s18, 3
      %s211 = scalar_select %p210, %s18, 3
      %p212 = scmp.lt.s32.totalorder %s209, 15
      %s213 = scalar_select %p212, %s209, 15
      %s214 = smul.addr %s211, 16
      %s215 = sadd.s32 %s213, %s214
      %s216 = smul.addr %s215, 8
      %s217 = scalar_lea.vmem %s3, %s216
      %s218 = smul.u32 16, %s19
      %p219 = scmp.lt.s32.totalorder %s18, 3
      %s220 = scalar_select %p219, %s18, 3
      %p221 = scmp.lt.s32.totalorder %s218, 15
      %s222 = scalar_select %p221, %s218, 15
      %s223 = smul.addr %s222, 2
      %s224 = smul.addr %s220, 32
      %s225 = sadd.s32 %s223, %s224
      %s226 = smul.addr %s225, 4
      %s227 = scalar_lea.vmem %s0, %s226
      %s228 = smul.u32 16, %s19
      %p229 = scmp.lt.s32.totalorder %s18, 3
      %s230 = scalar_select %p229, %s18, 3
      %s231 = smul.addr %s230, 18
      %s232 = smul.addr %s231, 4
      %s233 = scalar_lea.vmem %s1, %s232
      %p234 = scmp.lt.s32.totalorder %s18, 3
      %s235 = scalar_select %p234, %s18, 3
      %s236 = scalar_lea.vmem %s2, %s235
      %s237 = smul.u32 16, %s19
      %p238 = scmp.lt.s32.totalorder %s18, 3
      %s239 = scalar_select %p238, %s18, 3
      %p240 = scmp.lt.s32.totalorder %s237, 15
      %s241 = scalar_select %p240, %s237, 15
      %s242 = smul.addr %s239, 16
      %s243 = sadd.s32 %s241, %s242
      %s244 = smul.addr %s243, 8
      %s245 = scalar_lea.vmem %s3, %s244
      %s246 = smul.u32 16, %s19
      %v248 = vld [vmem:[%s227] sm:$0xff]
      %v249 = vld [vmem:[%s227 + $0x8] sm:$0xff]
      %v250 = vld [vmem:[%s227 + $0x10] sm:$0xff]
      %v251 = vld [vmem:[%s227 + $0x18] sm:$0xff]
      %v252 = vld [vmem:[%s227 + $0x20] sm:$0xff]
      %v253 = vld [vmem:[%s227 + $0x28] sm:$0xff]
      %v254 = vld [vmem:[%s227 + $0x30] sm:$0xff]
      %v255 = vld [vmem:[%s227 + $0x38] sm:$0xff]
      %v256 = vld [vmem:[%s227 + $0x40] sm:$0xff]
      %v257 = vld [vmem:[%s227 + $0x48] sm:$0xff]
      %v258 = vld [vmem:[%s227 + $0x50] sm:$0xff]
      %v259 = vld [vmem:[%s227 + $0x58] sm:$0xff]
      %v260 = vld [vmem:[%s227 + $0x60] sm:$0xff]
      %v261 = vld [vmem:[%s227 + $0x68] sm:$0xff]
      %v262 = vld [vmem:[%s227 + $0x70] sm:$0xff]
      %v263 = vld [vmem:[%s227 + $0x78] sm:$0xff]
      %v264 = vld [vmem:[%s233] sm:$0xf]
      %v265 = vld [vmem:[%s233 + $0x4] sm:$0xf]
      %v266 = vld [vmem:[%s233 + $0x8] sm:$0xf]
      %v267 = vld [vmem:[%s233 + $0xc] sm:$0xf]
      %v268 = vld [vmem:[%s233 + $0x10] sm:$0xf]
      %v269 = vld [vmem:[%s233 + $0x14] sm:$0xf]
      %v270 = vld [vmem:[%s233 + $0x18] sm:$0xf]
      %v271 = vld [vmem:[%s233 + $0x1c] sm:$0xf]
      %v272 = vld [vmem:[%s233 + $0x20] sm:$0xf]
      %v273 = vld [vmem:[%s233 + $0x24] sm:$0xf]
      %v274 = vld [vmem:[%s233 + $0x28] sm:$0xf]
      %v275 = vld [vmem:[%s233 + $0x2c] sm:$0xf]
      %v276 = vld [vmem:[%s233 + $0x30] sm:$0xf]
      %v277 = vld [vmem:[%s233 + $0x34] sm:$0xf]
      %v278 = vld [vmem:[%s233 + $0x38] sm:$0xf]
      %v279 = vld [vmem:[%s233 + $0x3c] sm:$0xf]
      %v280 = vld [vmem:[%s233 + $0x40] sm:$0xf]
      %v281 = vld [vmem:[%s233 + $0x44] sm:$0xf]
      %v282 = vld [vmem:[%s236] sm:$0x1]
      %v284 = vlaneseq
      %v285 = vshrl.u32 %v284, 7
      %v286 = vsub.s32 0, %v285
      %v287 = vrot.slane %v282, %v286
      %v305 = vunpack.c.l.b16 %v248
      %v306 = vunpack.c.h.b16 %v248
      %v307 = vunpack.c.l.b16 %v249
      %v308 = vunpack.c.h.b16 %v249
      %v309 = vunpack.c.l.b16 %v250
      %v310 = vunpack.c.h.b16 %v250
      %v311 = vunpack.c.l.b16 %v251
      %v312 = vunpack.c.h.b16 %v251
      %v313 = vunpack.c.l.b16 %v252
      %v314 = vunpack.c.h.b16 %v252
      %v315 = vunpack.c.l.b16 %v253
      %v316 = vunpack.c.h.b16 %v253
      %v317 = vunpack.c.l.b16 %v254
      %v318 = vunpack.c.h.b16 %v254
      %v319 = vunpack.c.l.b16 %v255
      %v320 = vunpack.c.h.b16 %v255
      %v321 = vunpack.c.l.b16 %v256
      %v322 = vunpack.c.h.b16 %v256
      %v323 = vunpack.c.l.b16 %v257
      %v324 = vunpack.c.h.b16 %v257
      %v325 = vunpack.c.l.b16 %v258
      %v326 = vunpack.c.h.b16 %v258
      %v327 = vunpack.c.l.b16 %v259
      %v328 = vunpack.c.h.b16 %v259
      %v329 = vunpack.c.l.b16 %v260
      %v330 = vunpack.c.h.b16 %v260
      %v331 = vunpack.c.l.b16 %v261
      %v332 = vunpack.c.h.b16 %v261
      %v333 = vunpack.c.l.b16 %v262
      %v334 = vunpack.c.h.b16 %v262
      %v335 = vunpack.c.l.b16 %v263
      %v336 = vunpack.c.h.b16 %v263
      %v337 = vpack.c.b16 %v307, %v305
      %v338 = vpack.c.b16 %v308, %v306
      %v339 = vpack.c.b16 %v311, %v309
      %v340 = vpack.c.b16 %v312, %v310
      %v341 = vpack.c.b16 %v315, %v313
      %v342 = vpack.c.b16 %v316, %v314
      %v343 = vpack.c.b16 %v319, %v317
      %v344 = vpack.c.b16 %v320, %v318
      %v345 = vpack.c.b16 %v323, %v321
      %v346 = vpack.c.b16 %v324, %v322
      %v347 = vpack.c.b16 %v327, %v325
      %v348 = vpack.c.b16 %v328, %v326
      %v349 = vpack.c.b16 %v331, %v329
      %v350 = vpack.c.b16 %v332, %v330
      %v351 = vpack.c.b16 %v335, %v333
      %v352 = vpack.c.b16 %v336, %v334
      %v379 = vunpack.c.l.b16 %v264
      %v380 = vunpack.c.l.b16 %v265
      %v381 = vunpack.c.l.b16 %v266
      %v382 = vunpack.c.l.b16 %v267
      %v383 = vunpack.c.l.b16 %v268
      %v384 = vunpack.c.l.b16 %v269
      %v385 = vunpack.c.l.b16 %v270
      %v386 = vunpack.c.l.b16 %v271
      %v387 = vunpack.c.l.b16 %v272
      %v388 = vunpack.c.l.b16 %v273
      %v389 = vunpack.c.l.b16 %v274
      %v390 = vunpack.c.l.b16 %v275
      %v391 = vunpack.c.l.b16 %v276
      %v392 = vunpack.c.l.b16 %v277
      %v393 = vunpack.c.l.b16 %v278
      %v394 = vunpack.c.l.b16 %v279
      %v395 = vunpack.c.l.b16 %v280
      %v396 = vunpack.c.l.b16 %v281
      %v397 = vpack.c.b16 %v380, %v379
      %v398 = vpack.c.b16 %v382, %v381
      %v399 = vpack.c.b16 %v384, %v383
      %v400 = vpack.c.b16 %v386, %v385
      %v401 = vpack.c.b16 %v388, %v387
      %v402 = vpack.c.b16 %v390, %v389
      %v403 = vpack.c.b16 %v392, %v391
      %v404 = vpack.c.b16 %v394, %v393
      %v405 = vpack.c.b16 %v396, %v395
      %vm415 = vcmask 130048
      %v417 = vsel %vm415, %v338, 0
      %v420 = vsel %vm415, %v340, 0
      %v423 = vsel %vm415, %v342, 0
      %v426 = vsel %vm415, %v344, 0
      %v429 = vsel %vm415, %v346, 0
      %v432 = vsel %vm415, %v348, 0
      %v435 = vsel %vm415, %v350, 0
      %v438 = vsel %vm415, %v352, 0
      %440 = vmatprep.subr.bf16.mxu0 0
      %441 = vmatpush1.bf16.msra.mxu0 %v397
      %442 = vmatprep.subr.bf16.mxu0 0
      %443 = vmatpush1.bf16.msra.mxu0 %v398
      %444 = vmatprep.subr.bf16.mxu0 0
      %445 = vmatpush1.bf16.msra.mxu0 %v399
      %446 = vmatprep.subr.bf16.mxu0 0
      %447 = vmatpush1.bf16.msra.mxu0 %v400
      %448 = vmatprep.subr.bf16.mxu0 0
      %449 = vmatpush1.bf16.msra.mxu0 %v401
      %450 = vmatprep.subr.bf16.mxu0 0
      %451 = vmatpush1.bf16.msra.mxu0 %v402
      %452 = vmatprep.subr.bf16.mxu0 0
      %453 = vmatpush1.bf16.msra.mxu0 %v403
      %454 = vmatprep.subr.bf16.mxu0 0
      %455 = vmatpush1.bf16.msra.mxu0 %v404
      %456 = vmatprep.subr.bf16.mxu0 0
      %457 = vmatpush1.bf16.msra.mxu0 %v405
      %458 = vmatprep.subr.bf16.mxu0 0
      %459 = vmatpush1.bf16.msra.mxu0 0
      %460 = vmatprep.subr.bf16.mxu0 0
      %461 = vmatpush1.bf16.msra.mxu0 0
      %462 = vmatprep.subr.bf16.mxu0 0
      %463 = vmatpush1.bf16.msra.mxu0 0
      %464 = vmatprep.subr.bf16.mxu0 0
      %465 = vmatpush1.bf16.msra.mxu0 0
      %466 = vmatprep.subr.bf16.mxu0 0
      %467 = vmatpush1.bf16.msra.mxu0 0
      %468 = vmatprep.subr.bf16.mxu0 0
      %469 = vmatpush1.bf16.msra.mxu0 0
      %470 = vmatprep.subr.bf16.mxu0 0
      %471 = vmatpush1.bf16.msra.mxu0 0
      %472 = vmatprep.mubr.bf16.mxu0 %v417
      %473 = vmatmul.mubr.bf16.gmra.mrb[0].mxu0 %v337
      %v474 = vpop.f32.mrb[0].mxu0
      %v475 = vadd.f32 %v287, %v474
      %v476 = vpop.f32.mrb[0].mxu0
      %v477 = vpop.f32.mrb[0].mxu0
      %v478 = vadd.f32 %v287, %v477
      %v479 = vpop.f32.mrb[0].mxu0
      %480 = vmatprep.mubr.bf16.mxu0 %v420
      %481 = vmatmul.mubr.bf16.gmra.mrb[0].mxu0 %v339
      %v482 = vpop.f32.mrb[0].mxu0
      %v483 = vadd.f32 %v287, %v482
      %v484 = vpop.f32.mrb[0].mxu0
      %v485 = vpop.f32.mrb[0].mxu0
      %v486 = vadd.f32 %v287, %v485
      %v487 = vpop.f32.mrb[0].mxu0
      %488 = vmatprep.mubr.bf16.mxu0 %v423
      %489 = vmatmul.mubr.bf16.gmra.mrb[0].mxu0 %v341
      %v490 = vpop.f32.mrb[0].mxu0
      %v491 = vadd.f32 %v287, %v490
      %v492 = vpop.f32.mrb[0].mxu0
      %v493 = vpop.f32.mrb[0].mxu0
      %v494 = vadd.f32 %v287, %v493
      %v495 = vpop.f32.mrb[0].mxu0
      %496 = vmatprep.mubr.bf16.mxu0 %v426
      %497 = vmatmul.mubr.bf16.gmra.mrb[0].mxu0 %v343
      %v498 = vpop.f32.mrb[0].mxu0
      %v499 = vadd.f32 %v287, %v498
      %v500 = vpop.f32.mrb[0].mxu0
      %v501 = vpop.f32.mrb[0].mxu0
      %v502 = vadd.f32 %v287, %v501
      %v503 = vpop.f32.mrb[0].mxu0
      %504 = vmatprep.mubr.bf16.mxu0 %v429
      %505 = vmatmul.mubr.bf16.gmra.mrb[0].mxu0 %v345
      %v506 = vpop.f32.mrb[0].mxu0
      %v507 = vadd.f32 %v287, %v506
      %v508 = vpop.f32.mrb[0].mxu0
      %v509 = vpop.f32.mrb[0].mxu0
      %v510 = vadd.f32 %v287, %v509
      %v511 = vpop.f32.mrb[0].mxu0
      %512 = vmatprep.mubr.bf16.mxu0 %v432
      %513 = vmatmul.mubr.bf16.gmra.mrb[0].mxu0 %v347
      %v514 = vpop.f32.mrb[0].mxu0
      %v515 = vadd.f32 %v287, %v514
      %v516 = vpop.f32.mrb[0].mxu0
      %v517 = vpop.f32.mrb[0].mxu0
      %v518 = vadd.f32 %v287, %v517
      %v519 = vpop.f32.mrb[0].mxu0
      %520 = vmatprep.mubr.bf16.mxu0 %v435
      %521 = vmatmul.mubr.bf16.gmra.mrb[0].mxu0 %v349
      %v522 = vpop.f32.mrb[0].mxu0
      %v523 = vadd.f32 %v287, %v522
      %v524 = vpop.f32.mrb[0].mxu0
      %v525 = vpop.f32.mrb[0].mxu0
      %v526 = vadd.f32 %v287, %v525
      %v527 = vpop.f32.mrb[0].mxu0
      %528 = vmatprep.mubr.bf16.mxu0 %v438
      %529 = vmatmul.mubr.bf16.gmra.mrb[0].mxu0 %v351
      %v530 = vpop.f32.mrb[0].mxu0
      %v531 = vadd.f32 %v287, %v530
      %v532 = vpop.f32.mrb[0].mxu0
      %v533 = vpop.f32.mrb[0].mxu0
      %v534 = vadd.f32 %v287, %v533
      %v535 = vpop.f32.mrb[0].mxu0
      %536 = vdwg.mxu0
      %v537 = vmax.f32 %v475, 0.0
      %v538 = vmax.f32 %v478, 0.0
      %v539 = vmax.f32 %v483, 0.0
      %v540 = vmax.f32 %v486, 0.0
      %v541 = vmax.f32 %v491, 0.0
      %v542 = vmax.f32 %v494, 0.0
      %v543 = vmax.f32 %v499, 0.0
      %v544 = vmax.f32 %v502, 0.0
      %v545 = vmax.f32 %v507, 0.0
      %v546 = vmax.f32 %v510, 0.0
      %v547 = vmax.f32 %v515, 0.0
      %v548 = vmax.f32 %v518, 0.0
      %v549 = vmax.f32 %v523, 0.0
      %v550 = vmax.f32 %v526, 0.0
      %v551 = vmax.f32 %v531, 0.0
      %v552 = vmax.f32 %v534, 0.0
      %553 = vst.msk [vmem:[%s245] sm:$0xff] %vm415, %v537
      %554 = vst.msk [vmem:[%s245 + $0x8] sm:$0xff] %vm415, %v538
      %555 = vst.msk [vmem:[%s245 + $0x10] sm:$0xff] %vm415, %v539
      %556 = vst.msk [vmem:[%s245 + $0x18] sm:$0xff] %vm415, %v540
      %557 = vst.msk [vmem:[%s245 + $0x20] sm:$0xff] %vm415, %v541
      %558 = vst.msk [vmem:[%s245 + $0x28] sm:$0xff] %vm415, %v542
      %559 = vst.msk [vmem:[%s245 + $0x30] sm:$0xff] %vm415, %v543
      %560 = vst.msk [vmem:[%s245 + $0x38] sm:$0xff] %vm415, %v544
      %561 = vst.msk [vmem:[%s245 + $0x40] sm:$0xff] %vm415, %v545
      %562 = vst.msk [vmem:[%s245 + $0x48] sm:$0xff] %vm415, %v546
      %563 = vst.msk [vmem:[%s245 + $0x50] sm:$0xff] %vm415, %v547
      %564 = vst.msk [vmem:[%s245 + $0x58] sm:$0xff] %vm415, %v548
      %565 = vst.msk [vmem:[%s245 + $0x60] sm:$0xff] %vm415, %v549
      %566 = vst.msk [vmem:[%s245 + $0x68] sm:$0xff] %vm415, %v550
      %567 = vst.msk [vmem:[%s245 + $0x70] sm:$0xff] %vm415, %v551
      %568 = vst.msk [vmem:[%s245 + $0x78] sm:$0xff] %vm415, %v552
      %s569 = smul.u32 16, %s19
      %p570 = scmp.lt.s32.totalorder %s18, 3
      %s571 = scalar_select %p570, %s18, 3
      %p572 = scmp.lt.s32.totalorder %s569, 15
      %s573 = scalar_select %p572, %s569, 15
      %s574 = smul.addr %s571, 16
      %s575 = sadd.s32 %s573, %s574
      %s576 = smul.addr %s575, 8
      %s577 = scalar_lea.vmem %s3, %s576
      // Predicated region
      $region33: #{smtl_forward.29} parent=31 // pred_check
        %p578 = pneg %p126
      $region34: #{smtl_forward.29} parent=31 // pred_check_branch
        %580 = sbr.rel (%p578) target = $region36
      $region35: #{smtl_forward.29} parent=31 // pred_region
        %s581 = smul.u32 16, %s19
      $region36: #{smtl_forward.29} parent=31 // pred_fallthru
        _
    $region32: #{smtl_forward.29} parent=5 // pred_fallthru
      _
    %p582 = scmp.le.s32.totalorder 2, %s9
    // Predicated region
    $region37: #{smtl_forward.29} parent=5 // pred_check
      %p583 = pneg %p582
    $region38: #{smtl_forward.29} parent=5 // pred_check_branch
      %585 = sbr.rel (%p583) target = $region40
    $region39: #{smtl_forward.29} parent=5 // pred_region
      %s586 = ssub.s32 %s9, 2
      // Predicated region
      $region41: #{smtl_forward.29} parent=39 // pred_check
        %p587 = pneg %p132
      $region42: #{smtl_forward.29} parent=39 // pred_check_branch
        %589 = sbr.rel (%p587) target = $region44
      $region43: #{smtl_forward.29} parent=39 // pred_region
        %s590 = smul.u32 16, %s21
        %p591 = scmp.lt.s32.totalorder %s20, 3
        %s592 = scalar_select %p591, %s20, 3
        %p593 = scmp.lt.s32.totalorder %s590, 15
        %s594 = scalar_select %p593, %s590, 15
        %s595 = smul.addr %s592, 16
        %s596 = sadd.s32 %s594, %s595
        %s597 = smul.addr %s596, 8
        %s598 = scalar_lea.vmem %s3, %s597
      $region44: #{smtl_forward.29} parent=39 // pred_fallthru
        _
    $region40: #{smtl_forward.29} parent=5 // pred_fallthru
      _
  $region6: #{smtl_forward.29} parent=0 // loop_footer
    %s13 = sadd.s32 1, %s9
  $region7: #{smtl_forward.29} parent=0 // loop_footer_branch
    %8 = sbr.rel target = $region3
  $region8: #{smtl_forward.29} parent=0 // loop_exit
    _

// kernel: smtl_forward.30
$region0: #{smtl_forward.30}
  #allocation0 [shape = 'u32[]', space=smem, size = 0x4, offset = 0x4, fixed_abs, tag = 'smem constant byte address 0x4 - core index']
  #allocation1 [shape = 'u32[144,128]{1,0:T(1,128)}', space=vmem, size = 0x12000, scoped, tag = 'internal scratch']
  %s0 = inlined_call_operand.vmem [shape: bf16[2,128,16], index: 0, kind: input, shape index: {}]
  %s1 = inlined_call_operand.vmem [shape: bf16[2,16,17], index: 1, kind: input, shape index: {}]
  %s2 = inlined_call_operand.vmem [shape: f32[2,1,17], index: 2, kind: input, shape index: {}]
  %s3 = inlined_call_operand.vmem [shape: f32[2,128,17], index: 3, kind: output, shape index: {}]
  %s4 = sld [smem:[#allocation0]]
  $region45: #{smtl_forward.30} parent=0
    _
  %s6 = ssub.s32 1, %s4
  %s7 = scalar_select 0, %s6, %s4
  loop: start=0, step=1, limit=4
  $region2: #{smtl_forward.30} parent=0 // loop_pre_header
    _
  $region3: #{smtl_forward.30} parent=0 // loop_header
    %s9 = sphi 0, %s13
    %p10 = scmp.ge.s32.totalorder %s9, 4
    %s16 = sphi 0, %s28
    %s17 = sphi 0, %s24
    %s18 = sphi 0, %s16
    %s19 = sphi 0, %s17
    %s20 = sphi 0, %s18
    %s21 = sphi 0, %s19
    %s33 = sphi 0, %s35
    %s36 = sphi 0, %s33
    %s37 = sphi 0, %s36
    %s53 = sphi 0, %s37
    %s59 = sphi 0, %s61
    %s62 = sphi 0, %s59
    %s63 = sphi 0, %s62
    %s79 = sphi 0, %s63
    %s85 = sphi 0, %s87
    %s88 = sphi 0, %s85
    %s89 = sphi 0, %s88
    %s105 = sphi 0, %s89
    %s113 = sphi 0, %s115
    %s116 = sphi 0, %s113
    %s117 = sphi 0, %s116
    %s133 = sphi 0, %s117
  $region4: #{smtl_forward.30} parent=0 // loop_header_branch
    %12 = sbr.rel (%p10) target = $region8
  $region5: #{smtl_forward.30} parent=0 // loop_body
    %s14 = ssub.s32 %s9, 1
    %s15 = ssub.s32 %s9, 2
    %s22 = sadd.s32 1, %s17
    %p23 = scmp.ge.s32.totalorder %s22, 1
    %s24 = scalar_select %p23, 0, %s22
    %s25 = sadd.s32 1, %s16
    %s26 = scalar_select %p23, %s25, %s16
    %p27 = scmp.ge.s32.totalorder %s26, 2
    %s28 = scalar_select %p27, 0, %s26
    %s29 = ssub.s32 %s16, %s28
    %s30 = ssub.s32 %s17, %s24
    %s31 = sor.u32 %s29, %s30
    %p32 = scmp.eq.s32.totalorder %s31, 0
    %s34 = sadd.s32 %s33, 1
    %s35 = scalar_select %p32, %s33, %s34
    %p38 = pneg %p32
    %p39 = scmp.eq.s32.totalorder %s9, 1
    %p40 = por %p38, %p39
    %p41 = scmp.ne.s32.totalorder %s33, %s36
    %p42 = scmp.eq.s32.totalorder %s9, 0
    %p43 = por %p41, %p42
    %p44 = scmp.ne.s32.totalorder %s33, %s36
    %p45 = scmp.eq.s32.totalorder %s14, 1
    %p46 = por %p44, %p45
    %p47 = scmp.ne.s32.totalorder %s36, %s37
    %p48 = scmp.eq.s32.totalorder %s14, 0
    %p49 = por %p47, %p48
    %p50 = scmp.ne.s32.totalorder %s36, %s37
    %p51 = scmp.eq.s32.totalorder %s15, 1
    %p52 = por %p50, %p51
    %p54 = scmp.ne.s32.totalorder %s37, %s53
    %p55 = scmp.eq.s32.totalorder %s15, 0
    %p56 = por %p54, %p55
    %s57 = ssub.s32 %s16, %s28
    %p58 = scmp.eq.s32.totalorder %s57, 0
    %s60 = sadd.s32 %s59, 1
    %s61 = scalar_select %p58, %s59, %s60
    %p64 = pneg %p58
    %p65 = scmp.eq.s32.totalorder %s9, 1
    %p66 = por %p64, %p65
    %p67 = scmp.ne.s32.totalorder %s59, %s62
    %p68 = scmp.eq.s32.totalorder %s9, 0
    %p69 = por %p67, %p68
    %p70 = scmp.ne.s32.totalorder %s59, %s62
    %p71 = scmp.eq.s32.totalorder %s14, 1
    %p72 = por %p70, %p71
    %p73 = scmp.ne.s32.totalorder %s62, %s63
    %p74 = scmp.eq.s32.totalorder %s14, 0
    %p75 = por %p73, %p74
    %p76 = scmp.ne.s32.totalorder %s62, %s63
    %p77 = scmp.eq.s32.totalorder %s15, 1
    %p78 = por %p76, %p77
    %p80 = scmp.ne.s32.totalorder %s63, %s79
    %p81 = scmp.eq.s32.totalorder %s15, 0
    %p82 = por %p80, %p81
    %s83 = ssub.s32 %s16, %s28
    %p84 = scmp.eq.s32.totalorder %s83, 0
    %s86 = sadd.s32 %s85, 1
    %s87 = scalar_select %p84, %s85, %s86
    %p90 = pneg %p84
    %p91 = scmp.eq.s32.totalorder %s9, 1
    %p92 = por %p90, %p91
    %p93 = scmp.ne.s32.totalorder %s85, %s88
    %p94 = scmp.eq.s32.totalorder %s9, 0
    %p95 = por %p93, %p94
    %p96 = scmp.ne.s32.totalorder %s85, %s88
    %p97 = scmp.eq.s32.totalorder %s14, 1
    %p98 = por %p96, %p97
    %p99 = scmp.ne.s32.totalorder %s88, %s89
    %p100 = scmp.eq.s32.totalorder %s14, 0
    %p101 = por %p99, %p100
    %p102 = scmp.ne.s32.totalorder %s88, %s89
    %p103 = scmp.eq.s32.totalorder %s15, 1
    %p104 = por %p102, %p103
    %p106 = scmp.ne.s32.totalorder %s89, %s105
    %p107 = scmp.eq.s32.totalorder %s15, 0
    %p108 = por %p106, %p107
    %s109 = ssub.s32 %s16, %s28
    %s110 = ssub.s32 %s17, %s24
    %s111 = sor.u32 %s109, %s110
    %p112 = scmp.eq.s32.totalorder %s111, 0
    %s114 = sadd.s32 %s113, 1
    %s115 = scalar_select %p112, %s113, %s114
    %p118 = pneg %p112
    %p119 = scmp.eq.s32.totalorder %s9, 1
    %p120 = por %p118, %p119
    %p121 = scmp.ne.s32.totalorder %s113, %s116
    %p122 = scmp.eq.s32.totalorder %s9, 0
    %p123 = por %p121, %p122
    %p124 = scmp.ne.s32.totalorder %s113, %s116
    %p125 = scmp.eq.s32.totalorder %s14, 1
    %p126 = por %p124, %p125
    %p127 = scmp.ne.s32.totalorder %s116, %s117
    %p128 = scmp.eq.s32.totalorder %s14, 0
    %p129 = por %p127, %p128
    %p130 = scmp.ne.s32.totalorder %s116, %s117
    %p131 = scmp.eq.s32.totalorder %s15, 1
    %p132 = por %p130, %p131
    %p134 = scmp.ne.s32.totalorder %s117, %s133
    %p135 = scmp.eq.s32.totalorder %s15, 0
    %p136 = por %p134, %p135
    %p137 = scmp.le.s32.totalorder 1, %s9
    %p138 = scmp.lt.s32.totalorder %s9, 3
    %p139 = pnand %p137, %p138
    %p140 = pneg %p139
    // Predicated region
    $region9: #{smtl_forward.30} parent=5 // pred_check
      _
    $region10: #{smtl_forward.30} parent=5 // pred_check_branch
      %142 = sbr.rel (%p139) target = $region12
    $region11: #{smtl_forward.30} parent=5 // pred_region
      %s143 = ssub.s32 %s9, 1
    $region12: #{smtl_forward.30} parent=5 // pred_fallthru
      _
    %p144 = scmp.lt.s32.totalorder %s9, 2
    // Predicated region
    $region13: #{smtl_forward.30} parent=5 // pred_check
      %p145 = pneg %p144
    $region14: #{smtl_forward.30} parent=5 // pred_check_branch
      %147 = sbr.rel (%p145) target = $region16
    $region15: #{smtl_forward.30} parent=5 // pred_region
      // Predicated region
      $region17: #{smtl_forward.30} parent=15 // pred_check
        %p148 = pneg %p43
      $region18: #{smtl_forward.30} parent=15 // pred_check_branch
        %150 = sbr.rel (%p148) target = $region20
      $region19: #{smtl_forward.30} parent=15 // pred_region
        %s151 = smul.u32 16, %s17
        %p152 = scmp.lt.s32.totalorder %s16, 1
        %s153 = scalar_select %p152, %s16, 1
        %p154 = scmp.lt.s32.totalorder %s151, 15
        %s155 = scalar_select %p154, %s151, 15
        %s156 = smul.addr %s153, 16
        %s157 = sadd.s32 %s155, %s156
        %s158 = smul.addr %s157, 4
        %s159 = scalar_lea.vmem %s0, %s158
        %s160 = smul.u32 16, %s17
      $region20: #{smtl_forward.30} parent=15 // pred_fallthru
        _
      // Predicated region
      $region21: #{smtl_forward.30} parent=15 // pred_check
        %p161 = pneg %p69
      $region22: #{smtl_forward.30} parent=15 // pred_check_branch
        %163 = sbr.rel (%p161) target = $region24
      $region23: #{smtl_forward.30} parent=15 // pred_region
        %p164 = scmp.lt.s32.totalorder %s16, 1
        %s165 = scalar_select %p164, %s16, 1
        %s166 = smul.addr %s165, 2
        %s167 = smul.addr %s166, 4
        %s168 = scalar_lea.vmem %s1, %s167
      $region24: #{smtl_forward.30} parent=15 // pred_fallthru
        _
      // Predicated region
      $region25: #{smtl_forward.30} parent=15 // pred_check
        %p169 = pneg %p95
      $region26: #{smtl_forward.30} parent=15 // pred_check_branch
        %171 = sbr.rel (%p169) target = $region28
      $region27: #{smtl_forward.30} parent=15 // pred_region
        %p172 = scmp.lt.s32.totalorder %s16, 1
        %s173 = scalar_select %p172, %s16, 1
        %s174 = scalar_lea.vmem %s2, %s173
      $region28: #{smtl_forward.30} parent=15 // pred_fallthru
        _
    $region16: #{smtl_forward.30} parent=5 // pred_fallthru
      _
    %p175 = scmp.le.s32.totalorder 1, %s9
    %p176 = scmp.lt.s32.totalorder %s9, 3
    %p177 = pnand %p175, %p176
    %p178 = pneg %p177
    // Predicated region
    $region29: #{smtl_forward.30} parent=5 // pred_check
      _
    $region30: #{smtl_forward.30} parent=5 // pred_check_branch
      %180 = sbr.rel (%p177) target = $region32
    $region31: #{smtl_forward.30} parent=5 // pred_region
      %s181 = ssub.s32 %s9, 1
      %s182 = smul.u32 16, %s19
      %p183 = scmp.lt.s32.totalorder %s18, 1
      %s184 = scalar_select %p183, %s18, 1
      %p185 = scmp.lt.s32.totalorder %s182, 15
      %s186 = scalar_select %p185, %s182, 15
      %s187 = smul.addr %s184, 16
      %s188 = sadd.s32 %s186, %s187
      %s189 = smul.addr %s188, 4
      %s190 = scalar_lea.vmem %s0, %s189
      %p191 = pneg %p49
      %p192 = pneg %p46
      %p193 = scmp.lt.s32.totalorder %s18, 1
      %s194 = scalar_select %p193, %s18, 1
      %s195 = smul.addr %s194, 2
      %s196 = smul.addr %s195, 4
      %s197 = scalar_lea.vmem %s1, %s196
      %p198 = pneg %p75
      %p199 = pneg %p72
      %p200 = scmp.lt.s32.totalorder %s18, 1
      %s201 = scalar_select %p200, %s18, 1
      %s202 = scalar_lea.vmem %s2, %s201
      %p203 = pneg %p101
      %p204 = pneg %p98
      %p205 = pneg %p129
      %p206 = pneg %p126
      %s207 = smul.u32 16, %s19
      %p208 = scmp.lt.s32.totalorder %s18, 1
      %s209 = scalar_select %p208, %s18, 1
      %p210 = scmp.lt.s32.totalorder %s207, 15
      %s211 = scalar_select %p210, %s207, 15
      %s212 = smul.addr %s209, 16
      %s213 = sadd.s32 %s211, %s212
      %s214 = smul.addr %s213, 8
      %s215 = scalar_lea.vmem %s3, %s214
      %s216 = smul.u32 16, %s19
      %p217 = scmp.lt.s32.totalorder %s18, 1
      %s218 = scalar_select %p217, %s18, 1
      %p219 = scmp.lt.s32.totalorder %s216, 15
      %s220 = scalar_select %p219, %s216, 15
      %s221 = smul.addr %s218, 16
      %s222 = sadd.s32 %s220, %s221
      %s223 = smul.addr %s222, 4
      %s224 = scalar_lea.vmem %s0, %s223
      %s225 = smul.u32 16, %s19
      %p226 = scmp.lt.s32.totalorder %s18, 1
      %s227 = scalar_select %p226, %s18, 1
      %s228 = smul.addr %s227, 2
      %s229 = smul.addr %s228, 4
      %s230 = scalar_lea.vmem %s1, %s229
      %p231 = scmp.lt.s32.totalorder %s18, 1
      %s232 = scalar_select %p231, %s18, 1
      %s233 = scalar_lea.vmem %s2, %s232
      %s234 = smul.u32 16, %s19
      %p235 = scmp.lt.s32.totalorder %s18, 1
      %s236 = scalar_select %p235, %s18, 1
      %p237 = scmp.lt.s32.totalorder %s234, 15
      %s238 = scalar_select %p237, %s234, 15
      %s239 = smul.addr %s236, 16
      %s240 = sadd.s32 %s238, %s239
      %s241 = smul.addr %s240, 8
      %s242 = scalar_lea.vmem %s3, %s241
      %s243 = smul.u32 16, %s19
      %v245 = vld [vmem:[%s224] sm:$0xf]
      %v246 = vld [vmem:[%s224 + $0x4] sm:$0xf]
      %v247 = vld [vmem:[%s224 + $0x8] sm:$0xf]
      %v248 = vld [vmem:[%s224 + $0xc] sm:$0xf]
      %v249 = vld [vmem:[%s224 + $0x10] sm:$0xf]
      %v250 = vld [vmem:[%s224 + $0x14] sm:$0xf]
      %v251 = vld [vmem:[%s224 + $0x18] sm:$0xf]
      %v252 = vld [vmem:[%s224 + $0x1c] sm:$0xf]
      %v253 = vld [vmem:[%s224 + $0x20] sm:$0xf]
      %v254 = vld [vmem:[%s224 + $0x24] sm:$0xf]
      %v255 = vld [vmem:[%s224 + $0x28] sm:$0xf]
      %v256 = vld [vmem:[%s224 + $0x2c] sm:$0xf]
      %v257 = vld [vmem:[%s224 + $0x30] sm:$0xf]
      %v258 = vld [vmem:[%s224 + $0x34] sm:$0xf]
      %v259 = vld [vmem:[%s224 + $0x38] sm:$0xf]
      %v260 = vld [vmem:[%s224 + $0x3c] sm:$0xf]
      %v261 = vld [vmem:[%s230] sm:$0xf]
      %v262 = vld [vmem:[%s230 + $0x4] sm:$0xf]
      %v263 = vld [vmem:[%s233] sm:$0x1]
      %v265 = vlaneseq
      %v266 = vshrl.u32 %v265, 7
      %v267 = vsub.s32 0, %v266
      %v268 = vrot.slane %v263, %v267
      %v286 = vunpack.c.l.b16 %v245
      %v287 = vunpack.c.l.b16 %v246
      %v288 = vunpack.c.l.b16 %v247
      %v289 = vunpack.c.l.b16 %v248
      %v290 = vunpack.c.l.b16 %v249
      %v291 = vunpack.c.l.b16 %v250
      %v292 = vunpack.c.l.b16 %v251
      %v293 = vunpack.c.l.b16 %v252
      %v294 = vunpack.c.l.b16 %v253
      %v295 = vunpack.c.l.b16 %v254
      %v296 = vunpack.c.l.b16 %v255
      %v297 = vunpack.c.l.b16 %v256
      %v298 = vunpack.c.l.b16 %v257
      %v299 = vunpack.c.l.b16 %v258
      %v300 = vunpack.c.l.b16 %v259
      %v301 = vunpack.c.l.b16 %v260
      %v302 = vpack.c.b16 %v287, %v286
      %v303 = vpack.c.b16 %v289, %v288
      %v304 = vpack.c.b16 %v291, %v290
      %v305 = vpack.c.b16 %v293, %v292
      %v306 = vpack.c.b16 %v295, %v294
      %v307 = vpack.c.b16 %v297, %v296
      %v308 = vpack.c.b16 %v299, %v298
      %v309 = vpack.c.b16 %v301, %v300
      %v312 = vunpack.c.l.b16 %v261
      %v313 = vunpack.c.l.b16 %v262
      %v314 = vpack.c.b16 %v313, %v312
      %vm316 = vcmask 130048
      %v318 = vsel %vm316, %v302, 0
      %v321 = vsel %vm316, %v303, 0
      %v324 = vsel %vm316, %v304, 0
      %v327 = vsel %vm316, %v305, 0
      %v330 = vsel %vm316, %v306, 0
      %v333 = vsel %vm316, %v307, 0
      %v336 = vsel %vm316, %v308, 0
      %v339 = vsel %vm316, %v309, 0
      %341 = vmatprep.subr.bf16.mxu0 0
      %342 = vmatpush1.bf16.msra.mxu0 %v314
      %343 = vmatprep.subr.bf16.mxu0 0
      %344 = vmatpush1.bf16.msra.mxu0 0
      %345 = vmatprep.subr.bf16.mxu0 0
      %346 = vmatpush1.bf16.msra.mxu0 0
      %347 = vmatprep.subr.bf16.mxu0 0
      %348 = vmatpush1.bf16.msra.mxu0 0
      %349 = vmatprep.subr.bf16.mxu0 0
      %350 = vmatpush1.bf16.msra.mxu0 0
      %351 = vmatprep.subr.bf16.mxu0 0
      %352 = vmatpush1.bf16.msra.mxu0 0
      %353 = vmatprep.subr.bf16.mxu0 0
      %354 = vmatpush1.bf16.msra.mxu0 0
      %355 = vmatprep.subr.bf16.mxu0 0
      %356 = vmatpush1.bf16.msra.mxu0 0
      %357 = vmatprep.subr.bf16.mxu0 0
      %358 = vmatpush1.bf16.msra.mxu0 0
      %359 = vmatprep.subr.bf16.mxu0 0
      %360 = vmatpush1.bf16.msra.mxu0 0
      %361 = vmatprep.subr.bf16.mxu0 0
      %362 = vmatpush1.bf16.msra.mxu0 0
      %363 = vmatprep.subr.bf16.mxu0 0
      %364 = vmatpush1.bf16.msra.mxu0 0
      %365 = vmatprep.subr.bf16.mxu0 0
      %366 = vmatpush1.bf16.msra.mxu0 0
      %367 = vmatprep.subr.bf16.mxu0 0
      %368 = vmatpush1.bf16.msra.mxu0 0
      %369 = vmatprep.subr.bf16.mxu0 0
      %370 = vmatpush1.bf16.msra.mxu0 0
      %371 = vmatprep.subr.bf16.mxu0 0
      %372 = vmatpush1.bf16.msra.mxu0 0
      %373 = vmatprep.mubr.bf16.mxu0 0
      %374 = vmatmul.mubr.bf16.gmra.mrb[0].mxu0 %v318
      %v375 = vpop.f32.mrb[0].mxu0
      %v376 = vadd.f32 %v268, %v375
      %v377 = vpop.f32.mrb[0].mxu0
      %v378 = vpop.f32.mrb[0].mxu0
      %v379 = vadd.f32 %v268, %v378
      %v380 = vpop.f32.mrb[0].mxu0
      %381 = vmatprep.mubr.bf16.mxu0 0
      %382 = vmatmul.mubr.bf16.gmra.mrb[0].mxu0 %v321
      %v383 = vpop.f32.mrb[0].mxu0
      %v384 = vadd.f32 %v268, %v383
      %v385 = vpop.f32.mrb[0].mxu0
      %v386 = vpop.f32.mrb[0].mxu0
      %v387 = vadd.f32 %v268, %v386
      %v388 = vpop.f32.mrb[0].mxu0
      %389 = vmatprep.mubr.bf16.mxu0 0
      %390 = vmatmul.mubr.bf16.gmra.mrb[0].mxu0 %v324
      %v391 = vpop.f32.mrb[0].mxu0
      %v392 = vadd.f32 %v268, %v391
      %v393 = vpop.f32.mrb[0].mxu0
      %v394 = vpop.f32.mrb[0].mxu0
      %v395 = vadd.f32 %v268, %v394
      %v396 = vpop.f32.mrb[0].mxu0
      %397 = vmatprep.mubr.bf16.mxu0 0
      %398 = vmatmul.mubr.bf16.gmra.mrb[0].mxu0 %v327
      %v399 = vpop.f32.mrb[0].mxu0
      %v400 = vadd.f32 %v268, %v399
      %v401 = vpop.f32.mrb[0].mxu0
      %v402 = vpop.f32.mrb[0].mxu0
      %v403 = vadd.f32 %v268, %v402
      %v404 = vpop.f32.mrb[0].mxu0
      %405 = vmatprep.mubr.bf16.mxu0 0
      %406 = vmatmul.mubr.bf16.gmra.mrb[0].mxu0 %v330
      %v407 = vpop.f32.mrb[0].mxu0
      %v408 = vadd.f32 %v268, %v407
      %v409 = vpop.f32.mrb[0].mxu0
      %v410 = vpop.f32.mrb[0].mxu0
      %v411 = vadd.f32 %v268, %v410
      %v412 = vpop.f32.mrb[0].mxu0
      %413 = vmatprep.mubr.bf16.mxu0 0
      %414 = vmatmul.mubr.bf16.gmra.mrb[0].mxu0 %v333
      %v415 = vpop.f32.mrb[0].mxu0
      %v416 = vadd.f32 %v268, %v415
      %v417 = vpop.f32.mrb[0].mxu0
      %v418 = vpop.f32.mrb[0].mxu0
      %v419 = vadd.f32 %v268, %v418
      %v420 = vpop.f32.mrb[0].mxu0
      %421 = vmatprep.mubr.bf16.mxu0 0
      %422 = vmatmul.mubr.bf16.gmra.mrb[0].mxu0 %v336
      %v423 = vpop.f32.mrb[0].mxu0
      %v424 = vadd.f32 %v268, %v423
      %v425 = vpop.f32.mrb[0].mxu0
      %v426 = vpop.f32.mrb[0].mxu0
      %v427 = vadd.f32 %v268, %v426
      %v428 = vpop.f32.mrb[0].mxu0
      %429 = vmatprep.mubr.bf16.mxu0 0
      %430 = vmatmul.mubr.bf16.gmra.mrb[0].mxu0 %v339
      %v431 = vpop.f32.mrb[0].mxu0
      %v432 = vadd.f32 %v268, %v431
      %v433 = vpop.f32.mrb[0].mxu0
      %v434 = vpop.f32.mrb[0].mxu0
      %v435 = vadd.f32 %v268, %v434
      %v436 = vpop.f32.mrb[0].mxu0
      %437 = vdwg.mxu0
      %vm438 = vcmask 138240
      %439 = vst.msk [vmem:[%s242] sm:$0xff] %vm438, %v376
      %440 = vst.msk [vmem:[%s242 + $0x8] sm:$0xff] %vm438, %v379
      %441 = vst.msk [vmem:[%s242 + $0x10] sm:$0xff] %vm438, %v384
      %442 = vst.msk [vmem:[%s242 + $0x18] sm:$0xff] %vm438, %v387
      %443 = vst.msk [vmem:[%s242 + $0x20] sm:$0xff] %vm438, %v392
      %444 = vst.msk [vmem:[%s242 + $0x28] sm:$0xff] %vm438, %v395
      %445 = vst.msk [vmem:[%s242 + $0x30] sm:$0xff] %vm438, %v400
      %446 = vst.msk [vmem:[%s242 + $0x38] sm:$0xff] %vm438, %v403
      %447 = vst.msk [vmem:[%s242 + $0x40] sm:$0xff] %vm438, %v408
      %448 = vst.msk [vmem:[%s242 + $0x48] sm:$0xff] %vm438, %v411
      %449 = vst.msk [vmem:[%s242 + $0x50] sm:$0xff] %vm438, %v416
      %450 = vst.msk [vmem:[%s242 + $0x58] sm:$0xff] %vm438, %v419
      %451 = vst.msk [vmem:[%s242 + $0x60] sm:$0xff] %vm438, %v424
      %452 = vst.msk [vmem:[%s242 + $0x68] sm:$0xff] %vm438, %v427
      %453 = vst.msk [vmem:[%s242 + $0x70] sm:$0xff] %vm438, %v432
      %454 = vst.msk [vmem:[%s242 + $0x78] sm:$0xff] %vm438, %v435
      %s455 = smul.u32 16, %s19
      %p456 = scmp.lt.s32.totalorder %s18, 1
      %s457 = scalar_select %p456, %s18, 1
      %p458 = scmp.lt.s32.totalorder %s455, 15
      %s459 = scalar_select %p458, %s455, 15
      %s460 = smul.addr %s457, 16
      %s461 = sadd.s32 %s459, %s460
      %s462 = smul.addr %s461, 8
      %s463 = scalar_lea.vmem %s3, %s462
      // Predicated region
      $region33: #{smtl_forward.30} parent=31 // pred_check
        %p464 = pneg %p126
      $region34: #{smtl_forward.30} parent=31 // pred_check_branch
        %466 = sbr.rel (%p464) target = $region36
      $region35: #{smtl_forward.30} parent=31 // pred_region
        %s467 = smul.u32 16, %s19
      $region36: #{smtl_forward.30} parent=31 // pred_fallthru
        _
    $region32: #{smtl_forward.30} parent=5 // pred_fallthru
      _
    %p468 = scmp.le.s32.totalorder 2, %s9
    // Predicated region
    $region37: #{smtl_forward.30} parent=5 // pred_check
      %p469 = pneg %p468
    $region38: #{smtl_forward.30} parent=5 // pred_check_branch
      %471 = sbr.rel (%p469) target = $region40
    $region39: #{smtl_forward.30} parent=5 // pred_region
      %s472 = ssub.s32 %s9, 2
      // Predicated region
      $region41: #{smtl_forward.30} parent=39 // pred_check
        %p473 = pneg %p132
      $region42: #{smtl_forward.30} parent=39 // pred_check_branch
        %475 = sbr.rel (%p473) target = $region44
      $region43: #{smtl_forward.30} parent=39 // pred_region
        %s476 = smul.u32 16, %s21
        %p477 = scmp.lt.s32.totalorder %s20, 1
        %s478 = scalar_select %p477, %s20, 1
        %p479 = scmp.lt.s32.totalorder %s476, 15
        %s480 = scalar_select %p479, %s476, 15
        %s481 = smul.addr %s478, 16
        %s482 = sadd.s32 %s480, %s481
        %s483 = smul.addr %s482, 8
        %s484 = scalar_lea.vmem %s3, %s483
      $region44: #{smtl_forward.30} parent=39 // pred_fallthru
        _
    $region40: #{smtl_forward.30} parent=5 // pred_fallthru
      _
  $region6: #{smtl_forward.30} parent=0 // loop_footer
    %s13 = sadd.s32 1, %s9
  $region7: #{smtl_forward.30} parent=0 // loop_footer_branch
    %8 = sbr.rel target = $region3
  $region8: #{smtl_forward.30} parent=0 // loop_exit
    _

// kernel: squeeze.0
$region0: #{squeeze.0}
  %s0 = inlined_call_operand.vmem [shape: f32[1,2,8,8,1], index: 0, kind: input, shape index: {}]
  %s1 = inlined_call_operand.vmem [shape: f32[128,1], index: 1, kind: output, shape index: {}]
  %v2 = vld [vmem:[%s0] sm:$0xff]
  %vm3 = vcmask 7168
  %4 = vst.msk [vmem:[%s1] ss:$8 sm:$0xf] %vm3, %v2
  %5 = vst.msk [vmem:[%s1] ss:$8 sm:$0xf0] %vm3, %v2
  %s6 = scalar_lea.vmem %s0, 8
  %v7 = vld [vmem:[%s6] sm:$0xff]
  %vm8 = vcmask 7168
  %s9 = scalar_lea.vmem %s1, 64
  %10 = vst.msk [vmem:[%s9] ss:$8 sm:$0xf] %vm8, %v7
  %s11 = scalar_lea.vmem %s1, 64
  %12 = vst.msk [vmem:[%s11] ss:$8 sm:$0xf0] %vm8, %v7
  %v13 = vld [vmem:[%s0] sm:$0xff]
  %14 = vrot.lane.b32.xlu0 %v13, 127
  %v15 = vpop.permute.xlu0 %14
  %vm16 = vcmask 7168
  %s17 = scalar_lea.vmem %s1, 1
  %18 = vst.msk [vmem:[%s17] ss:$8 sm:$0xf] %vm16, %v15
  %s19 = scalar_lea.vmem %s1, 1
  %20 = vst.msk [vmem:[%s19] ss:$8 sm:$0xf0] %vm16, %v15
  %s21 = scalar_lea.vmem %s0, 8
  %v22 = vld [vmem:[%s21] sm:$0xff]
  %23 = vrot.lane.b32.xlu0 %v22, 127
  %v24 = vpop.permute.xlu0 %23
  %vm25 = vcmask 7168
  %s26 = scalar_lea.vmem %s1, 65
  %27 = vst.msk [vmem:[%s26] ss:$8 sm:$0xf] %vm25, %v24
  %s28 = scalar_lea.vmem %s1, 65
  %29 = vst.msk [vmem:[%s28] ss:$8 sm:$0xf0] %vm25, %v24
  %v30 = vld [vmem:[%s0] sm:$0xff]
  %31 = vrot.lane.b32.xlu0 %v30, 126
  %v32 = vpop.permute.xlu0 %31
  %vm33 = vcmask 7168
  %s34 = scalar_lea.vmem %s1, 2
  %35 = vst.msk [vmem:[%s34] ss:$8 sm:$0xf] %vm33, %v32
  %s36 = scalar_lea.vmem %s1, 2
  %37 = vst.msk [vmem:[%s36] ss:$8 sm:$0xf0] %vm33, %v32
  %s38 = scalar_lea.vmem %s0, 8
  %v39 = vld [vmem:[%s38] sm:$0xff]
  %40 = vrot.lane.b32.xlu0 %v39, 126
  %v41 = vpop.permute.xlu0 %40
  %vm42 = vcmask 7168
  %s43 = scalar_lea.vmem %s1, 66
  %44 = vst.msk [vmem:[%s43] ss:$8 sm:$0xf] %vm42, %v41
  %s45 = scalar_lea.vmem %s1, 66
  %46 = vst.msk [vmem:[%s45] ss:$8 sm:$0xf0] %vm42, %v41
  %v47 = vld [vmem:[%s0] sm:$0xff]
  %48 = vrot.lane.b32.xlu0 %v47, 125
  %v49 = vpop.permute.xlu0 %48
  %vm50 = vcmask 7168
  %s51 = scalar_lea.vmem %s1, 3
  %52 = vst.msk [vmem:[%s51] ss:$8 sm:$0xf] %vm50, %v49
  %s53 = scalar_lea.vmem %s1, 3
  %54 = vst.msk [vmem:[%s53] ss:$8 sm:$0xf0] %vm50, %v49
  %s55 = scalar_lea.vmem %s0, 8
  %v56 = vld [vmem:[%s55] sm:$0xff]
  %57 = vrot.lane.b32.xlu0 %v56, 125
  %v58 = vpop.permute.xlu0 %57
  %vm59 = vcmask 7168
  %s60 = scalar_lea.vmem %s1, 67
  %61 = vst.msk [vmem:[%s60] ss:$8 sm:$0xf] %vm59, %v58
  %s62 = scalar_lea.vmem %s1, 67
  %63 = vst.msk [vmem:[%s62] ss:$8 sm:$0xf0] %vm59, %v58
  %v64 = vld [vmem:[%s0] sm:$0xff]
  %65 = vrot.lane.b32.xlu0 %v64, 124
  %v66 = vpop.permute.xlu0 %65
  %vm67 = vcmask 7168
  %s68 = scalar_lea.vmem %s1, 4
  %69 = vst.msk [vmem:[%s68] ss:$8 sm:$0xf] %vm67, %v66
  %s70 = scalar_lea.vmem %s1, 4
  %71 = vst.msk [vmem:[%s70] ss:$8 sm:$0xf0] %vm67, %v66
  %s72 = scalar_lea.vmem %s0, 8
  %v73 = vld [vmem:[%s72] sm:$0xff]
  %74 = vrot.lane.b32.xlu0 %v73, 124
  %v75 = vpop.permute.xlu0 %74
  %vm76 = vcmask 7168
  %s77 = scalar_lea.vmem %s1, 68
  %78 = vst.msk [vmem:[%s77] ss:$8 sm:$0xf] %vm76, %v75
  %s79 = scalar_lea.vmem %s1, 68
  %80 = vst.msk [vmem:[%s79] ss:$8 sm:$0xf0] %vm76, %v75
  %v81 = vld [vmem:[%s0] sm:$0xff]
  %82 = vrot.lane.b32.xlu0 %v81, 123
  %v83 = vpop.permute.xlu0 %82
  %vm84 = vcmask 7168
  %s85 = scalar_lea.vmem %s1, 5
  %86 = vst.msk [vmem:[%s85] ss:$8 sm:$0xf] %vm84, %v83
  %s87 = scalar_lea.vmem %s1, 5
  %88 = vst.msk [vmem:[%s87] ss:$8 sm:$0xf0] %vm84, %v83
  %s89 = scalar_lea.vmem %s0, 8
  %v90 = vld [vmem:[%s89] sm:$0xff]
  %91 = vrot.lane.b32.xlu0 %v90, 123
  %v92 = vpop.permute.xlu0 %91
  %vm93 = vcmask 7168
  %s94 = scalar_lea.vmem %s1, 69
  %95 = vst.msk [vmem:[%s94] ss:$8 sm:$0xf] %vm93, %v92
  %s96 = scalar_lea.vmem %s1, 69
  %97 = vst.msk [vmem:[%s96] ss:$8 sm:$0xf0] %vm93, %v92
  %v98 = vld [vmem:[%s0] sm:$0xff]
  %99 = vrot.lane.b32.xlu0 %v98, 122
  %v100 = vpop.permute.xlu0 %99
  %vm101 = vcmask 7168
  %s102 = scalar_lea.vmem %s1, 6
  %103 = vst.msk [vmem:[%s102] ss:$8 sm:$0xf] %vm101, %v100
  %s104 = scalar_lea.vmem %s1, 6
  %105 = vst.msk [vmem:[%s104] ss:$8 sm:$0xf0] %vm101, %v100
  %s106 = scalar_lea.vmem %s0, 8
  %v107 = vld [vmem:[%s106] sm:$0xff]
  %108 = vrot.lane.b32.xlu0 %v107, 122
  %v109 = vpop.permute.xlu0 %108
  %vm110 = vcmask 7168
  %s111 = scalar_lea.vmem %s1, 70
  %112 = vst.msk [vmem:[%s111] ss:$8 sm:$0xf] %vm110, %v109
  %s113 = scalar_lea.vmem %s1, 70
  %114 = vst.msk [vmem:[%s113] ss:$8 sm:$0xf0] %vm110, %v109
  %v115 = vld [vmem:[%s0] sm:$0xff]
  %116 = vrot.lane.b32.xlu0 %v115, 121
  %v117 = vpop.permute.xlu0 %116
  %vm118 = vcmask 7168
  %s119 = scalar_lea.vmem %s1, 7
  %120 = vst.msk [vmem:[%s119] ss:$8 sm:$0xf] %vm118, %v117
  %s121 = scalar_lea.vmem %s1, 7
  %122 = vst.msk [vmem:[%s121] ss:$8 sm:$0xf0] %vm118, %v117
  %s123 = scalar_lea.vmem %s0, 8
  %v124 = vld [vmem:[%s123] sm:$0xff]
  %125 = vrot.lane.b32.xlu0 %v124, 121
  %v126 = vpop.permute.xlu0 %125
  %vm127 = vcmask 7168
  %s128 = scalar_lea.vmem %s1, 71
  %129 = vst.msk [vmem:[%s128] ss:$8 sm:$0xf] %vm127, %v126
  %s130 = scalar_lea.vmem %s1, 71
  %131 = vst.msk [vmem:[%s130] ss:$8 sm:$0xf0] %vm127, %v126

// kernel: smtl_forward.32
$region0: #{smtl_forward.32}
  #allocation0 [shape = 'u32[]', space=smem, size = 0x4, offset = 0x4, fixed_abs, tag = 'smem constant byte address 0x4 - core index']
  #allocation1 [shape = 'u32[144,128]{1,0:T(1,128)}', space=vmem, size = 0x12000, scoped, tag = 'internal scratch']
  %s0 = inlined_call_operand.vmem [shape: bf16[2,128,16], index: 0, kind: input, shape index: {}]
  %s1 = inlined_call_operand.vmem [shape: bf16[2,16,1], index: 1, kind: input, shape index: {}]
  %s2 = inlined_call_operand.vmem [shape: f32[2,1,1], index: 2, kind: input, shape index: {}]
  %s3 = inlined_call_operand.vmem [shape: f32[2,128,1], index: 3, kind: output, shape index: {}]
  %s4 = sld [smem:[#allocation0]]
  $region45: #{smtl_forward.32} parent=0
    _
  %s6 = ssub.s32 1, %s4
  %s7 = scalar_select 0, %s6, %s4
  loop: start=0, step=1, limit=4
  $region2: #{smtl_forward.32} parent=0 // loop_pre_header
    _
  $region3: #{smtl_forward.32} parent=0 // loop_header
    %s9 = sphi 0, %s13
    %p10 = scmp.ge.s32.totalorder %s9, 4
    %s16 = sphi 0, %s28
    %s17 = sphi 0, %s24
    %s18 = sphi 0, %s16
    %s19 = sphi 0, %s17
    %s20 = sphi 0, %s18
    %s21 = sphi 0, %s19
    %s33 = sphi 0, %s35
    %s36 = sphi 0, %s33
    %s37 = sphi 0, %s36
    %s53 = sphi 0, %s37
    %s59 = sphi 0, %s61
    %s62 = sphi 0, %s59
    %s63 = sphi 0, %s62
    %s79 = sphi 0, %s63
    %s85 = sphi 0, %s87
    %s88 = sphi 0, %s85
    %s89 = sphi 0, %s88
    %s105 = sphi 0, %s89
    %s113 = sphi 0, %s115
    %s116 = sphi 0, %s113
    %s117 = sphi 0, %s116
    %s133 = sphi 0, %s117
  $region4: #{smtl_forward.32} parent=0 // loop_header_branch
    %12 = sbr.rel (%p10) target = $region8
  $region5: #{smtl_forward.32} parent=0 // loop_body
    %s14 = ssub.s32 %s9, 1
    %s15 = ssub.s32 %s9, 2
    %s22 = sadd.s32 1, %s17
    %p23 = scmp.ge.s32.totalorder %s22, 1
    %s24 = scalar_select %p23, 0, %s22
    %s25 = sadd.s32 1, %s16
    %s26 = scalar_select %p23, %s25, %s16
    %p27 = scmp.ge.s32.totalorder %s26, 2
    %s28 = scalar_select %p27, 0, %s26
    %s29 = ssub.s32 %s16, %s28
    %s30 = ssub.s32 %s17, %s24
    %s31 = sor.u32 %s29, %s30
    %p32 = scmp.eq.s32.totalorder %s31, 0
    %s34 = sadd.s32 %s33, 1
    %s35 = scalar_select %p32, %s33, %s34
    %p38 = pneg %p32
    %p39 = scmp.eq.s32.totalorder %s9, 1
    %p40 = por %p38, %p39
    %p41 = scmp.ne.s32.totalorder %s33, %s36
    %p42 = scmp.eq.s32.totalorder %s9, 0
    %p43 = por %p41, %p42
    %p44 = scmp.ne.s32.totalorder %s33, %s36
    %p45 = scmp.eq.s32.totalorder %s14, 1
    %p46 = por %p44, %p45
    %p47 = scmp.ne.s32.totalorder %s36, %s37
    %p48 = scmp.eq.s32.totalorder %s14, 0
    %p49 = por %p47, %p48
    %p50 = scmp.ne.s32.totalorder %s36, %s37
    %p51 = scmp.eq.s32.totalorder %s15, 1
    %p52 = por %p50, %p51
    %p54 = scmp.ne.s32.totalorder %s37, %s53
    %p55 = scmp.eq.s32.totalorder %s15, 0
    %p56 = por %p54, %p55
    %s57 = ssub.s32 %s16, %s28
    %p58 = scmp.eq.s32.totalorder %s57, 0
    %s60 = sadd.s32 %s59, 1
    %s61 = scalar_select %p58, %s59, %s60
    %p64 = pneg %p58
    %p65 = scmp.eq.s32.totalorder %s9, 1
    %p66 = por %p64, %p65
    %p67 = scmp.ne.s32.totalorder %s59, %s62
    %p68 = scmp.eq.s32.totalorder %s9, 0
    %p69 = por %p67, %p68
    %p70 = scmp.ne.s32.totalorder %s59, %s62
    %p71 = scmp.eq.s32.totalorder %s14, 1
    %p72 = por %p70, %p71
    %p73 = scmp.ne.s32.totalorder %s62, %s63
    %p74 = scmp.eq.s32.totalorder %s14, 0
    %p75 = por %p73, %p74
    %p76 = scmp.ne.s32.totalorder %s62, %s63
    %p77 = scmp.eq.s32.totalorder %s15, 1
    %p78 = por %p76, %p77
    %p80 = scmp.ne.s32.totalorder %s63, %s79
    %p81 = scmp.eq.s32.totalorder %s15, 0
    %p82 = por %p80, %p81
    %s83 = ssub.s32 %s16, %s28
    %p84 = scmp.eq.s32.totalorder %s83, 0
    %s86 = sadd.s32 %s85, 1
    %s87 = scalar_select %p84, %s85, %s86
    %p90 = pneg %p84
    %p91 = scmp.eq.s32.totalorder %s9, 1
    %p92 = por %p90, %p91
    %p93 = scmp.ne.s32.totalorder %s85, %s88
    %p94 = scmp.eq.s32.totalorder %s9, 0
    %p95 = por %p93, %p94
    %p96 = scmp.ne.s32.totalorder %s85, %s88
    %p97 = scmp.eq.s32.totalorder %s14, 1
    %p98 = por %p96, %p97
    %p99 = scmp.ne.s32.totalorder %s88, %s89
    %p100 = scmp.eq.s32.totalorder %s14, 0
    %p101 = por %p99, %p100
    %p102 = scmp.ne.s32.totalorder %s88, %s89
    %p103 = scmp.eq.s32.totalorder %s15, 1
    %p104 = por %p102, %p103
    %p106 = scmp.ne.s32.totalorder %s89, %s105
    %p107 = scmp.eq.s32.totalorder %s15, 0
    %p108 = por %p106, %p107
    %s109 = ssub.s32 %s16, %s28
    %s110 = ssub.s32 %s17, %s24
    %s111 = sor.u32 %s109, %s110
    %p112 = scmp.eq.s32.totalorder %s111, 0
    %s114 = sadd.s32 %s113, 1
    %s115 = scalar_select %p112, %s113, %s114
    %p118 = pneg %p112
    %p119 = scmp.eq.s32.totalorder %s9, 1
    %p120 = por %p118, %p119
    %p121 = scmp.ne.s32.totalorder %s113, %s116
    %p122 = scmp.eq.s32.totalorder %s9, 0
    %p123 = por %p121, %p122
    %p124 = scmp.ne.s32.totalorder %s113, %s116
    %p125 = scmp.eq.s32.totalorder %s14, 1
    %p126 = por %p124, %p125
    %p127 = scmp.ne.s32.totalorder %s116, %s117
    %p128 = scmp.eq.s32.totalorder %s14, 0
    %p129 = por %p127, %p128
    %p130 = scmp.ne.s32.totalorder %s116, %s117
    %p131 = scmp.eq.s32.totalorder %s15, 1
    %p132 = por %p130, %p131
    %p134 = scmp.ne.s32.totalorder %s117, %s133
    %p135 = scmp.eq.s32.totalorder %s15, 0
    %p136 = por %p134, %p135
    %p137 = scmp.le.s32.totalorder 1, %s9
    %p138 = scmp.lt.s32.totalorder %s9, 3
    %p139 = pnand %p137, %p138
    %p140 = pneg %p139
    // Predicated region
    $region9: #{smtl_forward.32} parent=5 // pred_check
      _
    $region10: #{smtl_forward.32} parent=5 // pred_check_branch
      %142 = sbr.rel (%p139) target = $region12
    $region11: #{smtl_forward.32} parent=5 // pred_region
      %s143 = ssub.s32 %s9, 1
    $region12: #{smtl_forward.32} parent=5 // pred_fallthru
      _
    %p144 = scmp.lt.s32.totalorder %s9, 2
    // Predicated region
    $region13: #{smtl_forward.32} parent=5 // pred_check
      %p145 = pneg %p144
    $region14: #{smtl_forward.32} parent=5 // pred_check_branch
      %147 = sbr.rel (%p145) target = $region16
    $region15: #{smtl_forward.32} parent=5 // pred_region
      // Predicated region
      $region17: #{smtl_forward.32} parent=15 // pred_check
        %p148 = pneg %p43
      $region18: #{smtl_forward.32} parent=15 // pred_check_branch
        %150 = sbr.rel (%p148) target = $region20
      $region19: #{smtl_forward.32} parent=15 // pred_region
        %s151 = smul.u32 16, %s17
        %p152 = scmp.lt.s32.totalorder %s16, 1
        %s153 = scalar_select %p152, %s16, 1
        %p154 = scmp.lt.s32.totalorder %s151, 15
        %s155 = scalar_select %p154, %s151, 15
        %s156 = smul.addr %s153, 16
        %s157 = sadd.s32 %s155, %s156
        %s158 = smul.addr %s157, 4
        %s159 = scalar_lea.vmem %s0, %s158
        %s160 = smul.u32 16, %s17
      $region20: #{smtl_forward.32} parent=15 // pred_fallthru
        _
      // Predicated region
      $region21: #{smtl_forward.32} parent=15 // pred_check
        %p161 = pneg %p69
      $region22: #{smtl_forward.32} parent=15 // pred_check_branch
        %163 = sbr.rel (%p161) target = $region24
      $region23: #{smtl_forward.32} parent=15 // pred_region
        %p164 = scmp.lt.s32.totalorder %s16, 1
        %s165 = scalar_select %p164, %s16, 1
        %s166 = smul.addr %s165, 2
        %s167 = smul.addr %s166, 4
        %s168 = scalar_lea.vmem %s1, %s167
      $region24: #{smtl_forward.32} parent=15 // pred_fallthru
        _
      // Predicated region
      $region25: #{smtl_forward.32} parent=15 // pred_check
        %p169 = pneg %p95
      $region26: #{smtl_forward.32} parent=15 // pred_check_branch
        %171 = sbr.rel (%p169) target = $region28
      $region27: #{smtl_forward.32} parent=15 // pred_region
        %p172 = scmp.lt.s32.totalorder %s16, 1
        %s173 = scalar_select %p172, %s16, 1
        %s174 = scalar_lea.vmem %s2, %s173
      $region28: #{smtl_forward.32} parent=15 // pred_fallthru
        _
    $region16: #{smtl_forward.32} parent=5 // pred_fallthru
      _
    %p175 = scmp.le.s32.totalorder 1, %s9
    %p176 = scmp.lt.s32.totalorder %s9, 3
    %p177 = pnand %p175, %p176
    %p178 = pneg %p177
    // Predicated region
    $region29: #{smtl_forward.32} parent=5 // pred_check
      _
    $region30: #{smtl_forward.32} parent=5 // pred_check_branch
      %180 = sbr.rel (%p177) target = $region32
    $region31: #{smtl_forward.32} parent=5 // pred_region
      %s181 = ssub.s32 %s9, 1
      %s182 = smul.u32 16, %s19
      %p183 = scmp.lt.s32.totalorder %s18, 1
      %s184 = scalar_select %p183, %s18, 1
      %p185 = scmp.lt.s32.totalorder %s182, 15
      %s186 = scalar_select %p185, %s182, 15
      %s187 = smul.addr %s184, 16
      %s188 = sadd.s32 %s186, %s187
      %s189 = smul.addr %s188, 4
      %s190 = scalar_lea.vmem %s0, %s189
      %p191 = pneg %p49
      %p192 = pneg %p46
      %p193 = scmp.lt.s32.totalorder %s18, 1
      %s194 = scalar_select %p193, %s18, 1
      %s195 = smul.addr %s194, 2
      %s196 = smul.addr %s195, 4
      %s197 = scalar_lea.vmem %s1, %s196
      %p198 = pneg %p75
      %p199 = pneg %p72
      %p200 = scmp.lt.s32.totalorder %s18, 1
      %s201 = scalar_select %p200, %s18, 1
      %s202 = scalar_lea.vmem %s2, %s201
      %p203 = pneg %p101
      %p204 = pneg %p98
      %p205 = pneg %p129
      %p206 = pneg %p126
      %s207 = smul.u32 16, %s19
      %p208 = scmp.lt.s32.totalorder %s18, 1
      %s209 = scalar_select %p208, %s18, 1
      %p210 = scmp.lt.s32.totalorder %s207, 15
      %s211 = scalar_select %p210, %s207, 15
      %s212 = smul.addr %s209, 16
      %s213 = sadd.s32 %s211, %s212
      %s214 = smul.addr %s213, 8
      %s215 = scalar_lea.vmem %s3, %s214
      %s216 = smul.u32 16, %s19
      %p217 = scmp.lt.s32.totalorder %s18, 1
      %s218 = scalar_select %p217, %s18, 1
      %p219 = scmp.lt.s32.totalorder %s216, 15
      %s220 = scalar_select %p219, %s216, 15
      %s221 = smul.addr %s218, 16
      %s222 = sadd.s32 %s220, %s221
      %s223 = smul.addr %s222, 4
      %s224 = scalar_lea.vmem %s0, %s223
      %s225 = smul.u32 16, %s19
      %p226 = scmp.lt.s32.totalorder %s18, 1
      %s227 = scalar_select %p226, %s18, 1
      %s228 = smul.addr %s227, 2
      %s229 = smul.addr %s228, 4
      %s230 = scalar_lea.vmem %s1, %s229
      %p231 = scmp.lt.s32.totalorder %s18, 1
      %s232 = scalar_select %p231, %s18, 1
      %s233 = scalar_lea.vmem %s2, %s232
      %s234 = smul.u32 16, %s19
      %p235 = scmp.lt.s32.totalorder %s18, 1
      %s236 = scalar_select %p235, %s18, 1
      %p237 = scmp.lt.s32.totalorder %s234, 15
      %s238 = scalar_select %p237, %s234, 15
      %s239 = smul.addr %s236, 16
      %s240 = sadd.s32 %s238, %s239
      %s241 = smul.addr %s240, 8
      %s242 = scalar_lea.vmem %s3, %s241
      %s243 = smul.u32 16, %s19
      %v245 = vld [vmem:[%s224] sm:$0xf]
      %v246 = vld [vmem:[%s224 + $0x4] sm:$0xf]
      %v247 = vld [vmem:[%s224 + $0x8] sm:$0xf]
      %v248 = vld [vmem:[%s224 + $0xc] sm:$0xf]
      %v249 = vld [vmem:[%s224 + $0x10] sm:$0xf]
      %v250 = vld [vmem:[%s224 + $0x14] sm:$0xf]
      %v251 = vld [vmem:[%s224 + $0x18] sm:$0xf]
      %v252 = vld [vmem:[%s224 + $0x1c] sm:$0xf]
      %v253 = vld [vmem:[%s224 + $0x20] sm:$0xf]
      %v254 = vld [vmem:[%s224 + $0x24] sm:$0xf]
      %v255 = vld [vmem:[%s224 + $0x28] sm:$0xf]
      %v256 = vld [vmem:[%s224 + $0x2c] sm:$0xf]
      %v257 = vld [vmem:[%s224 + $0x30] sm:$0xf]
      %v258 = vld [vmem:[%s224 + $0x34] sm:$0xf]
      %v259 = vld [vmem:[%s224 + $0x38] sm:$0xf]
      %v260 = vld [vmem:[%s224 + $0x3c] sm:$0xf]
      %v261 = vld [vmem:[%s230] sm:$0xf]
      %v262 = vld [vmem:[%s230 + $0x4] sm:$0xf]
      %v263 = vld [vmem:[%s233] sm:$0x1]
      %v265 = vlaneseq
      %v266 = vshrl.u32 %v265, 7
      %v267 = vsub.s32 0, %v266
      %v268 = vrot.slane %v263, %v267
      %v286 = vunpack.c.l.b16 %v245
      %v287 = vunpack.c.l.b16 %v246
      %v288 = vunpack.c.l.b16 %v247
      %v289 = vunpack.c.l.b16 %v248
      %v290 = vunpack.c.l.b16 %v249
      %v291 = vunpack.c.l.b16 %v250
      %v292 = vunpack.c.l.b16 %v251
      %v293 = vunpack.c.l.b16 %v252
      %v294 = vunpack.c.l.b16 %v253
      %v295 = vunpack.c.l.b16 %v254
      %v296 = vunpack.c.l.b16 %v255
      %v297 = vunpack.c.l.b16 %v256
      %v298 = vunpack.c.l.b16 %v257
      %v299 = vunpack.c.l.b16 %v258
      %v300 = vunpack.c.l.b16 %v259
      %v301 = vunpack.c.l.b16 %v260
      %v302 = vpack.c.b16 %v287, %v286
      %v303 = vpack.c.b16 %v289, %v288
      %v304 = vpack.c.b16 %v291, %v290
      %v305 = vpack.c.b16 %v293, %v292
      %v306 = vpack.c.b16 %v295, %v294
      %v307 = vpack.c.b16 %v297, %v296
      %v308 = vpack.c.b16 %v299, %v298
      %v309 = vpack.c.b16 %v301, %v300
      %v312 = vunpack.c.l.b16 %v261
      %v313 = vunpack.c.l.b16 %v262
      %v314 = vpack.c.b16 %v313, %v312
      %vm316 = vcmask 130048
      %v318 = vsel %vm316, %v302, 0
      %v321 = vsel %vm316, %v303, 0
      %v324 = vsel %vm316, %v304, 0
      %v327 = vsel %vm316, %v305, 0
      %v330 = vsel %vm316, %v306, 0
      %v333 = vsel %vm316, %v307, 0
      %v336 = vsel %vm316, %v308, 0
      %v339 = vsel %vm316, %v309, 0
      %341 = vmatprep.subr.bf16.mxu0 0
      %342 = vmatpush1.bf16.msra.mxu0 %v314
      %343 = vmatprep.subr.bf16.mxu0 0
      %344 = vmatpush1.bf16.msra.mxu0 0
      %345 = vmatprep.subr.bf16.mxu0 0
      %346 = vmatpush1.bf16.msra.mxu0 0
      %347 = vmatprep.subr.bf16.mxu0 0
      %348 = vmatpush1.bf16.msra.mxu0 0
      %349 = vmatprep.subr.bf16.mxu0 0
      %350 = vmatpush1.bf16.msra.mxu0 0
      %351 = vmatprep.subr.bf16.mxu0 0
      %352 = vmatpush1.bf16.msra.mxu0 0
      %353 = vmatprep.subr.bf16.mxu0 0
      %354 = vmatpush1.bf16.msra.mxu0 0
      %355 = vmatprep.subr.bf16.mxu0 0
      %356 = vmatpush1.bf16.msra.mxu0 0
      %357 = vmatprep.subr.bf16.mxu0 0
      %358 = vmatpush1.bf16.msra.mxu0 0
      %359 = vmatprep.subr.bf16.mxu0 0
      %360 = vmatpush1.bf16.msra.mxu0 0
      %361 = vmatprep.subr.bf16.mxu0 0
      %362 = vmatpush1.bf16.msra.mxu0 0
      %363 = vmatprep.subr.bf16.mxu0 0
      %364 = vmatpush1.bf16.msra.mxu0 0
      %365 = vmatprep.subr.bf16.mxu0 0
      %366 = vmatpush1.bf16.msra.mxu0 0
      %367 = vmatprep.subr.bf16.mxu0 0
      %368 = vmatpush1.bf16.msra.mxu0 0
      %369 = vmatprep.subr.bf16.mxu0 0
      %370 = vmatpush1.bf16.msra.mxu0 0
      %371 = vmatprep.subr.bf16.mxu0 0
      %372 = vmatpush1.bf16.msra.mxu0 0
      %373 = vmatprep.mubr.bf16.mxu0 0
      %374 = vmatmul.mubr.bf16.gmra.mrb[0].mxu0 %v318
      %v375 = vpop.f32.mrb[0].mxu0
      %v376 = vadd.f32 %v268, %v375
      %v377 = vpop.f32.mrb[0].mxu0
      %v378 = vpop.f32.mrb[0].mxu0
      %v379 = vadd.f32 %v268, %v378
      %v380 = vpop.f32.mrb[0].mxu0
      %381 = vmatprep.mubr.bf16.mxu0 0
      %382 = vmatmul.mubr.bf16.gmra.mrb[0].mxu0 %v321
      %v383 = vpop.f32.mrb[0].mxu0
      %v384 = vadd.f32 %v268, %v383
      %v385 = vpop.f32.mrb[0].mxu0
      %v386 = vpop.f32.mrb[0].mxu0
      %v387 = vadd.f32 %v268, %v386
      %v388 = vpop.f32.mrb[0].mxu0
      %389 = vmatprep.mubr.bf16.mxu0 0
      %390 = vmatmul.mubr.bf16.gmra.mrb[0].mxu0 %v324
      %v391 = vpop.f32.mrb[0].mxu0
      %v392 = vadd.f32 %v268, %v391
      %v393 = vpop.f32.mrb[0].mxu0
      %v394 = vpop.f32.mrb[0].mxu0
      %v395 = vadd.f32 %v268, %v394
      %v396 = vpop.f32.mrb[0].mxu0
      %397 = vmatprep.mubr.bf16.mxu0 0
      %398 = vmatmul.mubr.bf16.gmra.mrb[0].mxu0 %v327
      %v399 = vpop.f32.mrb[0].mxu0
      %v400 = vadd.f32 %v268, %v399
      %v401 = vpop.f32.mrb[0].mxu0
      %v402 = vpop.f32.mrb[0].mxu0
      %v403 = vadd.f32 %v268, %v402
      %v404 = vpop.f32.mrb[0].mxu0
      %405 = vmatprep.mubr.bf16.mxu0 0
      %406 = vmatmul.mubr.bf16.gmra.mrb[0].mxu0 %v330
      %v407 = vpop.f32.mrb[0].mxu0
      %v408 = vadd.f32 %v268, %v407
      %v409 = vpop.f32.mrb[0].mxu0
      %v410 = vpop.f32.mrb[0].mxu0
      %v411 = vadd.f32 %v268, %v410
      %v412 = vpop.f32.mrb[0].mxu0
      %413 = vmatprep.mubr.bf16.mxu0 0
      %414 = vmatmul.mubr.bf16.gmra.mrb[0].mxu0 %v333
      %v415 = vpop.f32.mrb[0].mxu0
      %v416 = vadd.f32 %v268, %v415
      %v417 = vpop.f32.mrb[0].mxu0
      %v418 = vpop.f32.mrb[0].mxu0
      %v419 = vadd.f32 %v268, %v418
      %v420 = vpop.f32.mrb[0].mxu0
      %421 = vmatprep.mubr.bf16.mxu0 0
      %422 = vmatmul.mubr.bf16.gmra.mrb[0].mxu0 %v336
      %v423 = vpop.f32.mrb[0].mxu0
      %v424 = vadd.f32 %v268, %v423
      %v425 = vpop.f32.mrb[0].mxu0
      %v426 = vpop.f32.mrb[0].mxu0
      %v427 = vadd.f32 %v268, %v426
      %v428 = vpop.f32.mrb[0].mxu0
      %429 = vmatprep.mubr.bf16.mxu0 0
      %430 = vmatmul.mubr.bf16.gmra.mrb[0].mxu0 %v339
      %v431 = vpop.f32.mrb[0].mxu0
      %v432 = vadd.f32 %v268, %v431
      %v433 = vpop.f32.mrb[0].mxu0
      %v434 = vpop.f32.mrb[0].mxu0
      %v435 = vadd.f32 %v268, %v434
      %v436 = vpop.f32.mrb[0].mxu0
      %437 = vdwg.mxu0
      %vm438 = vcmask 7168
      %439 = vst.msk [vmem:[%s242] sm:$0xff] %vm438, %v376
      %440 = vst.msk [vmem:[%s242 + $0x8] sm:$0xff] %vm438, %v379
      %441 = vst.msk [vmem:[%s242 + $0x10] sm:$0xff] %vm438, %v384
      %442 = vst.msk [vmem:[%s242 + $0x18] sm:$0xff] %vm438, %v387
      %443 = vst.msk [vmem:[%s242 + $0x20] sm:$0xff] %vm438, %v392
      %444 = vst.msk [vmem:[%s242 + $0x28] sm:$0xff] %vm438, %v395
      %445 = vst.msk [vmem:[%s242 + $0x30] sm:$0xff] %vm438, %v400
      %446 = vst.msk [vmem:[%s242 + $0x38] sm:$0xff] %vm438, %v403
      %447 = vst.msk [vmem:[%s242 + $0x40] sm:$0xff] %vm438, %v408
      %448 = vst.msk [vmem:[%s242 + $0x48] sm:$0xff] %vm438, %v411
      %449 = vst.msk [vmem:[%s242 + $0x50] sm:$0xff] %vm438, %v416
      %450 = vst.msk [vmem:[%s242 + $0x58] sm:$0xff] %vm438, %v419
      %451 = vst.msk [vmem:[%s242 + $0x60] sm:$0xff] %vm438, %v424
      %452 = vst.msk [vmem:[%s242 + $0x68] sm:$0xff] %vm438, %v427
      %453 = vst.msk [vmem:[%s242 + $0x70] sm:$0xff] %vm438, %v432
      %454 = vst.msk [vmem:[%s242 + $0x78] sm:$0xff] %vm438, %v435
      %s455 = smul.u32 16, %s19
      %p456 = scmp.lt.s32.totalorder %s18, 1
      %s457 = scalar_select %p456, %s18, 1
      %p458 = scmp.lt.s32.totalorder %s455, 15
      %s459 = scalar_select %p458, %s455, 15
      %s460 = smul.addr %s457, 16
      %s461 = sadd.s32 %s459, %s460
      %s462 = smul.addr %s461, 8
      %s463 = scalar_lea.vmem %s3, %s462
      // Predicated region
      $region33: #{smtl_forward.32} parent=31 // pred_check
        %p464 = pneg %p126
      $region34: #{smtl_forward.32} parent=31 // pred_check_branch
        %466 = sbr.rel (%p464) target = $region36
      $region35: #{smtl_forward.32} parent=31 // pred_region
        %s467 = smul.u32 16, %s19
      $region36: #{smtl_forward.32} parent=31 // pred_fallthru
        _
    $region32: #{smtl_forward.32} parent=5 // pred_fallthru
      _
    %p468 = scmp.le.s32.totalorder 2, %s9
    // Predicated region
    $region37: #{smtl_forward.32} parent=5 // pred_check
      %p469 = pneg %p468
    $region38: #{smtl_forward.32} parent=5 // pred_check_branch
      %471 = sbr.rel (%p469) target = $region40
    $region39: #{smtl_forward.32} parent=5 // pred_region
      %s472 = ssub.s32 %s9, 2
      // Predicated region
      $region41: #{smtl_forward.32} parent=39 // pred_check
        %p473 = pneg %p132
      $region42: #{smtl_forward.32} parent=39 // pred_check_branch
        %475 = sbr.rel (%p473) target = $region44
      $region43: #{smtl_forward.32} parent=39 // pred_region
        %s476 = smul.u32 16, %s21
        %p477 = scmp.lt.s32.totalorder %s20, 1
        %s478 = scalar_select %p477, %s20, 1
        %p479 = scmp.lt.s32.totalorder %s476, 15
        %s480 = scalar_select %p479, %s476, 15
        %s481 = smul.addr %s478, 16
        %s482 = sadd.s32 %s480, %s481
        %s483 = smul.addr %s482, 8
        %s484 = scalar_lea.vmem %s3, %s483
      $region44: #{smtl_forward.32} parent=39 // pred_fallthru
        _
    $region40: #{smtl_forward.32} parent=5 // pred_fallthru
      _
  $region6: #{smtl_forward.32} parent=0 // loop_footer
    %s13 = sadd.s32 1, %s9
  $region7: #{smtl_forward.32} parent=0 // loop_footer_branch
    %8 = sbr.rel target = $region3
  $region8: #{smtl_forward.32} parent=0 // loop_exit
    _

// kernel: smtl_forward.31
$region0: #{smtl_forward.31}
  #allocation0 [shape = 'u32[]', space=smem, size = 0x4, offset = 0x4, fixed_abs, tag = 'smem constant byte address 0x4 - core index']
  #allocation1 [shape = 'u32[144,128]{1,0:T(1,128)}', space=vmem, size = 0x12000, scoped, tag = 'internal scratch']
  %s0 = inlined_call_operand.vmem [shape: f32[2], index: 0, kind: input, shape index: {}]
  %s1 = inlined_call_operand.vmem [shape: f32[512,128], index: 1, kind: input, shape index: {}]
  %s2 = inlined_call_operand.vmem [shape: f32[128,17], index: 2, kind: input, shape index: {}]
  %s3 = inlined_call_operand.vmem [shape: f32[128,17], index: 3, kind: input, shape index: {}]
  %s4 = inlined_call_operand.hbm [shape: f32[512,17], index: 4, kind: output, shape index: {}]
  %s5 = sld [smem:[#allocation0]]
  $region30: #{smtl_forward.31} parent=0
    _
  %s7 = ssub.s32 1, %s5
  %s8 = scalar_select 0, %s7, %s5
  $region1: #{smtl_forward.31} parent=0
    #allocation2 [shape = 'u8[512]{0}', space=smem, size = 0x200, scoped, tag = 'input window, operand 0, single buffered']
    #allocation3 [shape = 's32[1]{0}', space=sflag, size = 0x4, scoped, tag = 'scoped memory for smtl_forward.31']
    #allocation4 [shape = 's32[1]{0}', space=sflag, size = 0x4, scoped, tag = 'scoped memory for smtl_forward.31']
    #allocation5 [shape = 'u8[262144]{0}', space=vmem, size = 0x40000, scoped, tag = 'output window, operand 0, single buffered']
    %9 = vsyncpa [#allocation4], 0
    %10 = vsyncpa [#allocation3], 0
    // Predicated region
    $region2: #{smtl_forward.31} parent=1 // pred_check
      _
    $region3: #{smtl_forward.31} parent=1 // pred_check_branch
      %12 = sbr.rel (0) target = $region5
    $region4: #{smtl_forward.31} parent=1 // pred_region
      %s14 = ssub.s32 16, 16
      %15 = vsyncadd [#allocation4], %s14
      %s17 = sshll.u32 %s0, 4
      %s18 = int_to_ptr.vmem [resolvable:$true] %s17
      %20 = dma.vmem_to_smem %s18, 16, [#allocation2], [#allocation4]
    $region5: #{smtl_forward.31} parent=1 // pred_fallthru
      _
    // Predicated region
    $region6: #{smtl_forward.31} parent=1 // pred_check
      _
    $region7: #{smtl_forward.31} parent=1 // pred_check_branch
      %22 = sbr.rel (0) target = $region9
    $region8: #{smtl_forward.31} parent=1 // pred_region
      _
    $region9: #{smtl_forward.31} parent=1 // pred_fallthru
      _
    // Predicated region
    $region10: #{smtl_forward.31} parent=1 // pred_check
      _
    $region11: #{smtl_forward.31} parent=1 // pred_check_branch
      %24 = sbr.rel (0) target = $region13
    $region12: #{smtl_forward.31} parent=1 // pred_region
      _
    $region13: #{smtl_forward.31} parent=1 // pred_fallthru
      _
    // Predicated region
    $region14: #{smtl_forward.31} parent=1 // pred_check
      _
    $region15: #{smtl_forward.31} parent=1 // pred_check_branch
      %26 = sbr.rel (0) target = $region17
    $region16: #{smtl_forward.31} parent=1 // pred_region
      _
    $region17: #{smtl_forward.31} parent=1 // pred_fallthru
      _
    // Predicated region
    $region18: #{smtl_forward.31} parent=1 // pred_check
      _
    $region19: #{smtl_forward.31} parent=1 // pred_check_branch
      %28 = sbr.rel (0) target = $region21
    $region20: #{smtl_forward.31} parent=1 // pred_region
      %29 = dma.done [#allocation4], 16
    $region21: #{smtl_forward.31} parent=1 // pred_fallthru
      _
    %30 = sfence
    %s31 = sld [smem:[#allocation2]]
    %v32 = vld [vmem:[%s2] sm:$0xff]
    %v33 = vld [vmem:[%s2 + $0x8] sm:$0xff]
    %v34 = vld [vmem:[%s2 + $0x10] sm:$0xff]
    %v35 = vld [vmem:[%s2 + $0x18] sm:$0xff]
    %v36 = vld [vmem:[%s2 + $0x20] sm:$0xff]
    %v37 = vld [vmem:[%s2 + $0x28] sm:$0xff]
    %v38 = vld [vmem:[%s2 + $0x30] sm:$0xff]
    %v39 = vld [vmem:[%s2 + $0x38] sm:$0xff]
    %v40 = vld [vmem:[%s2 + $0x40] sm:$0xff]
    %v41 = vld [vmem:[%s2 + $0x48] sm:$0xff]
    %v42 = vld [vmem:[%s2 + $0x50] sm:$0xff]
    %v43 = vld [vmem:[%s2 + $0x58] sm:$0xff]
    %v44 = vld [vmem:[%s2 + $0x60] sm:$0xff]
    %v45 = vld [vmem:[%s2 + $0x68] sm:$0xff]
    %v46 = vld [vmem:[%s2 + $0x70] sm:$0xff]
    %v47 = vld [vmem:[%s2 + $0x78] sm:$0xff]
    %v48 = vstv %s31
    %v49 = vmul.f32 %v48, %v32
    %v50 = vmul.f32 %v48, %v33
    %v51 = vmul.f32 %v48, %v34
    %v52 = vmul.f32 %v48, %v35
    %v53 = vmul.f32 %v48, %v36
    %v54 = vmul.f32 %v48, %v37
    %v55 = vmul.f32 %v48, %v38
    %v56 = vmul.f32 %v48, %v39
    %v57 = vmul.f32 %v48, %v40
    %v58 = vmul.f32 %v48, %v41
    %v59 = vmul.f32 %v48, %v42
    %v60 = vmul.f32 %v48, %v43
    %v61 = vmul.f32 %v48, %v44
    %v62 = vmul.f32 %v48, %v45
    %v63 = vmul.f32 %v48, %v46
    %v64 = vmul.f32 %v48, %v47
    %s65 = sld [smem:[#allocation2 + $0x1]]
    %v66 = vld [vmem:[%s3] sm:$0xff]
    %v67 = vld [vmem:[%s3 + $0x8] sm:$0xff]
    %v68 = vld [vmem:[%s3 + $0x10] sm:$0xff]
    %v69 = vld [vmem:[%s3 + $0x18] sm:$0xff]
    %v70 = vld [vmem:[%s3 + $0x20] sm:$0xff]
    %v71 = vld [vmem:[%s3 + $0x28] sm:$0xff]
    %v72 = vld [vmem:[%s3 + $0x30] sm:$0xff]
    %v73 = vld [vmem:[%s3 + $0x38] sm:$0xff]
    %v74 = vld [vmem:[%s3 + $0x40] sm:$0xff]
    %v75 = vld [vmem:[%s3 + $0x48] sm:$0xff]
    %v76 = vld [vmem:[%s3 + $0x50] sm:$0xff]
    %v77 = vld [vmem:[%s3 + $0x58] sm:$0xff]
    %v78 = vld [vmem:[%s3 + $0x60] sm:$0xff]
    %v79 = vld [vmem:[%s3 + $0x68] sm:$0xff]
    %v80 = vld [vmem:[%s3 + $0x70] sm:$0xff]
    %v81 = vld [vmem:[%s3 + $0x78] sm:$0xff]
    %v82 = vstv %s65
    %v83 = vmul.f32 %v82, %v66
    %v84 = vmul.f32 %v82, %v67
    %v85 = vmul.f32 %v82, %v68
    %v86 = vmul.f32 %v82, %v69
    %v87 = vmul.f32 %v82, %v70
    %v88 = vmul.f32 %v82, %v71
    %v89 = vmul.f32 %v82, %v72
    %v90 = vmul.f32 %v82, %v73
    %v91 = vmul.f32 %v82, %v74
    %v92 = vmul.f32 %v82, %v75
    %v93 = vmul.f32 %v82, %v76
    %v94 = vmul.f32 %v82, %v77
    %v95 = vmul.f32 %v82, %v78
    %v96 = vmul.f32 %v82, %v79
    %v97 = vmul.f32 %v82, %v80
    %v98 = vmul.f32 %v82, %v81
    %v99 = vadd.f32 %v49, %v83
    %v100 = vadd.f32 %v50, %v84
    %v101 = vadd.f32 %v51, %v85
    %v102 = vadd.f32 %v52, %v86
    %v103 = vadd.f32 %v53, %v87
    %v104 = vadd.f32 %v54, %v88
    %v105 = vadd.f32 %v55, %v89
    %v106 = vadd.f32 %v56, %v90
    %v107 = vadd.f32 %v57, %v91
    %v108 = vadd.f32 %v58, %v92
    %v109 = vadd.f32 %v59, %v93
    %v110 = vadd.f32 %v60, %v94
    %v111 = vadd.f32 %v61, %v95
    %v112 = vadd.f32 %v62, %v96
    %v113 = vadd.f32 %v63, %v97
    %v114 = vadd.f32 %v64, %v98
    %v115 = vld [vmem:[%s1] sm:$0xff]
    %v116 = vld [vmem:[%s1 + $0x8] sm:$0xff]
    %v117 = vld [vmem:[%s1 + $0x10] sm:$0xff]
    %v118 = vld [vmem:[%s1 + $0x18] sm:$0xff]
    %v119 = vld [vmem:[%s1 + $0x20] sm:$0xff]
    %v120 = vld [vmem:[%s1 + $0x28] sm:$0xff]
    %v121 = vld [vmem:[%s1 + $0x30] sm:$0xff]
    %v122 = vld [vmem:[%s1 + $0x38] sm:$0xff]
    %v123 = vld [vmem:[%s1 + $0x40] sm:$0xff]
    %v124 = vld [vmem:[%s1 + $0x48] sm:$0xff]
    %v125 = vld [vmem:[%s1 + $0x50] sm:$0xff]
    %v126 = vld [vmem:[%s1 + $0x58] sm:$0xff]
    %v127 = vld [vmem:[%s1 + $0x60] sm:$0xff]
    %v128 = vld [vmem:[%s1 + $0x68] sm:$0xff]
    %v129 = vld [vmem:[%s1 + $0x70] sm:$0xff]
    %v130 = vld [vmem:[%s1 + $0x78] sm:$0xff]
    %v131 = vld [vmem:[%s1 + $0x80] sm:$0xff]
    %v132 = vld [vmem:[%s1 + $0x88] sm:$0xff]
    %v133 = vld [vmem:[%s1 + $0x90] sm:$0xff]
    %v134 = vld [vmem:[%s1 + $0x98] sm:$0xff]
    %v135 = vld [vmem:[%s1 + $0xa0] sm:$0xff]
    %v136 = vld [vmem:[%s1 + $0xa8] sm:$0xff]
    %v137 = vld [vmem:[%s1 + $0xb0] sm:$0xff]
    %v138 = vld [vmem:[%s1 + $0xb8] sm:$0xff]
    %v139 = vld [vmem:[%s1 + $0xc0] sm:$0xff]
    %v140 = vld [vmem:[%s1 + $0xc8] sm:$0xff]
    %v141 = vld [vmem:[%s1 + $0xd0] sm:$0xff]
    %v142 = vld [vmem:[%s1 + $0xd8] sm:$0xff]
    %v143 = vld [vmem:[%s1 + $0xe0] sm:$0xff]
    %v144 = vld [vmem:[%s1 + $0xe8] sm:$0xff]
    %v145 = vld [vmem:[%s1 + $0xf0] sm:$0xff]
    %v146 = vld [vmem:[%s1 + $0xf8] sm:$0xff]
    %v147 = vld [vmem:[%s1 + $0x100] sm:$0xff]
    %v148 = vld [vmem:[%s1 + $0x108] sm:$0xff]
    %v149 = vld [vmem:[%s1 + $0x110] sm:$0xff]
    %v150 = vld [vmem:[%s1 + $0x118] sm:$0xff]
    %v151 = vld [vmem:[%s1 + $0x120] sm:$0xff]
    %v152 = vld [vmem:[%s1 + $0x128] sm:$0xff]
    %v153 = vld [vmem:[%s1 + $0x130] sm:$0xff]
    %v154 = vld [vmem:[%s1 + $0x138] sm:$0xff]
    %v155 = vld [vmem:[%s1 + $0x140] sm:$0xff]
    %v156 = vld [vmem:[%s1 + $0x148] sm:$0xff]
    %v157 = vld [vmem:[%s1 + $0x150] sm:$0xff]
    %v158 = vld [vmem:[%s1 + $0x158] sm:$0xff]
    %v159 = vld [vmem:[%s1 + $0x160] sm:$0xff]
    %v160 = vld [vmem:[%s1 + $0x168] sm:$0xff]
    %v161 = vld [vmem:[%s1 + $0x170] sm:$0xff]
    %v162 = vld [vmem:[%s1 + $0x178] sm:$0xff]
    %v163 = vld [vmem:[%s1 + $0x180] sm:$0xff]
    %v164 = vld [vmem:[%s1 + $0x188] sm:$0xff]
    %v165 = vld [vmem:[%s1 + $0x190] sm:$0xff]
    %v166 = vld [vmem:[%s1 + $0x198] sm:$0xff]
    %v167 = vld [vmem:[%s1 + $0x1a0] sm:$0xff]
    %v168 = vld [vmem:[%s1 + $0x1a8] sm:$0xff]
    %v169 = vld [vmem:[%s1 + $0x1b0] sm:$0xff]
    %v170 = vld [vmem:[%s1 + $0x1b8] sm:$0xff]
    %v171 = vld [vmem:[%s1 + $0x1c0] sm:$0xff]
    %v172 = vld [vmem:[%s1 + $0x1c8] sm:$0xff]
    %v173 = vld [vmem:[%s1 + $0x1d0] sm:$0xff]
    %v174 = vld [vmem:[%s1 + $0x1d8] sm:$0xff]
    %v175 = vld [vmem:[%s1 + $0x1e0] sm:$0xff]
    %v176 = vld [vmem:[%s1 + $0x1e8] sm:$0xff]
    %v177 = vld [vmem:[%s1 + $0x1f0] sm:$0xff]
    %v178 = vld [vmem:[%s1 + $0x1f8] sm:$0xff]
    %179 = vmatprep.subr.mxu0 0.0
    %180 = vmatpush1.msra.mxu0 %v99
    %181 = vmatprep.subr.mxu0 0.0
    %182 = vmatpush1.msra.mxu0 %v100
    %183 = vmatprep.subr.mxu0 0.0
    %184 = vmatpush1.msra.mxu0 %v101
    %185 = vmatprep.subr.mxu0 0.0
    %186 = vmatpush1.msra.mxu0 %v102
    %187 = vmatprep.subr.mxu0 0.0
    %188 = vmatpush1.msra.mxu0 %v103
    %189 = vmatprep.subr.mxu0 0.0
    %190 = vmatpush1.msra.mxu0 %v104
    %191 = vmatprep.subr.mxu0 0.0
    %192 = vmatpush1.msra.mxu0 %v105
    %193 = vmatprep.subr.mxu0 0.0
    %194 = vmatpush1.msra.mxu0 %v106
    %195 = vmatprep.subr.mxu0 0.0
    %196 = vmatpush1.msra.mxu0 %v107
    %197 = vmatprep.subr.mxu0 0.0
    %198 = vmatpush1.msra.mxu0 %v108
    %199 = vmatprep.subr.mxu0 0.0
    %200 = vmatpush1.msra.mxu0 %v109
    %201 = vmatprep.subr.mxu0 0.0
    %202 = vmatpush1.msra.mxu0 %v110
    %203 = vmatprep.subr.mxu0 0.0
    %204 = vmatpush1.msra.mxu0 %v111
    %205 = vmatprep.subr.mxu0 0.0
    %206 = vmatpush1.msra.mxu0 %v112
    %207 = vmatprep.subr.mxu0 0.0
    %208 = vmatpush1.msra.mxu0 %v113
    %209 = vmatprep.subr.mxu0 0.0
    %210 = vmatpush1.msra.mxu0 %v114
    %211 = vmatprep.subr.mxu0 0.0
    %212 = vmatpush1.msra.mxu0 0.0
    %213 = vmatprep.subr.mxu0 0.0
    %214 = vmatpush1.msra.mxu0 0.0
    %215 = vmatprep.subr.mxu0 0.0
    %216 = vmatpush1.msra.mxu0 0.0
    %217 = vmatprep.subr.mxu0 0.0
    %218 = vmatpush1.msra.mxu0 0.0
    %219 = vmatprep.subr.mxu0 0.0
    %220 = vmatpush1.msra.mxu0 0.0
    %221 = vmatprep.subr.mxu0 0.0
    %222 = vmatpush1.msra.mxu0 0.0
    %223 = vmatprep.subr.mxu0 0.0
    %224 = vmatpush1.msra.mxu0 0.0
    %225 = vmatprep.subr.mxu0 0.0
    %226 = vmatpush1.msra.mxu0 0.0
    %227 = vmatprep.subr.mxu0 0.0
    %228 = vmatpush1.msra.mxu0 0.0
    %229 = vmatprep.subr.mxu0 0.0
    %230 = vmatpush1.msra.mxu0 0.0
    %231 = vmatprep.subr.mxu0 0.0
    %232 = vmatpush1.msra.mxu0 0.0
    %233 = vmatprep.subr.mxu0 0.0
    %234 = vmatpush1.msra.mxu0 0.0
    %235 = vmatprep.subr.mxu0 0.0
    %236 = vmatpush1.msra.mxu0 0.0
    %237 = vmatprep.subr.mxu0 0.0
    %238 = vmatpush1.msra.mxu0 0.0
    %239 = vmatprep.subr.mxu0 0.0
    %240 = vmatpush1.msra.mxu0 0.0
    %241 = vmatprep.subr.mxu0 0.0
    %242 = vmatpush1.msra.mxu0 0.0
    %243 = vmatprep.mubr.f32.mxu0 0.0
    %244 = vmatmul.mubr.f32.gmra.mrb[0].mxu0 %v115
    %v245 = vpop.f32.mrb[0].mxu0
    %v246 = vadd.f32 0.0, %v245
    %v247 = vpop.f32.mrb[0].mxu0
    %248 = vmatprep.mubr.f32.mxu0 0.0
    %249 = vmatmul.mubr.f32.gmra.mrb[0].mxu0 %v116
    %v250 = vpop.f32.mrb[0].mxu0
    %v251 = vadd.f32 0.0, %v250
    %v252 = vpop.f32.mrb[0].mxu0
    %253 = vmatprep.mubr.f32.mxu0 0.0
    %254 = vmatmul.mubr.f32.gmra.mrb[0].mxu0 %v117
    %v255 = vpop.f32.mrb[0].mxu0
    %v256 = vadd.f32 0.0, %v255
    %v257 = vpop.f32.mrb[0].mxu0
    %258 = vmatprep.mubr.f32.mxu0 0.0
    %259 = vmatmul.mubr.f32.gmra.mrb[0].mxu0 %v118
    %v260 = vpop.f32.mrb[0].mxu0
    %v261 = vadd.f32 0.0, %v260
    %v262 = vpop.f32.mrb[0].mxu0
    %263 = vmatprep.mubr.f32.mxu0 0.0
    %264 = vmatmul.mubr.f32.gmra.mrb[0].mxu0 %v119
    %v265 = vpop.f32.mrb[0].mxu0
    %v266 = vadd.f32 0.0, %v265
    %v267 = vpop.f32.mrb[0].mxu0
    %268 = vmatprep.mubr.f32.mxu0 0.0
    %269 = vmatmul.mubr.f32.gmra.mrb[0].mxu0 %v120
    %v270 = vpop.f32.mrb[0].mxu0
    %v271 = vadd.f32 0.0, %v270
    %v272 = vpop.f32.mrb[0].mxu0
    %273 = vmatprep.mubr.f32.mxu0 0.0
    %274 = vmatmul.mubr.f32.gmra.mrb[0].mxu0 %v121
    %v275 = vpop.f32.mrb[0].mxu0
    %v276 = vadd.f32 0.0, %v275
    %v277 = vpop.f32.mrb[0].mxu0
    %278 = vmatprep.mubr.f32.mxu0 0.0
    %279 = vmatmul.mubr.f32.gmra.mrb[0].mxu0 %v122
    %v280 = vpop.f32.mrb[0].mxu0
    %v281 = vadd.f32 0.0, %v280
    %v282 = vpop.f32.mrb[0].mxu0
    %283 = vmatprep.mubr.f32.mxu0 0.0
    %284 = vmatmul.mubr.f32.gmra.mrb[0].mxu0 %v123
    %v285 = vpop.f32.mrb[0].mxu0
    %v286 = vadd.f32 0.0, %v285
    %v287 = vpop.f32.mrb[0].mxu0
    %288 = vmatprep.mubr.f32.mxu0 0.0
    %289 = vmatmul.mubr.f32.gmra.mrb[0].mxu0 %v124
    %v290 = vpop.f32.mrb[0].mxu0
    %v291 = vadd.f32 0.0, %v290
    %v292 = vpop.f32.mrb[0].mxu0
    %293 = vmatprep.mubr.f32.mxu0 0.0
    %294 = vmatmul.mubr.f32.gmra.mrb[0].mxu0 %v125
    %v295 = vpop.f32.mrb[0].mxu0
    %v296 = vadd.f32 0.0, %v295
    %v297 = vpop.f32.mrb[0].mxu0
    %298 = vmatprep.mubr.f32.mxu0 0.0
    %299 = vmatmul.mubr.f32.gmra.mrb[0].mxu0 %v126
    %v300 = vpop.f32.mrb[0].mxu0
    %v301 = vadd.f32 0.0, %v300
    %v302 = vpop.f32.mrb[0].mxu0
    %303 = vmatprep.mubr.f32.mxu0 0.0
    %304 = vmatmul.mubr.f32.gmra.mrb[0].mxu0 %v127
    %v305 = vpop.f32.mrb[0].mxu0
    %v306 = vadd.f32 0.0, %v305
    %v307 = vpop.f32.mrb[0].mxu0
    %308 = vmatprep.mubr.f32.mxu0 0.0
    %309 = vmatmul.mubr.f32.gmra.mrb[0].mxu0 %v128
    %v310 = vpop.f32.mrb[0].mxu0
    %v311 = vadd.f32 0.0, %v310
    %v312 = vpop.f32.mrb[0].mxu0
    %313 = vmatprep.mubr.f32.mxu0 0.0
    %314 = vmatmul.mubr.f32.gmra.mrb[0].mxu0 %v129
    %v315 = vpop.f32.mrb[0].mxu0
    %v316 = vadd.f32 0.0, %v315
    %v317 = vpop.f32.mrb[0].mxu0
    %318 = vmatprep.mubr.f32.mxu0 0.0
    %319 = vmatmul.mubr.f32.gmra.mrb[0].mxu0 %v130
    %v320 = vpop.f32.mrb[0].mxu0
    %v321 = vadd.f32 0.0, %v320
    %v322 = vpop.f32.mrb[0].mxu0
    %323 = vmatprep.mubr.f32.mxu0 0.0
    %324 = vmatmul.mubr.f32.gmra.mrb[0].mxu0 %v131
    %v325 = vpop.f32.mrb[0].mxu0
    %v326 = vadd.f32 0.0, %v325
    %v327 = vpop.f32.mrb[0].mxu0
    %328 = vmatprep.mubr.f32.mxu0 0.0
    %329 = vmatmul.mubr.f32.gmra.mrb[0].mxu0 %v132
    %v330 = vpop.f32.mrb[0].mxu0
    %v331 = vadd.f32 0.0, %v330
    %v332 = vpop.f32.mrb[0].mxu0
    %333 = vmatprep.mubr.f32.mxu0 0.0
    %334 = vmatmul.mubr.f32.gmra.mrb[0].mxu0 %v133
    %v335 = vpop.f32.mrb[0].mxu0
    %v336 = vadd.f32 0.0, %v335
    %v337 = vpop.f32.mrb[0].mxu0
    %338 = vmatprep.mubr.f32.mxu0 0.0
    %339 = vmatmul.mubr.f32.gmra.mrb[0].mxu0 %v134
    %v340 = vpop.f32.mrb[0].mxu0
    %v341 = vadd.f32 0.0, %v340
    %v342 = vpop.f32.mrb[0].mxu0
    %343 = vmatprep.mubr.f32.mxu0 0.0
    %344 = vmatmul.mubr.f32.gmra.mrb[0].mxu0 %v135
    %v345 = vpop.f32.mrb[0].mxu0
    %v346 = vadd.f32 0.0, %v345
    %v347 = vpop.f32.mrb[0].mxu0
    %348 = vmatprep.mubr.f32.mxu0 0.0
    %349 = vmatmul.mubr.f32.gmra.mrb[0].mxu0 %v136
    %v350 = vpop.f32.mrb[0].mxu0
    %v351 = vadd.f32 0.0, %v350
    %v352 = vpop.f32.mrb[0].mxu0
    %353 = vmatprep.mubr.f32.mxu0 0.0
    %354 = vmatmul.mubr.f32.gmra.mrb[0].mxu0 %v137
    %v355 = vpop.f32.mrb[0].mxu0
    %v356 = vadd.f32 0.0, %v355
    %v357 = vpop.f32.mrb[0].mxu0
    %358 = vmatprep.mubr.f32.mxu0 0.0
    %359 = vmatmul.mubr.f32.gmra.mrb[0].mxu0 %v138
    %v360 = vpop.f32.mrb[0].mxu0
    %v361 = vadd.f32 0.0, %v360
    %v362 = vpop.f32.mrb[0].mxu0
    %363 = vmatprep.mubr.f32.mxu0 0.0
    %364 = vmatmul.mubr.f32.gmra.mrb[0].mxu0 %v139
    %v365 = vpop.f32.mrb[0].mxu0
    %v366 = vadd.f32 0.0, %v365
    %v367 = vpop.f32.mrb[0].mxu0
    %368 = vmatprep.mubr.f32.mxu0 0.0
    %369 = vmatmul.mubr.f32.gmra.mrb[0].mxu0 %v140
    %v370 = vpop.f32.mrb[0].mxu0
    %v371 = vadd.f32 0.0, %v370
    %v372 = vpop.f32.mrb[0].mxu0
    %373 = vmatprep.mubr.f32.mxu0 0.0
    %374 = vmatmul.mubr.f32.gmra.mrb[0].mxu0 %v141
    %v375 = vpop.f32.mrb[0].mxu0
    %v376 = vadd.f32 0.0, %v375
    %v377 = vpop.f32.mrb[0].mxu0
    %378 = vmatprep.mubr.f32.mxu0 0.0
    %379 = vmatmul.mubr.f32.gmra.mrb[0].mxu0 %v142
    %v380 = vpop.f32.mrb[0].mxu0
    %v381 = vadd.f32 0.0, %v380
    %v382 = vpop.f32.mrb[0].mxu0
    %383 = vmatprep.mubr.f32.mxu0 0.0
    %384 = vmatmul.mubr.f32.gmra.mrb[0].mxu0 %v143
    %v385 = vpop.f32.mrb[0].mxu0
    %v386 = vadd.f32 0.0, %v385
    %v387 = vpop.f32.mrb[0].mxu0
    %388 = vmatprep.mubr.f32.mxu0 0.0
    %389 = vmatmul.mubr.f32.gmra.mrb[0].mxu0 %v144
    %v390 = vpop.f32.mrb[0].mxu0
    %v391 = vadd.f32 0.0, %v390
    %v392 = vpop.f32.mrb[0].mxu0
    %393 = vmatprep.mubr.f32.mxu0 0.0
    %394 = vmatmul.mubr.f32.gmra.mrb[0].mxu0 %v145
    %v395 = vpop.f32.mrb[0].mxu0
    %v396 = vadd.f32 0.0, %v395
    %v397 = vpop.f32.mrb[0].mxu0
    %398 = vmatprep.mubr.f32.mxu0 0.0
    %399 = vmatmul.mubr.f32.gmra.mrb[0].mxu0 %v146
    %v400 = vpop.f32.mrb[0].mxu0
    %v401 = vadd.f32 0.0, %v400
    %v402 = vpop.f32.mrb[0].mxu0
    %403 = vmatprep.mubr.f32.mxu0 0.0
    %404 = vmatmul.mubr.f32.gmra.mrb[0].mxu0 %v147
    %v405 = vpop.f32.mrb[0].mxu0
    %v406 = vadd.f32 0.0, %v405
    %v407 = vpop.f32.mrb[0].mxu0
    %408 = vmatprep.mubr.f32.mxu0 0.0
    %409 = vmatmul.mubr.f32.gmra.mrb[0].mxu0 %v148
    %v410 = vpop.f32.mrb[0].mxu0
    %v411 = vadd.f32 0.0, %v410
    %v412 = vpop.f32.mrb[0].mxu0
    %413 = vmatprep.mubr.f32.mxu0 0.0
    %414 = vmatmul.mubr.f32.gmra.mrb[0].mxu0 %v149
    %v415 = vpop.f32.mrb[0].mxu0
    %v416 = vadd.f32 0.0, %v415
    %v417 = vpop.f32.mrb[0].mxu0
    %418 = vmatprep.mubr.f32.mxu0 0.0
    %419 = vmatmul.mubr.f32.gmra.mrb[0].mxu0 %v150
    %v420 = vpop.f32.mrb[0].mxu0
    %v421 = vadd.f32 0.0, %v420
    %v422 = vpop.f32.mrb[0].mxu0
    %423 = vmatprep.mubr.f32.mxu0 0.0
    %424 = vmatmul.mubr.f32.gmra.mrb[0].mxu0 %v151
    %v425 = vpop.f32.mrb[0].mxu0
    %v426 = vadd.f32 0.0, %v425
    %v427 = vpop.f32.mrb[0].mxu0
    %428 = vmatprep.mubr.f32.mxu0 0.0
    %429 = vmatmul.mubr.f32.gmra.mrb[0].mxu0 %v152
    %v430 = vpop.f32.mrb[0].mxu0
    %v431 = vadd.f32 0.0, %v430
    %v432 = vpop.f32.mrb[0].mxu0
    %433 = vmatprep.mubr.f32.mxu0 0.0
    %434 = vmatmul.mubr.f32.gmra.mrb[0].mxu0 %v153
    %v435 = vpop.f32.mrb[0].mxu0
    %v436 = vadd.f32 0.0, %v435
    %v437 = vpop.f32.mrb[0].mxu0
    %438 = vmatprep.mubr.f32.mxu0 0.0
    %439 = vmatmul.mubr.f32.gmra.mrb[0].mxu0 %v154
    %v440 = vpop.f32.mrb[0].mxu0
    %v441 = vadd.f32 0.0, %v440
    %v442 = vpop.f32.mrb[0].mxu0
    %443 = vmatprep.mubr.f32.mxu0 0.0
    %444 = vmatmul.mubr.f32.gmra.mrb[0].mxu0 %v155
    %v445 = vpop.f32.mrb[0].mxu0
    %v446 = vadd.f32 0.0, %v445
    %v447 = vpop.f32.mrb[0].mxu0
    %448 = vmatprep.mubr.f32.mxu0 0.0
    %449 = vmatmul.mubr.f32.gmra.mrb[0].mxu0 %v156
    %v450 = vpop.f32.mrb[0].mxu0
    %v451 = vadd.f32 0.0, %v450
    %v452 = vpop.f32.mrb[0].mxu0
    %453 = vmatprep.mubr.f32.mxu0 0.0
    %454 = vmatmul.mubr.f32.gmra.mrb[0].mxu0 %v157
    %v455 = vpop.f32.mrb[0].mxu0
    %v456 = vadd.f32 0.0, %v455
    %v457 = vpop.f32.mrb[0].mxu0
    %458 = vmatprep.mubr.f32.mxu0 0.0
    %459 = vmatmul.mubr.f32.gmra.mrb[0].mxu0 %v158
    %v460 = vpop.f32.mrb[0].mxu0
    %v461 = vadd.f32 0.0, %v460
    %v462 = vpop.f32.mrb[0].mxu0
    %463 = vmatprep.mubr.f32.mxu0 0.0
    %464 = vmatmul.mubr.f32.gmra.mrb[0].mxu0 %v159
    %v465 = vpop.f32.mrb[0].mxu0
    %v466 = vadd.f32 0.0, %v465
    %v467 = vpop.f32.mrb[0].mxu0
    %468 = vmatprep.mubr.f32.mxu0 0.0
    %469 = vmatmul.mubr.f32.gmra.mrb[0].mxu0 %v160
    %v470 = vpop.f32.mrb[0].mxu0
    %v471 = vadd.f32 0.0, %v470
    %v472 = vpop.f32.mrb[0].mxu0
    %473 = vmatprep.mubr.f32.mxu0 0.0
    %474 = vmatmul.mubr.f32.gmra.mrb[0].mxu0 %v161
    %v475 = vpop.f32.mrb[0].mxu0
    %v476 = vadd.f32 0.0, %v475
    %v477 = vpop.f32.mrb[0].mxu0
    %478 = vmatprep.mubr.f32.mxu0 0.0
    %479 = vmatmul.mubr.f32.gmra.mrb[0].mxu0 %v162
    %v480 = vpop.f32.mrb[0].mxu0
    %v481 = vadd.f32 0.0, %v480
    %v482 = vpop.f32.mrb[0].mxu0
    %483 = vmatprep.mubr.f32.mxu0 0.0
    %484 = vmatmul.mubr.f32.gmra.mrb[0].mxu0 %v163
    %v485 = vpop.f32.mrb[0].mxu0
    %v486 = vadd.f32 0.0, %v485
    %v487 = vpop.f32.mrb[0].mxu0
    %488 = vmatprep.mubr.f32.mxu0 0.0
    %489 = vmatmul.mubr.f32.gmra.mrb[0].mxu0 %v164
    %v490 = vpop.f32.mrb[0].mxu0
    %v491 = vadd.f32 0.0, %v490
    %v492 = vpop.f32.mrb[0].mxu0
    %493 = vmatprep.mubr.f32.mxu0 0.0
    %494 = vmatmul.mubr.f32.gmra.mrb[0].mxu0 %v165
    %v495 = vpop.f32.mrb[0].mxu0
    %v496 = vadd.f32 0.0, %v495
    %v497 = vpop.f32.mrb[0].mxu0
    %498 = vmatprep.mubr.f32.mxu0 0.0
    %499 = vmatmul.mubr.f32.gmra.mrb[0].mxu0 %v166
    %v500 = vpop.f32.mrb[0].mxu0
    %v501 = vadd.f32 0.0, %v500
    %v502 = vpop.f32.mrb[0].mxu0
    %503 = vmatprep.mubr.f32.mxu0 0.0
    %504 = vmatmul.mubr.f32.gmra.mrb[0].mxu0 %v167
    %v505 = vpop.f32.mrb[0].mxu0
    %v506 = vadd.f32 0.0, %v505
    %v507 = vpop.f32.mrb[0].mxu0
    %508 = vmatprep.mubr.f32.mxu0 0.0
    %509 = vmatmul.mubr.f32.gmra.mrb[0].mxu0 %v168
    %v510 = vpop.f32.mrb[0].mxu0
    %v511 = vadd.f32 0.0, %v510
    %v512 = vpop.f32.mrb[0].mxu0
    %513 = vmatprep.mubr.f32.mxu0 0.0
    %514 = vmatmul.mubr.f32.gmra.mrb[0].mxu0 %v169
    %v515 = vpop.f32.mrb[0].mxu0
    %v516 = vadd.f32 0.0, %v515
    %v517 = vpop.f32.mrb[0].mxu0
    %518 = vmatprep.mubr.f32.mxu0 0.0
    %519 = vmatmul.mubr.f32.gmra.mrb[0].mxu0 %v170
    %v520 = vpop.f32.mrb[0].mxu0
    %v521 = vadd.f32 0.0, %v520
    %v522 = vpop.f32.mrb[0].mxu0
    %523 = vmatprep.mubr.f32.mxu0 0.0
    %524 = vmatmul.mubr.f32.gmra.mrb[0].mxu0 %v171
    %v525 = vpop.f32.mrb[0].mxu0
    %v526 = vadd.f32 0.0, %v525
    %v527 = vpop.f32.mrb[0].mxu0
    %528 = vmatprep.mubr.f32.mxu0 0.0
    %529 = vmatmul.mubr.f32.gmra.mrb[0].mxu0 %v172
    %v530 = vpop.f32.mrb[0].mxu0
    %v531 = vadd.f32 0.0, %v530
    %v532 = vpop.f32.mrb[0].mxu0
    %533 = vmatprep.mubr.f32.mxu0 0.0
    %534 = vmatmul.mubr.f32.gmra.mrb[0].mxu0 %v173
    %v535 = vpop.f32.mrb[0].mxu0
    %v536 = vadd.f32 0.0, %v535
    %v537 = vpop.f32.mrb[0].mxu0
    %538 = vmatprep.mubr.f32.mxu0 0.0
    %539 = vmatmul.mubr.f32.gmra.mrb[0].mxu0 %v174
    %v540 = vpop.f32.mrb[0].mxu0
    %v541 = vadd.f32 0.0, %v540
    %v542 = vpop.f32.mrb[0].mxu0
    %543 = vmatprep.mubr.f32.mxu0 0.0
    %544 = vmatmul.mubr.f32.gmra.mrb[0].mxu0 %v175
    %v545 = vpop.f32.mrb[0].mxu0
    %v546 = vadd.f32 0.0, %v545
    %v547 = vpop.f32.mrb[0].mxu0
    %548 = vmatprep.mubr.f32.mxu0 0.0
    %549 = vmatmul.mubr.f32.gmra.mrb[0].mxu0 %v176
    %v550 = vpop.f32.mrb[0].mxu0
    %v551 = vadd.f32 0.0, %v550
    %v552 = vpop.f32.mrb[0].mxu0
    %553 = vmatprep.mubr.f32.mxu0 0.0
    %554 = vmatmul.mubr.f32.gmra.mrb[0].mxu0 %v177
    %v555 = vpop.f32.mrb[0].mxu0
    %v556 = vadd.f32 0.0, %v555
    %v557 = vpop.f32.mrb[0].mxu0
    %558 = vmatprep.mubr.f32.mxu0 0.0
    %559 = vmatmul.mubr.f32.gmra.mrb[0].mxu0 %v178
    %v560 = vpop.f32.mrb[0].mxu0
    %v561 = vadd.f32 0.0, %v560
    %v562 = vpop.f32.mrb[0].mxu0
    %563 = vdwg.mxu0
    %vm564 = vcmask 138240
    %565 = vst.msk [vmem:[#allocation5] sm:$0xff] %vm564, %v246
    %566 = vst.msk [vmem:[#allocation5 + $0x8] sm:$0xff] %vm564, %v251
    %567 = vst.msk [vmem:[#allocation5 + $0x10] sm:$0xff] %vm564, %v256
    %568 = vst.msk [vmem:[#allocation5 + $0x18] sm:$0xff] %vm564, %v261
    %569 = vst.msk [vmem:[#allocation5 + $0x20] sm:$0xff] %vm564, %v266
    %570 = vst.msk [vmem:[#allocation5 + $0x28] sm:$0xff] %vm564, %v271
    %571 = vst.msk [vmem:[#allocation5 + $0x30] sm:$0xff] %vm564, %v276
    %572 = vst.msk [vmem:[#allocation5 + $0x38] sm:$0xff] %vm564, %v281
    %573 = vst.msk [vmem:[#allocation5 + $0x40] sm:$0xff] %vm564, %v286
    %574 = vst.msk [vmem:[#allocation5 + $0x48] sm:$0xff] %vm564, %v291
    %575 = vst.msk [vmem:[#allocation5 + $0x50] sm:$0xff] %vm564, %v296
    %576 = vst.msk [vmem:[#allocation5 + $0x58] sm:$0xff] %vm564, %v301
    %577 = vst.msk [vmem:[#allocation5 + $0x60] sm:$0xff] %vm564, %v306
    %578 = vst.msk [vmem:[#allocation5 + $0x68] sm:$0xff] %vm564, %v311
    %579 = vst.msk [vmem:[#allocation5 + $0x70] sm:$0xff] %vm564, %v316
    %580 = vst.msk [vmem:[#allocation5 + $0x78] sm:$0xff] %vm564, %v321
    %581 = vst.msk [vmem:[#allocation5 + $0x80] sm:$0xff] %vm564, %v326
    %582 = vst.msk [vmem:[#allocation5 + $0x88] sm:$0xff] %vm564, %v331
    %583 = vst.msk [vmem:[#allocation5 + $0x90] sm:$0xff] %vm564, %v336
    %584 = vst.msk [vmem:[#allocation5 + $0x98] sm:$0xff] %vm564, %v341
    %585 = vst.msk [vmem:[#allocation5 + $0xa0] sm:$0xff] %vm564, %v346
    %586 = vst.msk [vmem:[#allocation5 + $0xa8] sm:$0xff] %vm564, %v351
    %587 = vst.msk [vmem:[#allocation5 + $0xb0] sm:$0xff] %vm564, %v356
    %588 = vst.msk [vmem:[#allocation5 + $0xb8] sm:$0xff] %vm564, %v361
    %589 = vst.msk [vmem:[#allocation5 + $0xc0] sm:$0xff] %vm564, %v366
    %590 = vst.msk [vmem:[#allocation5 + $0xc8] sm:$0xff] %vm564, %v371
    %591 = vst.msk [vmem:[#allocation5 + $0xd0] sm:$0xff] %vm564, %v376
    %592 = vst.msk [vmem:[#allocation5 + $0xd8] sm:$0xff] %vm564, %v381
    %593 = vst.msk [vmem:[#allocation5 + $0xe0] sm:$0xff] %vm564, %v386
    %594 = vst.msk [vmem:[#allocation5 + $0xe8] sm:$0xff] %vm564, %v391
    %595 = vst.msk [vmem:[#allocation5 + $0xf0] sm:$0xff] %vm564, %v396
    %596 = vst.msk [vmem:[#allocation5 + $0xf8] sm:$0xff] %vm564, %v401
    %597 = vst.msk [vmem:[#allocation5 + $0x100] sm:$0xff] %vm564, %v406
    %598 = vst.msk [vmem:[#allocation5 + $0x108] sm:$0xff] %vm564, %v411
    %599 = vst.msk [vmem:[#allocation5 + $0x110] sm:$0xff] %vm564, %v416
    %600 = vst.msk [vmem:[#allocation5 + $0x118] sm:$0xff] %vm564, %v421
    %601 = vst.msk [vmem:[#allocation5 + $0x120] sm:$0xff] %vm564, %v426
    %602 = vst.msk [vmem:[#allocation5 + $0x128] sm:$0xff] %vm564, %v431
    %603 = vst.msk [vmem:[#allocation5 + $0x130] sm:$0xff] %vm564, %v436
    %604 = vst.msk [vmem:[#allocation5 + $0x138] sm:$0xff] %vm564, %v441
    %605 = vst.msk [vmem:[#allocation5 + $0x140] sm:$0xff] %vm564, %v446
    %606 = vst.msk [vmem:[#allocation5 + $0x148] sm:$0xff] %vm564, %v451
    %607 = vst.msk [vmem:[#allocation5 + $0x150] sm:$0xff] %vm564, %v456
    %608 = vst.msk [vmem:[#allocation5 + $0x158] sm:$0xff] %vm564, %v461
    %609 = vst.msk [vmem:[#allocation5 + $0x160] sm:$0xff] %vm564, %v466
    %610 = vst.msk [vmem:[#allocation5 + $0x168] sm:$0xff] %vm564, %v471
    %611 = vst.msk [vmem:[#allocation5 + $0x170] sm:$0xff] %vm564, %v476
    %612 = vst.msk [vmem:[#allocation5 + $0x178] sm:$0xff] %vm564, %v481
    %613 = vst.msk [vmem:[#allocation5 + $0x180] sm:$0xff] %vm564, %v486
    %614 = vst.msk [vmem:[#allocation5 + $0x188] sm:$0xff] %vm564, %v491
    %615 = vst.msk [vmem:[#allocation5 + $0x190] sm:$0xff] %vm564, %v496
    %616 = vst.msk [vmem:[#allocation5 + $0x198] sm:$0xff] %vm564, %v501
    %617 = vst.msk [vmem:[#allocation5 + $0x1a0] sm:$0xff] %vm564, %v506
    %618 = vst.msk [vmem:[#allocation5 + $0x1a8] sm:$0xff] %vm564, %v511
    %619 = vst.msk [vmem:[#allocation5 + $0x1b0] sm:$0xff] %vm564, %v516
    %620 = vst.msk [vmem:[#allocation5 + $0x1b8] sm:$0xff] %vm564, %v521
    %621 = vst.msk [vmem:[#allocation5 + $0x1c0] sm:$0xff] %vm564, %v526
    %622 = vst.msk [vmem:[#allocation5 + $0x1c8] sm:$0xff] %vm564, %v531
    %623 = vst.msk [vmem:[#allocation5 + $0x1d0] sm:$0xff] %vm564, %v536
    %624 = vst.msk [vmem:[#allocation5 + $0x1d8] sm:$0xff] %vm564, %v541
    %625 = vst.msk [vmem:[#allocation5 + $0x1e0] sm:$0xff] %vm564, %v546
    %626 = vst.msk [vmem:[#allocation5 + $0x1e8] sm:$0xff] %vm564, %v551
    %627 = vst.msk [vmem:[#allocation5 + $0x1f0] sm:$0xff] %vm564, %v556
    %628 = vst.msk [vmem:[#allocation5 + $0x1f8] sm:$0xff] %vm564, %v561
    // Predicated region
    $region22: #{smtl_forward.31} parent=1 // pred_check
      _
    $region23: #{smtl_forward.31} parent=1 // pred_check_branch
      %630 = sbr.rel (0) target = $region25
    $region24: #{smtl_forward.31} parent=1 // pred_region
      %s632 = ssub.s32 8192, 8192
      %633 = vsyncadd [#allocation3], %s632
      %s634 = sshll.u32 [#allocation5], 4
      %s635 = int_to_ptr.vmem [resolvable:$true] %s634
      %640 = dma.vmem_to_hbm [thread:$0]  %s635, 8192, %s4, [#allocation3], 128, 128, 8
    $region25: #{smtl_forward.31} parent=1 // pred_fallthru
      _
    // Predicated region
    $region26: #{smtl_forward.31} parent=1 // pred_check
      _
    $region27: #{smtl_forward.31} parent=1 // pred_check_branch
      %642 = sbr.rel (0) target = $region29
    $region28: #{smtl_forward.31} parent=1 // pred_region
      %643 = dma.done [#allocation3], 8192
    $region29: #{smtl_forward.31} parent=1 // pred_fallthru
      _
    %644 = vsyncpa [#allocation3], 1
    %645 = vsyncpa [#allocation4], 1

// kernel: smtl_forward.33
$region0: #{smtl_forward.33}
  #allocation0 [shape = 'u32[]', space=smem, size = 0x4, offset = 0x4, fixed_abs, tag = 'smem constant byte address 0x4 - core index']
  #allocation1 [shape = 'u32[144,128]{1,0:T(1,128)}', space=vmem, size = 0x12000, scoped, tag = 'internal scratch']
  %s0 = inlined_call_operand.vmem [shape: f32[2], index: 0, kind: input, shape index: {}]
  %s1 = inlined_call_operand.vmem [shape: f32[512,128], index: 1, kind: input, shape index: {}]
  %s2 = inlined_call_operand.vmem [shape: f32[128,1], index: 2, kind: input, shape index: {}]
  %s3 = inlined_call_operand.vmem [shape: f32[128,1], index: 3, kind: input, shape index: {}]
  %s4 = inlined_call_operand.vmem [shape: f32[512,1], index: 4, kind: output, shape index: {}]
  %s5 = sld [smem:[#allocation0]]
  $region30: #{smtl_forward.33} parent=0
    _
  %s7 = ssub.s32 1, %s5
  %s8 = scalar_select 0, %s7, %s5
  $region1: #{smtl_forward.33} parent=0
    #allocation2 [shape = 'u8[512]{0}', space=smem, size = 0x200, scoped, tag = 'input window, operand 0, single buffered']
    #allocation3 [shape = 's32[1]{0}', space=sflag, size = 0x4, scoped, tag = 'scoped memory for smtl_forward.33']
    %9 = vsyncpa [#allocation3], 0
    // Predicated region
    $region2: #{smtl_forward.33} parent=1 // pred_check
      _
    $region3: #{smtl_forward.33} parent=1 // pred_check_branch
      %11 = sbr.rel (0) target = $region5
    $region4: #{smtl_forward.33} parent=1 // pred_region
      %s13 = ssub.s32 16, 16
      %14 = vsyncadd [#allocation3], %s13
      %s16 = sshll.u32 %s0, 4
      %s17 = int_to_ptr.vmem [resolvable:$true] %s16
      %19 = dma.vmem_to_smem %s17, 16, [#allocation2], [#allocation3]
    $region5: #{smtl_forward.33} parent=1 // pred_fallthru
      _
    // Predicated region
    $region6: #{smtl_forward.33} parent=1 // pred_check
      _
    $region7: #{smtl_forward.33} parent=1 // pred_check_branch
      %21 = sbr.rel (0) target = $region9
    $region8: #{smtl_forward.33} parent=1 // pred_region
      _
    $region9: #{smtl_forward.33} parent=1 // pred_fallthru
      _
    // Predicated region
    $region10: #{smtl_forward.33} parent=1 // pred_check
      _
    $region11: #{smtl_forward.33} parent=1 // pred_check_branch
      %23 = sbr.rel (0) target = $region13
    $region12: #{smtl_forward.33} parent=1 // pred_region
      _
    $region13: #{smtl_forward.33} parent=1 // pred_fallthru
      _
    // Predicated region
    $region14: #{smtl_forward.33} parent=1 // pred_check
      _
    $region15: #{smtl_forward.33} parent=1 // pred_check_branch
      %25 = sbr.rel (0) target = $region17
    $region16: #{smtl_forward.33} parent=1 // pred_region
      _
    $region17: #{smtl_forward.33} parent=1 // pred_fallthru
      _
    // Predicated region
    $region18: #{smtl_forward.33} parent=1 // pred_check
      _
    $region19: #{smtl_forward.33} parent=1 // pred_check_branch
      %27 = sbr.rel (0) target = $region21
    $region20: #{smtl_forward.33} parent=1 // pred_region
      %28 = dma.done [#allocation3], 16
    $region21: #{smtl_forward.33} parent=1 // pred_fallthru
      _
    %29 = sfence
    %s30 = sld [smem:[#allocation2]]
    %v31 = vld [vmem:[%s2] sm:$0xff]
    %v32 = vld [vmem:[%s2 + $0x8] sm:$0xff]
    %v33 = vld [vmem:[%s2 + $0x10] sm:$0xff]
    %v34 = vld [vmem:[%s2 + $0x18] sm:$0xff]
    %v35 = vld [vmem:[%s2 + $0x20] sm:$0xff]
    %v36 = vld [vmem:[%s2 + $0x28] sm:$0xff]
    %v37 = vld [vmem:[%s2 + $0x30] sm:$0xff]
    %v38 = vld [vmem:[%s2 + $0x38] sm:$0xff]
    %v39 = vld [vmem:[%s2 + $0x40] sm:$0xff]
    %v40 = vld [vmem:[%s2 + $0x48] sm:$0xff]
    %v41 = vld [vmem:[%s2 + $0x50] sm:$0xff]
    %v42 = vld [vmem:[%s2 + $0x58] sm:$0xff]
    %v43 = vld [vmem:[%s2 + $0x60] sm:$0xff]
    %v44 = vld [vmem:[%s2 + $0x68] sm:$0xff]
    %v45 = vld [vmem:[%s2 + $0x70] sm:$0xff]
    %v46 = vld [vmem:[%s2 + $0x78] sm:$0xff]
    %v47 = vstv %s30
    %v48 = vmul.f32 %v47, %v31
    %v49 = vmul.f32 %v47, %v32
    %v50 = vmul.f32 %v47, %v33
    %v51 = vmul.f32 %v47, %v34
    %v52 = vmul.f32 %v47, %v35
    %v53 = vmul.f32 %v47, %v36
    %v54 = vmul.f32 %v47, %v37
    %v55 = vmul.f32 %v47, %v38
    %v56 = vmul.f32 %v47, %v39
    %v57 = vmul.f32 %v47, %v40
    %v58 = vmul.f32 %v47, %v41
    %v59 = vmul.f32 %v47, %v42
    %v60 = vmul.f32 %v47, %v43
    %v61 = vmul.f32 %v47, %v44
    %v62 = vmul.f32 %v47, %v45
    %v63 = vmul.f32 %v47, %v46
    %s64 = sld [smem:[#allocation2 + $0x1]]
    %v65 = vld [vmem:[%s3] sm:$0xff]
    %v66 = vld [vmem:[%s3 + $0x8] sm:$0xff]
    %v67 = vld [vmem:[%s3 + $0x10] sm:$0xff]
    %v68 = vld [vmem:[%s3 + $0x18] sm:$0xff]
    %v69 = vld [vmem:[%s3 + $0x20] sm:$0xff]
    %v70 = vld [vmem:[%s3 + $0x28] sm:$0xff]
    %v71 = vld [vmem:[%s3 + $0x30] sm:$0xff]
    %v72 = vld [vmem:[%s3 + $0x38] sm:$0xff]
    %v73 = vld [vmem:[%s3 + $0x40] sm:$0xff]
    %v74 = vld [vmem:[%s3 + $0x48] sm:$0xff]
    %v75 = vld [vmem:[%s3 + $0x50] sm:$0xff]
    %v76 = vld [vmem:[%s3 + $0x58] sm:$0xff]
    %v77 = vld [vmem:[%s3 + $0x60] sm:$0xff]
    %v78 = vld [vmem:[%s3 + $0x68] sm:$0xff]
    %v79 = vld [vmem:[%s3 + $0x70] sm:$0xff]
    %v80 = vld [vmem:[%s3 + $0x78] sm:$0xff]
    %v81 = vstv %s64
    %v82 = vmul.f32 %v81, %v65
    %v83 = vmul.f32 %v81, %v66
    %v84 = vmul.f32 %v81, %v67
    %v85 = vmul.f32 %v81, %v68
    %v86 = vmul.f32 %v81, %v69
    %v87 = vmul.f32 %v81, %v70
    %v88 = vmul.f32 %v81, %v71
    %v89 = vmul.f32 %v81, %v72
    %v90 = vmul.f32 %v81, %v73
    %v91 = vmul.f32 %v81, %v74
    %v92 = vmul.f32 %v81, %v75
    %v93 = vmul.f32 %v81, %v76
    %v94 = vmul.f32 %v81, %v77
    %v95 = vmul.f32 %v81, %v78
    %v96 = vmul.f32 %v81, %v79
    %v97 = vmul.f32 %v81, %v80
    %v98 = vadd.f32 %v48, %v82
    %v99 = vadd.f32 %v49, %v83
    %v100 = vadd.f32 %v50, %v84
    %v101 = vadd.f32 %v51, %v85
    %v102 = vadd.f32 %v52, %v86
    %v103 = vadd.f32 %v53, %v87
    %v104 = vadd.f32 %v54, %v88
    %v105 = vadd.f32 %v55, %v89
    %v106 = vadd.f32 %v56, %v90
    %v107 = vadd.f32 %v57, %v91
    %v108 = vadd.f32 %v58, %v92
    %v109 = vadd.f32 %v59, %v93
    %v110 = vadd.f32 %v60, %v94
    %v111 = vadd.f32 %v61, %v95
    %v112 = vadd.f32 %v62, %v96
    %v113 = vadd.f32 %v63, %v97
    %v114 = vld [vmem:[%s1] sm:$0xff]
    %v115 = vld [vmem:[%s1 + $0x8] sm:$0xff]
    %v116 = vld [vmem:[%s1 + $0x10] sm:$0xff]
    %v117 = vld [vmem:[%s1 + $0x18] sm:$0xff]
    %v118 = vld [vmem:[%s1 + $0x20] sm:$0xff]
    %v119 = vld [vmem:[%s1 + $0x28] sm:$0xff]
    %v120 = vld [vmem:[%s1 + $0x30] sm:$0xff]
    %v121 = vld [vmem:[%s1 + $0x38] sm:$0xff]
    %v122 = vld [vmem:[%s1 + $0x40] sm:$0xff]
    %v123 = vld [vmem:[%s1 + $0x48] sm:$0xff]
    %v124 = vld [vmem:[%s1 + $0x50] sm:$0xff]
    %v125 = vld [vmem:[%s1 + $0x58] sm:$0xff]
    %v126 = vld [vmem:[%s1 + $0x60] sm:$0xff]
    %v127 = vld [vmem:[%s1 + $0x68] sm:$0xff]
    %v128 = vld [vmem:[%s1 + $0x70] sm:$0xff]
    %v129 = vld [vmem:[%s1 + $0x78] sm:$0xff]
    %v130 = vld [vmem:[%s1 + $0x80] sm:$0xff]
    %v131 = vld [vmem:[%s1 + $0x88] sm:$0xff]
    %v132 = vld [vmem:[%s1 + $0x90] sm:$0xff]
    %v133 = vld [vmem:[%s1 + $0x98] sm:$0xff]
    %v134 = vld [vmem:[%s1 + $0xa0] sm:$0xff]
    %v135 = vld [vmem:[%s1 + $0xa8] sm:$0xff]
    %v136 = vld [vmem:[%s1 + $0xb0] sm:$0xff]
    %v137 = vld [vmem:[%s1 + $0xb8] sm:$0xff]
    %v138 = vld [vmem:[%s1 + $0xc0] sm:$0xff]
    %v139 = vld [vmem:[%s1 + $0xc8] sm:$0xff]
    %v140 = vld [vmem:[%s1 + $0xd0] sm:$0xff]
    %v141 = vld [vmem:[%s1 + $0xd8] sm:$0xff]
    %v142 = vld [vmem:[%s1 + $0xe0] sm:$0xff]
    %v143 = vld [vmem:[%s1 + $0xe8] sm:$0xff]
    %v144 = vld [vmem:[%s1 + $0xf0] sm:$0xff]
    %v145 = vld [vmem:[%s1 + $0xf8] sm:$0xff]
    %v146 = vld [vmem:[%s1 + $0x100] sm:$0xff]
    %v147 = vld [vmem:[%s1 + $0x108] sm:$0xff]
    %v148 = vld [vmem:[%s1 + $0x110] sm:$0xff]
    %v149 = vld [vmem:[%s1 + $0x118] sm:$0xff]
    %v150 = vld [vmem:[%s1 + $0x120] sm:$0xff]
    %v151 = vld [vmem:[%s1 + $0x128] sm:$0xff]
    %v152 = vld [vmem:[%s1 + $0x130] sm:$0xff]
    %v153 = vld [vmem:[%s1 + $0x138] sm:$0xff]
    %v154 = vld [vmem:[%s1 + $0x140] sm:$0xff]
    %v155 = vld [vmem:[%s1 + $0x148] sm:$0xff]
    %v156 = vld [vmem:[%s1 + $0x150] sm:$0xff]
    %v157 = vld [vmem:[%s1 + $0x158] sm:$0xff]
    %v158 = vld [vmem:[%s1 + $0x160] sm:$0xff]
    %v159 = vld [vmem:[%s1 + $0x168] sm:$0xff]
    %v160 = vld [vmem:[%s1 + $0x170] sm:$0xff]
    %v161 = vld [vmem:[%s1 + $0x178] sm:$0xff]
    %v162 = vld [vmem:[%s1 + $0x180] sm:$0xff]
    %v163 = vld [vmem:[%s1 + $0x188] sm:$0xff]
    %v164 = vld [vmem:[%s1 + $0x190] sm:$0xff]
    %v165 = vld [vmem:[%s1 + $0x198] sm:$0xff]
    %v166 = vld [vmem:[%s1 + $0x1a0] sm:$0xff]
    %v167 = vld [vmem:[%s1 + $0x1a8] sm:$0xff]
    %v168 = vld [vmem:[%s1 + $0x1b0] sm:$0xff]
    %v169 = vld [vmem:[%s1 + $0x1b8] sm:$0xff]
    %v170 = vld [vmem:[%s1 + $0x1c0] sm:$0xff]
    %v171 = vld [vmem:[%s1 + $0x1c8] sm:$0xff]
    %v172 = vld [vmem:[%s1 + $0x1d0] sm:$0xff]
    %v173 = vld [vmem:[%s1 + $0x1d8] sm:$0xff]
    %v174 = vld [vmem:[%s1 + $0x1e0] sm:$0xff]
    %v175 = vld [vmem:[%s1 + $0x1e8] sm:$0xff]
    %v176 = vld [vmem:[%s1 + $0x1f0] sm:$0xff]
    %v177 = vld [vmem:[%s1 + $0x1f8] sm:$0xff]
    %178 = vmatprep.subr.mxu0 0.0
    %179 = vmatpush1.msra.mxu0 %v98
    %180 = vmatprep.subr.mxu0 0.0
    %181 = vmatpush1.msra.mxu0 %v99
    %182 = vmatprep.subr.mxu0 0.0
    %183 = vmatpush1.msra.mxu0 %v100
    %184 = vmatprep.subr.mxu0 0.0
    %185 = vmatpush1.msra.mxu0 %v101
    %186 = vmatprep.subr.mxu0 0.0
    %187 = vmatpush1.msra.mxu0 %v102
    %188 = vmatprep.subr.mxu0 0.0
    %189 = vmatpush1.msra.mxu0 %v103
    %190 = vmatprep.subr.mxu0 0.0
    %191 = vmatpush1.msra.mxu0 %v104
    %192 = vmatprep.subr.mxu0 0.0
    %193 = vmatpush1.msra.mxu0 %v105
    %194 = vmatprep.subr.mxu0 0.0
    %195 = vmatpush1.msra.mxu0 %v106
    %196 = vmatprep.subr.mxu0 0.0
    %197 = vmatpush1.msra.mxu0 %v107
    %198 = vmatprep.subr.mxu0 0.0
    %199 = vmatpush1.msra.mxu0 %v108
    %200 = vmatprep.subr.mxu0 0.0
    %201 = vmatpush1.msra.mxu0 %v109
    %202 = vmatprep.subr.mxu0 0.0
    %203 = vmatpush1.msra.mxu0 %v110
    %204 = vmatprep.subr.mxu0 0.0
    %205 = vmatpush1.msra.mxu0 %v111
    %206 = vmatprep.subr.mxu0 0.0
    %207 = vmatpush1.msra.mxu0 %v112
    %208 = vmatprep.subr.mxu0 0.0
    %209 = vmatpush1.msra.mxu0 %v113
    %210 = vmatprep.subr.mxu0 0.0
    %211 = vmatpush1.msra.mxu0 0.0
    %212 = vmatprep.subr.mxu0 0.0
    %213 = vmatpush1.msra.mxu0 0.0
    %214 = vmatprep.subr.mxu0 0.0
    %215 = vmatpush1.msra.mxu0 0.0
    %216 = vmatprep.subr.mxu0 0.0
    %217 = vmatpush1.msra.mxu0 0.0
    %218 = vmatprep.subr.mxu0 0.0
    %219 = vmatpush1.msra.mxu0 0.0
    %220 = vmatprep.subr.mxu0 0.0
    %221 = vmatpush1.msra.mxu0 0.0
    %222 = vmatprep.subr.mxu0 0.0
    %223 = vmatpush1.msra.mxu0 0.0
    %224 = vmatprep.subr.mxu0 0.0
    %225 = vmatpush1.msra.mxu0 0.0
    %226 = vmatprep.subr.mxu0 0.0
    %227 = vmatpush1.msra.mxu0 0.0
    %228 = vmatprep.subr.mxu0 0.0
    %229 = vmatpush1.msra.mxu0 0.0
    %230 = vmatprep.subr.mxu0 0.0
    %231 = vmatpush1.msra.mxu0 0.0
    %232 = vmatprep.subr.mxu0 0.0
    %233 = vmatpush1.msra.mxu0 0.0
    %234 = vmatprep.subr.mxu0 0.0
    %235 = vmatpush1.msra.mxu0 0.0
    %236 = vmatprep.subr.mxu0 0.0
    %237 = vmatpush1.msra.mxu0 0.0
    %238 = vmatprep.subr.mxu0 0.0
    %239 = vmatpush1.msra.mxu0 0.0
    %240 = vmatprep.subr.mxu0 0.0
    %241 = vmatpush1.msra.mxu0 0.0
    %242 = vmatprep.mubr.f32.mxu0 0.0
    %243 = vmatmul.mubr.f32.gmra.mrb[0].mxu0 %v114
    %v244 = vpop.f32.mrb[0].mxu0
    %v245 = vadd.f32 0.0, %v244
    %v246 = vpop.f32.mrb[0].mxu0
    %247 = vmatprep.mubr.f32.mxu0 0.0
    %248 = vmatmul.mubr.f32.gmra.mrb[0].mxu0 %v115
    %v249 = vpop.f32.mrb[0].mxu0
    %v250 = vadd.f32 0.0, %v249
    %v251 = vpop.f32.mrb[0].mxu0
    %252 = vmatprep.mubr.f32.mxu0 0.0
    %253 = vmatmul.mubr.f32.gmra.mrb[0].mxu0 %v116
    %v254 = vpop.f32.mrb[0].mxu0
    %v255 = vadd.f32 0.0, %v254
    %v256 = vpop.f32.mrb[0].mxu0
    %257 = vmatprep.mubr.f32.mxu0 0.0
    %258 = vmatmul.mubr.f32.gmra.mrb[0].mxu0 %v117
    %v259 = vpop.f32.mrb[0].mxu0
    %v260 = vadd.f32 0.0, %v259
    %v261 = vpop.f32.mrb[0].mxu0
    %262 = vmatprep.mubr.f32.mxu0 0.0
    %263 = vmatmul.mubr.f32.gmra.mrb[0].mxu0 %v118
    %v264 = vpop.f32.mrb[0].mxu0
    %v265 = vadd.f32 0.0, %v264
    %v266 = vpop.f32.mrb[0].mxu0
    %267 = vmatprep.mubr.f32.mxu0 0.0
    %268 = vmatmul.mubr.f32.gmra.mrb[0].mxu0 %v119
    %v269 = vpop.f32.mrb[0].mxu0
    %v270 = vadd.f32 0.0, %v269
    %v271 = vpop.f32.mrb[0].mxu0
    %272 = vmatprep.mubr.f32.mxu0 0.0
    %273 = vmatmul.mubr.f32.gmra.mrb[0].mxu0 %v120
    %v274 = vpop.f32.mrb[0].mxu0
    %v275 = vadd.f32 0.0, %v274
    %v276 = vpop.f32.mrb[0].mxu0
    %277 = vmatprep.mubr.f32.mxu0 0.0
    %278 = vmatmul.mubr.f32.gmra.mrb[0].mxu0 %v121
    %v279 = vpop.f32.mrb[0].mxu0
    %v280 = vadd.f32 0.0, %v279
    %v281 = vpop.f32.mrb[0].mxu0
    %282 = vmatprep.mubr.f32.mxu0 0.0
    %283 = vmatmul.mubr.f32.gmra.mrb[0].mxu0 %v122
    %v284 = vpop.f32.mrb[0].mxu0
    %v285 = vadd.f32 0.0, %v284
    %v286 = vpop.f32.mrb[0].mxu0
    %287 = vmatprep.mubr.f32.mxu0 0.0
    %288 = vmatmul.mubr.f32.gmra.mrb[0].mxu0 %v123
    %v289 = vpop.f32.mrb[0].mxu0
    %v290 = vadd.f32 0.0, %v289
    %v291 = vpop.f32.mrb[0].mxu0
    %292 = vmatprep.mubr.f32.mxu0 0.0
    %293 = vmatmul.mubr.f32.gmra.mrb[0].mxu0 %v124
    %v294 = vpop.f32.mrb[0].mxu0
    %v295 = vadd.f32 0.0, %v294
    %v296 = vpop.f32.mrb[0].mxu0
    %297 = vmatprep.mubr.f32.mxu0 0.0
    %298 = vmatmul.mubr.f32.gmra.mrb[0].mxu0 %v125
    %v299 = vpop.f32.mrb[0].mxu0
    %v300 = vadd.f32 0.0, %v299
    %v301 = vpop.f32.mrb[0].mxu0
    %302 = vmatprep.mubr.f32.mxu0 0.0
    %303 = vmatmul.mubr.f32.gmra.mrb[0].mxu0 %v126
    %v304 = vpop.f32.mrb[0].mxu0
    %v305 = vadd.f32 0.0, %v304
    %v306 = vpop.f32.mrb[0].mxu0
    %307 = vmatprep.mubr.f32.mxu0 0.0
    %308 = vmatmul.mubr.f32.gmra.mrb[0].mxu0 %v127
    %v309 = vpop.f32.mrb[0].mxu0
    %v310 = vadd.f32 0.0, %v309
    %v311 = vpop.f32.mrb[0].mxu0
    %312 = vmatprep.mubr.f32.mxu0 0.0
    %313 = vmatmul.mubr.f32.gmra.mrb[0].mxu0 %v128
    %v314 = vpop.f32.mrb[0].mxu0
    %v315 = vadd.f32 0.0, %v314
    %v316 = vpop.f32.mrb[0].mxu0
    %317 = vmatprep.mubr.f32.mxu0 0.0
    %318 = vmatmul.mubr.f32.gmra.mrb[0].mxu0 %v129
    %v319 = vpop.f32.mrb[0].mxu0
    %v320 = vadd.f32 0.0, %v319
    %v321 = vpop.f32.mrb[0].mxu0
    %322 = vmatprep.mubr.f32.mxu0 0.0
    %323 = vmatmul.mubr.f32.gmra.mrb[0].mxu0 %v130
    %v324 = vpop.f32.mrb[0].mxu0
    %v325 = vadd.f32 0.0, %v324
    %v326 = vpop.f32.mrb[0].mxu0
    %327 = vmatprep.mubr.f32.mxu0 0.0
    %328 = vmatmul.mubr.f32.gmra.mrb[0].mxu0 %v131
    %v329 = vpop.f32.mrb[0].mxu0
    %v330 = vadd.f32 0.0, %v329
    %v331 = vpop.f32.mrb[0].mxu0
    %332 = vmatprep.mubr.f32.mxu0 0.0
    %333 = vmatmul.mubr.f32.gmra.mrb[0].mxu0 %v132
    %v334 = vpop.f32.mrb[0].mxu0
    %v335 = vadd.f32 0.0, %v334
    %v336 = vpop.f32.mrb[0].mxu0
    %337 = vmatprep.mubr.f32.mxu0 0.0
    %338 = vmatmul.mubr.f32.gmra.mrb[0].mxu0 %v133
    %v339 = vpop.f32.mrb[0].mxu0
    %v340 = vadd.f32 0.0, %v339
    %v341 = vpop.f32.mrb[0].mxu0
    %342 = vmatprep.mubr.f32.mxu0 0.0
    %343 = vmatmul.mubr.f32.gmra.mrb[0].mxu0 %v134
    %v344 = vpop.f32.mrb[0].mxu0
    %v345 = vadd.f32 0.0, %v344
    %v346 = vpop.f32.mrb[0].mxu0
    %347 = vmatprep.mubr.f32.mxu0 0.0
    %348 = vmatmul.mubr.f32.gmra.mrb[0].mxu0 %v135
    %v349 = vpop.f32.mrb[0].mxu0
    %v350 = vadd.f32 0.0, %v349
    %v351 = vpop.f32.mrb[0].mxu0
    %352 = vmatprep.mubr.f32.mxu0 0.0
    %353 = vmatmul.mubr.f32.gmra.mrb[0].mxu0 %v136
    %v354 = vpop.f32.mrb[0].mxu0
    %v355 = vadd.f32 0.0, %v354
    %v356 = vpop.f32.mrb[0].mxu0
    %357 = vmatprep.mubr.f32.mxu0 0.0
    %358 = vmatmul.mubr.f32.gmra.mrb[0].mxu0 %v137
    %v359 = vpop.f32.mrb[0].mxu0
    %v360 = vadd.f32 0.0, %v359
    %v361 = vpop.f32.mrb[0].mxu0
    %362 = vmatprep.mubr.f32.mxu0 0.0
    %363 = vmatmul.mubr.f32.gmra.mrb[0].mxu0 %v138
    %v364 = vpop.f32.mrb[0].mxu0
    %v365 = vadd.f32 0.0, %v364
    %v366 = vpop.f32.mrb[0].mxu0
    %367 = vmatprep.mubr.f32.mxu0 0.0
    %368 = vmatmul.mubr.f32.gmra.mrb[0].mxu0 %v139
    %v369 = vpop.f32.mrb[0].mxu0
    %v370 = vadd.f32 0.0, %v369
    %v371 = vpop.f32.mrb[0].mxu0
    %372 = vmatprep.mubr.f32.mxu0 0.0
    %373 = vmatmul.mubr.f32.gmra.mrb[0].mxu0 %v140
    %v374 = vpop.f32.mrb[0].mxu0
    %v375 = vadd.f32 0.0, %v374
    %v376 = vpop.f32.mrb[0].mxu0
    %377 = vmatprep.mubr.f32.mxu0 0.0
    %378 = vmatmul.mubr.f32.gmra.mrb[0].mxu0 %v141
    %v379 = vpop.f32.mrb[0].mxu0
    %v380 = vadd.f32 0.0, %v379
    %v381 = vpop.f32.mrb[0].mxu0
    %382 = vmatprep.mubr.f32.mxu0 0.0
    %383 = vmatmul.mubr.f32.gmra.mrb[0].mxu0 %v142
    %v384 = vpop.f32.mrb[0].mxu0
    %v385 = vadd.f32 0.0, %v384
    %v386 = vpop.f32.mrb[0].mxu0
    %387 = vmatprep.mubr.f32.mxu0 0.0
    %388 = vmatmul.mubr.f32.gmra.mrb[0].mxu0 %v143
    %v389 = vpop.f32.mrb[0].mxu0
    %v390 = vadd.f32 0.0, %v389
    %v391 = vpop.f32.mrb[0].mxu0
    %392 = vmatprep.mubr.f32.mxu0 0.0
    %393 = vmatmul.mubr.f32.gmra.mrb[0].mxu0 %v144
    %v394 = vpop.f32.mrb[0].mxu0
    %v395 = vadd.f32 0.0, %v394
    %v396 = vpop.f32.mrb[0].mxu0
    %397 = vmatprep.mubr.f32.mxu0 0.0
    %398 = vmatmul.mubr.f32.gmra.mrb[0].mxu0 %v145
    %v399 = vpop.f32.mrb[0].mxu0
    %v400 = vadd.f32 0.0, %v399
    %v401 = vpop.f32.mrb[0].mxu0
    %402 = vmatprep.mubr.f32.mxu0 0.0
    %403 = vmatmul.mubr.f32.gmra.mrb[0].mxu0 %v146
    %v404 = vpop.f32.mrb[0].mxu0
    %v405 = vadd.f32 0.0, %v404
    %v406 = vpop.f32.mrb[0].mxu0
    %407 = vmatprep.mubr.f32.mxu0 0.0
    %408 = vmatmul.mubr.f32.gmra.mrb[0].mxu0 %v147
    %v409 = vpop.f32.mrb[0].mxu0
    %v410 = vadd.f32 0.0, %v409
    %v411 = vpop.f32.mrb[0].mxu0
    %412 = vmatprep.mubr.f32.mxu0 0.0
    %413 = vmatmul.mubr.f32.gmra.mrb[0].mxu0 %v148
    %v414 = vpop.f32.mrb[0].mxu0
    %v415 = vadd.f32 0.0, %v414
    %v416 = vpop.f32.mrb[0].mxu0
    %417 = vmatprep.mubr.f32.mxu0 0.0
    %418 = vmatmul.mubr.f32.gmra.mrb[0].mxu0 %v149
    %v419 = vpop.f32.mrb[0].mxu0
    %v420 = vadd.f32 0.0, %v419
    %v421 = vpop.f32.mrb[0].mxu0
    %422 = vmatprep.mubr.f32.mxu0 0.0
    %423 = vmatmul.mubr.f32.gmra.mrb[0].mxu0 %v150
    %v424 = vpop.f32.mrb[0].mxu0
    %v425 = vadd.f32 0.0, %v424
    %v426 = vpop.f32.mrb[0].mxu0
    %427 = vmatprep.mubr.f32.mxu0 0.0
    %428 = vmatmul.mubr.f32.gmra.mrb[0].mxu0 %v151
    %v429 = vpop.f32.mrb[0].mxu0
    %v430 = vadd.f32 0.0, %v429
    %v431 = vpop.f32.mrb[0].mxu0
    %432 = vmatprep.mubr.f32.mxu0 0.0
    %433 = vmatmul.mubr.f32.gmra.mrb[0].mxu0 %v152
    %v434 = vpop.f32.mrb[0].mxu0
    %v435 = vadd.f32 0.0, %v434
    %v436 = vpop.f32.mrb[0].mxu0
    %437 = vmatprep.mubr.f32.mxu0 0.0
    %438 = vmatmul.mubr.f32.gmra.mrb[0].mxu0 %v153
    %v439 = vpop.f32.mrb[0].mxu0
    %v440 = vadd.f32 0.0, %v439
    %v441 = vpop.f32.mrb[0].mxu0
    %442 = vmatprep.mubr.f32.mxu0 0.0
    %443 = vmatmul.mubr.f32.gmra.mrb[0].mxu0 %v154
    %v444 = vpop.f32.mrb[0].mxu0
    %v445 = vadd.f32 0.0, %v444
    %v446 = vpop.f32.mrb[0].mxu0
    %447 = vmatprep.mubr.f32.mxu0 0.0
    %448 = vmatmul.mubr.f32.gmra.mrb[0].mxu0 %v155
    %v449 = vpop.f32.mrb[0].mxu0
    %v450 = vadd.f32 0.0, %v449
    %v451 = vpop.f32.mrb[0].mxu0
    %452 = vmatprep.mubr.f32.mxu0 0.0
    %453 = vmatmul.mubr.f32.gmra.mrb[0].mxu0 %v156
    %v454 = vpop.f32.mrb[0].mxu0
    %v455 = vadd.f32 0.0, %v454
    %v456 = vpop.f32.mrb[0].mxu0
    %457 = vmatprep.mubr.f32.mxu0 0.0
    %458 = vmatmul.mubr.f32.gmra.mrb[0].mxu0 %v157
    %v459 = vpop.f32.mrb[0].mxu0
    %v460 = vadd.f32 0.0, %v459
    %v461 = vpop.f32.mrb[0].mxu0
    %462 = vmatprep.mubr.f32.mxu0 0.0
    %463 = vmatmul.mubr.f32.gmra.mrb[0].mxu0 %v158
    %v464 = vpop.f32.mrb[0].mxu0
    %v465 = vadd.f32 0.0, %v464
    %v466 = vpop.f32.mrb[0].mxu0
    %467 = vmatprep.mubr.f32.mxu0 0.0
    %468 = vmatmul.mubr.f32.gmra.mrb[0].mxu0 %v159
    %v469 = vpop.f32.mrb[0].mxu0
    %v470 = vadd.f32 0.0, %v469
    %v471 = vpop.f32.mrb[0].mxu0
    %472 = vmatprep.mubr.f32.mxu0 0.0
    %473 = vmatmul.mubr.f32.gmra.mrb[0].mxu0 %v160
    %v474 = vpop.f32.mrb[0].mxu0
    %v475 = vadd.f32 0.0, %v474
    %v476 = vpop.f32.mrb[0].mxu0
    %477 = vmatprep.mubr.f32.mxu0 0.0
    %478 = vmatmul.mubr.f32.gmra.mrb[0].mxu0 %v161
    %v479 = vpop.f32.mrb[0].mxu0
    %v480 = vadd.f32 0.0, %v479
    %v481 = vpop.f32.mrb[0].mxu0
    %482 = vmatprep.mubr.f32.mxu0 0.0
    %483 = vmatmul.mubr.f32.gmra.mrb[0].mxu0 %v162
    %v484 = vpop.f32.mrb[0].mxu0
    %v485 = vadd.f32 0.0, %v484
    %v486 = vpop.f32.mrb[0].mxu0
    %487 = vmatprep.mubr.f32.mxu0 0.0
    %488 = vmatmul.mubr.f32.gmra.mrb[0].mxu0 %v163
    %v489 = vpop.f32.mrb[0].mxu0
    %v490 = vadd.f32 0.0, %v489
    %v491 = vpop.f32.mrb[0].mxu0
    %492 = vmatprep.mubr.f32.mxu0 0.0
    %493 = vmatmul.mubr.f32.gmra.mrb[0].mxu0 %v164
    %v494 = vpop.f32.mrb[0].mxu0
    %v495 = vadd.f32 0.0, %v494
    %v496 = vpop.f32.mrb[0].mxu0
    %497 = vmatprep.mubr.f32.mxu0 0.0
    %498 = vmatmul.mubr.f32.gmra.mrb[0].mxu0 %v165
    %v499 = vpop.f32.mrb[0].mxu0
    %v500 = vadd.f32 0.0, %v499
    %v501 = vpop.f32.mrb[0].mxu0
    %502 = vmatprep.mubr.f32.mxu0 0.0
    %503 = vmatmul.mubr.f32.gmra.mrb[0].mxu0 %v166
    %v504 = vpop.f32.mrb[0].mxu0
    %v505 = vadd.f32 0.0, %v504
    %v506 = vpop.f32.mrb[0].mxu0
    %507 = vmatprep.mubr.f32.mxu0 0.0
    %508 = vmatmul.mubr.f32.gmra.mrb[0].mxu0 %v167
    %v509 = vpop.f32.mrb[0].mxu0
    %v510 = vadd.f32 0.0, %v509
    %v511 = vpop.f32.mrb[0].mxu0
    %512 = vmatprep.mubr.f32.mxu0 0.0
    %513 = vmatmul.mubr.f32.gmra.mrb[0].mxu0 %v168
    %v514 = vpop.f32.mrb[0].mxu0
    %v515 = vadd.f32 0.0, %v514
    %v516 = vpop.f32.mrb[0].mxu0
    %517 = vmatprep.mubr.f32.mxu0 0.0
    %518 = vmatmul.mubr.f32.gmra.mrb[0].mxu0 %v169
    %v519 = vpop.f32.mrb[0].mxu0
    %v520 = vadd.f32 0.0, %v519
    %v521 = vpop.f32.mrb[0].mxu0
    %522 = vmatprep.mubr.f32.mxu0 0.0
    %523 = vmatmul.mubr.f32.gmra.mrb[0].mxu0 %v170
    %v524 = vpop.f32.mrb[0].mxu0
    %v525 = vadd.f32 0.0, %v524
    %v526 = vpop.f32.mrb[0].mxu0
    %527 = vmatprep.mubr.f32.mxu0 0.0
    %528 = vmatmul.mubr.f32.gmra.mrb[0].mxu0 %v171
    %v529 = vpop.f32.mrb[0].mxu0
    %v530 = vadd.f32 0.0, %v529
    %v531 = vpop.f32.mrb[0].mxu0
    %532 = vmatprep.mubr.f32.mxu0 0.0
    %533 = vmatmul.mubr.f32.gmra.mrb[0].mxu0 %v172
    %v534 = vpop.f32.mrb[0].mxu0
    %v535 = vadd.f32 0.0, %v534
    %v536 = vpop.f32.mrb[0].mxu0
    %537 = vmatprep.mubr.f32.mxu0 0.0
    %538 = vmatmul.mubr.f32.gmra.mrb[0].mxu0 %v173
    %v539 = vpop.f32.mrb[0].mxu0
    %v540 = vadd.f32 0.0, %v539
    %v541 = vpop.f32.mrb[0].mxu0
    %542 = vmatprep.mubr.f32.mxu0 0.0
    %543 = vmatmul.mubr.f32.gmra.mrb[0].mxu0 %v174
    %v544 = vpop.f32.mrb[0].mxu0
    %v545 = vadd.f32 0.0, %v544
    %v546 = vpop.f32.mrb[0].mxu0
    %547 = vmatprep.mubr.f32.mxu0 0.0
    %548 = vmatmul.mubr.f32.gmra.mrb[0].mxu0 %v175
    %v549 = vpop.f32.mrb[0].mxu0
    %v550 = vadd.f32 0.0, %v549
    %v551 = vpop.f32.mrb[0].mxu0
    %552 = vmatprep.mubr.f32.mxu0 0.0
    %553 = vmatmul.mubr.f32.gmra.mrb[0].mxu0 %v176
    %v554 = vpop.f32.mrb[0].mxu0
    %v555 = vadd.f32 0.0, %v554
    %v556 = vpop.f32.mrb[0].mxu0
    %557 = vmatprep.mubr.f32.mxu0 0.0
    %558 = vmatmul.mubr.f32.gmra.mrb[0].mxu0 %v177
    %v559 = vpop.f32.mrb[0].mxu0
    %v560 = vadd.f32 0.0, %v559
    %v561 = vpop.f32.mrb[0].mxu0
    %562 = vdwg.mxu0
    %vm563 = vcmask 7168
    %564 = vst.msk [vmem:[%s4] sm:$0xff] %vm563, %v245
    %565 = vst.msk [vmem:[%s4 + $0x8] sm:$0xff] %vm563, %v250
    %566 = vst.msk [vmem:[%s4 + $0x10] sm:$0xff] %vm563, %v255
    %567 = vst.msk [vmem:[%s4 + $0x18] sm:$0xff] %vm563, %v260
    %568 = vst.msk [vmem:[%s4 + $0x20] sm:$0xff] %vm563, %v265
    %569 = vst.msk [vmem:[%s4 + $0x28] sm:$0xff] %vm563, %v270
    %570 = vst.msk [vmem:[%s4 + $0x30] sm:$0xff] %vm563, %v275
    %571 = vst.msk [vmem:[%s4 + $0x38] sm:$0xff] %vm563, %v280
    %572 = vst.msk [vmem:[%s4 + $0x40] sm:$0xff] %vm563, %v285
    %573 = vst.msk [vmem:[%s4 + $0x48] sm:$0xff] %vm563, %v290
    %574 = vst.msk [vmem:[%s4 + $0x50] sm:$0xff] %vm563, %v295
    %575 = vst.msk [vmem:[%s4 + $0x58] sm:$0xff] %vm563, %v300
    %576 = vst.msk [vmem:[%s4 + $0x60] sm:$0xff] %vm563, %v305
    %577 = vst.msk [vmem:[%s4 + $0x68] sm:$0xff] %vm563, %v310
    %578 = vst.msk [vmem:[%s4 + $0x70] sm:$0xff] %vm563, %v315
    %579 = vst.msk [vmem:[%s4 + $0x78] sm:$0xff] %vm563, %v320
    %580 = vst.msk [vmem:[%s4 + $0x80] sm:$0xff] %vm563, %v325
    %581 = vst.msk [vmem:[%s4 + $0x88] sm:$0xff] %vm563, %v330
    %582 = vst.msk [vmem:[%s4 + $0x90] sm:$0xff] %vm563, %v335
    %583 = vst.msk [vmem:[%s4 + $0x98] sm:$0xff] %vm563, %v340
    %584 = vst.msk [vmem:[%s4 + $0xa0] sm:$0xff] %vm563, %v345
    %585 = vst.msk [vmem:[%s4 + $0xa8] sm:$0xff] %vm563, %v350
    %586 = vst.msk [vmem:[%s4 + $0xb0] sm:$0xff] %vm563, %v355
    %587 = vst.msk [vmem:[%s4 + $0xb8] sm:$0xff] %vm563, %v360
    %588 = vst.msk [vmem:[%s4 + $0xc0] sm:$0xff] %vm563, %v365
    %589 = vst.msk [vmem:[%s4 + $0xc8] sm:$0xff] %vm563, %v370
    %590 = vst.msk [vmem:[%s4 + $0xd0] sm:$0xff] %vm563, %v375
    %591 = vst.msk [vmem:[%s4 + $0xd8] sm:$0xff] %vm563, %v380
    %592 = vst.msk [vmem:[%s4 + $0xe0] sm:$0xff] %vm563, %v385
    %593 = vst.msk [vmem:[%s4 + $0xe8] sm:$0xff] %vm563, %v390
    %594 = vst.msk [vmem:[%s4 + $0xf0] sm:$0xff] %vm563, %v395
    %595 = vst.msk [vmem:[%s4 + $0xf8] sm:$0xff] %vm563, %v400
    %596 = vst.msk [vmem:[%s4 + $0x100] sm:$0xff] %vm563, %v405
    %597 = vst.msk [vmem:[%s4 + $0x108] sm:$0xff] %vm563, %v410
    %598 = vst.msk [vmem:[%s4 + $0x110] sm:$0xff] %vm563, %v415
    %599 = vst.msk [vmem:[%s4 + $0x118] sm:$0xff] %vm563, %v420
    %600 = vst.msk [vmem:[%s4 + $0x120] sm:$0xff] %vm563, %v425
    %601 = vst.msk [vmem:[%s4 + $0x128] sm:$0xff] %vm563, %v430
    %602 = vst.msk [vmem:[%s4 + $0x130] sm:$0xff] %vm563, %v435
    %603 = vst.msk [vmem:[%s4 + $0x138] sm:$0xff] %vm563, %v440
    %604 = vst.msk [vmem:[%s4 + $0x140] sm:$0xff] %vm563, %v445
    %605 = vst.msk [vmem:[%s4 + $0x148] sm:$0xff] %vm563, %v450
    %606 = vst.msk [vmem:[%s4 + $0x150] sm:$0xff] %vm563, %v455
    %607 = vst.msk [vmem:[%s4 + $0x158] sm:$0xff] %vm563, %v460
    %608 = vst.msk [vmem:[%s4 + $0x160] sm:$0xff] %vm563, %v465
    %609 = vst.msk [vmem:[%s4 + $0x168] sm:$0xff] %vm563, %v470
    %610 = vst.msk [vmem:[%s4 + $0x170] sm:$0xff] %vm563, %v475
    %611 = vst.msk [vmem:[%s4 + $0x178] sm:$0xff] %vm563, %v480
    %612 = vst.msk [vmem:[%s4 + $0x180] sm:$0xff] %vm563, %v485
    %613 = vst.msk [vmem:[%s4 + $0x188] sm:$0xff] %vm563, %v490
    %614 = vst.msk [vmem:[%s4 + $0x190] sm:$0xff] %vm563, %v495
    %615 = vst.msk [vmem:[%s4 + $0x198] sm:$0xff] %vm563, %v500
    %616 = vst.msk [vmem:[%s4 + $0x1a0] sm:$0xff] %vm563, %v505
    %617 = vst.msk [vmem:[%s4 + $0x1a8] sm:$0xff] %vm563, %v510
    %618 = vst.msk [vmem:[%s4 + $0x1b0] sm:$0xff] %vm563, %v515
    %619 = vst.msk [vmem:[%s4 + $0x1b8] sm:$0xff] %vm563, %v520
    %620 = vst.msk [vmem:[%s4 + $0x1c0] sm:$0xff] %vm563, %v525
    %621 = vst.msk [vmem:[%s4 + $0x1c8] sm:$0xff] %vm563, %v530
    %622 = vst.msk [vmem:[%s4 + $0x1d0] sm:$0xff] %vm563, %v535
    %623 = vst.msk [vmem:[%s4 + $0x1d8] sm:$0xff] %vm563, %v540
    %624 = vst.msk [vmem:[%s4 + $0x1e0] sm:$0xff] %vm563, %v545
    %625 = vst.msk [vmem:[%s4 + $0x1e8] sm:$0xff] %vm563, %v550
    %626 = vst.msk [vmem:[%s4 + $0x1f0] sm:$0xff] %vm563, %v555
    %627 = vst.msk [vmem:[%s4 + $0x1f8] sm:$0xff] %vm563, %v560
    // Predicated region
    $region22: #{smtl_forward.33} parent=1 // pred_check
      _
    $region23: #{smtl_forward.33} parent=1 // pred_check_branch
      %629 = sbr.rel (0) target = $region25
    $region24: #{smtl_forward.33} parent=1 // pred_region
      _
    $region25: #{smtl_forward.33} parent=1 // pred_fallthru
      _
    // Predicated region
    $region26: #{smtl_forward.33} parent=1 // pred_check
      _
    $region27: #{smtl_forward.33} parent=1 // pred_check_branch
      %631 = sbr.rel (0) target = $region29
    $region28: #{smtl_forward.33} parent=1 // pred_region
      _
    $region29: #{smtl_forward.33} parent=1 // pred_fallthru
      _
    %632 = vsyncpa [#allocation3], 1

</llo_original>
